<compile_context>
chip_gen: v7x
topology: tpu7x:2x2x1
jax: 0.10.0
libtpu: 0.0.40
codegen_flags: <defaults>
</compile_context>

<pallas_src>
import numpy as np
import jax
import jax.numpy as jnp
from jax.experimental import pallas as pl
from jax.experimental.pallas import tpu as pltpu

LRELU_SLOPE = 0.2
BN_EPS = 1e-5
KSIZE = 4
STRIDE = 2
KK = KSIZE * KSIZE


# ------------------------------- Pallas kernel ------------------------------ #

def _make_kernel(n_batch):
    """Build the fused 4-layer kernel for a static batch size."""

    def kernel(p1_ref, w1_ref, b1_ref,
               s2_ref, w2_ref, gm2_ref, bt2_ref,
               s3_ref, w3_ref, gm3_ref, bt3_ref,
               w4_ref, b4_ref, bsel_ref,
               o_ref):
        f32 = jnp.float32

        def lrelu(v):
            return jnp.where(v > 0, v, LRELU_SLOPE * v)

        def conv_taps(patches, w_ref, c_in, q):
            # patches: (n_batch*c_in, KK*q) -- taps fused on the lane axis.
            # Per-tap accumulation; never materializes a (KK*c_in, q) patch
            # matrix (no sublane concat / relayout).  Returns (n*c_out, q).
            outs = []
            for b in range(n_batch):
                gb = patches[b * c_in:(b + 1) * c_in, :]       # aligned sublane slice
                zb = jnp.dot(w_ref[0], gb[:, 0:q], preferred_element_type=f32)
                for t in range(1, KK):
                    zb = zb + jnp.dot(w_ref[t], gb[:, t * q:(t + 1) * q],
                                      preferred_element_type=f32)
                outs.append(zb)
            return jnp.concatenate(outs, axis=0)               # 8-aligned blocks

        def bn_lrelu(z, c, gm_ref, bt_ref):
            # Training-mode BatchNorm over (batch, spatial) per channel.
            # Conv bias omitted upstream: mean subtraction cancels it exactly.
            q = z.shape[1]
            s1 = jnp.sum(z, axis=1, keepdims=True)             # (n*c, 1)
            s2 = jnp.sum(z * z, axis=1, keepdims=True)         # one-pass stats
            cs1, cs2 = s1[0:c], s2[0:c]
            for b in range(1, n_batch):
                cs1 = cs1 + s1[b * c:(b + 1) * c]
                cs2 = cs2 + s2[b * c:(b + 1) * c]
            inv_cnt = 1.0 / (n_batch * q)
            mean = cs1 * inv_cnt
            var = jnp.maximum(cs2 * inv_cnt - mean * mean, 0.0)   # clamp cancellation
            inv_std = jax.lax.rsqrt(var + BN_EPS)
            mean_f = jnp.concatenate([mean] * n_batch, axis=0)    # tile over batch
            istd_f = jnp.concatenate([inv_std] * n_batch, axis=0)
            return lrelu((z - mean_f) * istd_f * gm_ref[...] + bt_ref[...])

        # ---- layer 1: conv(4x4,s2,p1) + bias + LeakyReLU -------------------- #
        c1 = w1_ref.shape[0]
        k1 = w1_ref.shape[1]                                   # kk * c_in (=48)
        p1 = p1_ref[...]                                       # (n*48, 256)
        y1s = [jnp.dot(w1_ref[...], p1[b * k1:(b + 1) * k1, :],
                       preferred_element_type=f32) for b in range(n_batch)]
        y = lrelu(jnp.concatenate(y1s, axis=0) + b1_ref[...])  # (n*c1, 256)

        # ---- layer 2: conv + BN(train) + LeakyReLU -------------------------- #
        c2 = w2_ref.shape[1]
        q2 = s2_ref.shape[1] // KK
        # One lane-dense selection matmul (all 16 taps fused), int8 -> f32.
        p2 = jnp.dot(y, s2_ref[...].astype(f32), preferred_element_type=f32)
        y = bn_lrelu(conv_taps(p2, w2_ref, c1, q2), c2, gm2_ref, bt2_ref)

        # ---- layer 3: conv + BN(train) + LeakyReLU -------------------------- #
        c3 = w3_ref.shape[1]
        q3 = s3_ref.shape[1] // KK
        p3 = jnp.dot(y, s3_ref[...].astype(f32), preferred_element_type=f32)
        y = bn_lrelu(conv_taps(p3, w3_ref, c2, q3), c3, gm3_ref, bt3_ref)

        # ---- layer 4: conv(4x4,s2,p0) on a 4x4 input == full dot product ---- #
        prod = y * w4_ref[...]                                 # (n*c3, 16)
        per_batch = jnp.dot(bsel_ref[...], prod, preferred_element_type=f32)  # (n,16)
        z4 = jnp.sum(per_batch, axis=1, keepdims=True) + b4_ref[...]          # (n,1)
        o_ref[...] = jax.nn.sigmoid(z4)

    return kernel


# ------------------------------ host-side helpers --------------------------- #

def _vmem_spec(shape):
    # Whole array as a single VMEM block (gridless call).
    return pl.BlockSpec(shape, lambda: (0,) * len(shape))


def _conv_out(size, k, stride, pad):
    return (size + 2 * pad - k) // stride + 1


def _w_mat(w):
    """PyTorch OIHW weight -> (C_out, k*k*C_in), column order (tap, c_in)."""
    cout, cin, kh, kw = w.shape
    return jnp.asarray(w).transpose(0, 2, 3, 1).reshape(cout, kh * kw * cin)


def _w_taps(w):
    """PyTorch OIHW weight -> (k*k, C_out, C_in) per-tap matrices."""
    cout, cin, kh, kw = w.shape
    return jnp.asarray(w).transpose(2, 3, 0, 1).reshape(kh * kw, cout, cin)


def _layer1_patches(x, k, stride, pad):
    """(N,C,H,W) -> (N*k*k*C, Ho*Wo); rows (n, tap, c_in), cols (oh, ow)."""
    n, c, h, w = x.shape
    xp = jnp.pad(x, ((0, 0), (0, 0), (pad, pad), (pad, pad)))
    hp, wp = h + 2 * pad, w + 2 * pad
    ho, wo = _conv_out(h, k, stride, pad), _conv_out(w, k, stride, pad)
    ih = np.arange(ho)[:, None] * stride + np.arange(k)[None, :]      # (ho, k)
    iw = np.arange(wo)[:, None] * stride + np.arange(k)[None, :]      # (wo, k)
    flat = ih[:, None, :, None] * wp + iw[None, :, None, :]           # (ho,wo,k,k)
    flat = jnp.asarray(flat.reshape(ho * wo, k * k))
    g = xp.reshape(n, c, hp * wp)[:, :, flat]                         # (n,c,M,kk)
    p = g.transpose(0, 3, 1, 2).reshape(n * k * k * c, ho * wo)
    return p, ho, wo


def _sel_matrix(h, w, k, stride, pad):
    """Batch-independent int8 0/1 selection with all taps fused on columns.

    S[ih*w + iw, t*Q + oh*Wo + ow] = 1 when input pixel (ih, iw) feeds kernel
    tap t at output (oh, ow); columns hit by zero padding stay all-zero.
    """
    ho, wo = _conv_out(h, k, stride, pad), _conv_out(w, k, stride, pad)
    q = ho * wo
    s = np.zeros((h * w, k * k * q), np.int8)
    for i in range(k):
        for j in range(k):
            t = i * k + j
            for oh in range(ho):
                ih = oh * stride + i - pad
                if ih < 0 or ih >= h:
                    continue
                for ow_ in range(wo):
                    iw = ow_ * stride + j - pad
                    if iw < 0 or iw >= w:
                        continue
                    s[ih * w + iw, t * q + oh * wo + ow_] = 1
    return jnp.asarray(s), ho, wo


def discriminator_forward(x, params):
    f32 = jnp.float32
    x = x.astype(f32)
    n = x.shape[0]
    c1 = params["w1"].shape[0]
    c2 = params["w2"].shape[0]
    c3 = params["w3"].shape[0]

    # -------- one-time host-side layout prep (all tiny, static-shape) ------- #
    p1, h1, w1_ = _layer1_patches(x, KSIZE, STRIDE, 1)        # (n*48, 256) f32
    sel2, h2, w2_ = _sel_matrix(h1, w1_, KSIZE, STRIDE, 1)    # (256, 1024) int8
    sel3, h3, w3_ = _sel_matrix(h2, w2_, KSIZE, STRIDE, 1)    # (64, 256) int8
    h4, w4_ = _conv_out(h3, KSIZE, STRIDE, 0), _conv_out(w3_, KSIZE, STRIDE, 0)
    # Layer-4 shortcut assumes the last conv sees a 4x4 input (32x32 images);
    # a different input resolution would need a sel4 like the other layers.
    assert (h3, w3_) == (KSIZE, KSIZE) and (h4, w4_) == (1, 1)

    def tile_col(v, reps):
        return jnp.tile(jnp.asarray(v, f32).reshape(-1, 1), (reps, 1))

    # Batch-block reduction matrix for layer 4: bsel[b, b*c3 + c] = 1.
    bsel = jnp.asarray(np.kron(np.eye(n, dtype=np.float32),
                               np.ones((1, c3), np.float32)))
    w4m = jnp.tile(jnp.asarray(params["w4"], f32).reshape(c3, KK), (n, 1))

    # NOTE: conv biases b2/b3 are intentionally NOT passed -- training-mode
    # BatchNorm mean subtraction cancels them exactly.
    args = (
        p1, _w_mat(params["w1"]), tile_col(params["b1"], n),
        sel2, _w_taps(params["w2"]), tile_col(params["g2"], n), tile_col(params["be2"], n),
        sel3, _w_taps(params["w3"]), tile_col(params["g3"], n), tile_col(params["be3"], n),
        w4m, jnp.asarray(params["b4"], f32).reshape(1, 1), bsel,
    )

    out = pl.pallas_call(
        _make_kernel(n),
        out_shape=jax.ShapeDtypeStruct((n, 1), f32),
        in_specs=[_vmem_spec(a.shape) for a in args],
        out_specs=_vmem_spec((n, 1)),
        # Resident footprint is ~2.5 MiB (incl. the in-kernel f32 copy of the
        # int8 selection); 8 MiB leaves headroom on every generation
        # (v5e/v6e 128 MiB, v7x 64 MiB physical).
        compiler_params=pltpu.CompilerParams(vmem_limit_bytes=8 * 1024 * 1024),
    )(*args)

    return out.reshape(n, 1, 1, 1)


# ------------------------------ pure-JAX reference -------------------------- #

def _ref_forward(x, p):
    def conv(x, w, b, pad):
        y = jax.lax.conv_general_dilated(
            x, w, (2, 2), [(pad, pad), (pad, pad)],
            dimension_numbers=("NCHW", "OIHW", "NCHW"))
        return y + b.reshape(1, -1, 1, 1)

    def bn(y, g, bta):
        m = jnp.mean(y, axis=(0, 2, 3), keepdims=True)
        v = jnp.mean((y - m) ** 2, axis=(0, 2, 3), keepdims=True)
        return (y - m) / jnp.sqrt(v + BN_EPS) * g.reshape(1, -1, 1, 1) + bta.reshape(1, -1, 1, 1)

    lrelu = lambda y: jnp.where(y > 0, y, LRELU_SLOPE * y)
    y = lrelu(conv(x, p["w1"], p["b1"], 1))
    y = lrelu(bn(conv(y, p["w2"], p["b2"], 1), p["g2"], p["be2"]))
    y = lrelu(bn(conv(y, p["w3"], p["b3"], 1), p["g3"], p["be3"]))
    return jax.nn.sigmoid(conv(y, p["w4"], p["b4"], 0))


# ----------------------------------- main ----------------------------------- #

def _init_params(key, channels_img, fd):
    ks = jax.random.split(key, 4)
    std = 0.02  # DCGAN-style normal init; deterministic, not a checkpoint load
    return {
        "w1": jax.random.normal(ks[0], (fd,      channels_img, 4, 4), jnp.float32) * std,
        "b1": jnp.zeros((fd,), jnp.float32),
        "w2": jax.random.normal(ks[1], (fd * 2,  fd,           4, 4), jnp.float32) * std,
        "b2": jnp.zeros((fd * 2,), jnp.float32),
        "g2": jnp.ones((fd * 2,), jnp.float32),
        "be2": jnp.zeros((fd * 2,), jnp.float32),
        "w3": jax.random.normal(ks[2], (fd * 4,  fd * 2,       4, 4), jnp.float32) * std,
        "b3": jnp.zeros((fd * 4,), jnp.float32),
        "g3": jnp.ones((fd * 4,), jnp.float32),
        "be3": jnp.zeros((fd * 4,), jnp.float32),
        "w4": jax.random.normal(ks[3], (1,       fd * 4,       4, 4), jnp.float32) * std,
        "b4": jnp.zeros((1,), jnp.float32),
    }


if __name__ == "__main__":
    key = jax.random.PRNGKey(0)
    k_x, k_p = jax.random.split(key)

    batch, channels_img, features_disc, spatial = 2, 3, 8, 32
    x = jax.random.normal(k_x, (batch, channels_img, spatial, spatial), jnp.float32)
    params = _init_params(k_p, channels_img, features_disc)

    fwd = jax.jit(discriminator_forward)
    out = jax.block_until_ready(fwd(x, params))
    ref = jax.block_until_ready(_ref_forward(x, params))

    assert out.shape == (batch, 1, 1, 1), out.shape
    assert jnp.allclose(out, ref, atol=1e-4, rtol=1e-4), (out, ref)
    print("KERNEL_OK")
</pallas_src>

<mosaic_0001>
module attributes {stable_mosaic.version = 11 : i64} {
  func.func @kernel(%arg0: memref<96x256xf32, #tpu.memory_space<vmem>>, %arg1: memref<8x48xf32, #tpu.memory_space<vmem>>, %arg2: memref<16x1xf32, #tpu.memory_space<vmem>>, %arg3: memref<256x1024xi8, #tpu.memory_space<vmem>>, %arg4: memref<16x16x8xf32, #tpu.memory_space<vmem>>, %arg5: memref<32x1xf32, #tpu.memory_space<vmem>>, %arg6: memref<32x1xf32, #tpu.memory_space<vmem>>, %arg7: memref<64x256xi8, #tpu.memory_space<vmem>>, %arg8: memref<16x32x16xf32, #tpu.memory_space<vmem>>, %arg9: memref<64x1xf32, #tpu.memory_space<vmem>>, %arg10: memref<64x1xf32, #tpu.memory_space<vmem>>, %arg11: memref<64x16xf32, #tpu.memory_space<vmem>>, %arg12: memref<1x1xf32, #tpu.memory_space<vmem>>, %arg13: memref<2x64xf32, #tpu.memory_space<vmem>>, %arg14: memref<2x1xf32, #tpu.memory_space<vmem>>) attributes {dimension_semantics = [], scalar_prefetch = 0 : i64, scratch_operands = 0 : i64, tpu.core_type = #tpu.core_type<tc>} {
    %c0 = arith.constant 0 : index
    %c0_0 = arith.constant 0 : index
    %0 = vector.load %arg0[%c0, %c0_0] : memref<96x256xf32, #tpu.memory_space<vmem>>, vector<96x256xf32>
    %c0_1 = arith.constant 0 : index
    %c0_2 = arith.constant 0 : index
    %1 = vector.load %arg1[%c0_1, %c0_2] : memref<8x48xf32, #tpu.memory_space<vmem>>, vector<8x48xf32>
    %2 = vector.extract_strided_slice %0 {offsets = [0, 0], sizes = [48, 256], strides = [1, 1]} : vector<96x256xf32> to vector<48x256xf32>
    %cst = arith.constant dense<0.000000e+00> : vector<8x256xf32>
    %3 = tpu.matmul %1, %2, %cst {dimension_numbers = #tpu.dot_dimension_numbers<[1], [0], [0], [1], [0, 0, 1, 1], [], []>} : vector<8x48xf32>, vector<48x256xf32>, vector<8x256xf32> -> vector<8x256xf32>
    %c0_3 = arith.constant 0 : index
    %c0_4 = arith.constant 0 : index
    %4 = vector.load %arg1[%c0_3, %c0_4] : memref<8x48xf32, #tpu.memory_space<vmem>>, vector<8x48xf32>
    %5 = vector.extract_strided_slice %0 {offsets = [48, 0], sizes = [48, 256], strides = [1, 1]} : vector<96x256xf32> to vector<48x256xf32>
    %cst_5 = arith.constant dense<0.000000e+00> : vector<8x256xf32>
    %6 = tpu.matmul %4, %5, %cst_5 {dimension_numbers = #tpu.dot_dimension_numbers<[1], [0], [0], [1], [0, 0, 1, 1], [], []>} : vector<8x48xf32>, vector<48x256xf32>, vector<8x256xf32> -> vector<8x256xf32>
    %7 = tpu.concatenate %3, %6 in 0 : vector<8x256xf32>, vector<8x256xf32> -> vector<16x256xf32>
    %c0_6 = arith.constant 0 : index
    %c0_7 = arith.constant 0 : index
    %8 = vector.load %arg2[%c0_6, %c0_7] : memref<16x1xf32, #tpu.memory_space<vmem>>, vector<16x1xf32>
    %9 = vector.broadcast %8 : vector<16x1xf32> to vector<16x256xf32>
    %10 = arith.addf %7, %9 : vector<16x256xf32>
    %cst_8 = arith.constant 0.000000e+00 : f32
    %11 = vector.broadcast %cst_8 : f32 to vector<16x256xf32>
    %12 = arith.cmpf ogt, %10, %11 : vector<16x256xf32>
    %cst_9 = arith.constant 2.000000e-01 : f32
    %13 = vector.broadcast %cst_9 : f32 to vector<16x256xf32>
    %14 = arith.mulf %13, %10 : vector<16x256xf32>
    %15 = arith.select %12, %10, %14 : vector<16x256xi1>, vector<16x256xf32>
    %c0_10 = arith.constant 0 : index
    %c0_11 = arith.constant 0 : index
    %16 = vector.load %arg3[%c0_10, %c0_11] : memref<256x1024xi8, #tpu.memory_space<vmem>>, vector<256x1024xi8>
    %17 = arith.sitofp %16 : vector<256x1024xi8> to vector<256x1024xf32>
    %cst_12 = arith.constant dense<0.000000e+00> : vector<16x1024xf32>
    %18 = tpu.matmul %15, %17, %cst_12 {dimension_numbers = #tpu.dot_dimension_numbers<[1], [0], [0], [1], [0, 0, 1, 1], [], []>} : vector<16x256xf32>, vector<256x1024xf32>, vector<16x1024xf32> -> vector<16x1024xf32>
    %19 = vector.extract_strided_slice %18 {offsets = [0, 0], sizes = [8, 1024], strides = [1, 1]} : vector<16x1024xf32> to vector<8x1024xf32>
    %c0_13 = arith.constant 0 : index
    %c0_14 = arith.constant 0 : index
    %c0_15 = arith.constant 0 : index
    %20 = vector.load %arg4[%c0_13, %c0_14, %c0_15] : memref<16x16x8xf32, #tpu.memory_space<vmem>>, vector<1x16x8xf32>
    %21 = vector.shape_cast %20 : vector<1x16x8xf32> to vector<16x8xf32>
    %22 = vector.extract_strided_slice %19 {offsets = [0, 0], sizes = [8, 64], strides = [1, 1]} : vector<8x1024xf32> to vector<8x64xf32>
    %cst_16 = arith.constant dense<0.000000e+00> : vector<16x64xf32>
    %23 = tpu.matmul %21, %22, %cst_16 {dimension_numbers = #tpu.dot_dimension_numbers<[1], [0], [0], [1], [0, 0, 1, 1], [], []>} : vector<16x8xf32>, vector<8x64xf32>, vector<16x64xf32> -> vector<16x64xf32>
    %c1 = arith.constant 1 : index
    %c0_17 = arith.constant 0 : index
    %c0_18 = arith.constant 0 : index
    %24 = vector.load %arg4[%c1, %c0_17, %c0_18] : memref<16x16x8xf32, #tpu.memory_space<vmem>>, vector<1x16x8xf32>
    %25 = vector.shape_cast %24 : vector<1x16x8xf32> to vector<16x8xf32>
    %26 = vector.extract_strided_slice %19 {offsets = [0, 64], sizes = [8, 64], strides = [1, 1]} : vector<8x1024xf32> to vector<8x64xf32>
    %cst_19 = arith.constant dense<0.000000e+00> : vector<16x64xf32>
    %27 = tpu.matmul %25, %26, %cst_19 {dimension_numbers = #tpu.dot_dimension_numbers<[1], [0], [0], [1], [0, 0, 1, 1], [], []>} : vector<16x8xf32>, vector<8x64xf32>, vector<16x64xf32> -> vector<16x64xf32>
    %28 = arith.addf %23, %27 : vector<16x64xf32>
    %c2 = arith.constant 2 : index
    %c0_20 = arith.constant 0 : index
    %c0_21 = arith.constant 0 : index
    %29 = vector.load %arg4[%c2, %c0_20, %c0_21] : memref<16x16x8xf32, #tpu.memory_space<vmem>>, vector<1x16x8xf32>
    %30 = vector.shape_cast %29 : vector<1x16x8xf32> to vector<16x8xf32>
    %31 = vector.extract_strided_slice %19 {offsets = [0, 128], sizes = [8, 64], strides = [1, 1]} : vector<8x1024xf32> to vector<8x64xf32>
    %cst_22 = arith.constant dense<0.000000e+00> : vector<16x64xf32>
    %32 = tpu.matmul %30, %31, %cst_22 {dimension_numbers = #tpu.dot_dimension_numbers<[1], [0], [0], [1], [0, 0, 1, 1], [], []>} : vector<16x8xf32>, vector<8x64xf32>, vector<16x64xf32> -> vector<16x64xf32>
    %33 = arith.addf %28, %32 : vector<16x64xf32>
    %c3 = arith.constant 3 : index
    %c0_23 = arith.constant 0 : index
    %c0_24 = arith.constant 0 : index
    %34 = vector.load %arg4[%c3, %c0_23, %c0_24] : memref<16x16x8xf32, #tpu.memory_space<vmem>>, vector<1x16x8xf32>
    %35 = vector.shape_cast %34 : vector<1x16x8xf32> to vector<16x8xf32>
    %36 = vector.extract_strided_slice %19 {offsets = [0, 192], sizes = [8, 64], strides = [1, 1]} : vector<8x1024xf32> to vector<8x64xf32>
    %cst_25 = arith.constant dense<0.000000e+00> : vector<16x64xf32>
    %37 = tpu.matmul %35, %36, %cst_25 {dimension_numbers = #tpu.dot_dimension_numbers<[1], [0], [0], [1], [0, 0, 1, 1], [], []>} : vector<16x8xf32>, vector<8x64xf32>, vector<16x64xf32> -> vector<16x64xf32>
    %38 = arith.addf %33, %37 : vector<16x64xf32>
    %c4 = arith.constant 4 : index
    %c0_26 = arith.constant 0 : index
    %c0_27 = arith.constant 0 : index
    %39 = vector.load %arg4[%c4, %c0_26, %c0_27] : memref<16x16x8xf32, #tpu.memory_space<vmem>>, vector<1x16x8xf32>
    %40 = vector.shape_cast %39 : vector<1x16x8xf32> to vector<16x8xf32>
    %41 = vector.extract_strided_slice %19 {offsets = [0, 256], sizes = [8, 64], strides = [1, 1]} : vector<8x1024xf32> to vector<8x64xf32>
    %cst_28 = arith.constant dense<0.000000e+00> : vector<16x64xf32>
    %42 = tpu.matmul %40, %41, %cst_28 {dimension_numbers = #tpu.dot_dimension_numbers<[1], [0], [0], [1], [0, 0, 1, 1], [], []>} : vector<16x8xf32>, vector<8x64xf32>, vector<16x64xf32> -> vector<16x64xf32>
    %43 = arith.addf %38, %42 : vector<16x64xf32>
    %c5 = arith.constant 5 : index
    %c0_29 = arith.constant 0 : index
    %c0_30 = arith.constant 0 : index
    %44 = vector.load %arg4[%c5, %c0_29, %c0_30] : memref<16x16x8xf32, #tpu.memory_space<vmem>>, vector<1x16x8xf32>
    %45 = vector.shape_cast %44 : vector<1x16x8xf32> to vector<16x8xf32>
    %46 = vector.extract_strided_slice %19 {offsets = [0, 320], sizes = [8, 64], strides = [1, 1]} : vector<8x1024xf32> to vector<8x64xf32>
    %cst_31 = arith.constant dense<0.000000e+00> : vector<16x64xf32>
    %47 = tpu.matmul %45, %46, %cst_31 {dimension_numbers = #tpu.dot_dimension_numbers<[1], [0], [0], [1], [0, 0, 1, 1], [], []>} : vector<16x8xf32>, vector<8x64xf32>, vector<16x64xf32> -> vector<16x64xf32>
    %48 = arith.addf %43, %47 : vector<16x64xf32>
    %c6 = arith.constant 6 : index
    %c0_32 = arith.constant 0 : index
    %c0_33 = arith.constant 0 : index
    %49 = vector.load %arg4[%c6, %c0_32, %c0_33] : memref<16x16x8xf32, #tpu.memory_space<vmem>>, vector<1x16x8xf32>
    %50 = vector.shape_cast %49 : vector<1x16x8xf32> to vector<16x8xf32>
    %51 = vector.extract_strided_slice %19 {offsets = [0, 384], sizes = [8, 64], strides = [1, 1]} : vector<8x1024xf32> to vector<8x64xf32>
    %cst_34 = arith.constant dense<0.000000e+00> : vector<16x64xf32>
    %52 = tpu.matmul %50, %51, %cst_34 {dimension_numbers = #tpu.dot_dimension_numbers<[1], [0], [0], [1], [0, 0, 1, 1], [], []>} : vector<16x8xf32>, vector<8x64xf32>, vector<16x64xf32> -> vector<16x64xf32>
    %53 = arith.addf %48, %52 : vector<16x64xf32>
    %c7 = arith.constant 7 : index
    %c0_35 = arith.constant 0 : index
    %c0_36 = arith.constant 0 : index
    %54 = vector.load %arg4[%c7, %c0_35, %c0_36] : memref<16x16x8xf32, #tpu.memory_space<vmem>>, vector<1x16x8xf32>
    %55 = vector.shape_cast %54 : vector<1x16x8xf32> to vector<16x8xf32>
    %56 = vector.extract_strided_slice %19 {offsets = [0, 448], sizes = [8, 64], strides = [1, 1]} : vector<8x1024xf32> to vector<8x64xf32>
    %cst_37 = arith.constant dense<0.000000e+00> : vector<16x64xf32>
    %57 = tpu.matmul %55, %56, %cst_37 {dimension_numbers = #tpu.dot_dimension_numbers<[1], [0], [0], [1], [0, 0, 1, 1], [], []>} : vector<16x8xf32>, vector<8x64xf32>, vector<16x64xf32> -> vector<16x64xf32>
    %58 = arith.addf %53, %57 : vector<16x64xf32>
    %c8 = arith.constant 8 : index
    %c0_38 = arith.constant 0 : index
    %c0_39 = arith.constant 0 : index
    %59 = vector.load %arg4[%c8, %c0_38, %c0_39] : memref<16x16x8xf32, #tpu.memory_space<vmem>>, vector<1x16x8xf32>
    %60 = vector.shape_cast %59 : vector<1x16x8xf32> to vector<16x8xf32>
    %61 = vector.extract_strided_slice %19 {offsets = [0, 512], sizes = [8, 64], strides = [1, 1]} : vector<8x1024xf32> to vector<8x64xf32>
    %cst_40 = arith.constant dense<0.000000e+00> : vector<16x64xf32>
    %62 = tpu.matmul %60, %61, %cst_40 {dimension_numbers = #tpu.dot_dimension_numbers<[1], [0], [0], [1], [0, 0, 1, 1], [], []>} : vector<16x8xf32>, vector<8x64xf32>, vector<16x64xf32> -> vector<16x64xf32>
    %63 = arith.addf %58, %62 : vector<16x64xf32>
    %c9 = arith.constant 9 : index
    %c0_41 = arith.constant 0 : index
    %c0_42 = arith.constant 0 : index
    %64 = vector.load %arg4[%c9, %c0_41, %c0_42] : memref<16x16x8xf32, #tpu.memory_space<vmem>>, vector<1x16x8xf32>
    %65 = vector.shape_cast %64 : vector<1x16x8xf32> to vector<16x8xf32>
    %66 = vector.extract_strided_slice %19 {offsets = [0, 576], sizes = [8, 64], strides = [1, 1]} : vector<8x1024xf32> to vector<8x64xf32>
    %cst_43 = arith.constant dense<0.000000e+00> : vector<16x64xf32>
    %67 = tpu.matmul %65, %66, %cst_43 {dimension_numbers = #tpu.dot_dimension_numbers<[1], [0], [0], [1], [0, 0, 1, 1], [], []>} : vector<16x8xf32>, vector<8x64xf32>, vector<16x64xf32> -> vector<16x64xf32>
    %68 = arith.addf %63, %67 : vector<16x64xf32>
    %c10 = arith.constant 10 : index
    %c0_44 = arith.constant 0 : index
    %c0_45 = arith.constant 0 : index
    %69 = vector.load %arg4[%c10, %c0_44, %c0_45] : memref<16x16x8xf32, #tpu.memory_space<vmem>>, vector<1x16x8xf32>
    %70 = vector.shape_cast %69 : vector<1x16x8xf32> to vector<16x8xf32>
    %71 = vector.extract_strided_slice %19 {offsets = [0, 640], sizes = [8, 64], strides = [1, 1]} : vector<8x1024xf32> to vector<8x64xf32>
    %cst_46 = arith.constant dense<0.000000e+00> : vector<16x64xf32>
    %72 = tpu.matmul %70, %71, %cst_46 {dimension_numbers = #tpu.dot_dimension_numbers<[1], [0], [0], [1], [0, 0, 1, 1], [], []>} : vector<16x8xf32>, vector<8x64xf32>, vector<16x64xf32> -> vector<16x64xf32>
    %73 = arith.addf %68, %72 : vector<16x64xf32>
    %c11 = arith.constant 11 : index
    %c0_47 = arith.constant 0 : index
    %c0_48 = arith.constant 0 : index
    %74 = vector.load %arg4[%c11, %c0_47, %c0_48] : memref<16x16x8xf32, #tpu.memory_space<vmem>>, vector<1x16x8xf32>
    %75 = vector.shape_cast %74 : vector<1x16x8xf32> to vector<16x8xf32>
    %76 = vector.extract_strided_slice %19 {offsets = [0, 704], sizes = [8, 64], strides = [1, 1]} : vector<8x1024xf32> to vector<8x64xf32>
    %cst_49 = arith.constant dense<0.000000e+00> : vector<16x64xf32>
    %77 = tpu.matmul %75, %76, %cst_49 {dimension_numbers = #tpu.dot_dimension_numbers<[1], [0], [0], [1], [0, 0, 1, 1], [], []>} : vector<16x8xf32>, vector<8x64xf32>, vector<16x64xf32> -> vector<16x64xf32>
    %78 = arith.addf %73, %77 : vector<16x64xf32>
    %c12 = arith.constant 12 : index
    %c0_50 = arith.constant 0 : index
    %c0_51 = arith.constant 0 : index
    %79 = vector.load %arg4[%c12, %c0_50, %c0_51] : memref<16x16x8xf32, #tpu.memory_space<vmem>>, vector<1x16x8xf32>
    %80 = vector.shape_cast %79 : vector<1x16x8xf32> to vector<16x8xf32>
    %81 = vector.extract_strided_slice %19 {offsets = [0, 768], sizes = [8, 64], strides = [1, 1]} : vector<8x1024xf32> to vector<8x64xf32>
    %cst_52 = arith.constant dense<0.000000e+00> : vector<16x64xf32>
    %82 = tpu.matmul %80, %81, %cst_52 {dimension_numbers = #tpu.dot_dimension_numbers<[1], [0], [0], [1], [0, 0, 1, 1], [], []>} : vector<16x8xf32>, vector<8x64xf32>, vector<16x64xf32> -> vector<16x64xf32>
    %83 = arith.addf %78, %82 : vector<16x64xf32>
    %c13 = arith.constant 13 : index
    %c0_53 = arith.constant 0 : index
    %c0_54 = arith.constant 0 : index
    %84 = vector.load %arg4[%c13, %c0_53, %c0_54] : memref<16x16x8xf32, #tpu.memory_space<vmem>>, vector<1x16x8xf32>
    %85 = vector.shape_cast %84 : vector<1x16x8xf32> to vector<16x8xf32>
    %86 = vector.extract_strided_slice %19 {offsets = [0, 832], sizes = [8, 64], strides = [1, 1]} : vector<8x1024xf32> to vector<8x64xf32>
    %cst_55 = arith.constant dense<0.000000e+00> : vector<16x64xf32>
    %87 = tpu.matmul %85, %86, %cst_55 {dimension_numbers = #tpu.dot_dimension_numbers<[1], [0], [0], [1], [0, 0, 1, 1], [], []>} : vector<16x8xf32>, vector<8x64xf32>, vector<16x64xf32> -> vector<16x64xf32>
    %88 = arith.addf %83, %87 : vector<16x64xf32>
    %c14 = arith.constant 14 : index
    %c0_56 = arith.constant 0 : index
    %c0_57 = arith.constant 0 : index
    %89 = vector.load %arg4[%c14, %c0_56, %c0_57] : memref<16x16x8xf32, #tpu.memory_space<vmem>>, vector<1x16x8xf32>
    %90 = vector.shape_cast %89 : vector<1x16x8xf32> to vector<16x8xf32>
    %91 = vector.extract_strided_slice %19 {offsets = [0, 896], sizes = [8, 64], strides = [1, 1]} : vector<8x1024xf32> to vector<8x64xf32>
    %cst_58 = arith.constant dense<0.000000e+00> : vector<16x64xf32>
    %92 = tpu.matmul %90, %91, %cst_58 {dimension_numbers = #tpu.dot_dimension_numbers<[1], [0], [0], [1], [0, 0, 1, 1], [], []>} : vector<16x8xf32>, vector<8x64xf32>, vector<16x64xf32> -> vector<16x64xf32>
    %93 = arith.addf %88, %92 : vector<16x64xf32>
    %c15 = arith.constant 15 : index
    %c0_59 = arith.constant 0 : index
    %c0_60 = arith.constant 0 : index
    %94 = vector.load %arg4[%c15, %c0_59, %c0_60] : memref<16x16x8xf32, #tpu.memory_space<vmem>>, vector<1x16x8xf32>
    %95 = vector.shape_cast %94 : vector<1x16x8xf32> to vector<16x8xf32>
    %96 = vector.extract_strided_slice %19 {offsets = [0, 960], sizes = [8, 64], strides = [1, 1]} : vector<8x1024xf32> to vector<8x64xf32>
    %cst_61 = arith.constant dense<0.000000e+00> : vector<16x64xf32>
    %97 = tpu.matmul %95, %96, %cst_61 {dimension_numbers = #tpu.dot_dimension_numbers<[1], [0], [0], [1], [0, 0, 1, 1], [], []>} : vector<16x8xf32>, vector<8x64xf32>, vector<16x64xf32> -> vector<16x64xf32>
    %98 = arith.addf %93, %97 : vector<16x64xf32>
    %99 = vector.extract_strided_slice %18 {offsets = [8, 0], sizes = [8, 1024], strides = [1, 1]} : vector<16x1024xf32> to vector<8x1024xf32>
    %c0_62 = arith.constant 0 : index
    %c0_63 = arith.constant 0 : index
    %c0_64 = arith.constant 0 : index
    %100 = vector.load %arg4[%c0_62, %c0_63, %c0_64] : memref<16x16x8xf32, #tpu.memory_space<vmem>>, vector<1x16x8xf32>
    %101 = vector.shape_cast %100 : vector<1x16x8xf32> to vector<16x8xf32>
    %102 = vector.extract_strided_slice %99 {offsets = [0, 0], sizes = [8, 64], strides = [1, 1]} : vector<8x1024xf32> to vector<8x64xf32>
    %cst_65 = arith.constant dense<0.000000e+00> : vector<16x64xf32>
    %103 = tpu.matmul %101, %102, %cst_65 {dimension_numbers = #tpu.dot_dimension_numbers<[1], [0], [0], [1], [0, 0, 1, 1], [], []>} : vector<16x8xf32>, vector<8x64xf32>, vector<16x64xf32> -> vector<16x64xf32>
    %c1_66 = arith.constant 1 : index
    %c0_67 = arith.constant 0 : index
    %c0_68 = arith.constant 0 : index
    %104 = vector.load %arg4[%c1_66, %c0_67, %c0_68] : memref<16x16x8xf32, #tpu.memory_space<vmem>>, vector<1x16x8xf32>
    %105 = vector.shape_cast %104 : vector<1x16x8xf32> to vector<16x8xf32>
    %106 = vector.extract_strided_slice %99 {offsets = [0, 64], sizes = [8, 64], strides = [1, 1]} : vector<8x1024xf32> to vector<8x64xf32>
    %cst_69 = arith.constant dense<0.000000e+00> : vector<16x64xf32>
    %107 = tpu.matmul %105, %106, %cst_69 {dimension_numbers = #tpu.dot_dimension_numbers<[1], [0], [0], [1], [0, 0, 1, 1], [], []>} : vector<16x8xf32>, vector<8x64xf32>, vector<16x64xf32> -> vector<16x64xf32>
    %108 = arith.addf %103, %107 : vector<16x64xf32>
    %c2_70 = arith.constant 2 : index
    %c0_71 = arith.constant 0 : index
    %c0_72 = arith.constant 0 : index
    %109 = vector.load %arg4[%c2_70, %c0_71, %c0_72] : memref<16x16x8xf32, #tpu.memory_space<vmem>>, vector<1x16x8xf32>
    %110 = vector.shape_cast %109 : vector<1x16x8xf32> to vector<16x8xf32>
    %111 = vector.extract_strided_slice %99 {offsets = [0, 128], sizes = [8, 64], strides = [1, 1]} : vector<8x1024xf32> to vector<8x64xf32>
    %cst_73 = arith.constant dense<0.000000e+00> : vector<16x64xf32>
    %112 = tpu.matmul %110, %111, %cst_73 {dimension_numbers = #tpu.dot_dimension_numbers<[1], [0], [0], [1], [0, 0, 1, 1], [], []>} : vector<16x8xf32>, vector<8x64xf32>, vector<16x64xf32> -> vector<16x64xf32>
    %113 = arith.addf %108, %112 : vector<16x64xf32>
    %c3_74 = arith.constant 3 : index
    %c0_75 = arith.constant 0 : index
    %c0_76 = arith.constant 0 : index
    %114 = vector.load %arg4[%c3_74, %c0_75, %c0_76] : memref<16x16x8xf32, #tpu.memory_space<vmem>>, vector<1x16x8xf32>
    %115 = vector.shape_cast %114 : vector<1x16x8xf32> to vector<16x8xf32>
    %116 = vector.extract_strided_slice %99 {offsets = [0, 192], sizes = [8, 64], strides = [1, 1]} : vector<8x1024xf32> to vector<8x64xf32>
    %cst_77 = arith.constant dense<0.000000e+00> : vector<16x64xf32>
    %117 = tpu.matmul %115, %116, %cst_77 {dimension_numbers = #tpu.dot_dimension_numbers<[1], [0], [0], [1], [0, 0, 1, 1], [], []>} : vector<16x8xf32>, vector<8x64xf32>, vector<16x64xf32> -> vector<16x64xf32>
    %118 = arith.addf %113, %117 : vector<16x64xf32>
    %c4_78 = arith.constant 4 : index
    %c0_79 = arith.constant 0 : index
    %c0_80 = arith.constant 0 : index
    %119 = vector.load %arg4[%c4_78, %c0_79, %c0_80] : memref<16x16x8xf32, #tpu.memory_space<vmem>>, vector<1x16x8xf32>
    %120 = vector.shape_cast %119 : vector<1x16x8xf32> to vector<16x8xf32>
    %121 = vector.extract_strided_slice %99 {offsets = [0, 256], sizes = [8, 64], strides = [1, 1]} : vector<8x1024xf32> to vector<8x64xf32>
    %cst_81 = arith.constant dense<0.000000e+00> : vector<16x64xf32>
    %122 = tpu.matmul %120, %121, %cst_81 {dimension_numbers = #tpu.dot_dimension_numbers<[1], [0], [0], [1], [0, 0, 1, 1], [], []>} : vector<16x8xf32>, vector<8x64xf32>, vector<16x64xf32> -> vector<16x64xf32>
    %123 = arith.addf %118, %122 : vector<16x64xf32>
    %c5_82 = arith.constant 5 : index
    %c0_83 = arith.constant 0 : index
    %c0_84 = arith.constant 0 : index
    %124 = vector.load %arg4[%c5_82, %c0_83, %c0_84] : memref<16x16x8xf32, #tpu.memory_space<vmem>>, vector<1x16x8xf32>
    %125 = vector.shape_cast %124 : vector<1x16x8xf32> to vector<16x8xf32>
    %126 = vector.extract_strided_slice %99 {offsets = [0, 320], sizes = [8, 64], strides = [1, 1]} : vector<8x1024xf32> to vector<8x64xf32>
    %cst_85 = arith.constant dense<0.000000e+00> : vector<16x64xf32>
    %127 = tpu.matmul %125, %126, %cst_85 {dimension_numbers = #tpu.dot_dimension_numbers<[1], [0], [0], [1], [0, 0, 1, 1], [], []>} : vector<16x8xf32>, vector<8x64xf32>, vector<16x64xf32> -> vector<16x64xf32>
    %128 = arith.addf %123, %127 : vector<16x64xf32>
    %c6_86 = arith.constant 6 : index
    %c0_87 = arith.constant 0 : index
    %c0_88 = arith.constant 0 : index
    %129 = vector.load %arg4[%c6_86, %c0_87, %c0_88] : memref<16x16x8xf32, #tpu.memory_space<vmem>>, vector<1x16x8xf32>
    %130 = vector.shape_cast %129 : vector<1x16x8xf32> to vector<16x8xf32>
    %131 = vector.extract_strided_slice %99 {offsets = [0, 384], sizes = [8, 64], strides = [1, 1]} : vector<8x1024xf32> to vector<8x64xf32>
    %cst_89 = arith.constant dense<0.000000e+00> : vector<16x64xf32>
    %132 = tpu.matmul %130, %131, %cst_89 {dimension_numbers = #tpu.dot_dimension_numbers<[1], [0], [0], [1], [0, 0, 1, 1], [], []>} : vector<16x8xf32>, vector<8x64xf32>, vector<16x64xf32> -> vector<16x64xf32>
    %133 = arith.addf %128, %132 : vector<16x64xf32>
    %c7_90 = arith.constant 7 : index
    %c0_91 = arith.constant 0 : index
    %c0_92 = arith.constant 0 : index
    %134 = vector.load %arg4[%c7_90, %c0_91, %c0_92] : memref<16x16x8xf32, #tpu.memory_space<vmem>>, vector<1x16x8xf32>
    %135 = vector.shape_cast %134 : vector<1x16x8xf32> to vector<16x8xf32>
    %136 = vector.extract_strided_slice %99 {offsets = [0, 448], sizes = [8, 64], strides = [1, 1]} : vector<8x1024xf32> to vector<8x64xf32>
    %cst_93 = arith.constant dense<0.000000e+00> : vector<16x64xf32>
    %137 = tpu.matmul %135, %136, %cst_93 {dimension_numbers = #tpu.dot_dimension_numbers<[1], [0], [0], [1], [0, 0, 1, 1], [], []>} : vector<16x8xf32>, vector<8x64xf32>, vector<16x64xf32> -> vector<16x64xf32>
    %138 = arith.addf %133, %137 : vector<16x64xf32>
    %c8_94 = arith.constant 8 : index
    %c0_95 = arith.constant 0 : index
    %c0_96 = arith.constant 0 : index
    %139 = vector.load %arg4[%c8_94, %c0_95, %c0_96] : memref<16x16x8xf32, #tpu.memory_space<vmem>>, vector<1x16x8xf32>
    %140 = vector.shape_cast %139 : vector<1x16x8xf32> to vector<16x8xf32>
    %141 = vector.extract_strided_slice %99 {offsets = [0, 512], sizes = [8, 64], strides = [1, 1]} : vector<8x1024xf32> to vector<8x64xf32>
    %cst_97 = arith.constant dense<0.000000e+00> : vector<16x64xf32>
    %142 = tpu.matmul %140, %141, %cst_97 {dimension_numbers = #tpu.dot_dimension_numbers<[1], [0], [0], [1], [0, 0, 1, 1], [], []>} : vector<16x8xf32>, vector<8x64xf32>, vector<16x64xf32> -> vector<16x64xf32>
    %143 = arith.addf %138, %142 : vector<16x64xf32>
    %c9_98 = arith.constant 9 : index
    %c0_99 = arith.constant 0 : index
    %c0_100 = arith.constant 0 : index
    %144 = vector.load %arg4[%c9_98, %c0_99, %c0_100] : memref<16x16x8xf32, #tpu.memory_space<vmem>>, vector<1x16x8xf32>
    %145 = vector.shape_cast %144 : vector<1x16x8xf32> to vector<16x8xf32>
    %146 = vector.extract_strided_slice %99 {offsets = [0, 576], sizes = [8, 64], strides = [1, 1]} : vector<8x1024xf32> to vector<8x64xf32>
    %cst_101 = arith.constant dense<0.000000e+00> : vector<16x64xf32>
    %147 = tpu.matmul %145, %146, %cst_101 {dimension_numbers = #tpu.dot_dimension_numbers<[1], [0], [0], [1], [0, 0, 1, 1], [], []>} : vector<16x8xf32>, vector<8x64xf32>, vector<16x64xf32> -> vector<16x64xf32>
    %148 = arith.addf %143, %147 : vector<16x64xf32>
    %c10_102 = arith.constant 10 : index
    %c0_103 = arith.constant 0 : index
    %c0_104 = arith.constant 0 : index
    %149 = vector.load %arg4[%c10_102, %c0_103, %c0_104] : memref<16x16x8xf32, #tpu.memory_space<vmem>>, vector<1x16x8xf32>
    %150 = vector.shape_cast %149 : vector<1x16x8xf32> to vector<16x8xf32>
    %151 = vector.extract_strided_slice %99 {offsets = [0, 640], sizes = [8, 64], strides = [1, 1]} : vector<8x1024xf32> to vector<8x64xf32>
    %cst_105 = arith.constant dense<0.000000e+00> : vector<16x64xf32>
    %152 = tpu.matmul %150, %151, %cst_105 {dimension_numbers = #tpu.dot_dimension_numbers<[1], [0], [0], [1], [0, 0, 1, 1], [], []>} : vector<16x8xf32>, vector<8x64xf32>, vector<16x64xf32> -> vector<16x64xf32>
    %153 = arith.addf %148, %152 : vector<16x64xf32>
    %c11_106 = arith.constant 11 : index
    %c0_107 = arith.constant 0 : index
    %c0_108 = arith.constant 0 : index
    %154 = vector.load %arg4[%c11_106, %c0_107, %c0_108] : memref<16x16x8xf32, #tpu.memory_space<vmem>>, vector<1x16x8xf32>
    %155 = vector.shape_cast %154 : vector<1x16x8xf32> to vector<16x8xf32>
    %156 = vector.extract_strided_slice %99 {offsets = [0, 704], sizes = [8, 64], strides = [1, 1]} : vector<8x1024xf32> to vector<8x64xf32>
    %cst_109 = arith.constant dense<0.000000e+00> : vector<16x64xf32>
    %157 = tpu.matmul %155, %156, %cst_109 {dimension_numbers = #tpu.dot_dimension_numbers<[1], [0], [0], [1], [0, 0, 1, 1], [], []>} : vector<16x8xf32>, vector<8x64xf32>, vector<16x64xf32> -> vector<16x64xf32>
    %158 = arith.addf %153, %157 : vector<16x64xf32>
    %c12_110 = arith.constant 12 : index
    %c0_111 = arith.constant 0 : index
    %c0_112 = arith.constant 0 : index
    %159 = vector.load %arg4[%c12_110, %c0_111, %c0_112] : memref<16x16x8xf32, #tpu.memory_space<vmem>>, vector<1x16x8xf32>
    %160 = vector.shape_cast %159 : vector<1x16x8xf32> to vector<16x8xf32>
    %161 = vector.extract_strided_slice %99 {offsets = [0, 768], sizes = [8, 64], strides = [1, 1]} : vector<8x1024xf32> to vector<8x64xf32>
    %cst_113 = arith.constant dense<0.000000e+00> : vector<16x64xf32>
    %162 = tpu.matmul %160, %161, %cst_113 {dimension_numbers = #tpu.dot_dimension_numbers<[1], [0], [0], [1], [0, 0, 1, 1], [], []>} : vector<16x8xf32>, vector<8x64xf32>, vector<16x64xf32> -> vector<16x64xf32>
    %163 = arith.addf %158, %162 : vector<16x64xf32>
    %c13_114 = arith.constant 13 : index
    %c0_115 = arith.constant 0 : index
    %c0_116 = arith.constant 0 : index
    %164 = vector.load %arg4[%c13_114, %c0_115, %c0_116] : memref<16x16x8xf32, #tpu.memory_space<vmem>>, vector<1x16x8xf32>
    %165 = vector.shape_cast %164 : vector<1x16x8xf32> to vector<16x8xf32>
    %166 = vector.extract_strided_slice %99 {offsets = [0, 832], sizes = [8, 64], strides = [1, 1]} : vector<8x1024xf32> to vector<8x64xf32>
    %cst_117 = arith.constant dense<0.000000e+00> : vector<16x64xf32>
    %167 = tpu.matmul %165, %166, %cst_117 {dimension_numbers = #tpu.dot_dimension_numbers<[1], [0], [0], [1], [0, 0, 1, 1], [], []>} : vector<16x8xf32>, vector<8x64xf32>, vector<16x64xf32> -> vector<16x64xf32>
    %168 = arith.addf %163, %167 : vector<16x64xf32>
    %c14_118 = arith.constant 14 : index
    %c0_119 = arith.constant 0 : index
    %c0_120 = arith.constant 0 : index
    %169 = vector.load %arg4[%c14_118, %c0_119, %c0_120] : memref<16x16x8xf32, #tpu.memory_space<vmem>>, vector<1x16x8xf32>
    %170 = vector.shape_cast %169 : vector<1x16x8xf32> to vector<16x8xf32>
    %171 = vector.extract_strided_slice %99 {offsets = [0, 896], sizes = [8, 64], strides = [1, 1]} : vector<8x1024xf32> to vector<8x64xf32>
    %cst_121 = arith.constant dense<0.000000e+00> : vector<16x64xf32>
    %172 = tpu.matmul %170, %171, %cst_121 {dimension_numbers = #tpu.dot_dimension_numbers<[1], [0], [0], [1], [0, 0, 1, 1], [], []>} : vector<16x8xf32>, vector<8x64xf32>, vector<16x64xf32> -> vector<16x64xf32>
    %173 = arith.addf %168, %172 : vector<16x64xf32>
    %c15_122 = arith.constant 15 : index
    %c0_123 = arith.constant 0 : index
    %c0_124 = arith.constant 0 : index
    %174 = vector.load %arg4[%c15_122, %c0_123, %c0_124] : memref<16x16x8xf32, #tpu.memory_space<vmem>>, vector<1x16x8xf32>
    %175 = vector.shape_cast %174 : vector<1x16x8xf32> to vector<16x8xf32>
    %176 = vector.extract_strided_slice %99 {offsets = [0, 960], sizes = [8, 64], strides = [1, 1]} : vector<8x1024xf32> to vector<8x64xf32>
    %cst_125 = arith.constant dense<0.000000e+00> : vector<16x64xf32>
    %177 = tpu.matmul %175, %176, %cst_125 {dimension_numbers = #tpu.dot_dimension_numbers<[1], [0], [0], [1], [0, 0, 1, 1], [], []>} : vector<16x8xf32>, vector<8x64xf32>, vector<16x64xf32> -> vector<16x64xf32>
    %178 = arith.addf %173, %177 : vector<16x64xf32>
    %179 = tpu.concatenate %98, %178 in 0 : vector<16x64xf32>, vector<16x64xf32> -> vector<32x64xf32>
    %cst_126 = arith.constant dense<0.000000e+00> : vector<32xf32>
    %180 = vector.multi_reduction <add>, %179, %cst_126 [1] : vector<32x64xf32> to vector<32xf32>
    %181 = vector.shape_cast %180 : vector<32xf32> to vector<32x1xf32>
    %182 = arith.mulf %179, %179 : vector<32x64xf32>
    %cst_127 = arith.constant dense<0.000000e+00> : vector<32xf32>
    %183 = vector.multi_reduction <add>, %182, %cst_127 [1] : vector<32x64xf32> to vector<32xf32>
    %184 = vector.shape_cast %183 : vector<32xf32> to vector<32x1xf32>
    %185 = vector.extract_strided_slice %181 {offsets = [0, 0], sizes = [16, 1], strides = [1, 1]} : vector<32x1xf32> to vector<16x1xf32>
    %186 = vector.extract_strided_slice %184 {offsets = [0, 0], sizes = [16, 1], strides = [1, 1]} : vector<32x1xf32> to vector<16x1xf32>
    %187 = vector.extract_strided_slice %181 {offsets = [16, 0], sizes = [16, 1], strides = [1, 1]} : vector<32x1xf32> to vector<16x1xf32>
    %188 = arith.addf %185, %187 : vector<16x1xf32>
    %189 = vector.extract_strided_slice %184 {offsets = [16, 0], sizes = [16, 1], strides = [1, 1]} : vector<32x1xf32> to vector<16x1xf32>
    %190 = arith.addf %186, %189 : vector<16x1xf32>
    %cst_128 = arith.constant 7.812500e-03 : f32
    %191 = vector.broadcast %cst_128 : f32 to vector<16x1xf32>
    %192 = arith.mulf %188, %191 : vector<16x1xf32>
    %cst_129 = arith.constant 7.812500e-03 : f32
    %193 = vector.broadcast %cst_129 : f32 to vector<16x1xf32>
    %194 = arith.mulf %190, %193 : vector<16x1xf32>
    %195 = arith.mulf %192, %192 : vector<16x1xf32>
    %196 = arith.subf %194, %195 : vector<16x1xf32>
    %cst_130 = arith.constant 0.000000e+00 : f32
    %197 = vector.broadcast %cst_130 : f32 to vector<16x1xf32>
    %198 = arith.maximumf %196, %197 : vector<16x1xf32>
    %cst_131 = arith.constant 9.99999974E-6 : f32
    %199 = vector.broadcast %cst_131 : f32 to vector<16x1xf32>
    %200 = arith.addf %198, %199 : vector<16x1xf32>
    %201 = math.rsqrt %200 : vector<16x1xf32>
    %202 = tpu.concatenate %192, %192 in 0 : vector<16x1xf32>, vector<16x1xf32> -> vector<32x1xf32>
    %203 = tpu.concatenate %201, %201 in 0 : vector<16x1xf32>, vector<16x1xf32> -> vector<32x1xf32>
    %204 = vector.broadcast %202 : vector<32x1xf32> to vector<32x64xf32>
    %205 = arith.subf %179, %204 : vector<32x64xf32>
    %206 = vector.broadcast %203 : vector<32x1xf32> to vector<32x64xf32>
    %207 = arith.mulf %205, %206 : vector<32x64xf32>
    %c0_132 = arith.constant 0 : index
    %c0_133 = arith.constant 0 : index
    %208 = vector.load %arg5[%c0_132, %c0_133] : memref<32x1xf32, #tpu.memory_space<vmem>>, vector<32x1xf32>
    %209 = vector.broadcast %208 : vector<32x1xf32> to vector<32x64xf32>
    %210 = arith.mulf %207, %209 : vector<32x64xf32>
    %c0_134 = arith.constant 0 : index
    %c0_135 = arith.constant 0 : index
    %211 = vector.load %arg6[%c0_134, %c0_135] : memref<32x1xf32, #tpu.memory_space<vmem>>, vector<32x1xf32>
    %212 = vector.broadcast %211 : vector<32x1xf32> to vector<32x64xf32>
    %213 = arith.addf %210, %212 : vector<32x64xf32>
    %cst_136 = arith.constant 0.000000e+00 : f32
    %214 = vector.broadcast %cst_136 : f32 to vector<32x64xf32>
    %215 = arith.cmpf ogt, %213, %214 : vector<32x64xf32>
    %cst_137 = arith.constant 2.000000e-01 : f32
    %216 = vector.broadcast %cst_137 : f32 to vector<32x64xf32>
    %217 = arith.mulf %216, %213 : vector<32x64xf32>
    %218 = arith.select %215, %213, %217 : vector<32x64xi1>, vector<32x64xf32>
    %c0_138 = arith.constant 0 : index
    %c0_139 = arith.constant 0 : index
    %219 = vector.load %arg7[%c0_138, %c0_139] : memref<64x256xi8, #tpu.memory_space<vmem>>, vector<64x256xi8>
    %220 = arith.sitofp %219 : vector<64x256xi8> to vector<64x256xf32>
    %cst_140 = arith.constant dense<0.000000e+00> : vector<32x256xf32>
    %221 = tpu.matmul %218, %220, %cst_140 {dimension_numbers = #tpu.dot_dimension_numbers<[1], [0], [0], [1], [0, 0, 1, 1], [], []>} : vector<32x64xf32>, vector<64x256xf32>, vector<32x256xf32> -> vector<32x256xf32>
    %222 = vector.extract_strided_slice %221 {offsets = [0, 0], sizes = [16, 256], strides = [1, 1]} : vector<32x256xf32> to vector<16x256xf32>
    %c0_141 = arith.constant 0 : index
    %c0_142 = arith.constant 0 : index
    %c0_143 = arith.constant 0 : index
    %223 = vector.load %arg8[%c0_141, %c0_142, %c0_143] : memref<16x32x16xf32, #tpu.memory_space<vmem>>, vector<1x32x16xf32>
    %224 = vector.shape_cast %223 : vector<1x32x16xf32> to vector<32x16xf32>
    %225 = vector.extract_strided_slice %222 {offsets = [0, 0], sizes = [16, 16], strides = [1, 1]} : vector<16x256xf32> to vector<16x16xf32>
    %cst_144 = arith.constant dense<0.000000e+00> : vector<32x16xf32>
    %226 = tpu.matmul %224, %225, %cst_144 {dimension_numbers = #tpu.dot_dimension_numbers<[1], [0], [0], [1], [0, 0, 1, 1], [], []>} : vector<32x16xf32>, vector<16x16xf32>, vector<32x16xf32> -> vector<32x16xf32>
    %c1_145 = arith.constant 1 : index
    %c0_146 = arith.constant 0 : index
    %c0_147 = arith.constant 0 : index
    %227 = vector.load %arg8[%c1_145, %c0_146, %c0_147] : memref<16x32x16xf32, #tpu.memory_space<vmem>>, vector<1x32x16xf32>
    %228 = vector.shape_cast %227 : vector<1x32x16xf32> to vector<32x16xf32>
    %229 = vector.extract_strided_slice %222 {offsets = [0, 16], sizes = [16, 16], strides = [1, 1]} : vector<16x256xf32> to vector<16x16xf32>
    %cst_148 = arith.constant dense<0.000000e+00> : vector<32x16xf32>
    %230 = tpu.matmul %228, %229, %cst_148 {dimension_numbers = #tpu.dot_dimension_numbers<[1], [0], [0], [1], [0, 0, 1, 1], [], []>} : vector<32x16xf32>, vector<16x16xf32>, vector<32x16xf32> -> vector<32x16xf32>
    %231 = arith.addf %226, %230 : vector<32x16xf32>
    %c2_149 = arith.constant 2 : index
    %c0_150 = arith.constant 0 : index
    %c0_151 = arith.constant 0 : index
    %232 = vector.load %arg8[%c2_149, %c0_150, %c0_151] : memref<16x32x16xf32, #tpu.memory_space<vmem>>, vector<1x32x16xf32>
    %233 = vector.shape_cast %232 : vector<1x32x16xf32> to vector<32x16xf32>
    %234 = vector.extract_strided_slice %222 {offsets = [0, 32], sizes = [16, 16], strides = [1, 1]} : vector<16x256xf32> to vector<16x16xf32>
    %cst_152 = arith.constant dense<0.000000e+00> : vector<32x16xf32>
    %235 = tpu.matmul %233, %234, %cst_152 {dimension_numbers = #tpu.dot_dimension_numbers<[1], [0], [0], [1], [0, 0, 1, 1], [], []>} : vector<32x16xf32>, vector<16x16xf32>, vector<32x16xf32> -> vector<32x16xf32>
    %236 = arith.addf %231, %235 : vector<32x16xf32>
    %c3_153 = arith.constant 3 : index
    %c0_154 = arith.constant 0 : index
    %c0_155 = arith.constant 0 : index
    %237 = vector.load %arg8[%c3_153, %c0_154, %c0_155] : memref<16x32x16xf32, #tpu.memory_space<vmem>>, vector<1x32x16xf32>
    %238 = vector.shape_cast %237 : vector<1x32x16xf32> to vector<32x16xf32>
    %239 = vector.extract_strided_slice %222 {offsets = [0, 48], sizes = [16, 16], strides = [1, 1]} : vector<16x256xf32> to vector<16x16xf32>
    %cst_156 = arith.constant dense<0.000000e+00> : vector<32x16xf32>
    %240 = tpu.matmul %238, %239, %cst_156 {dimension_numbers = #tpu.dot_dimension_numbers<[1], [0], [0], [1], [0, 0, 1, 1], [], []>} : vector<32x16xf32>, vector<16x16xf32>, vector<32x16xf32> -> vector<32x16xf32>
    %241 = arith.addf %236, %240 : vector<32x16xf32>
    %c4_157 = arith.constant 4 : index
    %c0_158 = arith.constant 0 : index
    %c0_159 = arith.constant 0 : index
    %242 = vector.load %arg8[%c4_157, %c0_158, %c0_159] : memref<16x32x16xf32, #tpu.memory_space<vmem>>, vector<1x32x16xf32>
    %243 = vector.shape_cast %242 : vector<1x32x16xf32> to vector<32x16xf32>
    %244 = vector.extract_strided_slice %222 {offsets = [0, 64], sizes = [16, 16], strides = [1, 1]} : vector<16x256xf32> to vector<16x16xf32>
    %cst_160 = arith.constant dense<0.000000e+00> : vector<32x16xf32>
    %245 = tpu.matmul %243, %244, %cst_160 {dimension_numbers = #tpu.dot_dimension_numbers<[1], [0], [0], [1], [0, 0, 1, 1], [], []>} : vector<32x16xf32>, vector<16x16xf32>, vector<32x16xf32> -> vector<32x16xf32>
    %246 = arith.addf %241, %245 : vector<32x16xf32>
    %c5_161 = arith.constant 5 : index
    %c0_162 = arith.constant 0 : index
    %c0_163 = arith.constant 0 : index
    %247 = vector.load %arg8[%c5_161, %c0_162, %c0_163] : memref<16x32x16xf32, #tpu.memory_space<vmem>>, vector<1x32x16xf32>
    %248 = vector.shape_cast %247 : vector<1x32x16xf32> to vector<32x16xf32>
    %249 = vector.extract_strided_slice %222 {offsets = [0, 80], sizes = [16, 16], strides = [1, 1]} : vector<16x256xf32> to vector<16x16xf32>
    %cst_164 = arith.constant dense<0.000000e+00> : vector<32x16xf32>
    %250 = tpu.matmul %248, %249, %cst_164 {dimension_numbers = #tpu.dot_dimension_numbers<[1], [0], [0], [1], [0, 0, 1, 1], [], []>} : vector<32x16xf32>, vector<16x16xf32>, vector<32x16xf32> -> vector<32x16xf32>
    %251 = arith.addf %246, %250 : vector<32x16xf32>
    %c6_165 = arith.constant 6 : index
    %c0_166 = arith.constant 0 : index
    %c0_167 = arith.constant 0 : index
    %252 = vector.load %arg8[%c6_165, %c0_166, %c0_167] : memref<16x32x16xf32, #tpu.memory_space<vmem>>, vector<1x32x16xf32>
    %253 = vector.shape_cast %252 : vector<1x32x16xf32> to vector<32x16xf32>
    %254 = vector.extract_strided_slice %222 {offsets = [0, 96], sizes = [16, 16], strides = [1, 1]} : vector<16x256xf32> to vector<16x16xf32>
    %cst_168 = arith.constant dense<0.000000e+00> : vector<32x16xf32>
    %255 = tpu.matmul %253, %254, %cst_168 {dimension_numbers = #tpu.dot_dimension_numbers<[1], [0], [0], [1], [0, 0, 1, 1], [], []>} : vector<32x16xf32>, vector<16x16xf32>, vector<32x16xf32> -> vector<32x16xf32>
    %256 = arith.addf %251, %255 : vector<32x16xf32>
    %c7_169 = arith.constant 7 : index
    %c0_170 = arith.constant 0 : index
    %c0_171 = arith.constant 0 : index
    %257 = vector.load %arg8[%c7_169, %c0_170, %c0_171] : memref<16x32x16xf32, #tpu.memory_space<vmem>>, vector<1x32x16xf32>
    %258 = vector.shape_cast %257 : vector<1x32x16xf32> to vector<32x16xf32>
    %259 = vector.extract_strided_slice %222 {offsets = [0, 112], sizes = [16, 16], strides = [1, 1]} : vector<16x256xf32> to vector<16x16xf32>
    %cst_172 = arith.constant dense<0.000000e+00> : vector<32x16xf32>
    %260 = tpu.matmul %258, %259, %cst_172 {dimension_numbers = #tpu.dot_dimension_numbers<[1], [0], [0], [1], [0, 0, 1, 1], [], []>} : vector<32x16xf32>, vector<16x16xf32>, vector<32x16xf32> -> vector<32x16xf32>
    %261 = arith.addf %256, %260 : vector<32x16xf32>
    %c8_173 = arith.constant 8 : index
    %c0_174 = arith.constant 0 : index
    %c0_175 = arith.constant 0 : index
    %262 = vector.load %arg8[%c8_173, %c0_174, %c0_175] : memref<16x32x16xf32, #tpu.memory_space<vmem>>, vector<1x32x16xf32>
    %263 = vector.shape_cast %262 : vector<1x32x16xf32> to vector<32x16xf32>
    %264 = vector.extract_strided_slice %222 {offsets = [0, 128], sizes = [16, 16], strides = [1, 1]} : vector<16x256xf32> to vector<16x16xf32>
    %cst_176 = arith.constant dense<0.000000e+00> : vector<32x16xf32>
    %265 = tpu.matmul %263, %264, %cst_176 {dimension_numbers = #tpu.dot_dimension_numbers<[1], [0], [0], [1], [0, 0, 1, 1], [], []>} : vector<32x16xf32>, vector<16x16xf32>, vector<32x16xf32> -> vector<32x16xf32>
    %266 = arith.addf %261, %265 : vector<32x16xf32>
    %c9_177 = arith.constant 9 : index
    %c0_178 = arith.constant 0 : index
    %c0_179 = arith.constant 0 : index
    %267 = vector.load %arg8[%c9_177, %c0_178, %c0_179] : memref<16x32x16xf32, #tpu.memory_space<vmem>>, vector<1x32x16xf32>
    %268 = vector.shape_cast %267 : vector<1x32x16xf32> to vector<32x16xf32>
    %269 = vector.extract_strided_slice %222 {offsets = [0, 144], sizes = [16, 16], strides = [1, 1]} : vector<16x256xf32> to vector<16x16xf32>
    %cst_180 = arith.constant dense<0.000000e+00> : vector<32x16xf32>
    %270 = tpu.matmul %268, %269, %cst_180 {dimension_numbers = #tpu.dot_dimension_numbers<[1], [0], [0], [1], [0, 0, 1, 1], [], []>} : vector<32x16xf32>, vector<16x16xf32>, vector<32x16xf32> -> vector<32x16xf32>
    %271 = arith.addf %266, %270 : vector<32x16xf32>
    %c10_181 = arith.constant 10 : index
    %c0_182 = arith.constant 0 : index
    %c0_183 = arith.constant 0 : index
    %272 = vector.load %arg8[%c10_181, %c0_182, %c0_183] : memref<16x32x16xf32, #tpu.memory_space<vmem>>, vector<1x32x16xf32>
    %273 = vector.shape_cast %272 : vector<1x32x16xf32> to vector<32x16xf32>
    %274 = vector.extract_strided_slice %222 {offsets = [0, 160], sizes = [16, 16], strides = [1, 1]} : vector<16x256xf32> to vector<16x16xf32>
    %cst_184 = arith.constant dense<0.000000e+00> : vector<32x16xf32>
    %275 = tpu.matmul %273, %274, %cst_184 {dimension_numbers = #tpu.dot_dimension_numbers<[1], [0], [0], [1], [0, 0, 1, 1], [], []>} : vector<32x16xf32>, vector<16x16xf32>, vector<32x16xf32> -> vector<32x16xf32>
    %276 = arith.addf %271, %275 : vector<32x16xf32>
    %c11_185 = arith.constant 11 : index
    %c0_186 = arith.constant 0 : index
    %c0_187 = arith.constant 0 : index
    %277 = vector.load %arg8[%c11_185, %c0_186, %c0_187] : memref<16x32x16xf32, #tpu.memory_space<vmem>>, vector<1x32x16xf32>
    %278 = vector.shape_cast %277 : vector<1x32x16xf32> to vector<32x16xf32>
    %279 = vector.extract_strided_slice %222 {offsets = [0, 176], sizes = [16, 16], strides = [1, 1]} : vector<16x256xf32> to vector<16x16xf32>
    %cst_188 = arith.constant dense<0.000000e+00> : vector<32x16xf32>
    %280 = tpu.matmul %278, %279, %cst_188 {dimension_numbers = #tpu.dot_dimension_numbers<[1], [0], [0], [1], [0, 0, 1, 1], [], []>} : vector<32x16xf32>, vector<16x16xf32>, vector<32x16xf32> -> vector<32x16xf32>
    %281 = arith.addf %276, %280 : vector<32x16xf32>
    %c12_189 = arith.constant 12 : index
    %c0_190 = arith.constant 0 : index
    %c0_191 = arith.constant 0 : index
    %282 = vector.load %arg8[%c12_189, %c0_190, %c0_191] : memref<16x32x16xf32, #tpu.memory_space<vmem>>, vector<1x32x16xf32>
    %283 = vector.shape_cast %282 : vector<1x32x16xf32> to vector<32x16xf32>
    %284 = vector.extract_strided_slice %222 {offsets = [0, 192], sizes = [16, 16], strides = [1, 1]} : vector<16x256xf32> to vector<16x16xf32>
    %cst_192 = arith.constant dense<0.000000e+00> : vector<32x16xf32>
    %285 = tpu.matmul %283, %284, %cst_192 {dimension_numbers = #tpu.dot_dimension_numbers<[1], [0], [0], [1], [0, 0, 1, 1], [], []>} : vector<32x16xf32>, vector<16x16xf32>, vector<32x16xf32> -> vector<32x16xf32>
    %286 = arith.addf %281, %285 : vector<32x16xf32>
    %c13_193 = arith.constant 13 : index
    %c0_194 = arith.constant 0 : index
    %c0_195 = arith.constant 0 : index
    %287 = vector.load %arg8[%c13_193, %c0_194, %c0_195] : memref<16x32x16xf32, #tpu.memory_space<vmem>>, vector<1x32x16xf32>
    %288 = vector.shape_cast %287 : vector<1x32x16xf32> to vector<32x16xf32>
    %289 = vector.extract_strided_slice %222 {offsets = [0, 208], sizes = [16, 16], strides = [1, 1]} : vector<16x256xf32> to vector<16x16xf32>
    %cst_196 = arith.constant dense<0.000000e+00> : vector<32x16xf32>
    %290 = tpu.matmul %288, %289, %cst_196 {dimension_numbers = #tpu.dot_dimension_numbers<[1], [0], [0], [1], [0, 0, 1, 1], [], []>} : vector<32x16xf32>, vector<16x16xf32>, vector<32x16xf32> -> vector<32x16xf32>
    %291 = arith.addf %286, %290 : vector<32x16xf32>
    %c14_197 = arith.constant 14 : index
    %c0_198 = arith.constant 0 : index
    %c0_199 = arith.constant 0 : index
    %292 = vector.load %arg8[%c14_197, %c0_198, %c0_199] : memref<16x32x16xf32, #tpu.memory_space<vmem>>, vector<1x32x16xf32>
    %293 = vector.shape_cast %292 : vector<1x32x16xf32> to vector<32x16xf32>
    %294 = vector.extract_strided_slice %222 {offsets = [0, 224], sizes = [16, 16], strides = [1, 1]} : vector<16x256xf32> to vector<16x16xf32>
    %cst_200 = arith.constant dense<0.000000e+00> : vector<32x16xf32>
    %295 = tpu.matmul %293, %294, %cst_200 {dimension_numbers = #tpu.dot_dimension_numbers<[1], [0], [0], [1], [0, 0, 1, 1], [], []>} : vector<32x16xf32>, vector<16x16xf32>, vector<32x16xf32> -> vector<32x16xf32>
    %296 = arith.addf %291, %295 : vector<32x16xf32>
    %c15_201 = arith.constant 15 : index
    %c0_202 = arith.constant 0 : index
    %c0_203 = arith.constant 0 : index
    %297 = vector.load %arg8[%c15_201, %c0_202, %c0_203] : memref<16x32x16xf32, #tpu.memory_space<vmem>>, vector<1x32x16xf32>
    %298 = vector.shape_cast %297 : vector<1x32x16xf32> to vector<32x16xf32>
    %299 = vector.extract_strided_slice %222 {offsets = [0, 240], sizes = [16, 16], strides = [1, 1]} : vector<16x256xf32> to vector<16x16xf32>
    %cst_204 = arith.constant dense<0.000000e+00> : vector<32x16xf32>
    %300 = tpu.matmul %298, %299, %cst_204 {dimension_numbers = #tpu.dot_dimension_numbers<[1], [0], [0], [1], [0, 0, 1, 1], [], []>} : vector<32x16xf32>, vector<16x16xf32>, vector<32x16xf32> -> vector<32x16xf32>
    %301 = arith.addf %296, %300 : vector<32x16xf32>
    %302 = vector.extract_strided_slice %221 {offsets = [16, 0], sizes = [16, 256], strides = [1, 1]} : vector<32x256xf32> to vector<16x256xf32>
    %c0_205 = arith.constant 0 : index
    %c0_206 = arith.constant 0 : index
    %c0_207 = arith.constant 0 : index
    %303 = vector.load %arg8[%c0_205, %c0_206, %c0_207] : memref<16x32x16xf32, #tpu.memory_space<vmem>>, vector<1x32x16xf32>
    %304 = vector.shape_cast %303 : vector<1x32x16xf32> to vector<32x16xf32>
    %305 = vector.extract_strided_slice %302 {offsets = [0, 0], sizes = [16, 16], strides = [1, 1]} : vector<16x256xf32> to vector<16x16xf32>
    %cst_208 = arith.constant dense<0.000000e+00> : vector<32x16xf32>
    %306 = tpu.matmul %304, %305, %cst_208 {dimension_numbers = #tpu.dot_dimension_numbers<[1], [0], [0], [1], [0, 0, 1, 1], [], []>} : vector<32x16xf32>, vector<16x16xf32>, vector<32x16xf32> -> vector<32x16xf32>
    %c1_209 = arith.constant 1 : index
    %c0_210 = arith.constant 0 : index
    %c0_211 = arith.constant 0 : index
    %307 = vector.load %arg8[%c1_209, %c0_210, %c0_211] : memref<16x32x16xf32, #tpu.memory_space<vmem>>, vector<1x32x16xf32>
    %308 = vector.shape_cast %307 : vector<1x32x16xf32> to vector<32x16xf32>
    %309 = vector.extract_strided_slice %302 {offsets = [0, 16], sizes = [16, 16], strides = [1, 1]} : vector<16x256xf32> to vector<16x16xf32>
    %cst_212 = arith.constant dense<0.000000e+00> : vector<32x16xf32>
    %310 = tpu.matmul %308, %309, %cst_212 {dimension_numbers = #tpu.dot_dimension_numbers<[1], [0], [0], [1], [0, 0, 1, 1], [], []>} : vector<32x16xf32>, vector<16x16xf32>, vector<32x16xf32> -> vector<32x16xf32>
    %311 = arith.addf %306, %310 : vector<32x16xf32>
    %c2_213 = arith.constant 2 : index
    %c0_214 = arith.constant 0 : index
    %c0_215 = arith.constant 0 : index
    %312 = vector.load %arg8[%c2_213, %c0_214, %c0_215] : memref<16x32x16xf32, #tpu.memory_space<vmem>>, vector<1x32x16xf32>
    %313 = vector.shape_cast %312 : vector<1x32x16xf32> to vector<32x16xf32>
    %314 = vector.extract_strided_slice %302 {offsets = [0, 32], sizes = [16, 16], strides = [1, 1]} : vector<16x256xf32> to vector<16x16xf32>
    %cst_216 = arith.constant dense<0.000000e+00> : vector<32x16xf32>
    %315 = tpu.matmul %313, %314, %cst_216 {dimension_numbers = #tpu.dot_dimension_numbers<[1], [0], [0], [1], [0, 0, 1, 1], [], []>} : vector<32x16xf32>, vector<16x16xf32>, vector<32x16xf32> -> vector<32x16xf32>
    %316 = arith.addf %311, %315 : vector<32x16xf32>
    %c3_217 = arith.constant 3 : index
    %c0_218 = arith.constant 0 : index
    %c0_219 = arith.constant 0 : index
    %317 = vector.load %arg8[%c3_217, %c0_218, %c0_219] : memref<16x32x16xf32, #tpu.memory_space<vmem>>, vector<1x32x16xf32>
    %318 = vector.shape_cast %317 : vector<1x32x16xf32> to vector<32x16xf32>
    %319 = vector.extract_strided_slice %302 {offsets = [0, 48], sizes = [16, 16], strides = [1, 1]} : vector<16x256xf32> to vector<16x16xf32>
    %cst_220 = arith.constant dense<0.000000e+00> : vector<32x16xf32>
    %320 = tpu.matmul %318, %319, %cst_220 {dimension_numbers = #tpu.dot_dimension_numbers<[1], [0], [0], [1], [0, 0, 1, 1], [], []>} : vector<32x16xf32>, vector<16x16xf32>, vector<32x16xf32> -> vector<32x16xf32>
    %321 = arith.addf %316, %320 : vector<32x16xf32>
    %c4_221 = arith.constant 4 : index
    %c0_222 = arith.constant 0 : index
    %c0_223 = arith.constant 0 : index
    %322 = vector.load %arg8[%c4_221, %c0_222, %c0_223] : memref<16x32x16xf32, #tpu.memory_space<vmem>>, vector<1x32x16xf32>
    %323 = vector.shape_cast %322 : vector<1x32x16xf32> to vector<32x16xf32>
    %324 = vector.extract_strided_slice %302 {offsets = [0, 64], sizes = [16, 16], strides = [1, 1]} : vector<16x256xf32> to vector<16x16xf32>
    %cst_224 = arith.constant dense<0.000000e+00> : vector<32x16xf32>
    %325 = tpu.matmul %323, %324, %cst_224 {dimension_numbers = #tpu.dot_dimension_numbers<[1], [0], [0], [1], [0, 0, 1, 1], [], []>} : vector<32x16xf32>, vector<16x16xf32>, vector<32x16xf32> -> vector<32x16xf32>
    %326 = arith.addf %321, %325 : vector<32x16xf32>
    %c5_225 = arith.constant 5 : index
    %c0_226 = arith.constant 0 : index
    %c0_227 = arith.constant 0 : index
    %327 = vector.load %arg8[%c5_225, %c0_226, %c0_227] : memref<16x32x16xf32, #tpu.memory_space<vmem>>, vector<1x32x16xf32>
    %328 = vector.shape_cast %327 : vector<1x32x16xf32> to vector<32x16xf32>
    %329 = vector.extract_strided_slice %302 {offsets = [0, 80], sizes = [16, 16], strides = [1, 1]} : vector<16x256xf32> to vector<16x16xf32>
    %cst_228 = arith.constant dense<0.000000e+00> : vector<32x16xf32>
    %330 = tpu.matmul %328, %329, %cst_228 {dimension_numbers = #tpu.dot_dimension_numbers<[1], [0], [0], [1], [0, 0, 1, 1], [], []>} : vector<32x16xf32>, vector<16x16xf32>, vector<32x16xf32> -> vector<32x16xf32>
    %331 = arith.addf %326, %330 : vector<32x16xf32>
    %c6_229 = arith.constant 6 : index
    %c0_230 = arith.constant 0 : index
    %c0_231 = arith.constant 0 : index
    %332 = vector.load %arg8[%c6_229, %c0_230, %c0_231] : memref<16x32x16xf32, #tpu.memory_space<vmem>>, vector<1x32x16xf32>
    %333 = vector.shape_cast %332 : vector<1x32x16xf32> to vector<32x16xf32>
    %334 = vector.extract_strided_slice %302 {offsets = [0, 96], sizes = [16, 16], strides = [1, 1]} : vector<16x256xf32> to vector<16x16xf32>
    %cst_232 = arith.constant dense<0.000000e+00> : vector<32x16xf32>
    %335 = tpu.matmul %333, %334, %cst_232 {dimension_numbers = #tpu.dot_dimension_numbers<[1], [0], [0], [1], [0, 0, 1, 1], [], []>} : vector<32x16xf32>, vector<16x16xf32>, vector<32x16xf32> -> vector<32x16xf32>
    %336 = arith.addf %331, %335 : vector<32x16xf32>
    %c7_233 = arith.constant 7 : index
    %c0_234 = arith.constant 0 : index
    %c0_235 = arith.constant 0 : index
    %337 = vector.load %arg8[%c7_233, %c0_234, %c0_235] : memref<16x32x16xf32, #tpu.memory_space<vmem>>, vector<1x32x16xf32>
    %338 = vector.shape_cast %337 : vector<1x32x16xf32> to vector<32x16xf32>
    %339 = vector.extract_strided_slice %302 {offsets = [0, 112], sizes = [16, 16], strides = [1, 1]} : vector<16x256xf32> to vector<16x16xf32>
    %cst_236 = arith.constant dense<0.000000e+00> : vector<32x16xf32>
    %340 = tpu.matmul %338, %339, %cst_236 {dimension_numbers = #tpu.dot_dimension_numbers<[1], [0], [0], [1], [0, 0, 1, 1], [], []>} : vector<32x16xf32>, vector<16x16xf32>, vector<32x16xf32> -> vector<32x16xf32>
    %341 = arith.addf %336, %340 : vector<32x16xf32>
    %c8_237 = arith.constant 8 : index
    %c0_238 = arith.constant 0 : index
    %c0_239 = arith.constant 0 : index
    %342 = vector.load %arg8[%c8_237, %c0_238, %c0_239] : memref<16x32x16xf32, #tpu.memory_space<vmem>>, vector<1x32x16xf32>
    %343 = vector.shape_cast %342 : vector<1x32x16xf32> to vector<32x16xf32>
    %344 = vector.extract_strided_slice %302 {offsets = [0, 128], sizes = [16, 16], strides = [1, 1]} : vector<16x256xf32> to vector<16x16xf32>
    %cst_240 = arith.constant dense<0.000000e+00> : vector<32x16xf32>
    %345 = tpu.matmul %343, %344, %cst_240 {dimension_numbers = #tpu.dot_dimension_numbers<[1], [0], [0], [1], [0, 0, 1, 1], [], []>} : vector<32x16xf32>, vector<16x16xf32>, vector<32x16xf32> -> vector<32x16xf32>
    %346 = arith.addf %341, %345 : vector<32x16xf32>
    %c9_241 = arith.constant 9 : index
    %c0_242 = arith.constant 0 : index
    %c0_243 = arith.constant 0 : index
    %347 = vector.load %arg8[%c9_241, %c0_242, %c0_243] : memref<16x32x16xf32, #tpu.memory_space<vmem>>, vector<1x32x16xf32>
    %348 = vector.shape_cast %347 : vector<1x32x16xf32> to vector<32x16xf32>
    %349 = vector.extract_strided_slice %302 {offsets = [0, 144], sizes = [16, 16], strides = [1, 1]} : vector<16x256xf32> to vector<16x16xf32>
    %cst_244 = arith.constant dense<0.000000e+00> : vector<32x16xf32>
    %350 = tpu.matmul %348, %349, %cst_244 {dimension_numbers = #tpu.dot_dimension_numbers<[1], [0], [0], [1], [0, 0, 1, 1], [], []>} : vector<32x16xf32>, vector<16x16xf32>, vector<32x16xf32> -> vector<32x16xf32>
    %351 = arith.addf %346, %350 : vector<32x16xf32>
    %c10_245 = arith.constant 10 : index
    %c0_246 = arith.constant 0 : index
    %c0_247 = arith.constant 0 : index
    %352 = vector.load %arg8[%c10_245, %c0_246, %c0_247] : memref<16x32x16xf32, #tpu.memory_space<vmem>>, vector<1x32x16xf32>
    %353 = vector.shape_cast %352 : vector<1x32x16xf32> to vector<32x16xf32>
    %354 = vector.extract_strided_slice %302 {offsets = [0, 160], sizes = [16, 16], strides = [1, 1]} : vector<16x256xf32> to vector<16x16xf32>
    %cst_248 = arith.constant dense<0.000000e+00> : vector<32x16xf32>
    %355 = tpu.matmul %353, %354, %cst_248 {dimension_numbers = #tpu.dot_dimension_numbers<[1], [0], [0], [1], [0, 0, 1, 1], [], []>} : vector<32x16xf32>, vector<16x16xf32>, vector<32x16xf32> -> vector<32x16xf32>
    %356 = arith.addf %351, %355 : vector<32x16xf32>
    %c11_249 = arith.constant 11 : index
    %c0_250 = arith.constant 0 : index
    %c0_251 = arith.constant 0 : index
    %357 = vector.load %arg8[%c11_249, %c0_250, %c0_251] : memref<16x32x16xf32, #tpu.memory_space<vmem>>, vector<1x32x16xf32>
    %358 = vector.shape_cast %357 : vector<1x32x16xf32> to vector<32x16xf32>
    %359 = vector.extract_strided_slice %302 {offsets = [0, 176], sizes = [16, 16], strides = [1, 1]} : vector<16x256xf32> to vector<16x16xf32>
    %cst_252 = arith.constant dense<0.000000e+00> : vector<32x16xf32>
    %360 = tpu.matmul %358, %359, %cst_252 {dimension_numbers = #tpu.dot_dimension_numbers<[1], [0], [0], [1], [0, 0, 1, 1], [], []>} : vector<32x16xf32>, vector<16x16xf32>, vector<32x16xf32> -> vector<32x16xf32>
    %361 = arith.addf %356, %360 : vector<32x16xf32>
    %c12_253 = arith.constant 12 : index
    %c0_254 = arith.constant 0 : index
    %c0_255 = arith.constant 0 : index
    %362 = vector.load %arg8[%c12_253, %c0_254, %c0_255] : memref<16x32x16xf32, #tpu.memory_space<vmem>>, vector<1x32x16xf32>
    %363 = vector.shape_cast %362 : vector<1x32x16xf32> to vector<32x16xf32>
    %364 = vector.extract_strided_slice %302 {offsets = [0, 192], sizes = [16, 16], strides = [1, 1]} : vector<16x256xf32> to vector<16x16xf32>
    %cst_256 = arith.constant dense<0.000000e+00> : vector<32x16xf32>
    %365 = tpu.matmul %363, %364, %cst_256 {dimension_numbers = #tpu.dot_dimension_numbers<[1], [0], [0], [1], [0, 0, 1, 1], [], []>} : vector<32x16xf32>, vector<16x16xf32>, vector<32x16xf32> -> vector<32x16xf32>
    %366 = arith.addf %361, %365 : vector<32x16xf32>
    %c13_257 = arith.constant 13 : index
    %c0_258 = arith.constant 0 : index
    %c0_259 = arith.constant 0 : index
    %367 = vector.load %arg8[%c13_257, %c0_258, %c0_259] : memref<16x32x16xf32, #tpu.memory_space<vmem>>, vector<1x32x16xf32>
    %368 = vector.shape_cast %367 : vector<1x32x16xf32> to vector<32x16xf32>
    %369 = vector.extract_strided_slice %302 {offsets = [0, 208], sizes = [16, 16], strides = [1, 1]} : vector<16x256xf32> to vector<16x16xf32>
    %cst_260 = arith.constant dense<0.000000e+00> : vector<32x16xf32>
    %370 = tpu.matmul %368, %369, %cst_260 {dimension_numbers = #tpu.dot_dimension_numbers<[1], [0], [0], [1], [0, 0, 1, 1], [], []>} : vector<32x16xf32>, vector<16x16xf32>, vector<32x16xf32> -> vector<32x16xf32>
    %371 = arith.addf %366, %370 : vector<32x16xf32>
    %c14_261 = arith.constant 14 : index
    %c0_262 = arith.constant 0 : index
    %c0_263 = arith.constant 0 : index
    %372 = vector.load %arg8[%c14_261, %c0_262, %c0_263] : memref<16x32x16xf32, #tpu.memory_space<vmem>>, vector<1x32x16xf32>
    %373 = vector.shape_cast %372 : vector<1x32x16xf32> to vector<32x16xf32>
    %374 = vector.extract_strided_slice %302 {offsets = [0, 224], sizes = [16, 16], strides = [1, 1]} : vector<16x256xf32> to vector<16x16xf32>
    %cst_264 = arith.constant dense<0.000000e+00> : vector<32x16xf32>
    %375 = tpu.matmul %373, %374, %cst_264 {dimension_numbers = #tpu.dot_dimension_numbers<[1], [0], [0], [1], [0, 0, 1, 1], [], []>} : vector<32x16xf32>, vector<16x16xf32>, vector<32x16xf32> -> vector<32x16xf32>
    %376 = arith.addf %371, %375 : vector<32x16xf32>
    %c15_265 = arith.constant 15 : index
    %c0_266 = arith.constant 0 : index
    %c0_267 = arith.constant 0 : index
    %377 = vector.load %arg8[%c15_265, %c0_266, %c0_267] : memref<16x32x16xf32, #tpu.memory_space<vmem>>, vector<1x32x16xf32>
    %378 = vector.shape_cast %377 : vector<1x32x16xf32> to vector<32x16xf32>
    %379 = vector.extract_strided_slice %302 {offsets = [0, 240], sizes = [16, 16], strides = [1, 1]} : vector<16x256xf32> to vector<16x16xf32>
    %cst_268 = arith.constant dense<0.000000e+00> : vector<32x16xf32>
    %380 = tpu.matmul %378, %379, %cst_268 {dimension_numbers = #tpu.dot_dimension_numbers<[1], [0], [0], [1], [0, 0, 1, 1], [], []>} : vector<32x16xf32>, vector<16x16xf32>, vector<32x16xf32> -> vector<32x16xf32>
    %381 = arith.addf %376, %380 : vector<32x16xf32>
    %382 = tpu.concatenate %301, %381 in 0 : vector<32x16xf32>, vector<32x16xf32> -> vector<64x16xf32>
    %cst_269 = arith.constant dense<0.000000e+00> : vector<64xf32>
    %383 = vector.multi_reduction <add>, %382, %cst_269 [1] : vector<64x16xf32> to vector<64xf32>
    %384 = vector.shape_cast %383 : vector<64xf32> to vector<64x1xf32>
    %385 = arith.mulf %382, %382 : vector<64x16xf32>
    %cst_270 = arith.constant dense<0.000000e+00> : vector<64xf32>
    %386 = vector.multi_reduction <add>, %385, %cst_270 [1] : vector<64x16xf32> to vector<64xf32>
    %387 = vector.shape_cast %386 : vector<64xf32> to vector<64x1xf32>
    %388 = vector.extract_strided_slice %384 {offsets = [0, 0], sizes = [32, 1], strides = [1, 1]} : vector<64x1xf32> to vector<32x1xf32>
    %389 = vector.extract_strided_slice %387 {offsets = [0, 0], sizes = [32, 1], strides = [1, 1]} : vector<64x1xf32> to vector<32x1xf32>
    %390 = vector.extract_strided_slice %384 {offsets = [32, 0], sizes = [32, 1], strides = [1, 1]} : vector<64x1xf32> to vector<32x1xf32>
    %391 = arith.addf %388, %390 : vector<32x1xf32>
    %392 = vector.extract_strided_slice %387 {offsets = [32, 0], sizes = [32, 1], strides = [1, 1]} : vector<64x1xf32> to vector<32x1xf32>
    %393 = arith.addf %389, %392 : vector<32x1xf32>
    %cst_271 = arith.constant 3.125000e-02 : f32
    %394 = vector.broadcast %cst_271 : f32 to vector<32x1xf32>
    %395 = arith.mulf %391, %394 : vector<32x1xf32>
    %cst_272 = arith.constant 3.125000e-02 : f32
    %396 = vector.broadcast %cst_272 : f32 to vector<32x1xf32>
    %397 = arith.mulf %393, %396 : vector<32x1xf32>
    %398 = arith.mulf %395, %395 : vector<32x1xf32>
    %399 = arith.subf %397, %398 : vector<32x1xf32>
    %cst_273 = arith.constant 0.000000e+00 : f32
    %400 = vector.broadcast %cst_273 : f32 to vector<32x1xf32>
    %401 = arith.maximumf %399, %400 : vector<32x1xf32>
    %cst_274 = arith.constant 9.99999974E-6 : f32
    %402 = vector.broadcast %cst_274 : f32 to vector<32x1xf32>
    %403 = arith.addf %401, %402 : vector<32x1xf32>
    %404 = math.rsqrt %403 : vector<32x1xf32>
    %405 = tpu.concatenate %395, %395 in 0 : vector<32x1xf32>, vector<32x1xf32> -> vector<64x1xf32>
    %406 = tpu.concatenate %404, %404 in 0 : vector<32x1xf32>, vector<32x1xf32> -> vector<64x1xf32>
    %407 = vector.broadcast %405 : vector<64x1xf32> to vector<64x16xf32>
    %408 = arith.subf %382, %407 : vector<64x16xf32>
    %409 = vector.broadcast %406 : vector<64x1xf32> to vector<64x16xf32>
    %410 = arith.mulf %408, %409 : vector<64x16xf32>
    %c0_275 = arith.constant 0 : index
    %c0_276 = arith.constant 0 : index
    %411 = vector.load %arg9[%c0_275, %c0_276] : memref<64x1xf32, #tpu.memory_space<vmem>>, vector<64x1xf32>
    %412 = vector.broadcast %411 : vector<64x1xf32> to vector<64x16xf32>
    %413 = arith.mulf %410, %412 : vector<64x16xf32>
    %c0_277 = arith.constant 0 : index
    %c0_278 = arith.constant 0 : index
    %414 = vector.load %arg10[%c0_277, %c0_278] : memref<64x1xf32, #tpu.memory_space<vmem>>, vector<64x1xf32>
    %415 = vector.broadcast %414 : vector<64x1xf32> to vector<64x16xf32>
    %416 = arith.addf %413, %415 : vector<64x16xf32>
    %cst_279 = arith.constant 0.000000e+00 : f32
    %417 = vector.broadcast %cst_279 : f32 to vector<64x16xf32>
    %418 = arith.cmpf ogt, %416, %417 : vector<64x16xf32>
    %cst_280 = arith.constant 2.000000e-01 : f32
    %419 = vector.broadcast %cst_280 : f32 to vector<64x16xf32>
    %420 = arith.mulf %419, %416 : vector<64x16xf32>
    %421 = arith.select %418, %416, %420 : vector<64x16xi1>, vector<64x16xf32>
    %c0_281 = arith.constant 0 : index
    %c0_282 = arith.constant 0 : index
    %422 = vector.load %arg11[%c0_281, %c0_282] : memref<64x16xf32, #tpu.memory_space<vmem>>, vector<64x16xf32>
    %423 = arith.mulf %421, %422 : vector<64x16xf32>
    %c0_283 = arith.constant 0 : index
    %c0_284 = arith.constant 0 : index
    %424 = vector.load %arg13[%c0_283, %c0_284] : memref<2x64xf32, #tpu.memory_space<vmem>>, vector<2x64xf32>
    %cst_285 = arith.constant dense<0.000000e+00> : vector<2x16xf32>
    %425 = tpu.matmul %424, %423, %cst_285 {dimension_numbers = #tpu.dot_dimension_numbers<[1], [0], [0], [1], [0, 0, 1, 1], [], []>} : vector<2x64xf32>, vector<64x16xf32>, vector<2x16xf32> -> vector<2x16xf32>
    %cst_286 = arith.constant dense<0.000000e+00> : vector<2xf32>
    %426 = vector.multi_reduction <add>, %425, %cst_286 [1] : vector<2x16xf32> to vector<2xf32>
    %427 = vector.shape_cast %426 : vector<2xf32> to vector<2x1xf32>
    %c0_287 = arith.constant 0 : index
    %c0_288 = arith.constant 0 : index
    %428 = vector.load %arg12[%c0_287, %c0_288] : memref<1x1xf32, #tpu.memory_space<vmem>>, vector<1x1xf32>
    %429 = vector.broadcast %428 : vector<1x1xf32> to vector<2x1xf32>
    %430 = arith.addf %427, %429 : vector<2x1xf32>
    %431 = arith.negf %430 : vector<2x1xf32>
    %432 = math.exp %431 : vector<2x1xf32>
    %cst_289 = arith.constant 1.000000e+00 : f32
    %433 = vector.broadcast %cst_289 : f32 to vector<2x1xf32>
    %434 = arith.addf %433, %432 : vector<2x1xf32>
    %435 = arith.divf %433, %434 : vector<2x1xf32>
    %c0_290 = arith.constant 0 : index
    %c0_291 = arith.constant 0 : index
    %436 = vector.load %arg14[%c0_290, %c0_291] : memref<2x1xf32, #tpu.memory_space<vmem>>, vector<2x1xf32>
    tpu.vector_store %arg14[%c0_290, %c0_291], %435 {strides = array<i32>} : memref<2x1xf32, #tpu.memory_space<vmem>>, vector<2x1xf32>,
    return
  }
}

</mosaic_0001>

<llo_original>
// kernel: discriminator_forward.1
$region0: #{discriminator_forward.1}
  #allocation0 [shape = 'u32[]', space=smem, size = 0x4, offset = 0x4, fixed_abs, tag = 'smem constant byte address 0x4 - core index']
  #allocation1 [shape = 'u32[144,128]{1,0:T(1,128)}', space=vmem, size = 0x12000, scoped, tag = 'internal scratch']
  #allocation2 [shape = 'f32[1,1]{1,0:T(1,128)S(1)}', space=vmem, size = 0x200, scoped, tag = 'scoped memory for discriminator_forward.1']
  %s0 = inlined_call_operand.vmem [shape: f32[96,256], index: 0, kind: input, shape index: {}]
  %s1 = inlined_call_operand.vmem [shape: f32[8,48], index: 1, kind: input, shape index: {}]
  %s2 = inlined_call_operand.vmem [shape: f32[16,1], index: 2, kind: input, shape index: {}]
  %s3 = inlined_call_operand.vmem [shape: s8[256,1024], index: 3, kind: input, shape index: {}]
  %s4 = inlined_call_operand.vmem [shape: f32[16,16,8], index: 4, kind: input, shape index: {}]
  %s5 = inlined_call_operand.vmem [shape: f32[32,1], index: 5, kind: input, shape index: {}]
  %s6 = inlined_call_operand.vmem [shape: f32[32,1], index: 6, kind: input, shape index: {}]
  %s7 = inlined_call_operand.vmem [shape: s8[64,256], index: 7, kind: input, shape index: {}]
  %s8 = inlined_call_operand.vmem [shape: f32[16,32,16], index: 8, kind: input, shape index: {}]
  %s9 = inlined_call_operand.vmem [shape: f32[64,1], index: 9, kind: input, shape index: {}]
  %s10 = inlined_call_operand.vmem [shape: f32[64,1], index: 10, kind: input, shape index: {}]
  %s11 = inlined_call_operand.vmem [shape: f32[64,16], index: 11, kind: input, shape index: {}]
  %s12 = inlined_call_operand.<no memory space> [shape: f32[1,1], index: 12, kind: input, shape index: {}]
  %s13 = inlined_call_operand.vmem [shape: f32[2,64], index: 13, kind: input, shape index: {}]
  %s14 = inlined_call_operand.vmem [shape: f32[2,1], index: 14, kind: output, shape index: {}]
  %s15 = sld [smem:[#allocation0]]
  $region66: #{discriminator_forward.1} parent=0
    _
  %s17 = ssub.s32 1, %s15
  %s18 = scalar_select 0, %s17, %s15
  %v19 = vstv %s12
  %20 = vst [vmem:[#allocation2] sm:$0x1] %v19
  // Predicated region
  $region2: #{discriminator_forward.1} parent=0 // pred_check
    _
  $region3: #{discriminator_forward.1} parent=0 // pred_check_branch
    %22 = sbr.rel (0) target = $region5
  $region4: #{discriminator_forward.1} parent=0 // pred_region
    _
  $region5: #{discriminator_forward.1} parent=0 // pred_fallthru
    _
  // Predicated region
  $region6: #{discriminator_forward.1} parent=0 // pred_check
    _
  $region7: #{discriminator_forward.1} parent=0 // pred_check_branch
    %24 = sbr.rel (0) target = $region9
  $region8: #{discriminator_forward.1} parent=0 // pred_region
    _
  $region9: #{discriminator_forward.1} parent=0 // pred_fallthru
    _
  // Predicated region
  $region10: #{discriminator_forward.1} parent=0 // pred_check
    _
  $region11: #{discriminator_forward.1} parent=0 // pred_check_branch
    %26 = sbr.rel (0) target = $region13
  $region12: #{discriminator_forward.1} parent=0 // pred_region
    _
  $region13: #{discriminator_forward.1} parent=0 // pred_fallthru
    _
  // Predicated region
  $region14: #{discriminator_forward.1} parent=0 // pred_check
    _
  $region15: #{discriminator_forward.1} parent=0 // pred_check_branch
    %28 = sbr.rel (0) target = $region17
  $region16: #{discriminator_forward.1} parent=0 // pred_region
    _
  $region17: #{discriminator_forward.1} parent=0 // pred_fallthru
    _
  // Predicated region
  $region18: #{discriminator_forward.1} parent=0 // pred_check
    _
  $region19: #{discriminator_forward.1} parent=0 // pred_check_branch
    %30 = sbr.rel (0) target = $region21
  $region20: #{discriminator_forward.1} parent=0 // pred_region
    _
  $region21: #{discriminator_forward.1} parent=0 // pred_fallthru
    _
  // Predicated region
  $region22: #{discriminator_forward.1} parent=0 // pred_check
    _
  $region23: #{discriminator_forward.1} parent=0 // pred_check_branch
    %32 = sbr.rel (0) target = $region25
  $region24: #{discriminator_forward.1} parent=0 // pred_region
    _
  $region25: #{discriminator_forward.1} parent=0 // pred_fallthru
    _
  // Predicated region
  $region26: #{discriminator_forward.1} parent=0 // pred_check
    _
  $region27: #{discriminator_forward.1} parent=0 // pred_check_branch
    %34 = sbr.rel (0) target = $region29
  $region28: #{discriminator_forward.1} parent=0 // pred_region
    _
  $region29: #{discriminator_forward.1} parent=0 // pred_fallthru
    _
  // Predicated region
  $region30: #{discriminator_forward.1} parent=0 // pred_check
    _
  $region31: #{discriminator_forward.1} parent=0 // pred_check_branch
    %36 = sbr.rel (0) target = $region33
  $region32: #{discriminator_forward.1} parent=0 // pred_region
    _
  $region33: #{discriminator_forward.1} parent=0 // pred_fallthru
    _
  // Predicated region
  $region34: #{discriminator_forward.1} parent=0 // pred_check
    _
  $region35: #{discriminator_forward.1} parent=0 // pred_check_branch
    %38 = sbr.rel (0) target = $region37
  $region36: #{discriminator_forward.1} parent=0 // pred_region
    _
  $region37: #{discriminator_forward.1} parent=0 // pred_fallthru
    _
  // Predicated region
  $region38: #{discriminator_forward.1} parent=0 // pred_check
    _
  $region39: #{discriminator_forward.1} parent=0 // pred_check_branch
    %40 = sbr.rel (0) target = $region41
  $region40: #{discriminator_forward.1} parent=0 // pred_region
    _
  $region41: #{discriminator_forward.1} parent=0 // pred_fallthru
    _
  // Predicated region
  $region42: #{discriminator_forward.1} parent=0 // pred_check
    _
  $region43: #{discriminator_forward.1} parent=0 // pred_check_branch
    %42 = sbr.rel (0) target = $region45
  $region44: #{discriminator_forward.1} parent=0 // pred_region
    _
  $region45: #{discriminator_forward.1} parent=0 // pred_fallthru
    _
  // Predicated region
  $region46: #{discriminator_forward.1} parent=0 // pred_check
    _
  $region47: #{discriminator_forward.1} parent=0 // pred_check_branch
    %44 = sbr.rel (0) target = $region49
  $region48: #{discriminator_forward.1} parent=0 // pred_region
    _
  $region49: #{discriminator_forward.1} parent=0 // pred_fallthru
    _
  // Predicated region
  $region50: #{discriminator_forward.1} parent=0 // pred_check
    _
  $region51: #{discriminator_forward.1} parent=0 // pred_check_branch
    %46 = sbr.rel (0) target = $region53
  $region52: #{discriminator_forward.1} parent=0 // pred_region
    _
  $region53: #{discriminator_forward.1} parent=0 // pred_fallthru
    _
  // Predicated region
  $region54: #{discriminator_forward.1} parent=0 // pred_check
    _
  $region55: #{discriminator_forward.1} parent=0 // pred_check_branch
    %48 = sbr.rel (0) target = $region57
  $region56: #{discriminator_forward.1} parent=0 // pred_region
    _
  $region57: #{discriminator_forward.1} parent=0 // pred_fallthru
    _
  %v49 = vld [vmem:[%s0] sm:$0xff]
  %v50 = vld [vmem:[%s0 + $0x8] sm:$0xff]
  %v51 = vld [vmem:[%s0 + $0x10] sm:$0xff]
  %v52 = vld [vmem:[%s0 + $0x18] sm:$0xff]
  %v53 = vld [vmem:[%s0 + $0x20] sm:$0xff]
  %v54 = vld [vmem:[%s0 + $0x28] sm:$0xff]
  %v55 = vld [vmem:[%s0 + $0x30] sm:$0xff]
  %v56 = vld [vmem:[%s0 + $0x38] sm:$0xff]
  %v57 = vld [vmem:[%s0 + $0x40] sm:$0xff]
  %v58 = vld [vmem:[%s0 + $0x48] sm:$0xff]
  %v59 = vld [vmem:[%s0 + $0x50] sm:$0xff]
  %v60 = vld [vmem:[%s0 + $0x58] sm:$0xff]
  %v61 = vld [vmem:[%s0 + $0x60] sm:$0xff]
  %v62 = vld [vmem:[%s0 + $0x68] sm:$0xff]
  %v63 = vld [vmem:[%s0 + $0x70] sm:$0xff]
  %v64 = vld [vmem:[%s0 + $0x78] sm:$0xff]
  %v65 = vld [vmem:[%s0 + $0x80] sm:$0xff]
  %v66 = vld [vmem:[%s0 + $0x88] sm:$0xff]
  %v67 = vld [vmem:[%s0 + $0x90] sm:$0xff]
  %v68 = vld [vmem:[%s0 + $0x98] sm:$0xff]
  %v69 = vld [vmem:[%s0 + $0xa0] sm:$0xff]
  %v70 = vld [vmem:[%s0 + $0xa8] sm:$0xff]
  %v71 = vld [vmem:[%s0 + $0xb0] sm:$0xff]
  %v72 = vld [vmem:[%s0 + $0xb8] sm:$0xff]
  %v73 = vld [vmem:[%s1] sm:$0xff]
  %vm74 = vcmask 392192
  %v76 = vsel %vm74, %v73, 0
  %78 = vmatprep.subr.mxu0 %v50
  %79 = vmatpush1.msra.mxu0 %v49
  %80 = vmatprep.subr.mxu0 %v52
  %81 = vmatpush1.msra.mxu0 %v51
  %82 = vmatprep.subr.mxu0 %v54
  %83 = vmatpush1.msra.mxu0 %v53
  %84 = vmatprep.subr.mxu0 %v56
  %85 = vmatpush1.msra.mxu0 %v55
  %86 = vmatprep.subr.mxu0 %v58
  %87 = vmatpush1.msra.mxu0 %v57
  %88 = vmatprep.subr.mxu0 %v60
  %89 = vmatpush1.msra.mxu0 %v59
  %90 = vmatprep.subr.mxu0 0.0
  %91 = vmatpush1.msra.mxu0 0.0
  %92 = vmatprep.subr.mxu0 0.0
  %93 = vmatpush1.msra.mxu0 0.0
  %94 = vmatprep.subr.mxu0 0.0
  %95 = vmatpush1.msra.mxu0 0.0
  %96 = vmatprep.subr.mxu0 0.0
  %97 = vmatpush1.msra.mxu0 0.0
  %98 = vmatprep.subr.mxu0 0.0
  %99 = vmatpush1.msra.mxu0 0.0
  %100 = vmatprep.subr.mxu0 0.0
  %101 = vmatpush1.msra.mxu0 0.0
  %102 = vmatprep.subr.mxu0 0.0
  %103 = vmatpush1.msra.mxu0 0.0
  %104 = vmatprep.subr.mxu0 0.0
  %105 = vmatpush1.msra.mxu0 0.0
  %106 = vmatprep.subr.mxu0 0.0
  %107 = vmatpush1.msra.mxu0 0.0
  %108 = vmatprep.subr.mxu0 0.0
  %109 = vmatpush1.msra.mxu0 0.0
  %110 = vmatprep.subr.mxu0 0.0
  %111 = vmatpush1.msra.mxu0 0.0
  %112 = vmatprep.subr.mxu0 0.0
  %113 = vmatpush1.msra.mxu0 0.0
  %114 = vmatprep.subr.mxu0 0.0
  %115 = vmatpush1.msra.mxu0 0.0
  %116 = vmatprep.subr.mxu0 0.0
  %117 = vmatpush1.msra.mxu0 0.0
  %118 = vmatprep.subr.mxu0 0.0
  %119 = vmatpush1.msra.mxu0 0.0
  %120 = vmatprep.subr.mxu0 0.0
  %121 = vmatpush1.msra.mxu0 0.0
  %122 = vmatprep.subr.mxu0 0.0
  %123 = vmatpush1.msra.mxu0 0.0
  %124 = vmatprep.subr.mxu0 0.0
  %125 = vmatpush1.msra.mxu0 0.0
  %126 = vmatprep.subr.mxu0 0.0
  %127 = vmatpush1.msra.mxu0 0.0
  %128 = vmatprep.subr.mxu0 0.0
  %129 = vmatpush1.msra.mxu0 0.0
  %130 = vmatprep.subr.mxu0 0.0
  %131 = vmatpush1.msra.mxu0 0.0
  %132 = vmatprep.subr.mxu0 0.0
  %133 = vmatpush1.msra.mxu0 0.0
  %134 = vmatprep.subr.mxu0 0.0
  %135 = vmatpush1.msra.mxu0 0.0
  %136 = vmatprep.subr.mxu0 0.0
  %137 = vmatpush1.msra.mxu0 0.0
  %138 = vmatprep.subr.mxu0 0.0
  %139 = vmatpush1.msra.mxu0 0.0
  %140 = vmatprep.subr.mxu0 0.0
  %141 = vmatpush1.msra.mxu0 0.0
  %142 = vmatprep.mubr.f32.mxu0 0.0
  %143 = vmatmul.mubr.f32.gmra.mrb[0].mxu0 %v76
  %v144 = vpop.f32.mrb[0].mxu0
  %v145 = vadd.f32 0.0, %v144
  %v146 = vpop.f32.mrb[0].mxu0
  %v147 = vadd.f32 0.0, %v146
  %148 = vdwg.mxu0
  %149 = vmatprep.subr.mxu0 %v62
  %150 = vmatpush1.msra.mxu0 %v61
  %151 = vmatprep.subr.mxu0 %v64
  %152 = vmatpush1.msra.mxu0 %v63
  %153 = vmatprep.subr.mxu0 %v66
  %154 = vmatpush1.msra.mxu0 %v65
  %155 = vmatprep.subr.mxu0 %v68
  %156 = vmatpush1.msra.mxu0 %v67
  %157 = vmatprep.subr.mxu0 %v70
  %158 = vmatpush1.msra.mxu0 %v69
  %159 = vmatprep.subr.mxu0 %v72
  %160 = vmatpush1.msra.mxu0 %v71
  %161 = vmatprep.subr.mxu0 0.0
  %162 = vmatpush1.msra.mxu0 0.0
  %163 = vmatprep.subr.mxu0 0.0
  %164 = vmatpush1.msra.mxu0 0.0
  %165 = vmatprep.subr.mxu0 0.0
  %166 = vmatpush1.msra.mxu0 0.0
  %167 = vmatprep.subr.mxu0 0.0
  %168 = vmatpush1.msra.mxu0 0.0
  %169 = vmatprep.subr.mxu0 0.0
  %170 = vmatpush1.msra.mxu0 0.0
  %171 = vmatprep.subr.mxu0 0.0
  %172 = vmatpush1.msra.mxu0 0.0
  %173 = vmatprep.subr.mxu0 0.0
  %174 = vmatpush1.msra.mxu0 0.0
  %175 = vmatprep.subr.mxu0 0.0
  %176 = vmatpush1.msra.mxu0 0.0
  %177 = vmatprep.subr.mxu0 0.0
  %178 = vmatpush1.msra.mxu0 0.0
  %179 = vmatprep.subr.mxu0 0.0
  %180 = vmatpush1.msra.mxu0 0.0
  %181 = vmatprep.subr.mxu0 0.0
  %182 = vmatpush1.msra.mxu0 0.0
  %183 = vmatprep.subr.mxu0 0.0
  %184 = vmatpush1.msra.mxu0 0.0
  %185 = vmatprep.subr.mxu0 0.0
  %186 = vmatpush1.msra.mxu0 0.0
  %187 = vmatprep.subr.mxu0 0.0
  %188 = vmatpush1.msra.mxu0 0.0
  %189 = vmatprep.subr.mxu0 0.0
  %190 = vmatpush1.msra.mxu0 0.0
  %191 = vmatprep.subr.mxu0 0.0
  %192 = vmatpush1.msra.mxu0 0.0
  %193 = vmatprep.subr.mxu0 0.0
  %194 = vmatpush1.msra.mxu0 0.0
  %195 = vmatprep.subr.mxu0 0.0
  %196 = vmatpush1.msra.mxu0 0.0
  %197 = vmatprep.subr.mxu0 0.0
  %198 = vmatpush1.msra.mxu0 0.0
  %199 = vmatprep.subr.mxu0 0.0
  %200 = vmatpush1.msra.mxu0 0.0
  %201 = vmatprep.subr.mxu0 0.0
  %202 = vmatpush1.msra.mxu0 0.0
  %203 = vmatprep.subr.mxu0 0.0
  %204 = vmatpush1.msra.mxu0 0.0
  %205 = vmatprep.subr.mxu0 0.0
  %206 = vmatpush1.msra.mxu0 0.0
  %207 = vmatprep.subr.mxu0 0.0
  %208 = vmatpush1.msra.mxu0 0.0
  %209 = vmatprep.subr.mxu0 0.0
  %210 = vmatpush1.msra.mxu0 0.0
  %211 = vmatprep.subr.mxu0 0.0
  %212 = vmatpush1.msra.mxu0 0.0
  %213 = vmatprep.mubr.f32.mxu0 0.0
  %214 = vmatmul.mubr.f32.gmra.mrb[0].mxu0 %v76
  %v215 = vpop.f32.mrb[0].mxu0
  %v216 = vadd.f32 0.0, %v215
  %v217 = vpop.f32.mrb[0].mxu0
  %v218 = vadd.f32 0.0, %v217
  %219 = vdwg.mxu0
  %v220 = vld [vmem:[%s2] sm:$0xff]
  %v221 = vld [vmem:[%s2 + $0x8] sm:$0xff]
  %223 = vset.pattern.permute.xlu0 0
  %224 = vperm.xlu0 %223, %v220
  %v225 = vpop.permute.xlu0 %224
  %228 = vset.pattern.permute.xlu0 0
  %229 = vperm.xlu0 %228, %v221
  %v230 = vpop.permute.xlu0 %229
  %v232 = vadd.f32 %v145, %v225
  %v233 = vadd.f32 %v147, %v225
  %v234 = vadd.f32 %v216, %v230
  %v235 = vadd.f32 %v218, %v230
  %vm236 = vcmp.gt.f32.partialorder %v232, 0.0
  %vm237 = vcmp.gt.f32.partialorder %v233, 0.0
  %vm238 = vcmp.gt.f32.partialorder %v234, 0.0
  %vm239 = vcmp.gt.f32.partialorder %v235, 0.0
  %v240 = vmul.f32 %v232, 0.2
  %v241 = vmul.f32 %v233, 0.2
  %v242 = vmul.f32 %v234, 0.2
  %v243 = vmul.f32 %v235, 0.2
  %v244 = vsel %vm236, %v232, %v240
  %v245 = vsel %vm237, %v233, %v241
  %v246 = vsel %vm238, %v234, %v242
  %v247 = vsel %vm239, %v235, %v243
  %v248 = vld [vmem:[%s3] sm:$0xff]
  %v249 = vld [vmem:[%s3 + $0x8] sm:$0xff]
  %v250 = vld [vmem:[%s3 + $0x10] sm:$0xff]
  %v251 = vld [vmem:[%s3 + $0x18] sm:$0xff]
  %v252 = vld [vmem:[%s3 + $0x20] sm:$0xff]
  %v253 = vld [vmem:[%s3 + $0x28] sm:$0xff]
  %v254 = vld [vmem:[%s3 + $0x30] sm:$0xff]
  %v255 = vld [vmem:[%s3 + $0x38] sm:$0xff]
  %v256 = vld [vmem:[%s3 + $0x40] sm:$0xff]
  %v257 = vld [vmem:[%s3 + $0x48] sm:$0xff]
  %v258 = vld [vmem:[%s3 + $0x50] sm:$0xff]
  %v259 = vld [vmem:[%s3 + $0x58] sm:$0xff]
  %v260 = vld [vmem:[%s3 + $0x60] sm:$0xff]
  %v261 = vld [vmem:[%s3 + $0x68] sm:$0xff]
  %v262 = vld [vmem:[%s3 + $0x70] sm:$0xff]
  %v263 = vld [vmem:[%s3 + $0x78] sm:$0xff]
  %v264 = vld [vmem:[%s3 + $0x80] sm:$0xff]
  %v265 = vld [vmem:[%s3 + $0x88] sm:$0xff]
  %v266 = vld [vmem:[%s3 + $0x90] sm:$0xff]
  %v267 = vld [vmem:[%s3 + $0x98] sm:$0xff]
  %v268 = vld [vmem:[%s3 + $0xa0] sm:$0xff]
  %v269 = vld [vmem:[%s3 + $0xa8] sm:$0xff]
  %v270 = vld [vmem:[%s3 + $0xb0] sm:$0xff]
  %v271 = vld [vmem:[%s3 + $0xb8] sm:$0xff]
  %v272 = vld [vmem:[%s3 + $0xc0] sm:$0xff]
  %v273 = vld [vmem:[%s3 + $0xc8] sm:$0xff]
  %v274 = vld [vmem:[%s3 + $0xd0] sm:$0xff]
  %v275 = vld [vmem:[%s3 + $0xd8] sm:$0xff]
  %v276 = vld [vmem:[%s3 + $0xe0] sm:$0xff]
  %v277 = vld [vmem:[%s3 + $0xe8] sm:$0xff]
  %v278 = vld [vmem:[%s3 + $0xf0] sm:$0xff]
  %v279 = vld [vmem:[%s3 + $0xf8] sm:$0xff]
  %v280 = vld [vmem:[%s3 + $0x100] sm:$0xff]
  %v281 = vld [vmem:[%s3 + $0x108] sm:$0xff]
  %v282 = vld [vmem:[%s3 + $0x110] sm:$0xff]
  %v283 = vld [vmem:[%s3 + $0x118] sm:$0xff]
  %v284 = vld [vmem:[%s3 + $0x120] sm:$0xff]
  %v285 = vld [vmem:[%s3 + $0x128] sm:$0xff]
  %v286 = vld [vmem:[%s3 + $0x130] sm:$0xff]
  %v287 = vld [vmem:[%s3 + $0x138] sm:$0xff]
  %v288 = vld [vmem:[%s3 + $0x140] sm:$0xff]
  %v289 = vld [vmem:[%s3 + $0x148] sm:$0xff]
  %v290 = vld [vmem:[%s3 + $0x150] sm:$0xff]
  %v291 = vld [vmem:[%s3 + $0x158] sm:$0xff]
  %v292 = vld [vmem:[%s3 + $0x160] sm:$0xff]
  %v293 = vld [vmem:[%s3 + $0x168] sm:$0xff]
  %v294 = vld [vmem:[%s3 + $0x170] sm:$0xff]
  %v295 = vld [vmem:[%s3 + $0x178] sm:$0xff]
  %v296 = vld [vmem:[%s3 + $0x180] sm:$0xff]
  %v297 = vld [vmem:[%s3 + $0x188] sm:$0xff]
  %v298 = vld [vmem:[%s3 + $0x190] sm:$0xff]
  %v299 = vld [vmem:[%s3 + $0x198] sm:$0xff]
  %v300 = vld [vmem:[%s3 + $0x1a0] sm:$0xff]
  %v301 = vld [vmem:[%s3 + $0x1a8] sm:$0xff]
  %v302 = vld [vmem:[%s3 + $0x1b0] sm:$0xff]
  %v303 = vld [vmem:[%s3 + $0x1b8] sm:$0xff]
  %v304 = vld [vmem:[%s3 + $0x1c0] sm:$0xff]
  %v305 = vld [vmem:[%s3 + $0x1c8] sm:$0xff]
  %v306 = vld [vmem:[%s3 + $0x1d0] sm:$0xff]
  %v307 = vld [vmem:[%s3 + $0x1d8] sm:$0xff]
  %v308 = vld [vmem:[%s3 + $0x1e0] sm:$0xff]
  %v309 = vld [vmem:[%s3 + $0x1e8] sm:$0xff]
  %v310 = vld [vmem:[%s3 + $0x1f0] sm:$0xff]
  %v311 = vld [vmem:[%s3 + $0x1f8] sm:$0xff]
  %v312 = vunpack.c.0.s8 %v248
  %v313 = vunpack.c.0.s8 %v249
  %v314 = vunpack.c.0.s8 %v250
  %v315 = vunpack.c.0.s8 %v251
  %v316 = vunpack.c.0.s8 %v252
  %v317 = vunpack.c.0.s8 %v253
  %v318 = vunpack.c.0.s8 %v254
  %v319 = vunpack.c.0.s8 %v255
  %v320 = vunpack.c.1.s8 %v248
  %v321 = vunpack.c.1.s8 %v249
  %v322 = vunpack.c.1.s8 %v250
  %v323 = vunpack.c.1.s8 %v251
  %v324 = vunpack.c.1.s8 %v252
  %v325 = vunpack.c.1.s8 %v253
  %v326 = vunpack.c.1.s8 %v254
  %v327 = vunpack.c.1.s8 %v255
  %v328 = vunpack.c.2.s8 %v248
  %v329 = vunpack.c.2.s8 %v249
  %v330 = vunpack.c.2.s8 %v250
  %v331 = vunpack.c.2.s8 %v251
  %v332 = vunpack.c.2.s8 %v252
  %v333 = vunpack.c.2.s8 %v253
  %v334 = vunpack.c.2.s8 %v254
  %v335 = vunpack.c.2.s8 %v255
  %v336 = vunpack.c.3.s8 %v248
  %v337 = vunpack.c.3.s8 %v249
  %v338 = vunpack.c.3.s8 %v250
  %v339 = vunpack.c.3.s8 %v251
  %v340 = vunpack.c.3.s8 %v252
  %v341 = vunpack.c.3.s8 %v253
  %v342 = vunpack.c.3.s8 %v254
  %v343 = vunpack.c.3.s8 %v255
  %v344 = vunpack.c.0.s8 %v256
  %v345 = vunpack.c.0.s8 %v257
  %v346 = vunpack.c.0.s8 %v258
  %v347 = vunpack.c.0.s8 %v259
  %v348 = vunpack.c.0.s8 %v260
  %v349 = vunpack.c.0.s8 %v261
  %v350 = vunpack.c.0.s8 %v262
  %v351 = vunpack.c.0.s8 %v263
  %v352 = vunpack.c.1.s8 %v256
  %v353 = vunpack.c.1.s8 %v257
  %v354 = vunpack.c.1.s8 %v258
  %v355 = vunpack.c.1.s8 %v259
  %v356 = vunpack.c.1.s8 %v260
  %v357 = vunpack.c.1.s8 %v261
  %v358 = vunpack.c.1.s8 %v262
  %v359 = vunpack.c.1.s8 %v263
  %v360 = vunpack.c.2.s8 %v256
  %v361 = vunpack.c.2.s8 %v257
  %v362 = vunpack.c.2.s8 %v258
  %v363 = vunpack.c.2.s8 %v259
  %v364 = vunpack.c.2.s8 %v260
  %v365 = vunpack.c.2.s8 %v261
  %v366 = vunpack.c.2.s8 %v262
  %v367 = vunpack.c.2.s8 %v263
  %v368 = vunpack.c.3.s8 %v256
  %v369 = vunpack.c.3.s8 %v257
  %v370 = vunpack.c.3.s8 %v258
  %v371 = vunpack.c.3.s8 %v259
  %v372 = vunpack.c.3.s8 %v260
  %v373 = vunpack.c.3.s8 %v261
  %v374 = vunpack.c.3.s8 %v262
  %v375 = vunpack.c.3.s8 %v263
  %v376 = vunpack.c.0.s8 %v264
  %v377 = vunpack.c.0.s8 %v265
  %v378 = vunpack.c.0.s8 %v266
  %v379 = vunpack.c.0.s8 %v267
  %v380 = vunpack.c.0.s8 %v268
  %v381 = vunpack.c.0.s8 %v269
  %v382 = vunpack.c.0.s8 %v270
  %v383 = vunpack.c.0.s8 %v271
  %v384 = vunpack.c.1.s8 %v264
  %v385 = vunpack.c.1.s8 %v265
  %v386 = vunpack.c.1.s8 %v266
  %v387 = vunpack.c.1.s8 %v267
  %v388 = vunpack.c.1.s8 %v268
  %v389 = vunpack.c.1.s8 %v269
  %v390 = vunpack.c.1.s8 %v270
  %v391 = vunpack.c.1.s8 %v271
  %v392 = vunpack.c.2.s8 %v264
  %v393 = vunpack.c.2.s8 %v265
  %v394 = vunpack.c.2.s8 %v266
  %v395 = vunpack.c.2.s8 %v267
  %v396 = vunpack.c.2.s8 %v268
  %v397 = vunpack.c.2.s8 %v269
  %v398 = vunpack.c.2.s8 %v270
  %v399 = vunpack.c.2.s8 %v271
  %v400 = vunpack.c.3.s8 %v264
  %v401 = vunpack.c.3.s8 %v265
  %v402 = vunpack.c.3.s8 %v266
  %v403 = vunpack.c.3.s8 %v267
  %v404 = vunpack.c.3.s8 %v268
  %v405 = vunpack.c.3.s8 %v269
  %v406 = vunpack.c.3.s8 %v270
  %v407 = vunpack.c.3.s8 %v271
  %v408 = vunpack.c.0.s8 %v272
  %v409 = vunpack.c.0.s8 %v273
  %v410 = vunpack.c.0.s8 %v274
  %v411 = vunpack.c.0.s8 %v275
  %v412 = vunpack.c.0.s8 %v276
  %v413 = vunpack.c.0.s8 %v277
  %v414 = vunpack.c.0.s8 %v278
  %v415 = vunpack.c.0.s8 %v279
  %v416 = vunpack.c.1.s8 %v272
  %v417 = vunpack.c.1.s8 %v273
  %v418 = vunpack.c.1.s8 %v274
  %v419 = vunpack.c.1.s8 %v275
  %v420 = vunpack.c.1.s8 %v276
  %v421 = vunpack.c.1.s8 %v277
  %v422 = vunpack.c.1.s8 %v278
  %v423 = vunpack.c.1.s8 %v279
  %v424 = vunpack.c.2.s8 %v272
  %v425 = vunpack.c.2.s8 %v273
  %v426 = vunpack.c.2.s8 %v274
  %v427 = vunpack.c.2.s8 %v275
  %v428 = vunpack.c.2.s8 %v276
  %v429 = vunpack.c.2.s8 %v277
  %v430 = vunpack.c.2.s8 %v278
  %v431 = vunpack.c.2.s8 %v279
  %v432 = vunpack.c.3.s8 %v272
  %v433 = vunpack.c.3.s8 %v273
  %v434 = vunpack.c.3.s8 %v274
  %v435 = vunpack.c.3.s8 %v275
  %v436 = vunpack.c.3.s8 %v276
  %v437 = vunpack.c.3.s8 %v277
  %v438 = vunpack.c.3.s8 %v278
  %v439 = vunpack.c.3.s8 %v279
  %v440 = vunpack.c.0.s8 %v280
  %v441 = vunpack.c.0.s8 %v281
  %v442 = vunpack.c.0.s8 %v282
  %v443 = vunpack.c.0.s8 %v283
  %v444 = vunpack.c.0.s8 %v284
  %v445 = vunpack.c.0.s8 %v285
  %v446 = vunpack.c.0.s8 %v286
  %v447 = vunpack.c.0.s8 %v287
  %v448 = vunpack.c.1.s8 %v280
  %v449 = vunpack.c.1.s8 %v281
  %v450 = vunpack.c.1.s8 %v282
  %v451 = vunpack.c.1.s8 %v283
  %v452 = vunpack.c.1.s8 %v284
  %v453 = vunpack.c.1.s8 %v285
  %v454 = vunpack.c.1.s8 %v286
  %v455 = vunpack.c.1.s8 %v287
  %v456 = vunpack.c.2.s8 %v280
  %v457 = vunpack.c.2.s8 %v281
  %v458 = vunpack.c.2.s8 %v282
  %v459 = vunpack.c.2.s8 %v283
  %v460 = vunpack.c.2.s8 %v284
  %v461 = vunpack.c.2.s8 %v285
  %v462 = vunpack.c.2.s8 %v286
  %v463 = vunpack.c.2.s8 %v287
  %v464 = vunpack.c.3.s8 %v280
  %v465 = vunpack.c.3.s8 %v281
  %v466 = vunpack.c.3.s8 %v282
  %v467 = vunpack.c.3.s8 %v283
  %v468 = vunpack.c.3.s8 %v284
  %v469 = vunpack.c.3.s8 %v285
  %v470 = vunpack.c.3.s8 %v286
  %v471 = vunpack.c.3.s8 %v287
  %v472 = vunpack.c.0.s8 %v288
  %v473 = vunpack.c.0.s8 %v289
  %v474 = vunpack.c.0.s8 %v290
  %v475 = vunpack.c.0.s8 %v291
  %v476 = vunpack.c.0.s8 %v292
  %v477 = vunpack.c.0.s8 %v293
  %v478 = vunpack.c.0.s8 %v294
  %v479 = vunpack.c.0.s8 %v295
  %v480 = vunpack.c.1.s8 %v288
  %v481 = vunpack.c.1.s8 %v289
  %v482 = vunpack.c.1.s8 %v290
  %v483 = vunpack.c.1.s8 %v291
  %v484 = vunpack.c.1.s8 %v292
  %v485 = vunpack.c.1.s8 %v293
  %v486 = vunpack.c.1.s8 %v294
  %v487 = vunpack.c.1.s8 %v295
  %v488 = vunpack.c.2.s8 %v288
  %v489 = vunpack.c.2.s8 %v289
  %v490 = vunpack.c.2.s8 %v290
  %v491 = vunpack.c.2.s8 %v291
  %v492 = vunpack.c.2.s8 %v292
  %v493 = vunpack.c.2.s8 %v293
  %v494 = vunpack.c.2.s8 %v294
  %v495 = vunpack.c.2.s8 %v295
  %v496 = vunpack.c.3.s8 %v288
  %v497 = vunpack.c.3.s8 %v289
  %v498 = vunpack.c.3.s8 %v290
  %v499 = vunpack.c.3.s8 %v291
  %v500 = vunpack.c.3.s8 %v292
  %v501 = vunpack.c.3.s8 %v293
  %v502 = vunpack.c.3.s8 %v294
  %v503 = vunpack.c.3.s8 %v295
  %v504 = vunpack.c.0.s8 %v296
  %v505 = vunpack.c.0.s8 %v297
  %v506 = vunpack.c.0.s8 %v298
  %v507 = vunpack.c.0.s8 %v299
  %v508 = vunpack.c.0.s8 %v300
  %v509 = vunpack.c.0.s8 %v301
  %v510 = vunpack.c.0.s8 %v302
  %v511 = vunpack.c.0.s8 %v303
  %v512 = vunpack.c.1.s8 %v296
  %v513 = vunpack.c.1.s8 %v297
  %v514 = vunpack.c.1.s8 %v298
  %v515 = vunpack.c.1.s8 %v299
  %v516 = vunpack.c.1.s8 %v300
  %v517 = vunpack.c.1.s8 %v301
  %v518 = vunpack.c.1.s8 %v302
  %v519 = vunpack.c.1.s8 %v303
  %v520 = vunpack.c.2.s8 %v296
  %v521 = vunpack.c.2.s8 %v297
  %v522 = vunpack.c.2.s8 %v298
  %v523 = vunpack.c.2.s8 %v299
  %v524 = vunpack.c.2.s8 %v300
  %v525 = vunpack.c.2.s8 %v301
  %v526 = vunpack.c.2.s8 %v302
  %v527 = vunpack.c.2.s8 %v303
  %v528 = vunpack.c.3.s8 %v296
  %v529 = vunpack.c.3.s8 %v297
  %v530 = vunpack.c.3.s8 %v298
  %v531 = vunpack.c.3.s8 %v299
  %v532 = vunpack.c.3.s8 %v300
  %v533 = vunpack.c.3.s8 %v301
  %v534 = vunpack.c.3.s8 %v302
  %v535 = vunpack.c.3.s8 %v303
  %v536 = vunpack.c.0.s8 %v304
  %v537 = vunpack.c.0.s8 %v305
  %v538 = vunpack.c.0.s8 %v306
  %v539 = vunpack.c.0.s8 %v307
  %v540 = vunpack.c.0.s8 %v308
  %v541 = vunpack.c.0.s8 %v309
  %v542 = vunpack.c.0.s8 %v310
  %v543 = vunpack.c.0.s8 %v311
  %v544 = vunpack.c.1.s8 %v304
  %v545 = vunpack.c.1.s8 %v305
  %v546 = vunpack.c.1.s8 %v306
  %v547 = vunpack.c.1.s8 %v307
  %v548 = vunpack.c.1.s8 %v308
  %v549 = vunpack.c.1.s8 %v309
  %v550 = vunpack.c.1.s8 %v310
  %v551 = vunpack.c.1.s8 %v311
  %v552 = vunpack.c.2.s8 %v304
  %v553 = vunpack.c.2.s8 %v305
  %v554 = vunpack.c.2.s8 %v306
  %v555 = vunpack.c.2.s8 %v307
  %v556 = vunpack.c.2.s8 %v308
  %v557 = vunpack.c.2.s8 %v309
  %v558 = vunpack.c.2.s8 %v310
  %v559 = vunpack.c.2.s8 %v311
  %v560 = vunpack.c.3.s8 %v304
  %v561 = vunpack.c.3.s8 %v305
  %v562 = vunpack.c.3.s8 %v306
  %v563 = vunpack.c.3.s8 %v307
  %v564 = vunpack.c.3.s8 %v308
  %v565 = vunpack.c.3.s8 %v309
  %v566 = vunpack.c.3.s8 %v310
  %v567 = vunpack.c.3.s8 %v311
  %v568 = vcvt.s32.f32 %v312
  %v569 = vcvt.s32.f32 %v313
  %v570 = vcvt.s32.f32 %v314
  %v571 = vcvt.s32.f32 %v315
  %v572 = vcvt.s32.f32 %v316
  %v573 = vcvt.s32.f32 %v317
  %v574 = vcvt.s32.f32 %v318
  %v575 = vcvt.s32.f32 %v319
  %v576 = vcvt.s32.f32 %v320
  %v577 = vcvt.s32.f32 %v321
  %v578 = vcvt.s32.f32 %v322
  %v579 = vcvt.s32.f32 %v323
  %v580 = vcvt.s32.f32 %v324
  %v581 = vcvt.s32.f32 %v325
  %v582 = vcvt.s32.f32 %v326
  %v583 = vcvt.s32.f32 %v327
  %v584 = vcvt.s32.f32 %v328
  %v585 = vcvt.s32.f32 %v329
  %v586 = vcvt.s32.f32 %v330
  %v587 = vcvt.s32.f32 %v331
  %v588 = vcvt.s32.f32 %v332
  %v589 = vcvt.s32.f32 %v333
  %v590 = vcvt.s32.f32 %v334
  %v591 = vcvt.s32.f32 %v335
  %v592 = vcvt.s32.f32 %v336
  %v593 = vcvt.s32.f32 %v337
  %v594 = vcvt.s32.f32 %v338
  %v595 = vcvt.s32.f32 %v339
  %v596 = vcvt.s32.f32 %v340
  %v597 = vcvt.s32.f32 %v341
  %v598 = vcvt.s32.f32 %v342
  %v599 = vcvt.s32.f32 %v343
  %v600 = vcvt.s32.f32 %v344
  %v601 = vcvt.s32.f32 %v345
  %v602 = vcvt.s32.f32 %v346
  %v603 = vcvt.s32.f32 %v347
  %v604 = vcvt.s32.f32 %v348
  %v605 = vcvt.s32.f32 %v349
  %v606 = vcvt.s32.f32 %v350
  %v607 = vcvt.s32.f32 %v351
  %v608 = vcvt.s32.f32 %v352
  %v609 = vcvt.s32.f32 %v353
  %v610 = vcvt.s32.f32 %v354
  %v611 = vcvt.s32.f32 %v355
  %v612 = vcvt.s32.f32 %v356
  %v613 = vcvt.s32.f32 %v357
  %v614 = vcvt.s32.f32 %v358
  %v615 = vcvt.s32.f32 %v359
  %v616 = vcvt.s32.f32 %v360
  %v617 = vcvt.s32.f32 %v361
  %v618 = vcvt.s32.f32 %v362
  %v619 = vcvt.s32.f32 %v363
  %v620 = vcvt.s32.f32 %v364
  %v621 = vcvt.s32.f32 %v365
  %v622 = vcvt.s32.f32 %v366
  %v623 = vcvt.s32.f32 %v367
  %v624 = vcvt.s32.f32 %v368
  %v625 = vcvt.s32.f32 %v369
  %v626 = vcvt.s32.f32 %v370
  %v627 = vcvt.s32.f32 %v371
  %v628 = vcvt.s32.f32 %v372
  %v629 = vcvt.s32.f32 %v373
  %v630 = vcvt.s32.f32 %v374
  %v631 = vcvt.s32.f32 %v375
  %v632 = vcvt.s32.f32 %v376
  %v633 = vcvt.s32.f32 %v377
  %v634 = vcvt.s32.f32 %v378
  %v635 = vcvt.s32.f32 %v379
  %v636 = vcvt.s32.f32 %v380
  %v637 = vcvt.s32.f32 %v381
  %v638 = vcvt.s32.f32 %v382
  %v639 = vcvt.s32.f32 %v383
  %v640 = vcvt.s32.f32 %v384
  %v641 = vcvt.s32.f32 %v385
  %v642 = vcvt.s32.f32 %v386
  %v643 = vcvt.s32.f32 %v387
  %v644 = vcvt.s32.f32 %v388
  %v645 = vcvt.s32.f32 %v389
  %v646 = vcvt.s32.f32 %v390
  %v647 = vcvt.s32.f32 %v391
  %v648 = vcvt.s32.f32 %v392
  %v649 = vcvt.s32.f32 %v393
  %v650 = vcvt.s32.f32 %v394
  %v651 = vcvt.s32.f32 %v395
  %v652 = vcvt.s32.f32 %v396
  %v653 = vcvt.s32.f32 %v397
  %v654 = vcvt.s32.f32 %v398
  %v655 = vcvt.s32.f32 %v399
  %v656 = vcvt.s32.f32 %v400
  %v657 = vcvt.s32.f32 %v401
  %v658 = vcvt.s32.f32 %v402
  %v659 = vcvt.s32.f32 %v403
  %v660 = vcvt.s32.f32 %v404
  %v661 = vcvt.s32.f32 %v405
  %v662 = vcvt.s32.f32 %v406
  %v663 = vcvt.s32.f32 %v407
  %v664 = vcvt.s32.f32 %v408
  %v665 = vcvt.s32.f32 %v409
  %v666 = vcvt.s32.f32 %v410
  %v667 = vcvt.s32.f32 %v411
  %v668 = vcvt.s32.f32 %v412
  %v669 = vcvt.s32.f32 %v413
  %v670 = vcvt.s32.f32 %v414
  %v671 = vcvt.s32.f32 %v415
  %v672 = vcvt.s32.f32 %v416
  %v673 = vcvt.s32.f32 %v417
  %v674 = vcvt.s32.f32 %v418
  %v675 = vcvt.s32.f32 %v419
  %v676 = vcvt.s32.f32 %v420
  %v677 = vcvt.s32.f32 %v421
  %v678 = vcvt.s32.f32 %v422
  %v679 = vcvt.s32.f32 %v423
  %v680 = vcvt.s32.f32 %v424
  %v681 = vcvt.s32.f32 %v425
  %v682 = vcvt.s32.f32 %v426
  %v683 = vcvt.s32.f32 %v427
  %v684 = vcvt.s32.f32 %v428
  %v685 = vcvt.s32.f32 %v429
  %v686 = vcvt.s32.f32 %v430
  %v687 = vcvt.s32.f32 %v431
  %v688 = vcvt.s32.f32 %v432
  %v689 = vcvt.s32.f32 %v433
  %v690 = vcvt.s32.f32 %v434
  %v691 = vcvt.s32.f32 %v435
  %v692 = vcvt.s32.f32 %v436
  %v693 = vcvt.s32.f32 %v437
  %v694 = vcvt.s32.f32 %v438
  %v695 = vcvt.s32.f32 %v439
  %v696 = vcvt.s32.f32 %v440
  %v697 = vcvt.s32.f32 %v441
  %v698 = vcvt.s32.f32 %v442
  %v699 = vcvt.s32.f32 %v443
  %v700 = vcvt.s32.f32 %v444
  %v701 = vcvt.s32.f32 %v445
  %v702 = vcvt.s32.f32 %v446
  %v703 = vcvt.s32.f32 %v447
  %v704 = vcvt.s32.f32 %v448
  %v705 = vcvt.s32.f32 %v449
  %v706 = vcvt.s32.f32 %v450
  %v707 = vcvt.s32.f32 %v451
  %v708 = vcvt.s32.f32 %v452
  %v709 = vcvt.s32.f32 %v453
  %v710 = vcvt.s32.f32 %v454
  %v711 = vcvt.s32.f32 %v455
  %v712 = vcvt.s32.f32 %v456
  %v713 = vcvt.s32.f32 %v457
  %v714 = vcvt.s32.f32 %v458
  %v715 = vcvt.s32.f32 %v459
  %v716 = vcvt.s32.f32 %v460
  %v717 = vcvt.s32.f32 %v461
  %v718 = vcvt.s32.f32 %v462
  %v719 = vcvt.s32.f32 %v463
  %v720 = vcvt.s32.f32 %v464
  %v721 = vcvt.s32.f32 %v465
  %v722 = vcvt.s32.f32 %v466
  %v723 = vcvt.s32.f32 %v467
  %v724 = vcvt.s32.f32 %v468
  %v725 = vcvt.s32.f32 %v469
  %v726 = vcvt.s32.f32 %v470
  %v727 = vcvt.s32.f32 %v471
  %v728 = vcvt.s32.f32 %v472
  %v729 = vcvt.s32.f32 %v473
  %v730 = vcvt.s32.f32 %v474
  %v731 = vcvt.s32.f32 %v475
  %v732 = vcvt.s32.f32 %v476
  %v733 = vcvt.s32.f32 %v477
  %v734 = vcvt.s32.f32 %v478
  %v735 = vcvt.s32.f32 %v479
  %v736 = vcvt.s32.f32 %v480
  %v737 = vcvt.s32.f32 %v481
  %v738 = vcvt.s32.f32 %v482
  %v739 = vcvt.s32.f32 %v483
  %v740 = vcvt.s32.f32 %v484
  %v741 = vcvt.s32.f32 %v485
  %v742 = vcvt.s32.f32 %v486
  %v743 = vcvt.s32.f32 %v487
  %v744 = vcvt.s32.f32 %v488
  %v745 = vcvt.s32.f32 %v489
  %v746 = vcvt.s32.f32 %v490
  %v747 = vcvt.s32.f32 %v491
  %v748 = vcvt.s32.f32 %v492
  %v749 = vcvt.s32.f32 %v493
  %v750 = vcvt.s32.f32 %v494
  %v751 = vcvt.s32.f32 %v495
  %v752 = vcvt.s32.f32 %v496
  %v753 = vcvt.s32.f32 %v497
  %v754 = vcvt.s32.f32 %v498
  %v755 = vcvt.s32.f32 %v499
  %v756 = vcvt.s32.f32 %v500
  %v757 = vcvt.s32.f32 %v501
  %v758 = vcvt.s32.f32 %v502
  %v759 = vcvt.s32.f32 %v503
  %v760 = vcvt.s32.f32 %v504
  %v761 = vcvt.s32.f32 %v505
  %v762 = vcvt.s32.f32 %v506
  %v763 = vcvt.s32.f32 %v507
  %v764 = vcvt.s32.f32 %v508
  %v765 = vcvt.s32.f32 %v509
  %v766 = vcvt.s32.f32 %v510
  %v767 = vcvt.s32.f32 %v511
  %v768 = vcvt.s32.f32 %v512
  %v769 = vcvt.s32.f32 %v513
  %v770 = vcvt.s32.f32 %v514
  %v771 = vcvt.s32.f32 %v515
  %v772 = vcvt.s32.f32 %v516
  %v773 = vcvt.s32.f32 %v517
  %v774 = vcvt.s32.f32 %v518
  %v775 = vcvt.s32.f32 %v519
  %v776 = vcvt.s32.f32 %v520
  %v777 = vcvt.s32.f32 %v521
  %v778 = vcvt.s32.f32 %v522
  %v779 = vcvt.s32.f32 %v523
  %v780 = vcvt.s32.f32 %v524
  %v781 = vcvt.s32.f32 %v525
  %v782 = vcvt.s32.f32 %v526
  %v783 = vcvt.s32.f32 %v527
  %v784 = vcvt.s32.f32 %v528
  %v785 = vcvt.s32.f32 %v529
  %v786 = vcvt.s32.f32 %v530
  %v787 = vcvt.s32.f32 %v531
  %v788 = vcvt.s32.f32 %v532
  %v789 = vcvt.s32.f32 %v533
  %v790 = vcvt.s32.f32 %v534
  %v791 = vcvt.s32.f32 %v535
  %v792 = vcvt.s32.f32 %v536
  %v793 = vcvt.s32.f32 %v537
  %v794 = vcvt.s32.f32 %v538
  %v795 = vcvt.s32.f32 %v539
  %v796 = vcvt.s32.f32 %v540
  %v797 = vcvt.s32.f32 %v541
  %v798 = vcvt.s32.f32 %v542
  %v799 = vcvt.s32.f32 %v543
  %v800 = vcvt.s32.f32 %v544
  %v801 = vcvt.s32.f32 %v545
  %v802 = vcvt.s32.f32 %v546
  %v803 = vcvt.s32.f32 %v547
  %v804 = vcvt.s32.f32 %v548
  %v805 = vcvt.s32.f32 %v549
  %v806 = vcvt.s32.f32 %v550
  %v807 = vcvt.s32.f32 %v551
  %v808 = vcvt.s32.f32 %v552
  %v809 = vcvt.s32.f32 %v553
  %v810 = vcvt.s32.f32 %v554
  %v811 = vcvt.s32.f32 %v555
  %v812 = vcvt.s32.f32 %v556
  %v813 = vcvt.s32.f32 %v557
  %v814 = vcvt.s32.f32 %v558
  %v815 = vcvt.s32.f32 %v559
  %v816 = vcvt.s32.f32 %v560
  %v817 = vcvt.s32.f32 %v561
  %v818 = vcvt.s32.f32 %v562
  %v819 = vcvt.s32.f32 %v563
  %v820 = vcvt.s32.f32 %v564
  %v821 = vcvt.s32.f32 %v565
  %v822 = vcvt.s32.f32 %v566
  %v823 = vcvt.s32.f32 %v567
  %824 = vmatprep.subr.mxu0 %v569
  %825 = vmatpush1.msra.mxu0 %v568
  %826 = vmatprep.subr.mxu0 %v577
  %827 = vmatpush1.msra.mxu0 %v576
  %828 = vmatprep.subr.mxu0 %v585
  %829 = vmatpush1.msra.mxu0 %v584
  %830 = vmatprep.subr.mxu0 %v593
  %831 = vmatpush1.msra.mxu0 %v592
  %832 = vmatprep.subr.mxu0 %v601
  %833 = vmatpush1.msra.mxu0 %v600
  %834 = vmatprep.subr.mxu0 %v609
  %835 = vmatpush1.msra.mxu0 %v608
  %836 = vmatprep.subr.mxu0 %v617
  %837 = vmatpush1.msra.mxu0 %v616
  %838 = vmatprep.subr.mxu0 %v625
  %839 = vmatpush1.msra.mxu0 %v624
  %840 = vmatprep.subr.mxu0 %v633
  %841 = vmatpush1.msra.mxu0 %v632
  %842 = vmatprep.subr.mxu0 %v641
  %843 = vmatpush1.msra.mxu0 %v640
  %844 = vmatprep.subr.mxu0 %v649
  %845 = vmatpush1.msra.mxu0 %v648
  %846 = vmatprep.subr.mxu0 %v657
  %847 = vmatpush1.msra.mxu0 %v656
  %848 = vmatprep.subr.mxu0 %v665
  %849 = vmatpush1.msra.mxu0 %v664
  %850 = vmatprep.subr.mxu0 %v673
  %851 = vmatpush1.msra.mxu0 %v672
  %852 = vmatprep.subr.mxu0 %v681
  %853 = vmatpush1.msra.mxu0 %v680
  %854 = vmatprep.subr.mxu0 %v689
  %855 = vmatpush1.msra.mxu0 %v688
  %856 = vmatprep.subr.mxu0 %v697
  %857 = vmatpush1.msra.mxu0 %v696
  %858 = vmatprep.subr.mxu0 %v705
  %859 = vmatpush1.msra.mxu0 %v704
  %860 = vmatprep.subr.mxu0 %v713
  %861 = vmatpush1.msra.mxu0 %v712
  %862 = vmatprep.subr.mxu0 %v721
  %863 = vmatpush1.msra.mxu0 %v720
  %864 = vmatprep.subr.mxu0 %v729
  %865 = vmatpush1.msra.mxu0 %v728
  %866 = vmatprep.subr.mxu0 %v737
  %867 = vmatpush1.msra.mxu0 %v736
  %868 = vmatprep.subr.mxu0 %v745
  %869 = vmatpush1.msra.mxu0 %v744
  %870 = vmatprep.subr.mxu0 %v753
  %871 = vmatpush1.msra.mxu0 %v752
  %872 = vmatprep.subr.mxu0 %v761
  %873 = vmatpush1.msra.mxu0 %v760
  %874 = vmatprep.subr.mxu0 %v769
  %875 = vmatpush1.msra.mxu0 %v768
  %876 = vmatprep.subr.mxu0 %v777
  %877 = vmatpush1.msra.mxu0 %v776
  %878 = vmatprep.subr.mxu0 %v785
  %879 = vmatpush1.msra.mxu0 %v784
  %880 = vmatprep.subr.mxu0 %v793
  %881 = vmatpush1.msra.mxu0 %v792
  %882 = vmatprep.subr.mxu0 %v801
  %883 = vmatpush1.msra.mxu0 %v800
  %884 = vmatprep.subr.mxu0 %v809
  %885 = vmatpush1.msra.mxu0 %v808
  %886 = vmatprep.subr.mxu0 %v817
  %887 = vmatpush1.msra.mxu0 %v816
  %888 = vmatprep.mubr.f32.mxu0 %v245
  %889 = vmatmul.mubr.f32.gmra.mrb[0].mxu0 %v244
  %v890 = vpop.f32.mrb[0].mxu0
  %v891 = vadd.f32 0.0, %v890
  %v892 = vpop.f32.mrb[0].mxu0
  %v893 = vadd.f32 0.0, %v892
  %894 = vmatprep.mubr.f32.mxu0 %v247
  %895 = vmatmul.mubr.f32.gmra.mrb[0].mxu0 %v246
  %v896 = vpop.f32.mrb[0].mxu0
  %v897 = vadd.f32 0.0, %v896
  %v898 = vpop.f32.mrb[0].mxu0
  %v899 = vadd.f32 0.0, %v898
  %900 = vdwg.mxu0
  %901 = vmatprep.subr.mxu0 %v571
  %902 = vmatpush1.msra.mxu0 %v570
  %903 = vmatprep.subr.mxu0 %v579
  %904 = vmatpush1.msra.mxu0 %v578
  %905 = vmatprep.subr.mxu0 %v587
  %906 = vmatpush1.msra.mxu0 %v586
  %907 = vmatprep.subr.mxu0 %v595
  %908 = vmatpush1.msra.mxu0 %v594
  %909 = vmatprep.subr.mxu0 %v603
  %910 = vmatpush1.msra.mxu0 %v602
  %911 = vmatprep.subr.mxu0 %v611
  %912 = vmatpush1.msra.mxu0 %v610
  %913 = vmatprep.subr.mxu0 %v619
  %914 = vmatpush1.msra.mxu0 %v618
  %915 = vmatprep.subr.mxu0 %v627
  %916 = vmatpush1.msra.mxu0 %v626
  %917 = vmatprep.subr.mxu0 %v635
  %918 = vmatpush1.msra.mxu0 %v634
  %919 = vmatprep.subr.mxu0 %v643
  %920 = vmatpush1.msra.mxu0 %v642
  %921 = vmatprep.subr.mxu0 %v651
  %922 = vmatpush1.msra.mxu0 %v650
  %923 = vmatprep.subr.mxu0 %v659
  %924 = vmatpush1.msra.mxu0 %v658
  %925 = vmatprep.subr.mxu0 %v667
  %926 = vmatpush1.msra.mxu0 %v666
  %927 = vmatprep.subr.mxu0 %v675
  %928 = vmatpush1.msra.mxu0 %v674
  %929 = vmatprep.subr.mxu0 %v683
  %930 = vmatpush1.msra.mxu0 %v682
  %931 = vmatprep.subr.mxu0 %v691
  %932 = vmatpush1.msra.mxu0 %v690
  %933 = vmatprep.subr.mxu0 %v699
  %934 = vmatpush1.msra.mxu0 %v698
  %935 = vmatprep.subr.mxu0 %v707
  %936 = vmatpush1.msra.mxu0 %v706
  %937 = vmatprep.subr.mxu0 %v715
  %938 = vmatpush1.msra.mxu0 %v714
  %939 = vmatprep.subr.mxu0 %v723
  %940 = vmatpush1.msra.mxu0 %v722
  %941 = vmatprep.subr.mxu0 %v731
  %942 = vmatpush1.msra.mxu0 %v730
  %943 = vmatprep.subr.mxu0 %v739
  %944 = vmatpush1.msra.mxu0 %v738
  %945 = vmatprep.subr.mxu0 %v747
  %946 = vmatpush1.msra.mxu0 %v746
  %947 = vmatprep.subr.mxu0 %v755
  %948 = vmatpush1.msra.mxu0 %v754
  %949 = vmatprep.subr.mxu0 %v763
  %950 = vmatpush1.msra.mxu0 %v762
  %951 = vmatprep.subr.mxu0 %v771
  %952 = vmatpush1.msra.mxu0 %v770
  %953 = vmatprep.subr.mxu0 %v779
  %954 = vmatpush1.msra.mxu0 %v778
  %955 = vmatprep.subr.mxu0 %v787
  %956 = vmatpush1.msra.mxu0 %v786
  %957 = vmatprep.subr.mxu0 %v795
  %958 = vmatpush1.msra.mxu0 %v794
  %959 = vmatprep.subr.mxu0 %v803
  %960 = vmatpush1.msra.mxu0 %v802
  %961 = vmatprep.subr.mxu0 %v811
  %962 = vmatpush1.msra.mxu0 %v810
  %963 = vmatprep.subr.mxu0 %v819
  %964 = vmatpush1.msra.mxu0 %v818
  %965 = vmatprep.mubr.f32.mxu0 %v245
  %966 = vmatmul.mubr.f32.gmra.mrb[0].mxu0 %v244
  %v967 = vpop.f32.mrb[0].mxu0
  %v968 = vadd.f32 0.0, %v967
  %v969 = vpop.f32.mrb[0].mxu0
  %v970 = vadd.f32 0.0, %v969
  %971 = vmatprep.mubr.f32.mxu0 %v247
  %972 = vmatmul.mubr.f32.gmra.mrb[0].mxu0 %v246
  %v973 = vpop.f32.mrb[0].mxu0
  %v974 = vadd.f32 0.0, %v973
  %v975 = vpop.f32.mrb[0].mxu0
  %v976 = vadd.f32 0.0, %v975
  %977 = vdwg.mxu0
  %978 = vmatprep.subr.mxu0 %v573
  %979 = vmatpush1.msra.mxu0 %v572
  %980 = vmatprep.subr.mxu0 %v581
  %981 = vmatpush1.msra.mxu0 %v580
  %982 = vmatprep.subr.mxu0 %v589
  %983 = vmatpush1.msra.mxu0 %v588
  %984 = vmatprep.subr.mxu0 %v597
  %985 = vmatpush1.msra.mxu0 %v596
  %986 = vmatprep.subr.mxu0 %v605
  %987 = vmatpush1.msra.mxu0 %v604
  %988 = vmatprep.subr.mxu0 %v613
  %989 = vmatpush1.msra.mxu0 %v612
  %990 = vmatprep.subr.mxu0 %v621
  %991 = vmatpush1.msra.mxu0 %v620
  %992 = vmatprep.subr.mxu0 %v629
  %993 = vmatpush1.msra.mxu0 %v628
  %994 = vmatprep.subr.mxu0 %v637
  %995 = vmatpush1.msra.mxu0 %v636
  %996 = vmatprep.subr.mxu0 %v645
  %997 = vmatpush1.msra.mxu0 %v644
  %998 = vmatprep.subr.mxu0 %v653
  %999 = vmatpush1.msra.mxu0 %v652
  %1000 = vmatprep.subr.mxu0 %v661
  %1001 = vmatpush1.msra.mxu0 %v660
  %1002 = vmatprep.subr.mxu0 %v669
  %1003 = vmatpush1.msra.mxu0 %v668
  %1004 = vmatprep.subr.mxu0 %v677
  %1005 = vmatpush1.msra.mxu0 %v676
  %1006 = vmatprep.subr.mxu0 %v685
  %1007 = vmatpush1.msra.mxu0 %v684
  %1008 = vmatprep.subr.mxu0 %v693
  %1009 = vmatpush1.msra.mxu0 %v692
  %1010 = vmatprep.subr.mxu0 %v701
  %1011 = vmatpush1.msra.mxu0 %v700
  %1012 = vmatprep.subr.mxu0 %v709
  %1013 = vmatpush1.msra.mxu0 %v708
  %1014 = vmatprep.subr.mxu0 %v717
  %1015 = vmatpush1.msra.mxu0 %v716
  %1016 = vmatprep.subr.mxu0 %v725
  %1017 = vmatpush1.msra.mxu0 %v724
  %1018 = vmatprep.subr.mxu0 %v733
  %1019 = vmatpush1.msra.mxu0 %v732
  %1020 = vmatprep.subr.mxu0 %v741
  %1021 = vmatpush1.msra.mxu0 %v740
  %1022 = vmatprep.subr.mxu0 %v749
  %1023 = vmatpush1.msra.mxu0 %v748
  %1024 = vmatprep.subr.mxu0 %v757
  %1025 = vmatpush1.msra.mxu0 %v756
  %1026 = vmatprep.subr.mxu0 %v765
  %1027 = vmatpush1.msra.mxu0 %v764
  %1028 = vmatprep.subr.mxu0 %v773
  %1029 = vmatpush1.msra.mxu0 %v772
  %1030 = vmatprep.subr.mxu0 %v781
  %1031 = vmatpush1.msra.mxu0 %v780
  %1032 = vmatprep.subr.mxu0 %v789
  %1033 = vmatpush1.msra.mxu0 %v788
  %1034 = vmatprep.subr.mxu0 %v797
  %1035 = vmatpush1.msra.mxu0 %v796
  %1036 = vmatprep.subr.mxu0 %v805
  %1037 = vmatpush1.msra.mxu0 %v804
  %1038 = vmatprep.subr.mxu0 %v813
  %1039 = vmatpush1.msra.mxu0 %v812
  %1040 = vmatprep.subr.mxu0 %v821
  %1041 = vmatpush1.msra.mxu0 %v820
  %1042 = vmatprep.mubr.f32.mxu0 %v245
  %1043 = vmatmul.mubr.f32.gmra.mrb[0].mxu0 %v244
  %v1044 = vpop.f32.mrb[0].mxu0
  %v1045 = vadd.f32 0.0, %v1044
  %v1046 = vpop.f32.mrb[0].mxu0
  %v1047 = vadd.f32 0.0, %v1046
  %1048 = vmatprep.mubr.f32.mxu0 %v247
  %1049 = vmatmul.mubr.f32.gmra.mrb[0].mxu0 %v246
  %v1050 = vpop.f32.mrb[0].mxu0
  %v1051 = vadd.f32 0.0, %v1050
  %v1052 = vpop.f32.mrb[0].mxu0
  %v1053 = vadd.f32 0.0, %v1052
  %1054 = vdwg.mxu0
  %1055 = vmatprep.subr.mxu0 %v575
  %1056 = vmatpush1.msra.mxu0 %v574
  %1057 = vmatprep.subr.mxu0 %v583
  %1058 = vmatpush1.msra.mxu0 %v582
  %1059 = vmatprep.subr.mxu0 %v591
  %1060 = vmatpush1.msra.mxu0 %v590
  %1061 = vmatprep.subr.mxu0 %v599
  %1062 = vmatpush1.msra.mxu0 %v598
  %1063 = vmatprep.subr.mxu0 %v607
  %1064 = vmatpush1.msra.mxu0 %v606
  %1065 = vmatprep.subr.mxu0 %v615
  %1066 = vmatpush1.msra.mxu0 %v614
  %1067 = vmatprep.subr.mxu0 %v623
  %1068 = vmatpush1.msra.mxu0 %v622
  %1069 = vmatprep.subr.mxu0 %v631
  %1070 = vmatpush1.msra.mxu0 %v630
  %1071 = vmatprep.subr.mxu0 %v639
  %1072 = vmatpush1.msra.mxu0 %v638
  %1073 = vmatprep.subr.mxu0 %v647
  %1074 = vmatpush1.msra.mxu0 %v646
  %1075 = vmatprep.subr.mxu0 %v655
  %1076 = vmatpush1.msra.mxu0 %v654
  %1077 = vmatprep.subr.mxu0 %v663
  %1078 = vmatpush1.msra.mxu0 %v662
  %1079 = vmatprep.subr.mxu0 %v671
  %1080 = vmatpush1.msra.mxu0 %v670
  %1081 = vmatprep.subr.mxu0 %v679
  %1082 = vmatpush1.msra.mxu0 %v678
  %1083 = vmatprep.subr.mxu0 %v687
  %1084 = vmatpush1.msra.mxu0 %v686
  %1085 = vmatprep.subr.mxu0 %v695
  %1086 = vmatpush1.msra.mxu0 %v694
  %1087 = vmatprep.subr.mxu0 %v703
  %1088 = vmatpush1.msra.mxu0 %v702
  %1089 = vmatprep.subr.mxu0 %v711
  %1090 = vmatpush1.msra.mxu0 %v710
  %1091 = vmatprep.subr.mxu0 %v719
  %1092 = vmatpush1.msra.mxu0 %v718
  %1093 = vmatprep.subr.mxu0 %v727
  %1094 = vmatpush1.msra.mxu0 %v726
  %1095 = vmatprep.subr.mxu0 %v735
  %1096 = vmatpush1.msra.mxu0 %v734
  %1097 = vmatprep.subr.mxu0 %v743
  %1098 = vmatpush1.msra.mxu0 %v742
  %1099 = vmatprep.subr.mxu0 %v751
  %1100 = vmatpush1.msra.mxu0 %v750
  %1101 = vmatprep.subr.mxu0 %v759
  %1102 = vmatpush1.msra.mxu0 %v758
  %1103 = vmatprep.subr.mxu0 %v767
  %1104 = vmatpush1.msra.mxu0 %v766
  %1105 = vmatprep.subr.mxu0 %v775
  %1106 = vmatpush1.msra.mxu0 %v774
  %1107 = vmatprep.subr.mxu0 %v783
  %1108 = vmatpush1.msra.mxu0 %v782
  %1109 = vmatprep.subr.mxu0 %v791
  %1110 = vmatpush1.msra.mxu0 %v790
  %1111 = vmatprep.subr.mxu0 %v799
  %1112 = vmatpush1.msra.mxu0 %v798
  %1113 = vmatprep.subr.mxu0 %v807
  %1114 = vmatpush1.msra.mxu0 %v806
  %1115 = vmatprep.subr.mxu0 %v815
  %1116 = vmatpush1.msra.mxu0 %v814
  %1117 = vmatprep.subr.mxu0 %v823
  %1118 = vmatpush1.msra.mxu0 %v822
  %1119 = vmatprep.mubr.f32.mxu0 %v245
  %1120 = vmatmul.mubr.f32.gmra.mrb[0].mxu0 %v244
  %v1121 = vpop.f32.mrb[0].mxu0
  %v1122 = vadd.f32 0.0, %v1121
  %v1123 = vpop.f32.mrb[0].mxu0
  %v1124 = vadd.f32 0.0, %v1123
  %1125 = vmatprep.mubr.f32.mxu0 %v247
  %1126 = vmatmul.mubr.f32.gmra.mrb[0].mxu0 %v246
  %v1127 = vpop.f32.mrb[0].mxu0
  %v1128 = vadd.f32 0.0, %v1127
  %v1129 = vpop.f32.mrb[0].mxu0
  %v1130 = vadd.f32 0.0, %v1129
  %1131 = vdwg.mxu0
  %v1132 = vld [vmem:[%s4] sm:$0xff]
  %v1133 = vld [vmem:[%s4 + $0x8] sm:$0xff]
  %s1134 = scalar_lea.vmem %s4, 16
  %v1135 = vld [vmem:[%s1134] sm:$0xff]
  %v1136 = vld [vmem:[%s1134 + $0x8] sm:$0xff]
  %1138 = vrot.lane.b32.xlu0 %v891, 64
  %v1139 = vpop.permute.xlu0 %1138
  %vm1141 = vcmask 64512
  %v1143 = vsel %vm1141, %v1135, 0
  %v1146 = vsel %vm1141, %v1136, 0
  %1148 = vmatprep.subr.mxu0 0.0
  %1149 = vmatpush1.msra.mxu0 %v1139
  %1150 = vmatprep.subr.mxu0 0.0
  %1151 = vmatpush1.msra.mxu0 0.0
  %1152 = vmatprep.subr.mxu0 0.0
  %1153 = vmatpush1.msra.mxu0 0.0
  %1154 = vmatprep.subr.mxu0 0.0
  %1155 = vmatpush1.msra.mxu0 0.0
  %1156 = vmatprep.subr.mxu0 0.0
  %1157 = vmatpush1.msra.mxu0 0.0
  %1158 = vmatprep.subr.mxu0 0.0
  %1159 = vmatpush1.msra.mxu0 0.0
  %1160 = vmatprep.subr.mxu0 0.0
  %1161 = vmatpush1.msra.mxu0 0.0
  %1162 = vmatprep.subr.mxu0 0.0
  %1163 = vmatpush1.msra.mxu0 0.0
  %1164 = vmatprep.subr.mxu0 0.0
  %1165 = vmatpush1.msra.mxu0 0.0
  %1166 = vmatprep.subr.mxu0 0.0
  %1167 = vmatpush1.msra.mxu0 0.0
  %1168 = vmatprep.subr.mxu0 0.0
  %1169 = vmatpush1.msra.mxu0 0.0
  %1170 = vmatprep.subr.mxu0 0.0
  %1171 = vmatpush1.msra.mxu0 0.0
  %1172 = vmatprep.subr.mxu0 0.0
  %1173 = vmatpush1.msra.mxu0 0.0
  %1174 = vmatprep.subr.mxu0 0.0
  %1175 = vmatpush1.msra.mxu0 0.0
  %1176 = vmatprep.subr.mxu0 0.0
  %1177 = vmatpush1.msra.mxu0 0.0
  %1178 = vmatprep.subr.mxu0 0.0
  %1179 = vmatpush1.msra.mxu0 0.0
  %1180 = vmatprep.subr.mxu0 0.0
  %1181 = vmatpush1.msra.mxu0 0.0
  %1182 = vmatprep.subr.mxu0 0.0
  %1183 = vmatpush1.msra.mxu0 0.0
  %1184 = vmatprep.subr.mxu0 0.0
  %1185 = vmatpush1.msra.mxu0 0.0
  %1186 = vmatprep.subr.mxu0 0.0
  %1187 = vmatpush1.msra.mxu0 0.0
  %1188 = vmatprep.subr.mxu0 0.0
  %1189 = vmatpush1.msra.mxu0 0.0
  %1190 = vmatprep.subr.mxu0 0.0
  %1191 = vmatpush1.msra.mxu0 0.0
  %1192 = vmatprep.subr.mxu0 0.0
  %1193 = vmatpush1.msra.mxu0 0.0
  %1194 = vmatprep.subr.mxu0 0.0
  %1195 = vmatpush1.msra.mxu0 0.0
  %1196 = vmatprep.subr.mxu0 0.0
  %1197 = vmatpush1.msra.mxu0 0.0
  %1198 = vmatprep.subr.mxu0 0.0
  %1199 = vmatpush1.msra.mxu0 0.0
  %1200 = vmatprep.subr.mxu0 0.0
  %1201 = vmatpush1.msra.mxu0 0.0
  %1202 = vmatprep.subr.mxu0 0.0
  %1203 = vmatpush1.msra.mxu0 0.0
  %1204 = vmatprep.subr.mxu0 0.0
  %1205 = vmatpush1.msra.mxu0 0.0
  %1206 = vmatprep.subr.mxu0 0.0
  %1207 = vmatpush1.msra.mxu0 0.0
  %1208 = vmatprep.subr.mxu0 0.0
  %1209 = vmatpush1.msra.mxu0 0.0
  %1210 = vmatprep.subr.mxu0 0.0
  %1211 = vmatpush1.msra.mxu0 0.0
  %1212 = vmatprep.mubr.f32.mxu0 0.0
  %1213 = vmatmul.mubr.f32.gmra.mrb[0].mxu0 %v1143
  %v1214 = vpop.f32.mrb[0].mxu0
  %v1215 = vadd.f32 0.0, %v1214
  %v1216 = vpop.f32.mrb[0].mxu0
  %1217 = vmatprep.mubr.f32.mxu0 0.0
  %1218 = vmatmul.mubr.f32.gmra.mrb[0].mxu0 %v1146
  %v1219 = vpop.f32.mrb[0].mxu0
  %v1220 = vadd.f32 0.0, %v1219
  %v1221 = vpop.f32.mrb[0].mxu0
  %1222 = vdwg.mxu0
  %v1224 = vsel %vm1141, %v1132, 0
  %v1227 = vsel %vm1141, %v1133, 0
  %1229 = vmatprep.subr.mxu0 0.0
  %1230 = vmatpush1.msra.mxu0 %v891
  %1231 = vmatprep.subr.mxu0 0.0
  %1232 = vmatpush1.msra.mxu0 0.0
  %1233 = vmatprep.subr.mxu0 0.0
  %1234 = vmatpush1.msra.mxu0 0.0
  %1235 = vmatprep.subr.mxu0 0.0
  %1236 = vmatpush1.msra.mxu0 0.0
  %1237 = vmatprep.subr.mxu0 0.0
  %1238 = vmatpush1.msra.mxu0 0.0
  %1239 = vmatprep.subr.mxu0 0.0
  %1240 = vmatpush1.msra.mxu0 0.0
  %1241 = vmatprep.subr.mxu0 0.0
  %1242 = vmatpush1.msra.mxu0 0.0
  %1243 = vmatprep.subr.mxu0 0.0
  %1244 = vmatpush1.msra.mxu0 0.0
  %1245 = vmatprep.subr.mxu0 0.0
  %1246 = vmatpush1.msra.mxu0 0.0
  %1247 = vmatprep.subr.mxu0 0.0
  %1248 = vmatpush1.msra.mxu0 0.0
  %1249 = vmatprep.subr.mxu0 0.0
  %1250 = vmatpush1.msra.mxu0 0.0
  %1251 = vmatprep.subr.mxu0 0.0
  %1252 = vmatpush1.msra.mxu0 0.0
  %1253 = vmatprep.subr.mxu0 0.0
  %1254 = vmatpush1.msra.mxu0 0.0
  %1255 = vmatprep.subr.mxu0 0.0
  %1256 = vmatpush1.msra.mxu0 0.0
  %1257 = vmatprep.subr.mxu0 0.0
  %1258 = vmatpush1.msra.mxu0 0.0
  %1259 = vmatprep.subr.mxu0 0.0
  %1260 = vmatpush1.msra.mxu0 0.0
  %1261 = vmatprep.subr.mxu0 0.0
  %1262 = vmatpush1.msra.mxu0 0.0
  %1263 = vmatprep.subr.mxu0 0.0
  %1264 = vmatpush1.msra.mxu0 0.0
  %1265 = vmatprep.subr.mxu0 0.0
  %1266 = vmatpush1.msra.mxu0 0.0
  %1267 = vmatprep.subr.mxu0 0.0
  %1268 = vmatpush1.msra.mxu0 0.0
  %1269 = vmatprep.subr.mxu0 0.0
  %1270 = vmatpush1.msra.mxu0 0.0
  %1271 = vmatprep.subr.mxu0 0.0
  %1272 = vmatpush1.msra.mxu0 0.0
  %1273 = vmatprep.subr.mxu0 0.0
  %1274 = vmatpush1.msra.mxu0 0.0
  %1275 = vmatprep.subr.mxu0 0.0
  %1276 = vmatpush1.msra.mxu0 0.0
  %1277 = vmatprep.subr.mxu0 0.0
  %1278 = vmatpush1.msra.mxu0 0.0
  %1279 = vmatprep.subr.mxu0 0.0
  %1280 = vmatpush1.msra.mxu0 0.0
  %1281 = vmatprep.subr.mxu0 0.0
  %1282 = vmatpush1.msra.mxu0 0.0
  %1283 = vmatprep.subr.mxu0 0.0
  %1284 = vmatpush1.msra.mxu0 0.0
  %1285 = vmatprep.subr.mxu0 0.0
  %1286 = vmatpush1.msra.mxu0 0.0
  %1287 = vmatprep.subr.mxu0 0.0
  %1288 = vmatpush1.msra.mxu0 0.0
  %1289 = vmatprep.subr.mxu0 0.0
  %1290 = vmatpush1.msra.mxu0 0.0
  %1291 = vmatprep.subr.mxu0 0.0
  %1292 = vmatpush1.msra.mxu0 0.0
  %1293 = vmatprep.mubr.f32.mxu0 0.0
  %1294 = vmatmul.mubr.f32.gmra.mrb[0].mxu0 %v1224
  %v1295 = vpop.f32.mrb[0].mxu0
  %v1296 = vadd.f32 %v1215, %v1295
  %v1297 = vpop.f32.mrb[0].mxu0
  %1298 = vmatprep.mubr.f32.mxu0 0.0
  %1299 = vmatmul.mubr.f32.gmra.mrb[0].mxu0 %v1227
  %v1300 = vpop.f32.mrb[0].mxu0
  %v1301 = vadd.f32 %v1220, %v1300
  %v1302 = vpop.f32.mrb[0].mxu0
  %1303 = vdwg.mxu0
  %s1304 = scalar_lea.vmem %s4, 32
  %v1305 = vld [vmem:[%s1304] sm:$0xff]
  %v1306 = vld [vmem:[%s1304 + $0x8] sm:$0xff]
  %v1308 = vsel %vm1141, %v1305, 0
  %v1311 = vsel %vm1141, %v1306, 0
  %1313 = vmatprep.subr.mxu0 0.0
  %1314 = vmatpush1.msra.mxu0 %v893
  %1315 = vmatprep.subr.mxu0 0.0
  %1316 = vmatpush1.msra.mxu0 0.0
  %1317 = vmatprep.subr.mxu0 0.0
  %1318 = vmatpush1.msra.mxu0 0.0
  %1319 = vmatprep.subr.mxu0 0.0
  %1320 = vmatpush1.msra.mxu0 0.0
  %1321 = vmatprep.subr.mxu0 0.0
  %1322 = vmatpush1.msra.mxu0 0.0
  %1323 = vmatprep.subr.mxu0 0.0
  %1324 = vmatpush1.msra.mxu0 0.0
  %1325 = vmatprep.subr.mxu0 0.0
  %1326 = vmatpush1.msra.mxu0 0.0
  %1327 = vmatprep.subr.mxu0 0.0
  %1328 = vmatpush1.msra.mxu0 0.0
  %1329 = vmatprep.subr.mxu0 0.0
  %1330 = vmatpush1.msra.mxu0 0.0
  %1331 = vmatprep.subr.mxu0 0.0
  %1332 = vmatpush1.msra.mxu0 0.0
  %1333 = vmatprep.subr.mxu0 0.0
  %1334 = vmatpush1.msra.mxu0 0.0
  %1335 = vmatprep.subr.mxu0 0.0
  %1336 = vmatpush1.msra.mxu0 0.0
  %1337 = vmatprep.subr.mxu0 0.0
  %1338 = vmatpush1.msra.mxu0 0.0
  %1339 = vmatprep.subr.mxu0 0.0
  %1340 = vmatpush1.msra.mxu0 0.0
  %1341 = vmatprep.subr.mxu0 0.0
  %1342 = vmatpush1.msra.mxu0 0.0
  %1343 = vmatprep.subr.mxu0 0.0
  %1344 = vmatpush1.msra.mxu0 0.0
  %1345 = vmatprep.subr.mxu0 0.0
  %1346 = vmatpush1.msra.mxu0 0.0
  %1347 = vmatprep.subr.mxu0 0.0
  %1348 = vmatpush1.msra.mxu0 0.0
  %1349 = vmatprep.subr.mxu0 0.0
  %1350 = vmatpush1.msra.mxu0 0.0
  %1351 = vmatprep.subr.mxu0 0.0
  %1352 = vmatpush1.msra.mxu0 0.0
  %1353 = vmatprep.subr.mxu0 0.0
  %1354 = vmatpush1.msra.mxu0 0.0
  %1355 = vmatprep.subr.mxu0 0.0
  %1356 = vmatpush1.msra.mxu0 0.0
  %1357 = vmatprep.subr.mxu0 0.0
  %1358 = vmatpush1.msra.mxu0 0.0
  %1359 = vmatprep.subr.mxu0 0.0
  %1360 = vmatpush1.msra.mxu0 0.0
  %1361 = vmatprep.subr.mxu0 0.0
  %1362 = vmatpush1.msra.mxu0 0.0
  %1363 = vmatprep.subr.mxu0 0.0
  %1364 = vmatpush1.msra.mxu0 0.0
  %1365 = vmatprep.subr.mxu0 0.0
  %1366 = vmatpush1.msra.mxu0 0.0
  %1367 = vmatprep.subr.mxu0 0.0
  %1368 = vmatpush1.msra.mxu0 0.0
  %1369 = vmatprep.subr.mxu0 0.0
  %1370 = vmatpush1.msra.mxu0 0.0
  %1371 = vmatprep.subr.mxu0 0.0
  %1372 = vmatpush1.msra.mxu0 0.0
  %1373 = vmatprep.subr.mxu0 0.0
  %1374 = vmatpush1.msra.mxu0 0.0
  %1375 = vmatprep.subr.mxu0 0.0
  %1376 = vmatpush1.msra.mxu0 0.0
  %1377 = vmatprep.mubr.f32.mxu0 0.0
  %1378 = vmatmul.mubr.f32.gmra.mrb[0].mxu0 %v1308
  %v1379 = vpop.f32.mrb[0].mxu0
  %v1380 = vadd.f32 0.0, %v1379
  %v1381 = vpop.f32.mrb[0].mxu0
  %1382 = vmatprep.mubr.f32.mxu0 0.0
  %1383 = vmatmul.mubr.f32.gmra.mrb[0].mxu0 %v1311
  %v1384 = vpop.f32.mrb[0].mxu0
  %v1385 = vadd.f32 0.0, %v1384
  %v1386 = vpop.f32.mrb[0].mxu0
  %1387 = vdwg.mxu0
  %v1388 = vadd.f32 %v1296, %v1380
  %v1389 = vadd.f32 %v1301, %v1385
  %s1390 = scalar_lea.vmem %s4, 48
  %v1391 = vld [vmem:[%s1390] sm:$0xff]
  %v1392 = vld [vmem:[%s1390 + $0x8] sm:$0xff]
  %1394 = vrot.lane.b32.xlu0 %v893, 64
  %v1395 = vpop.permute.xlu0 %1394
  %v1398 = vsel %vm1141, %v1391, 0
  %v1401 = vsel %vm1141, %v1392, 0
  %1403 = vmatprep.subr.mxu0 0.0
  %1404 = vmatpush1.msra.mxu0 %v1395
  %1405 = vmatprep.subr.mxu0 0.0
  %1406 = vmatpush1.msra.mxu0 0.0
  %1407 = vmatprep.subr.mxu0 0.0
  %1408 = vmatpush1.msra.mxu0 0.0
  %1409 = vmatprep.subr.mxu0 0.0
  %1410 = vmatpush1.msra.mxu0 0.0
  %1411 = vmatprep.subr.mxu0 0.0
  %1412 = vmatpush1.msra.mxu0 0.0
  %1413 = vmatprep.subr.mxu0 0.0
  %1414 = vmatpush1.msra.mxu0 0.0
  %1415 = vmatprep.subr.mxu0 0.0
  %1416 = vmatpush1.msra.mxu0 0.0
  %1417 = vmatprep.subr.mxu0 0.0
  %1418 = vmatpush1.msra.mxu0 0.0
  %1419 = vmatprep.subr.mxu0 0.0
  %1420 = vmatpush1.msra.mxu0 0.0
  %1421 = vmatprep.subr.mxu0 0.0
  %1422 = vmatpush1.msra.mxu0 0.0
  %1423 = vmatprep.subr.mxu0 0.0
  %1424 = vmatpush1.msra.mxu0 0.0
  %1425 = vmatprep.subr.mxu0 0.0
  %1426 = vmatpush1.msra.mxu0 0.0
  %1427 = vmatprep.subr.mxu0 0.0
  %1428 = vmatpush1.msra.mxu0 0.0
  %1429 = vmatprep.subr.mxu0 0.0
  %1430 = vmatpush1.msra.mxu0 0.0
  %1431 = vmatprep.subr.mxu0 0.0
  %1432 = vmatpush1.msra.mxu0 0.0
  %1433 = vmatprep.subr.mxu0 0.0
  %1434 = vmatpush1.msra.mxu0 0.0
  %1435 = vmatprep.subr.mxu0 0.0
  %1436 = vmatpush1.msra.mxu0 0.0
  %1437 = vmatprep.subr.mxu0 0.0
  %1438 = vmatpush1.msra.mxu0 0.0
  %1439 = vmatprep.subr.mxu0 0.0
  %1440 = vmatpush1.msra.mxu0 0.0
  %1441 = vmatprep.subr.mxu0 0.0
  %1442 = vmatpush1.msra.mxu0 0.0
  %1443 = vmatprep.subr.mxu0 0.0
  %1444 = vmatpush1.msra.mxu0 0.0
  %1445 = vmatprep.subr.mxu0 0.0
  %1446 = vmatpush1.msra.mxu0 0.0
  %1447 = vmatprep.subr.mxu0 0.0
  %1448 = vmatpush1.msra.mxu0 0.0
  %1449 = vmatprep.subr.mxu0 0.0
  %1450 = vmatpush1.msra.mxu0 0.0
  %1451 = vmatprep.subr.mxu0 0.0
  %1452 = vmatpush1.msra.mxu0 0.0
  %1453 = vmatprep.subr.mxu0 0.0
  %1454 = vmatpush1.msra.mxu0 0.0
  %1455 = vmatprep.subr.mxu0 0.0
  %1456 = vmatpush1.msra.mxu0 0.0
  %1457 = vmatprep.subr.mxu0 0.0
  %1458 = vmatpush1.msra.mxu0 0.0
  %1459 = vmatprep.subr.mxu0 0.0
  %1460 = vmatpush1.msra.mxu0 0.0
  %1461 = vmatprep.subr.mxu0 0.0
  %1462 = vmatpush1.msra.mxu0 0.0
  %1463 = vmatprep.subr.mxu0 0.0
  %1464 = vmatpush1.msra.mxu0 0.0
  %1465 = vmatprep.subr.mxu0 0.0
  %1466 = vmatpush1.msra.mxu0 0.0
  %1467 = vmatprep.mubr.f32.mxu0 0.0
  %1468 = vmatmul.mubr.f32.gmra.mrb[0].mxu0 %v1398
  %v1469 = vpop.f32.mrb[0].mxu0
  %v1470 = vadd.f32 0.0, %v1469
  %v1471 = vpop.f32.mrb[0].mxu0
  %1472 = vmatprep.mubr.f32.mxu0 0.0
  %1473 = vmatmul.mubr.f32.gmra.mrb[0].mxu0 %v1401
  %v1474 = vpop.f32.mrb[0].mxu0
  %v1475 = vadd.f32 0.0, %v1474
  %v1476 = vpop.f32.mrb[0].mxu0
  %1477 = vdwg.mxu0
  %v1478 = vadd.f32 %v1388, %v1470
  %v1479 = vadd.f32 %v1389, %v1475
  %s1480 = scalar_lea.vmem %s4, 64
  %v1481 = vld [vmem:[%s1480] sm:$0xff]
  %v1482 = vld [vmem:[%s1480 + $0x8] sm:$0xff]
  %v1484 = vsel %vm1141, %v1481, 0
  %v1487 = vsel %vm1141, %v1482, 0
  %1489 = vmatprep.subr.mxu0 0.0
  %1490 = vmatpush1.msra.mxu0 %v968
  %1491 = vmatprep.subr.mxu0 0.0
  %1492 = vmatpush1.msra.mxu0 0.0
  %1493 = vmatprep.subr.mxu0 0.0
  %1494 = vmatpush1.msra.mxu0 0.0
  %1495 = vmatprep.subr.mxu0 0.0
  %1496 = vmatpush1.msra.mxu0 0.0
  %1497 = vmatprep.subr.mxu0 0.0
  %1498 = vmatpush1.msra.mxu0 0.0
  %1499 = vmatprep.subr.mxu0 0.0
  %1500 = vmatpush1.msra.mxu0 0.0
  %1501 = vmatprep.subr.mxu0 0.0
  %1502 = vmatpush1.msra.mxu0 0.0
  %1503 = vmatprep.subr.mxu0 0.0
  %1504 = vmatpush1.msra.mxu0 0.0
  %1505 = vmatprep.subr.mxu0 0.0
  %1506 = vmatpush1.msra.mxu0 0.0
  %1507 = vmatprep.subr.mxu0 0.0
  %1508 = vmatpush1.msra.mxu0 0.0
  %1509 = vmatprep.subr.mxu0 0.0
  %1510 = vmatpush1.msra.mxu0 0.0
  %1511 = vmatprep.subr.mxu0 0.0
  %1512 = vmatpush1.msra.mxu0 0.0
  %1513 = vmatprep.subr.mxu0 0.0
  %1514 = vmatpush1.msra.mxu0 0.0
  %1515 = vmatprep.subr.mxu0 0.0
  %1516 = vmatpush1.msra.mxu0 0.0
  %1517 = vmatprep.subr.mxu0 0.0
  %1518 = vmatpush1.msra.mxu0 0.0
  %1519 = vmatprep.subr.mxu0 0.0
  %1520 = vmatpush1.msra.mxu0 0.0
  %1521 = vmatprep.subr.mxu0 0.0
  %1522 = vmatpush1.msra.mxu0 0.0
  %1523 = vmatprep.subr.mxu0 0.0
  %1524 = vmatpush1.msra.mxu0 0.0
  %1525 = vmatprep.subr.mxu0 0.0
  %1526 = vmatpush1.msra.mxu0 0.0
  %1527 = vmatprep.subr.mxu0 0.0
  %1528 = vmatpush1.msra.mxu0 0.0
  %1529 = vmatprep.subr.mxu0 0.0
  %1530 = vmatpush1.msra.mxu0 0.0
  %1531 = vmatprep.subr.mxu0 0.0
  %1532 = vmatpush1.msra.mxu0 0.0
  %1533 = vmatprep.subr.mxu0 0.0
  %1534 = vmatpush1.msra.mxu0 0.0
  %1535 = vmatprep.subr.mxu0 0.0
  %1536 = vmatpush1.msra.mxu0 0.0
  %1537 = vmatprep.subr.mxu0 0.0
  %1538 = vmatpush1.msra.mxu0 0.0
  %1539 = vmatprep.subr.mxu0 0.0
  %1540 = vmatpush1.msra.mxu0 0.0
  %1541 = vmatprep.subr.mxu0 0.0
  %1542 = vmatpush1.msra.mxu0 0.0
  %1543 = vmatprep.subr.mxu0 0.0
  %1544 = vmatpush1.msra.mxu0 0.0
  %1545 = vmatprep.subr.mxu0 0.0
  %1546 = vmatpush1.msra.mxu0 0.0
  %1547 = vmatprep.subr.mxu0 0.0
  %1548 = vmatpush1.msra.mxu0 0.0
  %1549 = vmatprep.subr.mxu0 0.0
  %1550 = vmatpush1.msra.mxu0 0.0
  %1551 = vmatprep.subr.mxu0 0.0
  %1552 = vmatpush1.msra.mxu0 0.0
  %1553 = vmatprep.mubr.f32.mxu0 0.0
  %1554 = vmatmul.mubr.f32.gmra.mrb[0].mxu0 %v1484
  %v1555 = vpop.f32.mrb[0].mxu0
  %v1556 = vadd.f32 0.0, %v1555
  %v1557 = vpop.f32.mrb[0].mxu0
  %1558 = vmatprep.mubr.f32.mxu0 0.0
  %1559 = vmatmul.mubr.f32.gmra.mrb[0].mxu0 %v1487
  %v1560 = vpop.f32.mrb[0].mxu0
  %v1561 = vadd.f32 0.0, %v1560
  %v1562 = vpop.f32.mrb[0].mxu0
  %1563 = vdwg.mxu0
  %v1564 = vadd.f32 %v1478, %v1556
  %v1565 = vadd.f32 %v1479, %v1561
  %s1566 = scalar_lea.vmem %s4, 80
  %v1567 = vld [vmem:[%s1566] sm:$0xff]
  %v1568 = vld [vmem:[%s1566 + $0x8] sm:$0xff]
  %1570 = vrot.lane.b32.xlu0 %v968, 64
  %v1571 = vpop.permute.xlu0 %1570
  %v1574 = vsel %vm1141, %v1567, 0
  %v1577 = vsel %vm1141, %v1568, 0
  %1579 = vmatprep.subr.mxu0 0.0
  %1580 = vmatpush1.msra.mxu0 %v1571
  %1581 = vmatprep.subr.mxu0 0.0
  %1582 = vmatpush1.msra.mxu0 0.0
  %1583 = vmatprep.subr.mxu0 0.0
  %1584 = vmatpush1.msra.mxu0 0.0
  %1585 = vmatprep.subr.mxu0 0.0
  %1586 = vmatpush1.msra.mxu0 0.0
  %1587 = vmatprep.subr.mxu0 0.0
  %1588 = vmatpush1.msra.mxu0 0.0
  %1589 = vmatprep.subr.mxu0 0.0
  %1590 = vmatpush1.msra.mxu0 0.0
  %1591 = vmatprep.subr.mxu0 0.0
  %1592 = vmatpush1.msra.mxu0 0.0
  %1593 = vmatprep.subr.mxu0 0.0
  %1594 = vmatpush1.msra.mxu0 0.0
  %1595 = vmatprep.subr.mxu0 0.0
  %1596 = vmatpush1.msra.mxu0 0.0
  %1597 = vmatprep.subr.mxu0 0.0
  %1598 = vmatpush1.msra.mxu0 0.0
  %1599 = vmatprep.subr.mxu0 0.0
  %1600 = vmatpush1.msra.mxu0 0.0
  %1601 = vmatprep.subr.mxu0 0.0
  %1602 = vmatpush1.msra.mxu0 0.0
  %1603 = vmatprep.subr.mxu0 0.0
  %1604 = vmatpush1.msra.mxu0 0.0
  %1605 = vmatprep.subr.mxu0 0.0
  %1606 = vmatpush1.msra.mxu0 0.0
  %1607 = vmatprep.subr.mxu0 0.0
  %1608 = vmatpush1.msra.mxu0 0.0
  %1609 = vmatprep.subr.mxu0 0.0
  %1610 = vmatpush1.msra.mxu0 0.0
  %1611 = vmatprep.subr.mxu0 0.0
  %1612 = vmatpush1.msra.mxu0 0.0
  %1613 = vmatprep.subr.mxu0 0.0
  %1614 = vmatpush1.msra.mxu0 0.0
  %1615 = vmatprep.subr.mxu0 0.0
  %1616 = vmatpush1.msra.mxu0 0.0
  %1617 = vmatprep.subr.mxu0 0.0
  %1618 = vmatpush1.msra.mxu0 0.0
  %1619 = vmatprep.subr.mxu0 0.0
  %1620 = vmatpush1.msra.mxu0 0.0
  %1621 = vmatprep.subr.mxu0 0.0
  %1622 = vmatpush1.msra.mxu0 0.0
  %1623 = vmatprep.subr.mxu0 0.0
  %1624 = vmatpush1.msra.mxu0 0.0
  %1625 = vmatprep.subr.mxu0 0.0
  %1626 = vmatpush1.msra.mxu0 0.0
  %1627 = vmatprep.subr.mxu0 0.0
  %1628 = vmatpush1.msra.mxu0 0.0
  %1629 = vmatprep.subr.mxu0 0.0
  %1630 = vmatpush1.msra.mxu0 0.0
  %1631 = vmatprep.subr.mxu0 0.0
  %1632 = vmatpush1.msra.mxu0 0.0
  %1633 = vmatprep.subr.mxu0 0.0
  %1634 = vmatpush1.msra.mxu0 0.0
  %1635 = vmatprep.subr.mxu0 0.0
  %1636 = vmatpush1.msra.mxu0 0.0
  %1637 = vmatprep.subr.mxu0 0.0
  %1638 = vmatpush1.msra.mxu0 0.0
  %1639 = vmatprep.subr.mxu0 0.0
  %1640 = vmatpush1.msra.mxu0 0.0
  %1641 = vmatprep.subr.mxu0 0.0
  %1642 = vmatpush1.msra.mxu0 0.0
  %1643 = vmatprep.mubr.f32.mxu0 0.0
  %1644 = vmatmul.mubr.f32.gmra.mrb[0].mxu0 %v1574
  %v1645 = vpop.f32.mrb[0].mxu0
  %v1646 = vadd.f32 0.0, %v1645
  %v1647 = vpop.f32.mrb[0].mxu0
  %1648 = vmatprep.mubr.f32.mxu0 0.0
  %1649 = vmatmul.mubr.f32.gmra.mrb[0].mxu0 %v1577
  %v1650 = vpop.f32.mrb[0].mxu0
  %v1651 = vadd.f32 0.0, %v1650
  %v1652 = vpop.f32.mrb[0].mxu0
  %1653 = vdwg.mxu0
  %v1654 = vadd.f32 %v1564, %v1646
  %v1655 = vadd.f32 %v1565, %v1651
  %s1656 = scalar_lea.vmem %s4, 96
  %v1657 = vld [vmem:[%s1656] sm:$0xff]
  %v1658 = vld [vmem:[%s1656 + $0x8] sm:$0xff]
  %v1660 = vsel %vm1141, %v1657, 0
  %v1663 = vsel %vm1141, %v1658, 0
  %1665 = vmatprep.subr.mxu0 0.0
  %1666 = vmatpush1.msra.mxu0 %v970
  %1667 = vmatprep.subr.mxu0 0.0
  %1668 = vmatpush1.msra.mxu0 0.0
  %1669 = vmatprep.subr.mxu0 0.0
  %1670 = vmatpush1.msra.mxu0 0.0
  %1671 = vmatprep.subr.mxu0 0.0
  %1672 = vmatpush1.msra.mxu0 0.0
  %1673 = vmatprep.subr.mxu0 0.0
  %1674 = vmatpush1.msra.mxu0 0.0
  %1675 = vmatprep.subr.mxu0 0.0
  %1676 = vmatpush1.msra.mxu0 0.0
  %1677 = vmatprep.subr.mxu0 0.0
  %1678 = vmatpush1.msra.mxu0 0.0
  %1679 = vmatprep.subr.mxu0 0.0
  %1680 = vmatpush1.msra.mxu0 0.0
  %1681 = vmatprep.subr.mxu0 0.0
  %1682 = vmatpush1.msra.mxu0 0.0
  %1683 = vmatprep.subr.mxu0 0.0
  %1684 = vmatpush1.msra.mxu0 0.0
  %1685 = vmatprep.subr.mxu0 0.0
  %1686 = vmatpush1.msra.mxu0 0.0
  %1687 = vmatprep.subr.mxu0 0.0
  %1688 = vmatpush1.msra.mxu0 0.0
  %1689 = vmatprep.subr.mxu0 0.0
  %1690 = vmatpush1.msra.mxu0 0.0
  %1691 = vmatprep.subr.mxu0 0.0
  %1692 = vmatpush1.msra.mxu0 0.0
  %1693 = vmatprep.subr.mxu0 0.0
  %1694 = vmatpush1.msra.mxu0 0.0
  %1695 = vmatprep.subr.mxu0 0.0
  %1696 = vmatpush1.msra.mxu0 0.0
  %1697 = vmatprep.subr.mxu0 0.0
  %1698 = vmatpush1.msra.mxu0 0.0
  %1699 = vmatprep.subr.mxu0 0.0
  %1700 = vmatpush1.msra.mxu0 0.0
  %1701 = vmatprep.subr.mxu0 0.0
  %1702 = vmatpush1.msra.mxu0 0.0
  %1703 = vmatprep.subr.mxu0 0.0
  %1704 = vmatpush1.msra.mxu0 0.0
  %1705 = vmatprep.subr.mxu0 0.0
  %1706 = vmatpush1.msra.mxu0 0.0
  %1707 = vmatprep.subr.mxu0 0.0
  %1708 = vmatpush1.msra.mxu0 0.0
  %1709 = vmatprep.subr.mxu0 0.0
  %1710 = vmatpush1.msra.mxu0 0.0
  %1711 = vmatprep.subr.mxu0 0.0
  %1712 = vmatpush1.msra.mxu0 0.0
  %1713 = vmatprep.subr.mxu0 0.0
  %1714 = vmatpush1.msra.mxu0 0.0
  %1715 = vmatprep.subr.mxu0 0.0
  %1716 = vmatpush1.msra.mxu0 0.0
  %1717 = vmatprep.subr.mxu0 0.0
  %1718 = vmatpush1.msra.mxu0 0.0
  %1719 = vmatprep.subr.mxu0 0.0
  %1720 = vmatpush1.msra.mxu0 0.0
  %1721 = vmatprep.subr.mxu0 0.0
  %1722 = vmatpush1.msra.mxu0 0.0
  %1723 = vmatprep.subr.mxu0 0.0
  %1724 = vmatpush1.msra.mxu0 0.0
  %1725 = vmatprep.subr.mxu0 0.0
  %1726 = vmatpush1.msra.mxu0 0.0
  %1727 = vmatprep.subr.mxu0 0.0
  %1728 = vmatpush1.msra.mxu0 0.0
  %1729 = vmatprep.mubr.f32.mxu0 0.0
  %1730 = vmatmul.mubr.f32.gmra.mrb[0].mxu0 %v1660
  %v1731 = vpop.f32.mrb[0].mxu0
  %v1732 = vadd.f32 0.0, %v1731
  %v1733 = vpop.f32.mrb[0].mxu0
  %1734 = vmatprep.mubr.f32.mxu0 0.0
  %1735 = vmatmul.mubr.f32.gmra.mrb[0].mxu0 %v1663
  %v1736 = vpop.f32.mrb[0].mxu0
  %v1737 = vadd.f32 0.0, %v1736
  %v1738 = vpop.f32.mrb[0].mxu0
  %1739 = vdwg.mxu0
  %v1740 = vadd.f32 %v1654, %v1732
  %v1741 = vadd.f32 %v1655, %v1737
  %s1742 = scalar_lea.vmem %s4, 112
  %v1743 = vld [vmem:[%s1742] sm:$0xff]
  %v1744 = vld [vmem:[%s1742 + $0x8] sm:$0xff]
  %1746 = vrot.lane.b32.xlu0 %v970, 64
  %v1747 = vpop.permute.xlu0 %1746
  %v1750 = vsel %vm1141, %v1743, 0
  %v1753 = vsel %vm1141, %v1744, 0
  %1755 = vmatprep.subr.mxu0 0.0
  %1756 = vmatpush1.msra.mxu0 %v1747
  %1757 = vmatprep.subr.mxu0 0.0
  %1758 = vmatpush1.msra.mxu0 0.0
  %1759 = vmatprep.subr.mxu0 0.0
  %1760 = vmatpush1.msra.mxu0 0.0
  %1761 = vmatprep.subr.mxu0 0.0
  %1762 = vmatpush1.msra.mxu0 0.0
  %1763 = vmatprep.subr.mxu0 0.0
  %1764 = vmatpush1.msra.mxu0 0.0
  %1765 = vmatprep.subr.mxu0 0.0
  %1766 = vmatpush1.msra.mxu0 0.0
  %1767 = vmatprep.subr.mxu0 0.0
  %1768 = vmatpush1.msra.mxu0 0.0
  %1769 = vmatprep.subr.mxu0 0.0
  %1770 = vmatpush1.msra.mxu0 0.0
  %1771 = vmatprep.subr.mxu0 0.0
  %1772 = vmatpush1.msra.mxu0 0.0
  %1773 = vmatprep.subr.mxu0 0.0
  %1774 = vmatpush1.msra.mxu0 0.0
  %1775 = vmatprep.subr.mxu0 0.0
  %1776 = vmatpush1.msra.mxu0 0.0
  %1777 = vmatprep.subr.mxu0 0.0
  %1778 = vmatpush1.msra.mxu0 0.0
  %1779 = vmatprep.subr.mxu0 0.0
  %1780 = vmatpush1.msra.mxu0 0.0
  %1781 = vmatprep.subr.mxu0 0.0
  %1782 = vmatpush1.msra.mxu0 0.0
  %1783 = vmatprep.subr.mxu0 0.0
  %1784 = vmatpush1.msra.mxu0 0.0
  %1785 = vmatprep.subr.mxu0 0.0
  %1786 = vmatpush1.msra.mxu0 0.0
  %1787 = vmatprep.subr.mxu0 0.0
  %1788 = vmatpush1.msra.mxu0 0.0
  %1789 = vmatprep.subr.mxu0 0.0
  %1790 = vmatpush1.msra.mxu0 0.0
  %1791 = vmatprep.subr.mxu0 0.0
  %1792 = vmatpush1.msra.mxu0 0.0
  %1793 = vmatprep.subr.mxu0 0.0
  %1794 = vmatpush1.msra.mxu0 0.0
  %1795 = vmatprep.subr.mxu0 0.0
  %1796 = vmatpush1.msra.mxu0 0.0
  %1797 = vmatprep.subr.mxu0 0.0
  %1798 = vmatpush1.msra.mxu0 0.0
  %1799 = vmatprep.subr.mxu0 0.0
  %1800 = vmatpush1.msra.mxu0 0.0
  %1801 = vmatprep.subr.mxu0 0.0
  %1802 = vmatpush1.msra.mxu0 0.0
  %1803 = vmatprep.subr.mxu0 0.0
  %1804 = vmatpush1.msra.mxu0 0.0
  %1805 = vmatprep.subr.mxu0 0.0
  %1806 = vmatpush1.msra.mxu0 0.0
  %1807 = vmatprep.subr.mxu0 0.0
  %1808 = vmatpush1.msra.mxu0 0.0
  %1809 = vmatprep.subr.mxu0 0.0
  %1810 = vmatpush1.msra.mxu0 0.0
  %1811 = vmatprep.subr.mxu0 0.0
  %1812 = vmatpush1.msra.mxu0 0.0
  %1813 = vmatprep.subr.mxu0 0.0
  %1814 = vmatpush1.msra.mxu0 0.0
  %1815 = vmatprep.subr.mxu0 0.0
  %1816 = vmatpush1.msra.mxu0 0.0
  %1817 = vmatprep.subr.mxu0 0.0
  %1818 = vmatpush1.msra.mxu0 0.0
  %1819 = vmatprep.mubr.f32.mxu0 0.0
  %1820 = vmatmul.mubr.f32.gmra.mrb[0].mxu0 %v1750
  %v1821 = vpop.f32.mrb[0].mxu0
  %v1822 = vadd.f32 0.0, %v1821
  %v1823 = vpop.f32.mrb[0].mxu0
  %1824 = vmatprep.mubr.f32.mxu0 0.0
  %1825 = vmatmul.mubr.f32.gmra.mrb[0].mxu0 %v1753
  %v1826 = vpop.f32.mrb[0].mxu0
  %v1827 = vadd.f32 0.0, %v1826
  %v1828 = vpop.f32.mrb[0].mxu0
  %1829 = vdwg.mxu0
  %v1830 = vadd.f32 %v1740, %v1822
  %v1831 = vadd.f32 %v1741, %v1827
  %s1832 = scalar_lea.vmem %s4, 128
  %v1833 = vld [vmem:[%s1832] sm:$0xff]
  %v1834 = vld [vmem:[%s1832 + $0x8] sm:$0xff]
  %v1836 = vsel %vm1141, %v1833, 0
  %v1839 = vsel %vm1141, %v1834, 0
  %1841 = vmatprep.subr.mxu0 0.0
  %1842 = vmatpush1.msra.mxu0 %v1045
  %1843 = vmatprep.subr.mxu0 0.0
  %1844 = vmatpush1.msra.mxu0 0.0
  %1845 = vmatprep.subr.mxu0 0.0
  %1846 = vmatpush1.msra.mxu0 0.0
  %1847 = vmatprep.subr.mxu0 0.0
  %1848 = vmatpush1.msra.mxu0 0.0
  %1849 = vmatprep.subr.mxu0 0.0
  %1850 = vmatpush1.msra.mxu0 0.0
  %1851 = vmatprep.subr.mxu0 0.0
  %1852 = vmatpush1.msra.mxu0 0.0
  %1853 = vmatprep.subr.mxu0 0.0
  %1854 = vmatpush1.msra.mxu0 0.0
  %1855 = vmatprep.subr.mxu0 0.0
  %1856 = vmatpush1.msra.mxu0 0.0
  %1857 = vmatprep.subr.mxu0 0.0
  %1858 = vmatpush1.msra.mxu0 0.0
  %1859 = vmatprep.subr.mxu0 0.0
  %1860 = vmatpush1.msra.mxu0 0.0
  %1861 = vmatprep.subr.mxu0 0.0
  %1862 = vmatpush1.msra.mxu0 0.0
  %1863 = vmatprep.subr.mxu0 0.0
  %1864 = vmatpush1.msra.mxu0 0.0
  %1865 = vmatprep.subr.mxu0 0.0
  %1866 = vmatpush1.msra.mxu0 0.0
  %1867 = vmatprep.subr.mxu0 0.0
  %1868 = vmatpush1.msra.mxu0 0.0
  %1869 = vmatprep.subr.mxu0 0.0
  %1870 = vmatpush1.msra.mxu0 0.0
  %1871 = vmatprep.subr.mxu0 0.0
  %1872 = vmatpush1.msra.mxu0 0.0
  %1873 = vmatprep.subr.mxu0 0.0
  %1874 = vmatpush1.msra.mxu0 0.0
  %1875 = vmatprep.subr.mxu0 0.0
  %1876 = vmatpush1.msra.mxu0 0.0
  %1877 = vmatprep.subr.mxu0 0.0
  %1878 = vmatpush1.msra.mxu0 0.0
  %1879 = vmatprep.subr.mxu0 0.0
  %1880 = vmatpush1.msra.mxu0 0.0
  %1881 = vmatprep.subr.mxu0 0.0
  %1882 = vmatpush1.msra.mxu0 0.0
  %1883 = vmatprep.subr.mxu0 0.0
  %1884 = vmatpush1.msra.mxu0 0.0
  %1885 = vmatprep.subr.mxu0 0.0
  %1886 = vmatpush1.msra.mxu0 0.0
  %1887 = vmatprep.subr.mxu0 0.0
  %1888 = vmatpush1.msra.mxu0 0.0
  %1889 = vmatprep.subr.mxu0 0.0
  %1890 = vmatpush1.msra.mxu0 0.0
  %1891 = vmatprep.subr.mxu0 0.0
  %1892 = vmatpush1.msra.mxu0 0.0
  %1893 = vmatprep.subr.mxu0 0.0
  %1894 = vmatpush1.msra.mxu0 0.0
  %1895 = vmatprep.subr.mxu0 0.0
  %1896 = vmatpush1.msra.mxu0 0.0
  %1897 = vmatprep.subr.mxu0 0.0
  %1898 = vmatpush1.msra.mxu0 0.0
  %1899 = vmatprep.subr.mxu0 0.0
  %1900 = vmatpush1.msra.mxu0 0.0
  %1901 = vmatprep.subr.mxu0 0.0
  %1902 = vmatpush1.msra.mxu0 0.0
  %1903 = vmatprep.subr.mxu0 0.0
  %1904 = vmatpush1.msra.mxu0 0.0
  %1905 = vmatprep.mubr.f32.mxu0 0.0
  %1906 = vmatmul.mubr.f32.gmra.mrb[0].mxu0 %v1836
  %v1907 = vpop.f32.mrb[0].mxu0
  %v1908 = vadd.f32 0.0, %v1907
  %v1909 = vpop.f32.mrb[0].mxu0
  %1910 = vmatprep.mubr.f32.mxu0 0.0
  %1911 = vmatmul.mubr.f32.gmra.mrb[0].mxu0 %v1839
  %v1912 = vpop.f32.mrb[0].mxu0
  %v1913 = vadd.f32 0.0, %v1912
  %v1914 = vpop.f32.mrb[0].mxu0
  %1915 = vdwg.mxu0
  %v1916 = vadd.f32 %v1830, %v1908
  %v1917 = vadd.f32 %v1831, %v1913
  %s1918 = scalar_lea.vmem %s4, 144
  %v1919 = vld [vmem:[%s1918] sm:$0xff]
  %v1920 = vld [vmem:[%s1918 + $0x8] sm:$0xff]
  %1922 = vrot.lane.b32.xlu0 %v1045, 64
  %v1923 = vpop.permute.xlu0 %1922
  %v1926 = vsel %vm1141, %v1919, 0
  %v1929 = vsel %vm1141, %v1920, 0
  %1931 = vmatprep.subr.mxu0 0.0
  %1932 = vmatpush1.msra.mxu0 %v1923
  %1933 = vmatprep.subr.mxu0 0.0
  %1934 = vmatpush1.msra.mxu0 0.0
  %1935 = vmatprep.subr.mxu0 0.0
  %1936 = vmatpush1.msra.mxu0 0.0
  %1937 = vmatprep.subr.mxu0 0.0
  %1938 = vmatpush1.msra.mxu0 0.0
  %1939 = vmatprep.subr.mxu0 0.0
  %1940 = vmatpush1.msra.mxu0 0.0
  %1941 = vmatprep.subr.mxu0 0.0
  %1942 = vmatpush1.msra.mxu0 0.0
  %1943 = vmatprep.subr.mxu0 0.0
  %1944 = vmatpush1.msra.mxu0 0.0
  %1945 = vmatprep.subr.mxu0 0.0
  %1946 = vmatpush1.msra.mxu0 0.0
  %1947 = vmatprep.subr.mxu0 0.0
  %1948 = vmatpush1.msra.mxu0 0.0
  %1949 = vmatprep.subr.mxu0 0.0
  %1950 = vmatpush1.msra.mxu0 0.0
  %1951 = vmatprep.subr.mxu0 0.0
  %1952 = vmatpush1.msra.mxu0 0.0
  %1953 = vmatprep.subr.mxu0 0.0
  %1954 = vmatpush1.msra.mxu0 0.0
  %1955 = vmatprep.subr.mxu0 0.0
  %1956 = vmatpush1.msra.mxu0 0.0
  %1957 = vmatprep.subr.mxu0 0.0
  %1958 = vmatpush1.msra.mxu0 0.0
  %1959 = vmatprep.subr.mxu0 0.0
  %1960 = vmatpush1.msra.mxu0 0.0
  %1961 = vmatprep.subr.mxu0 0.0
  %1962 = vmatpush1.msra.mxu0 0.0
  %1963 = vmatprep.subr.mxu0 0.0
  %1964 = vmatpush1.msra.mxu0 0.0
  %1965 = vmatprep.subr.mxu0 0.0
  %1966 = vmatpush1.msra.mxu0 0.0
  %1967 = vmatprep.subr.mxu0 0.0
  %1968 = vmatpush1.msra.mxu0 0.0
  %1969 = vmatprep.subr.mxu0 0.0
  %1970 = vmatpush1.msra.mxu0 0.0
  %1971 = vmatprep.subr.mxu0 0.0
  %1972 = vmatpush1.msra.mxu0 0.0
  %1973 = vmatprep.subr.mxu0 0.0
  %1974 = vmatpush1.msra.mxu0 0.0
  %1975 = vmatprep.subr.mxu0 0.0
  %1976 = vmatpush1.msra.mxu0 0.0
  %1977 = vmatprep.subr.mxu0 0.0
  %1978 = vmatpush1.msra.mxu0 0.0
  %1979 = vmatprep.subr.mxu0 0.0
  %1980 = vmatpush1.msra.mxu0 0.0
  %1981 = vmatprep.subr.mxu0 0.0
  %1982 = vmatpush1.msra.mxu0 0.0
  %1983 = vmatprep.subr.mxu0 0.0
  %1984 = vmatpush1.msra.mxu0 0.0
  %1985 = vmatprep.subr.mxu0 0.0
  %1986 = vmatpush1.msra.mxu0 0.0
  %1987 = vmatprep.subr.mxu0 0.0
  %1988 = vmatpush1.msra.mxu0 0.0
  %1989 = vmatprep.subr.mxu0 0.0
  %1990 = vmatpush1.msra.mxu0 0.0
  %1991 = vmatprep.subr.mxu0 0.0
  %1992 = vmatpush1.msra.mxu0 0.0
  %1993 = vmatprep.subr.mxu0 0.0
  %1994 = vmatpush1.msra.mxu0 0.0
  %1995 = vmatprep.mubr.f32.mxu0 0.0
  %1996 = vmatmul.mubr.f32.gmra.mrb[0].mxu0 %v1926
  %v1997 = vpop.f32.mrb[0].mxu0
  %v1998 = vadd.f32 0.0, %v1997
  %v1999 = vpop.f32.mrb[0].mxu0
  %2000 = vmatprep.mubr.f32.mxu0 0.0
  %2001 = vmatmul.mubr.f32.gmra.mrb[0].mxu0 %v1929
  %v2002 = vpop.f32.mrb[0].mxu0
  %v2003 = vadd.f32 0.0, %v2002
  %v2004 = vpop.f32.mrb[0].mxu0
  %2005 = vdwg.mxu0
  %v2006 = vadd.f32 %v1916, %v1998
  %v2007 = vadd.f32 %v1917, %v2003
  %s2008 = scalar_lea.vmem %s4, 160
  %v2009 = vld [vmem:[%s2008] sm:$0xff]
  %v2010 = vld [vmem:[%s2008 + $0x8] sm:$0xff]
  %v2012 = vsel %vm1141, %v2009, 0
  %v2015 = vsel %vm1141, %v2010, 0
  %2017 = vmatprep.subr.mxu0 0.0
  %2018 = vmatpush1.msra.mxu0 %v1047
  %2019 = vmatprep.subr.mxu0 0.0
  %2020 = vmatpush1.msra.mxu0 0.0
  %2021 = vmatprep.subr.mxu0 0.0
  %2022 = vmatpush1.msra.mxu0 0.0
  %2023 = vmatprep.subr.mxu0 0.0
  %2024 = vmatpush1.msra.mxu0 0.0
  %2025 = vmatprep.subr.mxu0 0.0
  %2026 = vmatpush1.msra.mxu0 0.0
  %2027 = vmatprep.subr.mxu0 0.0
  %2028 = vmatpush1.msra.mxu0 0.0
  %2029 = vmatprep.subr.mxu0 0.0
  %2030 = vmatpush1.msra.mxu0 0.0
  %2031 = vmatprep.subr.mxu0 0.0
  %2032 = vmatpush1.msra.mxu0 0.0
  %2033 = vmatprep.subr.mxu0 0.0
  %2034 = vmatpush1.msra.mxu0 0.0
  %2035 = vmatprep.subr.mxu0 0.0
  %2036 = vmatpush1.msra.mxu0 0.0
  %2037 = vmatprep.subr.mxu0 0.0
  %2038 = vmatpush1.msra.mxu0 0.0
  %2039 = vmatprep.subr.mxu0 0.0
  %2040 = vmatpush1.msra.mxu0 0.0
  %2041 = vmatprep.subr.mxu0 0.0
  %2042 = vmatpush1.msra.mxu0 0.0
  %2043 = vmatprep.subr.mxu0 0.0
  %2044 = vmatpush1.msra.mxu0 0.0
  %2045 = vmatprep.subr.mxu0 0.0
  %2046 = vmatpush1.msra.mxu0 0.0
  %2047 = vmatprep.subr.mxu0 0.0
  %2048 = vmatpush1.msra.mxu0 0.0
  %2049 = vmatprep.subr.mxu0 0.0
  %2050 = vmatpush1.msra.mxu0 0.0
  %2051 = vmatprep.subr.mxu0 0.0
  %2052 = vmatpush1.msra.mxu0 0.0
  %2053 = vmatprep.subr.mxu0 0.0
  %2054 = vmatpush1.msra.mxu0 0.0
  %2055 = vmatprep.subr.mxu0 0.0
  %2056 = vmatpush1.msra.mxu0 0.0
  %2057 = vmatprep.subr.mxu0 0.0
  %2058 = vmatpush1.msra.mxu0 0.0
  %2059 = vmatprep.subr.mxu0 0.0
  %2060 = vmatpush1.msra.mxu0 0.0
  %2061 = vmatprep.subr.mxu0 0.0
  %2062 = vmatpush1.msra.mxu0 0.0
  %2063 = vmatprep.subr.mxu0 0.0
  %2064 = vmatpush1.msra.mxu0 0.0
  %2065 = vmatprep.subr.mxu0 0.0
  %2066 = vmatpush1.msra.mxu0 0.0
  %2067 = vmatprep.subr.mxu0 0.0
  %2068 = vmatpush1.msra.mxu0 0.0
  %2069 = vmatprep.subr.mxu0 0.0
  %2070 = vmatpush1.msra.mxu0 0.0
  %2071 = vmatprep.subr.mxu0 0.0
  %2072 = vmatpush1.msra.mxu0 0.0
  %2073 = vmatprep.subr.mxu0 0.0
  %2074 = vmatpush1.msra.mxu0 0.0
  %2075 = vmatprep.subr.mxu0 0.0
  %2076 = vmatpush1.msra.mxu0 0.0
  %2077 = vmatprep.subr.mxu0 0.0
  %2078 = vmatpush1.msra.mxu0 0.0
  %2079 = vmatprep.subr.mxu0 0.0
  %2080 = vmatpush1.msra.mxu0 0.0
  %2081 = vmatprep.mubr.f32.mxu0 0.0
  %2082 = vmatmul.mubr.f32.gmra.mrb[0].mxu0 %v2012
  %v2083 = vpop.f32.mrb[0].mxu0
  %v2084 = vadd.f32 0.0, %v2083
  %v2085 = vpop.f32.mrb[0].mxu0
  %2086 = vmatprep.mubr.f32.mxu0 0.0
  %2087 = vmatmul.mubr.f32.gmra.mrb[0].mxu0 %v2015
  %v2088 = vpop.f32.mrb[0].mxu0
  %v2089 = vadd.f32 0.0, %v2088
  %v2090 = vpop.f32.mrb[0].mxu0
  %2091 = vdwg.mxu0
  %v2092 = vadd.f32 %v2006, %v2084
  %v2093 = vadd.f32 %v2007, %v2089
  %s2094 = scalar_lea.vmem %s4, 176
  %v2095 = vld [vmem:[%s2094] sm:$0xff]
  %v2096 = vld [vmem:[%s2094 + $0x8] sm:$0xff]
  %2098 = vrot.lane.b32.xlu0 %v1047, 64
  %v2099 = vpop.permute.xlu0 %2098
  %v2102 = vsel %vm1141, %v2095, 0
  %v2105 = vsel %vm1141, %v2096, 0
  %2107 = vmatprep.subr.mxu0 0.0
  %2108 = vmatpush1.msra.mxu0 %v2099
  %2109 = vmatprep.subr.mxu0 0.0
  %2110 = vmatpush1.msra.mxu0 0.0
  %2111 = vmatprep.subr.mxu0 0.0
  %2112 = vmatpush1.msra.mxu0 0.0
  %2113 = vmatprep.subr.mxu0 0.0
  %2114 = vmatpush1.msra.mxu0 0.0
  %2115 = vmatprep.subr.mxu0 0.0
  %2116 = vmatpush1.msra.mxu0 0.0
  %2117 = vmatprep.subr.mxu0 0.0
  %2118 = vmatpush1.msra.mxu0 0.0
  %2119 = vmatprep.subr.mxu0 0.0
  %2120 = vmatpush1.msra.mxu0 0.0
  %2121 = vmatprep.subr.mxu0 0.0
  %2122 = vmatpush1.msra.mxu0 0.0
  %2123 = vmatprep.subr.mxu0 0.0
  %2124 = vmatpush1.msra.mxu0 0.0
  %2125 = vmatprep.subr.mxu0 0.0
  %2126 = vmatpush1.msra.mxu0 0.0
  %2127 = vmatprep.subr.mxu0 0.0
  %2128 = vmatpush1.msra.mxu0 0.0
  %2129 = vmatprep.subr.mxu0 0.0
  %2130 = vmatpush1.msra.mxu0 0.0
  %2131 = vmatprep.subr.mxu0 0.0
  %2132 = vmatpush1.msra.mxu0 0.0
  %2133 = vmatprep.subr.mxu0 0.0
  %2134 = vmatpush1.msra.mxu0 0.0
  %2135 = vmatprep.subr.mxu0 0.0
  %2136 = vmatpush1.msra.mxu0 0.0
  %2137 = vmatprep.subr.mxu0 0.0
  %2138 = vmatpush1.msra.mxu0 0.0
  %2139 = vmatprep.subr.mxu0 0.0
  %2140 = vmatpush1.msra.mxu0 0.0
  %2141 = vmatprep.subr.mxu0 0.0
  %2142 = vmatpush1.msra.mxu0 0.0
  %2143 = vmatprep.subr.mxu0 0.0
  %2144 = vmatpush1.msra.mxu0 0.0
  %2145 = vmatprep.subr.mxu0 0.0
  %2146 = vmatpush1.msra.mxu0 0.0
  %2147 = vmatprep.subr.mxu0 0.0
  %2148 = vmatpush1.msra.mxu0 0.0
  %2149 = vmatprep.subr.mxu0 0.0
  %2150 = vmatpush1.msra.mxu0 0.0
  %2151 = vmatprep.subr.mxu0 0.0
  %2152 = vmatpush1.msra.mxu0 0.0
  %2153 = vmatprep.subr.mxu0 0.0
  %2154 = vmatpush1.msra.mxu0 0.0
  %2155 = vmatprep.subr.mxu0 0.0
  %2156 = vmatpush1.msra.mxu0 0.0
  %2157 = vmatprep.subr.mxu0 0.0
  %2158 = vmatpush1.msra.mxu0 0.0
  %2159 = vmatprep.subr.mxu0 0.0
  %2160 = vmatpush1.msra.mxu0 0.0
  %2161 = vmatprep.subr.mxu0 0.0
  %2162 = vmatpush1.msra.mxu0 0.0
  %2163 = vmatprep.subr.mxu0 0.0
  %2164 = vmatpush1.msra.mxu0 0.0
  %2165 = vmatprep.subr.mxu0 0.0
  %2166 = vmatpush1.msra.mxu0 0.0
  %2167 = vmatprep.subr.mxu0 0.0
  %2168 = vmatpush1.msra.mxu0 0.0
  %2169 = vmatprep.subr.mxu0 0.0
  %2170 = vmatpush1.msra.mxu0 0.0
  %2171 = vmatprep.mubr.f32.mxu0 0.0
  %2172 = vmatmul.mubr.f32.gmra.mrb[0].mxu0 %v2102
  %v2173 = vpop.f32.mrb[0].mxu0
  %v2174 = vadd.f32 0.0, %v2173
  %v2175 = vpop.f32.mrb[0].mxu0
  %2176 = vmatprep.mubr.f32.mxu0 0.0
  %2177 = vmatmul.mubr.f32.gmra.mrb[0].mxu0 %v2105
  %v2178 = vpop.f32.mrb[0].mxu0
  %v2179 = vadd.f32 0.0, %v2178
  %v2180 = vpop.f32.mrb[0].mxu0
  %2181 = vdwg.mxu0
  %v2182 = vadd.f32 %v2092, %v2174
  %v2183 = vadd.f32 %v2093, %v2179
  %s2184 = scalar_lea.vmem %s4, 192
  %v2185 = vld [vmem:[%s2184] sm:$0xff]
  %v2186 = vld [vmem:[%s2184 + $0x8] sm:$0xff]
  %v2188 = vsel %vm1141, %v2185, 0
  %v2191 = vsel %vm1141, %v2186, 0
  %2193 = vmatprep.subr.mxu0 0.0
  %2194 = vmatpush1.msra.mxu0 %v1122
  %2195 = vmatprep.subr.mxu0 0.0
  %2196 = vmatpush1.msra.mxu0 0.0
  %2197 = vmatprep.subr.mxu0 0.0
  %2198 = vmatpush1.msra.mxu0 0.0
  %2199 = vmatprep.subr.mxu0 0.0
  %2200 = vmatpush1.msra.mxu0 0.0
  %2201 = vmatprep.subr.mxu0 0.0
  %2202 = vmatpush1.msra.mxu0 0.0
  %2203 = vmatprep.subr.mxu0 0.0
  %2204 = vmatpush1.msra.mxu0 0.0
  %2205 = vmatprep.subr.mxu0 0.0
  %2206 = vmatpush1.msra.mxu0 0.0
  %2207 = vmatprep.subr.mxu0 0.0
  %2208 = vmatpush1.msra.mxu0 0.0
  %2209 = vmatprep.subr.mxu0 0.0
  %2210 = vmatpush1.msra.mxu0 0.0
  %2211 = vmatprep.subr.mxu0 0.0
  %2212 = vmatpush1.msra.mxu0 0.0
  %2213 = vmatprep.subr.mxu0 0.0
  %2214 = vmatpush1.msra.mxu0 0.0
  %2215 = vmatprep.subr.mxu0 0.0
  %2216 = vmatpush1.msra.mxu0 0.0
  %2217 = vmatprep.subr.mxu0 0.0
  %2218 = vmatpush1.msra.mxu0 0.0
  %2219 = vmatprep.subr.mxu0 0.0
  %2220 = vmatpush1.msra.mxu0 0.0
  %2221 = vmatprep.subr.mxu0 0.0
  %2222 = vmatpush1.msra.mxu0 0.0
  %2223 = vmatprep.subr.mxu0 0.0
  %2224 = vmatpush1.msra.mxu0 0.0
  %2225 = vmatprep.subr.mxu0 0.0
  %2226 = vmatpush1.msra.mxu0 0.0
  %2227 = vmatprep.subr.mxu0 0.0
  %2228 = vmatpush1.msra.mxu0 0.0
  %2229 = vmatprep.subr.mxu0 0.0
  %2230 = vmatpush1.msra.mxu0 0.0
  %2231 = vmatprep.subr.mxu0 0.0
  %2232 = vmatpush1.msra.mxu0 0.0
  %2233 = vmatprep.subr.mxu0 0.0
  %2234 = vmatpush1.msra.mxu0 0.0
  %2235 = vmatprep.subr.mxu0 0.0
  %2236 = vmatpush1.msra.mxu0 0.0
  %2237 = vmatprep.subr.mxu0 0.0
  %2238 = vmatpush1.msra.mxu0 0.0
  %2239 = vmatprep.subr.mxu0 0.0
  %2240 = vmatpush1.msra.mxu0 0.0
  %2241 = vmatprep.subr.mxu0 0.0
  %2242 = vmatpush1.msra.mxu0 0.0
  %2243 = vmatprep.subr.mxu0 0.0
  %2244 = vmatpush1.msra.mxu0 0.0
  %2245 = vmatprep.subr.mxu0 0.0
  %2246 = vmatpush1.msra.mxu0 0.0
  %2247 = vmatprep.subr.mxu0 0.0
  %2248 = vmatpush1.msra.mxu0 0.0
  %2249 = vmatprep.subr.mxu0 0.0
  %2250 = vmatpush1.msra.mxu0 0.0
  %2251 = vmatprep.subr.mxu0 0.0
  %2252 = vmatpush1.msra.mxu0 0.0
  %2253 = vmatprep.subr.mxu0 0.0
  %2254 = vmatpush1.msra.mxu0 0.0
  %2255 = vmatprep.subr.mxu0 0.0
  %2256 = vmatpush1.msra.mxu0 0.0
  %2257 = vmatprep.mubr.f32.mxu0 0.0
  %2258 = vmatmul.mubr.f32.gmra.mrb[0].mxu0 %v2188
  %v2259 = vpop.f32.mrb[0].mxu0
  %v2260 = vadd.f32 0.0, %v2259
  %v2261 = vpop.f32.mrb[0].mxu0
  %2262 = vmatprep.mubr.f32.mxu0 0.0
  %2263 = vmatmul.mubr.f32.gmra.mrb[0].mxu0 %v2191
  %v2264 = vpop.f32.mrb[0].mxu0
  %v2265 = vadd.f32 0.0, %v2264
  %v2266 = vpop.f32.mrb[0].mxu0
  %2267 = vdwg.mxu0
  %v2268 = vadd.f32 %v2182, %v2260
  %v2269 = vadd.f32 %v2183, %v2265
  %s2270 = scalar_lea.vmem %s4, 208
  %v2271 = vld [vmem:[%s2270] sm:$0xff]
  %v2272 = vld [vmem:[%s2270 + $0x8] sm:$0xff]
  %2274 = vrot.lane.b32.xlu0 %v1122, 64
  %v2275 = vpop.permute.xlu0 %2274
  %v2278 = vsel %vm1141, %v2271, 0
  %v2281 = vsel %vm1141, %v2272, 0
  %2283 = vmatprep.subr.mxu0 0.0
  %2284 = vmatpush1.msra.mxu0 %v2275
  %2285 = vmatprep.subr.mxu0 0.0
  %2286 = vmatpush1.msra.mxu0 0.0
  %2287 = vmatprep.subr.mxu0 0.0
  %2288 = vmatpush1.msra.mxu0 0.0
  %2289 = vmatprep.subr.mxu0 0.0
  %2290 = vmatpush1.msra.mxu0 0.0
  %2291 = vmatprep.subr.mxu0 0.0
  %2292 = vmatpush1.msra.mxu0 0.0
  %2293 = vmatprep.subr.mxu0 0.0
  %2294 = vmatpush1.msra.mxu0 0.0
  %2295 = vmatprep.subr.mxu0 0.0
  %2296 = vmatpush1.msra.mxu0 0.0
  %2297 = vmatprep.subr.mxu0 0.0
  %2298 = vmatpush1.msra.mxu0 0.0
  %2299 = vmatprep.subr.mxu0 0.0
  %2300 = vmatpush1.msra.mxu0 0.0
  %2301 = vmatprep.subr.mxu0 0.0
  %2302 = vmatpush1.msra.mxu0 0.0
  %2303 = vmatprep.subr.mxu0 0.0
  %2304 = vmatpush1.msra.mxu0 0.0
  %2305 = vmatprep.subr.mxu0 0.0
  %2306 = vmatpush1.msra.mxu0 0.0
  %2307 = vmatprep.subr.mxu0 0.0
  %2308 = vmatpush1.msra.mxu0 0.0
  %2309 = vmatprep.subr.mxu0 0.0
  %2310 = vmatpush1.msra.mxu0 0.0
  %2311 = vmatprep.subr.mxu0 0.0
  %2312 = vmatpush1.msra.mxu0 0.0
  %2313 = vmatprep.subr.mxu0 0.0
  %2314 = vmatpush1.msra.mxu0 0.0
  %2315 = vmatprep.subr.mxu0 0.0
  %2316 = vmatpush1.msra.mxu0 0.0
  %2317 = vmatprep.subr.mxu0 0.0
  %2318 = vmatpush1.msra.mxu0 0.0
  %2319 = vmatprep.subr.mxu0 0.0
  %2320 = vmatpush1.msra.mxu0 0.0
  %2321 = vmatprep.subr.mxu0 0.0
  %2322 = vmatpush1.msra.mxu0 0.0
  %2323 = vmatprep.subr.mxu0 0.0
  %2324 = vmatpush1.msra.mxu0 0.0
  %2325 = vmatprep.subr.mxu0 0.0
  %2326 = vmatpush1.msra.mxu0 0.0
  %2327 = vmatprep.subr.mxu0 0.0
  %2328 = vmatpush1.msra.mxu0 0.0
  %2329 = vmatprep.subr.mxu0 0.0
  %2330 = vmatpush1.msra.mxu0 0.0
  %2331 = vmatprep.subr.mxu0 0.0
  %2332 = vmatpush1.msra.mxu0 0.0
  %2333 = vmatprep.subr.mxu0 0.0
  %2334 = vmatpush1.msra.mxu0 0.0
  %2335 = vmatprep.subr.mxu0 0.0
  %2336 = vmatpush1.msra.mxu0 0.0
  %2337 = vmatprep.subr.mxu0 0.0
  %2338 = vmatpush1.msra.mxu0 0.0
  %2339 = vmatprep.subr.mxu0 0.0
  %2340 = vmatpush1.msra.mxu0 0.0
  %2341 = vmatprep.subr.mxu0 0.0
  %2342 = vmatpush1.msra.mxu0 0.0
  %2343 = vmatprep.subr.mxu0 0.0
  %2344 = vmatpush1.msra.mxu0 0.0
  %2345 = vmatprep.subr.mxu0 0.0
  %2346 = vmatpush1.msra.mxu0 0.0
  %2347 = vmatprep.mubr.f32.mxu0 0.0
  %2348 = vmatmul.mubr.f32.gmra.mrb[0].mxu0 %v2278
  %v2349 = vpop.f32.mrb[0].mxu0
  %v2350 = vadd.f32 0.0, %v2349
  %v2351 = vpop.f32.mrb[0].mxu0
  %2352 = vmatprep.mubr.f32.mxu0 0.0
  %2353 = vmatmul.mubr.f32.gmra.mrb[0].mxu0 %v2281
  %v2354 = vpop.f32.mrb[0].mxu0
  %v2355 = vadd.f32 0.0, %v2354
  %v2356 = vpop.f32.mrb[0].mxu0
  %2357 = vdwg.mxu0
  %v2358 = vadd.f32 %v2268, %v2350
  %v2359 = vadd.f32 %v2269, %v2355
  %s2360 = scalar_lea.vmem %s4, 224
  %v2361 = vld [vmem:[%s2360] sm:$0xff]
  %v2362 = vld [vmem:[%s2360 + $0x8] sm:$0xff]
  %v2364 = vsel %vm1141, %v2361, 0
  %v2367 = vsel %vm1141, %v2362, 0
  %2369 = vmatprep.subr.mxu0 0.0
  %2370 = vmatpush1.msra.mxu0 %v1124
  %2371 = vmatprep.subr.mxu0 0.0
  %2372 = vmatpush1.msra.mxu0 0.0
  %2373 = vmatprep.subr.mxu0 0.0
  %2374 = vmatpush1.msra.mxu0 0.0
  %2375 = vmatprep.subr.mxu0 0.0
  %2376 = vmatpush1.msra.mxu0 0.0
  %2377 = vmatprep.subr.mxu0 0.0
  %2378 = vmatpush1.msra.mxu0 0.0
  %2379 = vmatprep.subr.mxu0 0.0
  %2380 = vmatpush1.msra.mxu0 0.0
  %2381 = vmatprep.subr.mxu0 0.0
  %2382 = vmatpush1.msra.mxu0 0.0
  %2383 = vmatprep.subr.mxu0 0.0
  %2384 = vmatpush1.msra.mxu0 0.0
  %2385 = vmatprep.subr.mxu0 0.0
  %2386 = vmatpush1.msra.mxu0 0.0
  %2387 = vmatprep.subr.mxu0 0.0
  %2388 = vmatpush1.msra.mxu0 0.0
  %2389 = vmatprep.subr.mxu0 0.0
  %2390 = vmatpush1.msra.mxu0 0.0
  %2391 = vmatprep.subr.mxu0 0.0
  %2392 = vmatpush1.msra.mxu0 0.0
  %2393 = vmatprep.subr.mxu0 0.0
  %2394 = vmatpush1.msra.mxu0 0.0
  %2395 = vmatprep.subr.mxu0 0.0
  %2396 = vmatpush1.msra.mxu0 0.0
  %2397 = vmatprep.subr.mxu0 0.0
  %2398 = vmatpush1.msra.mxu0 0.0
  %2399 = vmatprep.subr.mxu0 0.0
  %2400 = vmatpush1.msra.mxu0 0.0
  %2401 = vmatprep.subr.mxu0 0.0
  %2402 = vmatpush1.msra.mxu0 0.0
  %2403 = vmatprep.subr.mxu0 0.0
  %2404 = vmatpush1.msra.mxu0 0.0
  %2405 = vmatprep.subr.mxu0 0.0
  %2406 = vmatpush1.msra.mxu0 0.0
  %2407 = vmatprep.subr.mxu0 0.0
  %2408 = vmatpush1.msra.mxu0 0.0
  %2409 = vmatprep.subr.mxu0 0.0
  %2410 = vmatpush1.msra.mxu0 0.0
  %2411 = vmatprep.subr.mxu0 0.0
  %2412 = vmatpush1.msra.mxu0 0.0
  %2413 = vmatprep.subr.mxu0 0.0
  %2414 = vmatpush1.msra.mxu0 0.0
  %2415 = vmatprep.subr.mxu0 0.0
  %2416 = vmatpush1.msra.mxu0 0.0
  %2417 = vmatprep.subr.mxu0 0.0
  %2418 = vmatpush1.msra.mxu0 0.0
  %2419 = vmatprep.subr.mxu0 0.0
  %2420 = vmatpush1.msra.mxu0 0.0
  %2421 = vmatprep.subr.mxu0 0.0
  %2422 = vmatpush1.msra.mxu0 0.0
  %2423 = vmatprep.subr.mxu0 0.0
  %2424 = vmatpush1.msra.mxu0 0.0
  %2425 = vmatprep.subr.mxu0 0.0
  %2426 = vmatpush1.msra.mxu0 0.0
  %2427 = vmatprep.subr.mxu0 0.0
  %2428 = vmatpush1.msra.mxu0 0.0
  %2429 = vmatprep.subr.mxu0 0.0
  %2430 = vmatpush1.msra.mxu0 0.0
  %2431 = vmatprep.subr.mxu0 0.0
  %2432 = vmatpush1.msra.mxu0 0.0
  %2433 = vmatprep.mubr.f32.mxu0 0.0
  %2434 = vmatmul.mubr.f32.gmra.mrb[0].mxu0 %v2364
  %v2435 = vpop.f32.mrb[0].mxu0
  %v2436 = vadd.f32 0.0, %v2435
  %v2437 = vpop.f32.mrb[0].mxu0
  %2438 = vmatprep.mubr.f32.mxu0 0.0
  %2439 = vmatmul.mubr.f32.gmra.mrb[0].mxu0 %v2367
  %v2440 = vpop.f32.mrb[0].mxu0
  %v2441 = vadd.f32 0.0, %v2440
  %v2442 = vpop.f32.mrb[0].mxu0
  %2443 = vdwg.mxu0
  %v2444 = vadd.f32 %v2358, %v2436
  %v2445 = vadd.f32 %v2359, %v2441
  %s2446 = scalar_lea.vmem %s4, 240
  %v2447 = vld [vmem:[%s2446] sm:$0xff]
  %v2448 = vld [vmem:[%s2446 + $0x8] sm:$0xff]
  %2450 = vrot.lane.b32.xlu0 %v1124, 64
  %v2451 = vpop.permute.xlu0 %2450
  %v2454 = vsel %vm1141, %v2447, 0
  %v2457 = vsel %vm1141, %v2448, 0
  %2459 = vmatprep.subr.mxu0 0.0
  %2460 = vmatpush1.msra.mxu0 %v2451
  %2461 = vmatprep.subr.mxu0 0.0
  %2462 = vmatpush1.msra.mxu0 0.0
  %2463 = vmatprep.subr.mxu0 0.0
  %2464 = vmatpush1.msra.mxu0 0.0
  %2465 = vmatprep.subr.mxu0 0.0
  %2466 = vmatpush1.msra.mxu0 0.0
  %2467 = vmatprep.subr.mxu0 0.0
  %2468 = vmatpush1.msra.mxu0 0.0
  %2469 = vmatprep.subr.mxu0 0.0
  %2470 = vmatpush1.msra.mxu0 0.0
  %2471 = vmatprep.subr.mxu0 0.0
  %2472 = vmatpush1.msra.mxu0 0.0
  %2473 = vmatprep.subr.mxu0 0.0
  %2474 = vmatpush1.msra.mxu0 0.0
  %2475 = vmatprep.subr.mxu0 0.0
  %2476 = vmatpush1.msra.mxu0 0.0
  %2477 = vmatprep.subr.mxu0 0.0
  %2478 = vmatpush1.msra.mxu0 0.0
  %2479 = vmatprep.subr.mxu0 0.0
  %2480 = vmatpush1.msra.mxu0 0.0
  %2481 = vmatprep.subr.mxu0 0.0
  %2482 = vmatpush1.msra.mxu0 0.0
  %2483 = vmatprep.subr.mxu0 0.0
  %2484 = vmatpush1.msra.mxu0 0.0
  %2485 = vmatprep.subr.mxu0 0.0
  %2486 = vmatpush1.msra.mxu0 0.0
  %2487 = vmatprep.subr.mxu0 0.0
  %2488 = vmatpush1.msra.mxu0 0.0
  %2489 = vmatprep.subr.mxu0 0.0
  %2490 = vmatpush1.msra.mxu0 0.0
  %2491 = vmatprep.subr.mxu0 0.0
  %2492 = vmatpush1.msra.mxu0 0.0
  %2493 = vmatprep.subr.mxu0 0.0
  %2494 = vmatpush1.msra.mxu0 0.0
  %2495 = vmatprep.subr.mxu0 0.0
  %2496 = vmatpush1.msra.mxu0 0.0
  %2497 = vmatprep.subr.mxu0 0.0
  %2498 = vmatpush1.msra.mxu0 0.0
  %2499 = vmatprep.subr.mxu0 0.0
  %2500 = vmatpush1.msra.mxu0 0.0
  %2501 = vmatprep.subr.mxu0 0.0
  %2502 = vmatpush1.msra.mxu0 0.0
  %2503 = vmatprep.subr.mxu0 0.0
  %2504 = vmatpush1.msra.mxu0 0.0
  %2505 = vmatprep.subr.mxu0 0.0
  %2506 = vmatpush1.msra.mxu0 0.0
  %2507 = vmatprep.subr.mxu0 0.0
  %2508 = vmatpush1.msra.mxu0 0.0
  %2509 = vmatprep.subr.mxu0 0.0
  %2510 = vmatpush1.msra.mxu0 0.0
  %2511 = vmatprep.subr.mxu0 0.0
  %2512 = vmatpush1.msra.mxu0 0.0
  %2513 = vmatprep.subr.mxu0 0.0
  %2514 = vmatpush1.msra.mxu0 0.0
  %2515 = vmatprep.subr.mxu0 0.0
  %2516 = vmatpush1.msra.mxu0 0.0
  %2517 = vmatprep.subr.mxu0 0.0
  %2518 = vmatpush1.msra.mxu0 0.0
  %2519 = vmatprep.subr.mxu0 0.0
  %2520 = vmatpush1.msra.mxu0 0.0
  %2521 = vmatprep.subr.mxu0 0.0
  %2522 = vmatpush1.msra.mxu0 0.0
  %2523 = vmatprep.mubr.f32.mxu0 0.0
  %2524 = vmatmul.mubr.f32.gmra.mrb[0].mxu0 %v2454
  %v2525 = vpop.f32.mrb[0].mxu0
  %v2526 = vadd.f32 0.0, %v2525
  %v2527 = vpop.f32.mrb[0].mxu0
  %2528 = vmatprep.mubr.f32.mxu0 0.0
  %2529 = vmatmul.mubr.f32.gmra.mrb[0].mxu0 %v2457
  %v2530 = vpop.f32.mrb[0].mxu0
  %v2531 = vadd.f32 0.0, %v2530
  %v2532 = vpop.f32.mrb[0].mxu0
  %2533 = vdwg.mxu0
  %v2534 = vadd.f32 %v2444, %v2526
  %v2535 = vadd.f32 %v2445, %v2531
  %2537 = vrot.lane.b32.xlu0 %v897, 64
  %v2538 = vpop.permute.xlu0 %2537
  %2540 = vmatprep.subr.mxu0 0.0
  %2541 = vmatpush1.msra.mxu0 %v2538
  %2542 = vmatprep.subr.mxu0 0.0
  %2543 = vmatpush1.msra.mxu0 0.0
  %2544 = vmatprep.subr.mxu0 0.0
  %2545 = vmatpush1.msra.mxu0 0.0
  %2546 = vmatprep.subr.mxu0 0.0
  %2547 = vmatpush1.msra.mxu0 0.0
  %2548 = vmatprep.subr.mxu0 0.0
  %2549 = vmatpush1.msra.mxu0 0.0
  %2550 = vmatprep.subr.mxu0 0.0
  %2551 = vmatpush1.msra.mxu0 0.0
  %2552 = vmatprep.subr.mxu0 0.0
  %2553 = vmatpush1.msra.mxu0 0.0
  %2554 = vmatprep.subr.mxu0 0.0
  %2555 = vmatpush1.msra.mxu0 0.0
  %2556 = vmatprep.subr.mxu0 0.0
  %2557 = vmatpush1.msra.mxu0 0.0
  %2558 = vmatprep.subr.mxu0 0.0
  %2559 = vmatpush1.msra.mxu0 0.0
  %2560 = vmatprep.subr.mxu0 0.0
  %2561 = vmatpush1.msra.mxu0 0.0
  %2562 = vmatprep.subr.mxu0 0.0
  %2563 = vmatpush1.msra.mxu0 0.0
  %2564 = vmatprep.subr.mxu0 0.0
  %2565 = vmatpush1.msra.mxu0 0.0
  %2566 = vmatprep.subr.mxu0 0.0
  %2567 = vmatpush1.msra.mxu0 0.0
  %2568 = vmatprep.subr.mxu0 0.0
  %2569 = vmatpush1.msra.mxu0 0.0
  %2570 = vmatprep.subr.mxu0 0.0
  %2571 = vmatpush1.msra.mxu0 0.0
  %2572 = vmatprep.subr.mxu0 0.0
  %2573 = vmatpush1.msra.mxu0 0.0
  %2574 = vmatprep.subr.mxu0 0.0
  %2575 = vmatpush1.msra.mxu0 0.0
  %2576 = vmatprep.subr.mxu0 0.0
  %2577 = vmatpush1.msra.mxu0 0.0
  %2578 = vmatprep.subr.mxu0 0.0
  %2579 = vmatpush1.msra.mxu0 0.0
  %2580 = vmatprep.subr.mxu0 0.0
  %2581 = vmatpush1.msra.mxu0 0.0
  %2582 = vmatprep.subr.mxu0 0.0
  %2583 = vmatpush1.msra.mxu0 0.0
  %2584 = vmatprep.subr.mxu0 0.0
  %2585 = vmatpush1.msra.mxu0 0.0
  %2586 = vmatprep.subr.mxu0 0.0
  %2587 = vmatpush1.msra.mxu0 0.0
  %2588 = vmatprep.subr.mxu0 0.0
  %2589 = vmatpush1.msra.mxu0 0.0
  %2590 = vmatprep.subr.mxu0 0.0
  %2591 = vmatpush1.msra.mxu0 0.0
  %2592 = vmatprep.subr.mxu0 0.0
  %2593 = vmatpush1.msra.mxu0 0.0
  %2594 = vmatprep.subr.mxu0 0.0
  %2595 = vmatpush1.msra.mxu0 0.0
  %2596 = vmatprep.subr.mxu0 0.0
  %2597 = vmatpush1.msra.mxu0 0.0
  %2598 = vmatprep.subr.mxu0 0.0
  %2599 = vmatpush1.msra.mxu0 0.0
  %2600 = vmatprep.subr.mxu0 0.0
  %2601 = vmatpush1.msra.mxu0 0.0
  %2602 = vmatprep.subr.mxu0 0.0
  %2603 = vmatpush1.msra.mxu0 0.0
  %2604 = vmatprep.mubr.f32.mxu0 0.0
  %2605 = vmatmul.mubr.f32.gmra.mrb[0].mxu0 %v1143
  %v2606 = vpop.f32.mrb[0].mxu0
  %v2607 = vadd.f32 0.0, %v2606
  %v2608 = vpop.f32.mrb[0].mxu0
  %2609 = vmatprep.mubr.f32.mxu0 0.0
  %2610 = vmatmul.mubr.f32.gmra.mrb[0].mxu0 %v1146
  %v2611 = vpop.f32.mrb[0].mxu0
  %v2612 = vadd.f32 0.0, %v2611
  %v2613 = vpop.f32.mrb[0].mxu0
  %2614 = vdwg.mxu0
  %2615 = vmatprep.subr.mxu0 0.0
  %2616 = vmatpush1.msra.mxu0 %v897
  %2617 = vmatprep.subr.mxu0 0.0
  %2618 = vmatpush1.msra.mxu0 0.0
  %2619 = vmatprep.subr.mxu0 0.0
  %2620 = vmatpush1.msra.mxu0 0.0
  %2621 = vmatprep.subr.mxu0 0.0
  %2622 = vmatpush1.msra.mxu0 0.0
  %2623 = vmatprep.subr.mxu0 0.0
  %2624 = vmatpush1.msra.mxu0 0.0
  %2625 = vmatprep.subr.mxu0 0.0
  %2626 = vmatpush1.msra.mxu0 0.0
  %2627 = vmatprep.subr.mxu0 0.0
  %2628 = vmatpush1.msra.mxu0 0.0
  %2629 = vmatprep.subr.mxu0 0.0
  %2630 = vmatpush1.msra.mxu0 0.0
  %2631 = vmatprep.subr.mxu0 0.0
  %2632 = vmatpush1.msra.mxu0 0.0
  %2633 = vmatprep.subr.mxu0 0.0
  %2634 = vmatpush1.msra.mxu0 0.0
  %2635 = vmatprep.subr.mxu0 0.0
  %2636 = vmatpush1.msra.mxu0 0.0
  %2637 = vmatprep.subr.mxu0 0.0
  %2638 = vmatpush1.msra.mxu0 0.0
  %2639 = vmatprep.subr.mxu0 0.0
  %2640 = vmatpush1.msra.mxu0 0.0
  %2641 = vmatprep.subr.mxu0 0.0
  %2642 = vmatpush1.msra.mxu0 0.0
  %2643 = vmatprep.subr.mxu0 0.0
  %2644 = vmatpush1.msra.mxu0 0.0
  %2645 = vmatprep.subr.mxu0 0.0
  %2646 = vmatpush1.msra.mxu0 0.0
  %2647 = vmatprep.subr.mxu0 0.0
  %2648 = vmatpush1.msra.mxu0 0.0
  %2649 = vmatprep.subr.mxu0 0.0
  %2650 = vmatpush1.msra.mxu0 0.0
  %2651 = vmatprep.subr.mxu0 0.0
  %2652 = vmatpush1.msra.mxu0 0.0
  %2653 = vmatprep.subr.mxu0 0.0
  %2654 = vmatpush1.msra.mxu0 0.0
  %2655 = vmatprep.subr.mxu0 0.0
  %2656 = vmatpush1.msra.mxu0 0.0
  %2657 = vmatprep.subr.mxu0 0.0
  %2658 = vmatpush1.msra.mxu0 0.0
  %2659 = vmatprep.subr.mxu0 0.0
  %2660 = vmatpush1.msra.mxu0 0.0
  %2661 = vmatprep.subr.mxu0 0.0
  %2662 = vmatpush1.msra.mxu0 0.0
  %2663 = vmatprep.subr.mxu0 0.0
  %2664 = vmatpush1.msra.mxu0 0.0
  %2665 = vmatprep.subr.mxu0 0.0
  %2666 = vmatpush1.msra.mxu0 0.0
  %2667 = vmatprep.subr.mxu0 0.0
  %2668 = vmatpush1.msra.mxu0 0.0
  %2669 = vmatprep.subr.mxu0 0.0
  %2670 = vmatpush1.msra.mxu0 0.0
  %2671 = vmatprep.subr.mxu0 0.0
  %2672 = vmatpush1.msra.mxu0 0.0
  %2673 = vmatprep.subr.mxu0 0.0
  %2674 = vmatpush1.msra.mxu0 0.0
  %2675 = vmatprep.subr.mxu0 0.0
  %2676 = vmatpush1.msra.mxu0 0.0
  %2677 = vmatprep.subr.mxu0 0.0
  %2678 = vmatpush1.msra.mxu0 0.0
  %2679 = vmatprep.mubr.f32.mxu0 0.0
  %2680 = vmatmul.mubr.f32.gmra.mrb[0].mxu0 %v1224
  %v2681 = vpop.f32.mrb[0].mxu0
  %v2682 = vadd.f32 %v2607, %v2681
  %v2683 = vpop.f32.mrb[0].mxu0
  %2684 = vmatprep.mubr.f32.mxu0 0.0
  %2685 = vmatmul.mubr.f32.gmra.mrb[0].mxu0 %v1227
  %v2686 = vpop.f32.mrb[0].mxu0
  %v2687 = vadd.f32 %v2612, %v2686
  %v2688 = vpop.f32.mrb[0].mxu0
  %2689 = vdwg.mxu0
  %2690 = vmatprep.subr.mxu0 0.0
  %2691 = vmatpush1.msra.mxu0 %v899
  %2692 = vmatprep.subr.mxu0 0.0
  %2693 = vmatpush1.msra.mxu0 0.0
  %2694 = vmatprep.subr.mxu0 0.0
  %2695 = vmatpush1.msra.mxu0 0.0
  %2696 = vmatprep.subr.mxu0 0.0
  %2697 = vmatpush1.msra.mxu0 0.0
  %2698 = vmatprep.subr.mxu0 0.0
  %2699 = vmatpush1.msra.mxu0 0.0
  %2700 = vmatprep.subr.mxu0 0.0
  %2701 = vmatpush1.msra.mxu0 0.0
  %2702 = vmatprep.subr.mxu0 0.0
  %2703 = vmatpush1.msra.mxu0 0.0
  %2704 = vmatprep.subr.mxu0 0.0
  %2705 = vmatpush1.msra.mxu0 0.0
  %2706 = vmatprep.subr.mxu0 0.0
  %2707 = vmatpush1.msra.mxu0 0.0
  %2708 = vmatprep.subr.mxu0 0.0
  %2709 = vmatpush1.msra.mxu0 0.0
  %2710 = vmatprep.subr.mxu0 0.0
  %2711 = vmatpush1.msra.mxu0 0.0
  %2712 = vmatprep.subr.mxu0 0.0
  %2713 = vmatpush1.msra.mxu0 0.0
  %2714 = vmatprep.subr.mxu0 0.0
  %2715 = vmatpush1.msra.mxu0 0.0
  %2716 = vmatprep.subr.mxu0 0.0
  %2717 = vmatpush1.msra.mxu0 0.0
  %2718 = vmatprep.subr.mxu0 0.0
  %2719 = vmatpush1.msra.mxu0 0.0
  %2720 = vmatprep.subr.mxu0 0.0
  %2721 = vmatpush1.msra.mxu0 0.0
  %2722 = vmatprep.subr.mxu0 0.0
  %2723 = vmatpush1.msra.mxu0 0.0
  %2724 = vmatprep.subr.mxu0 0.0
  %2725 = vmatpush1.msra.mxu0 0.0
  %2726 = vmatprep.subr.mxu0 0.0
  %2727 = vmatpush1.msra.mxu0 0.0
  %2728 = vmatprep.subr.mxu0 0.0
  %2729 = vmatpush1.msra.mxu0 0.0
  %2730 = vmatprep.subr.mxu0 0.0
  %2731 = vmatpush1.msra.mxu0 0.0
  %2732 = vmatprep.subr.mxu0 0.0
  %2733 = vmatpush1.msra.mxu0 0.0
  %2734 = vmatprep.subr.mxu0 0.0
  %2735 = vmatpush1.msra.mxu0 0.0
  %2736 = vmatprep.subr.mxu0 0.0
  %2737 = vmatpush1.msra.mxu0 0.0
  %2738 = vmatprep.subr.mxu0 0.0
  %2739 = vmatpush1.msra.mxu0 0.0
  %2740 = vmatprep.subr.mxu0 0.0
  %2741 = vmatpush1.msra.mxu0 0.0
  %2742 = vmatprep.subr.mxu0 0.0
  %2743 = vmatpush1.msra.mxu0 0.0
  %2744 = vmatprep.subr.mxu0 0.0
  %2745 = vmatpush1.msra.mxu0 0.0
  %2746 = vmatprep.subr.mxu0 0.0
  %2747 = vmatpush1.msra.mxu0 0.0
  %2748 = vmatprep.subr.mxu0 0.0
  %2749 = vmatpush1.msra.mxu0 0.0
  %2750 = vmatprep.subr.mxu0 0.0
  %2751 = vmatpush1.msra.mxu0 0.0
  %2752 = vmatprep.subr.mxu0 0.0
  %2753 = vmatpush1.msra.mxu0 0.0
  %2754 = vmatprep.mubr.f32.mxu0 0.0
  %2755 = vmatmul.mubr.f32.gmra.mrb[0].mxu0 %v1308
  %v2756 = vpop.f32.mrb[0].mxu0
  %v2757 = vadd.f32 0.0, %v2756
  %v2758 = vpop.f32.mrb[0].mxu0
  %2759 = vmatprep.mubr.f32.mxu0 0.0
  %2760 = vmatmul.mubr.f32.gmra.mrb[0].mxu0 %v1311
  %v2761 = vpop.f32.mrb[0].mxu0
  %v2762 = vadd.f32 0.0, %v2761
  %v2763 = vpop.f32.mrb[0].mxu0
  %2764 = vdwg.mxu0
  %v2765 = vadd.f32 %v2682, %v2757
  %v2766 = vadd.f32 %v2687, %v2762
  %2768 = vrot.lane.b32.xlu0 %v899, 64
  %v2769 = vpop.permute.xlu0 %2768
  %2771 = vmatprep.subr.mxu0 0.0
  %2772 = vmatpush1.msra.mxu0 %v2769
  %2773 = vmatprep.subr.mxu0 0.0
  %2774 = vmatpush1.msra.mxu0 0.0
  %2775 = vmatprep.subr.mxu0 0.0
  %2776 = vmatpush1.msra.mxu0 0.0
  %2777 = vmatprep.subr.mxu0 0.0
  %2778 = vmatpush1.msra.mxu0 0.0
  %2779 = vmatprep.subr.mxu0 0.0
  %2780 = vmatpush1.msra.mxu0 0.0
  %2781 = vmatprep.subr.mxu0 0.0
  %2782 = vmatpush1.msra.mxu0 0.0
  %2783 = vmatprep.subr.mxu0 0.0
  %2784 = vmatpush1.msra.mxu0 0.0
  %2785 = vmatprep.subr.mxu0 0.0
  %2786 = vmatpush1.msra.mxu0 0.0
  %2787 = vmatprep.subr.mxu0 0.0
  %2788 = vmatpush1.msra.mxu0 0.0
  %2789 = vmatprep.subr.mxu0 0.0
  %2790 = vmatpush1.msra.mxu0 0.0
  %2791 = vmatprep.subr.mxu0 0.0
  %2792 = vmatpush1.msra.mxu0 0.0
  %2793 = vmatprep.subr.mxu0 0.0
  %2794 = vmatpush1.msra.mxu0 0.0
  %2795 = vmatprep.subr.mxu0 0.0
  %2796 = vmatpush1.msra.mxu0 0.0
  %2797 = vmatprep.subr.mxu0 0.0
  %2798 = vmatpush1.msra.mxu0 0.0
  %2799 = vmatprep.subr.mxu0 0.0
  %2800 = vmatpush1.msra.mxu0 0.0
  %2801 = vmatprep.subr.mxu0 0.0
  %2802 = vmatpush1.msra.mxu0 0.0
  %2803 = vmatprep.subr.mxu0 0.0
  %2804 = vmatpush1.msra.mxu0 0.0
  %2805 = vmatprep.subr.mxu0 0.0
  %2806 = vmatpush1.msra.mxu0 0.0
  %2807 = vmatprep.subr.mxu0 0.0
  %2808 = vmatpush1.msra.mxu0 0.0
  %2809 = vmatprep.subr.mxu0 0.0
  %2810 = vmatpush1.msra.mxu0 0.0
  %2811 = vmatprep.subr.mxu0 0.0
  %2812 = vmatpush1.msra.mxu0 0.0
  %2813 = vmatprep.subr.mxu0 0.0
  %2814 = vmatpush1.msra.mxu0 0.0
  %2815 = vmatprep.subr.mxu0 0.0
  %2816 = vmatpush1.msra.mxu0 0.0
  %2817 = vmatprep.subr.mxu0 0.0
  %2818 = vmatpush1.msra.mxu0 0.0
  %2819 = vmatprep.subr.mxu0 0.0
  %2820 = vmatpush1.msra.mxu0 0.0
  %2821 = vmatprep.subr.mxu0 0.0
  %2822 = vmatpush1.msra.mxu0 0.0
  %2823 = vmatprep.subr.mxu0 0.0
  %2824 = vmatpush1.msra.mxu0 0.0
  %2825 = vmatprep.subr.mxu0 0.0
  %2826 = vmatpush1.msra.mxu0 0.0
  %2827 = vmatprep.subr.mxu0 0.0
  %2828 = vmatpush1.msra.mxu0 0.0
  %2829 = vmatprep.subr.mxu0 0.0
  %2830 = vmatpush1.msra.mxu0 0.0
  %2831 = vmatprep.subr.mxu0 0.0
  %2832 = vmatpush1.msra.mxu0 0.0
  %2833 = vmatprep.subr.mxu0 0.0
  %2834 = vmatpush1.msra.mxu0 0.0
  %2835 = vmatprep.mubr.f32.mxu0 0.0
  %2836 = vmatmul.mubr.f32.gmra.mrb[0].mxu0 %v1398
  %v2837 = vpop.f32.mrb[0].mxu0
  %v2838 = vadd.f32 0.0, %v2837
  %v2839 = vpop.f32.mrb[0].mxu0
  %2840 = vmatprep.mubr.f32.mxu0 0.0
  %2841 = vmatmul.mubr.f32.gmra.mrb[0].mxu0 %v1401
  %v2842 = vpop.f32.mrb[0].mxu0
  %v2843 = vadd.f32 0.0, %v2842
  %v2844 = vpop.f32.mrb[0].mxu0
  %2845 = vdwg.mxu0
  %v2846 = vadd.f32 %v2765, %v2838
  %v2847 = vadd.f32 %v2766, %v2843
  %2848 = vmatprep.subr.mxu0 0.0
  %2849 = vmatpush1.msra.mxu0 %v974
  %2850 = vmatprep.subr.mxu0 0.0
  %2851 = vmatpush1.msra.mxu0 0.0
  %2852 = vmatprep.subr.mxu0 0.0
  %2853 = vmatpush1.msra.mxu0 0.0
  %2854 = vmatprep.subr.mxu0 0.0
  %2855 = vmatpush1.msra.mxu0 0.0
  %2856 = vmatprep.subr.mxu0 0.0
  %2857 = vmatpush1.msra.mxu0 0.0
  %2858 = vmatprep.subr.mxu0 0.0
  %2859 = vmatpush1.msra.mxu0 0.0
  %2860 = vmatprep.subr.mxu0 0.0
  %2861 = vmatpush1.msra.mxu0 0.0
  %2862 = vmatprep.subr.mxu0 0.0
  %2863 = vmatpush1.msra.mxu0 0.0
  %2864 = vmatprep.subr.mxu0 0.0
  %2865 = vmatpush1.msra.mxu0 0.0
  %2866 = vmatprep.subr.mxu0 0.0
  %2867 = vmatpush1.msra.mxu0 0.0
  %2868 = vmatprep.subr.mxu0 0.0
  %2869 = vmatpush1.msra.mxu0 0.0
  %2870 = vmatprep.subr.mxu0 0.0
  %2871 = vmatpush1.msra.mxu0 0.0
  %2872 = vmatprep.subr.mxu0 0.0
  %2873 = vmatpush1.msra.mxu0 0.0
  %2874 = vmatprep.subr.mxu0 0.0
  %2875 = vmatpush1.msra.mxu0 0.0
  %2876 = vmatprep.subr.mxu0 0.0
  %2877 = vmatpush1.msra.mxu0 0.0
  %2878 = vmatprep.subr.mxu0 0.0
  %2879 = vmatpush1.msra.mxu0 0.0
  %2880 = vmatprep.subr.mxu0 0.0
  %2881 = vmatpush1.msra.mxu0 0.0
  %2882 = vmatprep.subr.mxu0 0.0
  %2883 = vmatpush1.msra.mxu0 0.0
  %2884 = vmatprep.subr.mxu0 0.0
  %2885 = vmatpush1.msra.mxu0 0.0
  %2886 = vmatprep.subr.mxu0 0.0
  %2887 = vmatpush1.msra.mxu0 0.0
  %2888 = vmatprep.subr.mxu0 0.0
  %2889 = vmatpush1.msra.mxu0 0.0
  %2890 = vmatprep.subr.mxu0 0.0
  %2891 = vmatpush1.msra.mxu0 0.0
  %2892 = vmatprep.subr.mxu0 0.0
  %2893 = vmatpush1.msra.mxu0 0.0
  %2894 = vmatprep.subr.mxu0 0.0
  %2895 = vmatpush1.msra.mxu0 0.0
  %2896 = vmatprep.subr.mxu0 0.0
  %2897 = vmatpush1.msra.mxu0 0.0
  %2898 = vmatprep.subr.mxu0 0.0
  %2899 = vmatpush1.msra.mxu0 0.0
  %2900 = vmatprep.subr.mxu0 0.0
  %2901 = vmatpush1.msra.mxu0 0.0
  %2902 = vmatprep.subr.mxu0 0.0
  %2903 = vmatpush1.msra.mxu0 0.0
  %2904 = vmatprep.subr.mxu0 0.0
  %2905 = vmatpush1.msra.mxu0 0.0
  %2906 = vmatprep.subr.mxu0 0.0
  %2907 = vmatpush1.msra.mxu0 0.0
  %2908 = vmatprep.subr.mxu0 0.0
  %2909 = vmatpush1.msra.mxu0 0.0
  %2910 = vmatprep.subr.mxu0 0.0
  %2911 = vmatpush1.msra.mxu0 0.0
  %2912 = vmatprep.mubr.f32.mxu0 0.0
  %2913 = vmatmul.mubr.f32.gmra.mrb[0].mxu0 %v1484
  %v2914 = vpop.f32.mrb[0].mxu0
  %v2915 = vadd.f32 0.0, %v2914
  %v2916 = vpop.f32.mrb[0].mxu0
  %2917 = vmatprep.mubr.f32.mxu0 0.0
  %2918 = vmatmul.mubr.f32.gmra.mrb[0].mxu0 %v1487
  %v2919 = vpop.f32.mrb[0].mxu0
  %v2920 = vadd.f32 0.0, %v2919
  %v2921 = vpop.f32.mrb[0].mxu0
  %2922 = vdwg.mxu0
  %v2923 = vadd.f32 %v2846, %v2915
  %v2924 = vadd.f32 %v2847, %v2920
  %2926 = vrot.lane.b32.xlu0 %v974, 64
  %v2927 = vpop.permute.xlu0 %2926
  %2929 = vmatprep.subr.mxu0 0.0
  %2930 = vmatpush1.msra.mxu0 %v2927
  %2931 = vmatprep.subr.mxu0 0.0
  %2932 = vmatpush1.msra.mxu0 0.0
  %2933 = vmatprep.subr.mxu0 0.0
  %2934 = vmatpush1.msra.mxu0 0.0
  %2935 = vmatprep.subr.mxu0 0.0
  %2936 = vmatpush1.msra.mxu0 0.0
  %2937 = vmatprep.subr.mxu0 0.0
  %2938 = vmatpush1.msra.mxu0 0.0
  %2939 = vmatprep.subr.mxu0 0.0
  %2940 = vmatpush1.msra.mxu0 0.0
  %2941 = vmatprep.subr.mxu0 0.0
  %2942 = vmatpush1.msra.mxu0 0.0
  %2943 = vmatprep.subr.mxu0 0.0
  %2944 = vmatpush1.msra.mxu0 0.0
  %2945 = vmatprep.subr.mxu0 0.0
  %2946 = vmatpush1.msra.mxu0 0.0
  %2947 = vmatprep.subr.mxu0 0.0
  %2948 = vmatpush1.msra.mxu0 0.0
  %2949 = vmatprep.subr.mxu0 0.0
  %2950 = vmatpush1.msra.mxu0 0.0
  %2951 = vmatprep.subr.mxu0 0.0
  %2952 = vmatpush1.msra.mxu0 0.0
  %2953 = vmatprep.subr.mxu0 0.0
  %2954 = vmatpush1.msra.mxu0 0.0
  %2955 = vmatprep.subr.mxu0 0.0
  %2956 = vmatpush1.msra.mxu0 0.0
  %2957 = vmatprep.subr.mxu0 0.0
  %2958 = vmatpush1.msra.mxu0 0.0
  %2959 = vmatprep.subr.mxu0 0.0
  %2960 = vmatpush1.msra.mxu0 0.0
  %2961 = vmatprep.subr.mxu0 0.0
  %2962 = vmatpush1.msra.mxu0 0.0
  %2963 = vmatprep.subr.mxu0 0.0
  %2964 = vmatpush1.msra.mxu0 0.0
  %2965 = vmatprep.subr.mxu0 0.0
  %2966 = vmatpush1.msra.mxu0 0.0
  %2967 = vmatprep.subr.mxu0 0.0
  %2968 = vmatpush1.msra.mxu0 0.0
  %2969 = vmatprep.subr.mxu0 0.0
  %2970 = vmatpush1.msra.mxu0 0.0
  %2971 = vmatprep.subr.mxu0 0.0
  %2972 = vmatpush1.msra.mxu0 0.0
  %2973 = vmatprep.subr.mxu0 0.0
  %2974 = vmatpush1.msra.mxu0 0.0
  %2975 = vmatprep.subr.mxu0 0.0
  %2976 = vmatpush1.msra.mxu0 0.0
  %2977 = vmatprep.subr.mxu0 0.0
  %2978 = vmatpush1.msra.mxu0 0.0
  %2979 = vmatprep.subr.mxu0 0.0
  %2980 = vmatpush1.msra.mxu0 0.0
  %2981 = vmatprep.subr.mxu0 0.0
  %2982 = vmatpush1.msra.mxu0 0.0
  %2983 = vmatprep.subr.mxu0 0.0
  %2984 = vmatpush1.msra.mxu0 0.0
  %2985 = vmatprep.subr.mxu0 0.0
  %2986 = vmatpush1.msra.mxu0 0.0
  %2987 = vmatprep.subr.mxu0 0.0
  %2988 = vmatpush1.msra.mxu0 0.0
  %2989 = vmatprep.subr.mxu0 0.0
  %2990 = vmatpush1.msra.mxu0 0.0
  %2991 = vmatprep.subr.mxu0 0.0
  %2992 = vmatpush1.msra.mxu0 0.0
  %2993 = vmatprep.mubr.f32.mxu0 0.0
  %2994 = vmatmul.mubr.f32.gmra.mrb[0].mxu0 %v1574
  %v2995 = vpop.f32.mrb[0].mxu0
  %v2996 = vadd.f32 0.0, %v2995
  %v2997 = vpop.f32.mrb[0].mxu0
  %2998 = vmatprep.mubr.f32.mxu0 0.0
  %2999 = vmatmul.mubr.f32.gmra.mrb[0].mxu0 %v1577
  %v3000 = vpop.f32.mrb[0].mxu0
  %v3001 = vadd.f32 0.0, %v3000
  %v3002 = vpop.f32.mrb[0].mxu0
  %3003 = vdwg.mxu0
  %v3004 = vadd.f32 %v2923, %v2996
  %v3005 = vadd.f32 %v2924, %v3001
  %3006 = vmatprep.subr.mxu0 0.0
  %3007 = vmatpush1.msra.mxu0 %v976
  %3008 = vmatprep.subr.mxu0 0.0
  %3009 = vmatpush1.msra.mxu0 0.0
  %3010 = vmatprep.subr.mxu0 0.0
  %3011 = vmatpush1.msra.mxu0 0.0
  %3012 = vmatprep.subr.mxu0 0.0
  %3013 = vmatpush1.msra.mxu0 0.0
  %3014 = vmatprep.subr.mxu0 0.0
  %3015 = vmatpush1.msra.mxu0 0.0
  %3016 = vmatprep.subr.mxu0 0.0
  %3017 = vmatpush1.msra.mxu0 0.0
  %3018 = vmatprep.subr.mxu0 0.0
  %3019 = vmatpush1.msra.mxu0 0.0
  %3020 = vmatprep.subr.mxu0 0.0
  %3021 = vmatpush1.msra.mxu0 0.0
  %3022 = vmatprep.subr.mxu0 0.0
  %3023 = vmatpush1.msra.mxu0 0.0
  %3024 = vmatprep.subr.mxu0 0.0
  %3025 = vmatpush1.msra.mxu0 0.0
  %3026 = vmatprep.subr.mxu0 0.0
  %3027 = vmatpush1.msra.mxu0 0.0
  %3028 = vmatprep.subr.mxu0 0.0
  %3029 = vmatpush1.msra.mxu0 0.0
  %3030 = vmatprep.subr.mxu0 0.0
  %3031 = vmatpush1.msra.mxu0 0.0
  %3032 = vmatprep.subr.mxu0 0.0
  %3033 = vmatpush1.msra.mxu0 0.0
  %3034 = vmatprep.subr.mxu0 0.0
  %3035 = vmatpush1.msra.mxu0 0.0
  %3036 = vmatprep.subr.mxu0 0.0
  %3037 = vmatpush1.msra.mxu0 0.0
  %3038 = vmatprep.subr.mxu0 0.0
  %3039 = vmatpush1.msra.mxu0 0.0
  %3040 = vmatprep.subr.mxu0 0.0
  %3041 = vmatpush1.msra.mxu0 0.0
  %3042 = vmatprep.subr.mxu0 0.0
  %3043 = vmatpush1.msra.mxu0 0.0
  %3044 = vmatprep.subr.mxu0 0.0
  %3045 = vmatpush1.msra.mxu0 0.0
  %3046 = vmatprep.subr.mxu0 0.0
  %3047 = vmatpush1.msra.mxu0 0.0
  %3048 = vmatprep.subr.mxu0 0.0
  %3049 = vmatpush1.msra.mxu0 0.0
  %3050 = vmatprep.subr.mxu0 0.0
  %3051 = vmatpush1.msra.mxu0 0.0
  %3052 = vmatprep.subr.mxu0 0.0
  %3053 = vmatpush1.msra.mxu0 0.0
  %3054 = vmatprep.subr.mxu0 0.0
  %3055 = vmatpush1.msra.mxu0 0.0
  %3056 = vmatprep.subr.mxu0 0.0
  %3057 = vmatpush1.msra.mxu0 0.0
  %3058 = vmatprep.subr.mxu0 0.0
  %3059 = vmatpush1.msra.mxu0 0.0
  %3060 = vmatprep.subr.mxu0 0.0
  %3061 = vmatpush1.msra.mxu0 0.0
  %3062 = vmatprep.subr.mxu0 0.0
  %3063 = vmatpush1.msra.mxu0 0.0
  %3064 = vmatprep.subr.mxu0 0.0
  %3065 = vmatpush1.msra.mxu0 0.0
  %3066 = vmatprep.subr.mxu0 0.0
  %3067 = vmatpush1.msra.mxu0 0.0
  %3068 = vmatprep.subr.mxu0 0.0
  %3069 = vmatpush1.msra.mxu0 0.0
  %3070 = vmatprep.mubr.f32.mxu0 0.0
  %3071 = vmatmul.mubr.f32.gmra.mrb[0].mxu0 %v1660
  %v3072 = vpop.f32.mrb[0].mxu0
  %v3073 = vadd.f32 0.0, %v3072
  %v3074 = vpop.f32.mrb[0].mxu0
  %3075 = vmatprep.mubr.f32.mxu0 0.0
  %3076 = vmatmul.mubr.f32.gmra.mrb[0].mxu0 %v1663
  %v3077 = vpop.f32.mrb[0].mxu0
  %v3078 = vadd.f32 0.0, %v3077
  %v3079 = vpop.f32.mrb[0].mxu0
  %3080 = vdwg.mxu0
  %v3081 = vadd.f32 %v3004, %v3073
  %v3082 = vadd.f32 %v3005, %v3078
  %3084 = vrot.lane.b32.xlu0 %v976, 64
  %v3085 = vpop.permute.xlu0 %3084
  %3087 = vmatprep.subr.mxu0 0.0
  %3088 = vmatpush1.msra.mxu0 %v3085
  %3089 = vmatprep.subr.mxu0 0.0
  %3090 = vmatpush1.msra.mxu0 0.0
  %3091 = vmatprep.subr.mxu0 0.0
  %3092 = vmatpush1.msra.mxu0 0.0
  %3093 = vmatprep.subr.mxu0 0.0
  %3094 = vmatpush1.msra.mxu0 0.0
  %3095 = vmatprep.subr.mxu0 0.0
  %3096 = vmatpush1.msra.mxu0 0.0
  %3097 = vmatprep.subr.mxu0 0.0
  %3098 = vmatpush1.msra.mxu0 0.0
  %3099 = vmatprep.subr.mxu0 0.0
  %3100 = vmatpush1.msra.mxu0 0.0
  %3101 = vmatprep.subr.mxu0 0.0
  %3102 = vmatpush1.msra.mxu0 0.0
  %3103 = vmatprep.subr.mxu0 0.0
  %3104 = vmatpush1.msra.mxu0 0.0
  %3105 = vmatprep.subr.mxu0 0.0
  %3106 = vmatpush1.msra.mxu0 0.0
  %3107 = vmatprep.subr.mxu0 0.0
  %3108 = vmatpush1.msra.mxu0 0.0
  %3109 = vmatprep.subr.mxu0 0.0
  %3110 = vmatpush1.msra.mxu0 0.0
  %3111 = vmatprep.subr.mxu0 0.0
  %3112 = vmatpush1.msra.mxu0 0.0
  %3113 = vmatprep.subr.mxu0 0.0
  %3114 = vmatpush1.msra.mxu0 0.0
  %3115 = vmatprep.subr.mxu0 0.0
  %3116 = vmatpush1.msra.mxu0 0.0
  %3117 = vmatprep.subr.mxu0 0.0
  %3118 = vmatpush1.msra.mxu0 0.0
  %3119 = vmatprep.subr.mxu0 0.0
  %3120 = vmatpush1.msra.mxu0 0.0
  %3121 = vmatprep.subr.mxu0 0.0
  %3122 = vmatpush1.msra.mxu0 0.0
  %3123 = vmatprep.subr.mxu0 0.0
  %3124 = vmatpush1.msra.mxu0 0.0
  %3125 = vmatprep.subr.mxu0 0.0
  %3126 = vmatpush1.msra.mxu0 0.0
  %3127 = vmatprep.subr.mxu0 0.0
  %3128 = vmatpush1.msra.mxu0 0.0
  %3129 = vmatprep.subr.mxu0 0.0
  %3130 = vmatpush1.msra.mxu0 0.0
  %3131 = vmatprep.subr.mxu0 0.0
  %3132 = vmatpush1.msra.mxu0 0.0
  %3133 = vmatprep.subr.mxu0 0.0
  %3134 = vmatpush1.msra.mxu0 0.0
  %3135 = vmatprep.subr.mxu0 0.0
  %3136 = vmatpush1.msra.mxu0 0.0
  %3137 = vmatprep.subr.mxu0 0.0
  %3138 = vmatpush1.msra.mxu0 0.0
  %3139 = vmatprep.subr.mxu0 0.0
  %3140 = vmatpush1.msra.mxu0 0.0
  %3141 = vmatprep.subr.mxu0 0.0
  %3142 = vmatpush1.msra.mxu0 0.0
  %3143 = vmatprep.subr.mxu0 0.0
  %3144 = vmatpush1.msra.mxu0 0.0
  %3145 = vmatprep.subr.mxu0 0.0
  %3146 = vmatpush1.msra.mxu0 0.0
  %3147 = vmatprep.subr.mxu0 0.0
  %3148 = vmatpush1.msra.mxu0 0.0
  %3149 = vmatprep.subr.mxu0 0.0
  %3150 = vmatpush1.msra.mxu0 0.0
  %3151 = vmatprep.mubr.f32.mxu0 0.0
  %3152 = vmatmul.mubr.f32.gmra.mrb[0].mxu0 %v1750
  %v3153 = vpop.f32.mrb[0].mxu0
  %v3154 = vadd.f32 0.0, %v3153
  %v3155 = vpop.f32.mrb[0].mxu0
  %3156 = vmatprep.mubr.f32.mxu0 0.0
  %3157 = vmatmul.mubr.f32.gmra.mrb[0].mxu0 %v1753
  %v3158 = vpop.f32.mrb[0].mxu0
  %v3159 = vadd.f32 0.0, %v3158
  %v3160 = vpop.f32.mrb[0].mxu0
  %3161 = vdwg.mxu0
  %v3162 = vadd.f32 %v3081, %v3154
  %v3163 = vadd.f32 %v3082, %v3159
  %3164 = vmatprep.subr.mxu0 0.0
  %3165 = vmatpush1.msra.mxu0 %v1051
  %3166 = vmatprep.subr.mxu0 0.0
  %3167 = vmatpush1.msra.mxu0 0.0
  %3168 = vmatprep.subr.mxu0 0.0
  %3169 = vmatpush1.msra.mxu0 0.0
  %3170 = vmatprep.subr.mxu0 0.0
  %3171 = vmatpush1.msra.mxu0 0.0
  %3172 = vmatprep.subr.mxu0 0.0
  %3173 = vmatpush1.msra.mxu0 0.0
  %3174 = vmatprep.subr.mxu0 0.0
  %3175 = vmatpush1.msra.mxu0 0.0
  %3176 = vmatprep.subr.mxu0 0.0
  %3177 = vmatpush1.msra.mxu0 0.0
  %3178 = vmatprep.subr.mxu0 0.0
  %3179 = vmatpush1.msra.mxu0 0.0
  %3180 = vmatprep.subr.mxu0 0.0
  %3181 = vmatpush1.msra.mxu0 0.0
  %3182 = vmatprep.subr.mxu0 0.0
  %3183 = vmatpush1.msra.mxu0 0.0
  %3184 = vmatprep.subr.mxu0 0.0
  %3185 = vmatpush1.msra.mxu0 0.0
  %3186 = vmatprep.subr.mxu0 0.0
  %3187 = vmatpush1.msra.mxu0 0.0
  %3188 = vmatprep.subr.mxu0 0.0
  %3189 = vmatpush1.msra.mxu0 0.0
  %3190 = vmatprep.subr.mxu0 0.0
  %3191 = vmatpush1.msra.mxu0 0.0
  %3192 = vmatprep.subr.mxu0 0.0
  %3193 = vmatpush1.msra.mxu0 0.0
  %3194 = vmatprep.subr.mxu0 0.0
  %3195 = vmatpush1.msra.mxu0 0.0
  %3196 = vmatprep.subr.mxu0 0.0
  %3197 = vmatpush1.msra.mxu0 0.0
  %3198 = vmatprep.subr.mxu0 0.0
  %3199 = vmatpush1.msra.mxu0 0.0
  %3200 = vmatprep.subr.mxu0 0.0
  %3201 = vmatpush1.msra.mxu0 0.0
  %3202 = vmatprep.subr.mxu0 0.0
  %3203 = vmatpush1.msra.mxu0 0.0
  %3204 = vmatprep.subr.mxu0 0.0
  %3205 = vmatpush1.msra.mxu0 0.0
  %3206 = vmatprep.subr.mxu0 0.0
  %3207 = vmatpush1.msra.mxu0 0.0
  %3208 = vmatprep.subr.mxu0 0.0
  %3209 = vmatpush1.msra.mxu0 0.0
  %3210 = vmatprep.subr.mxu0 0.0
  %3211 = vmatpush1.msra.mxu0 0.0
  %3212 = vmatprep.subr.mxu0 0.0
  %3213 = vmatpush1.msra.mxu0 0.0
  %3214 = vmatprep.subr.mxu0 0.0
  %3215 = vmatpush1.msra.mxu0 0.0
  %3216 = vmatprep.subr.mxu0 0.0
  %3217 = vmatpush1.msra.mxu0 0.0
  %3218 = vmatprep.subr.mxu0 0.0
  %3219 = vmatpush1.msra.mxu0 0.0
  %3220 = vmatprep.subr.mxu0 0.0
  %3221 = vmatpush1.msra.mxu0 0.0
  %3222 = vmatprep.subr.mxu0 0.0
  %3223 = vmatpush1.msra.mxu0 0.0
  %3224 = vmatprep.subr.mxu0 0.0
  %3225 = vmatpush1.msra.mxu0 0.0
  %3226 = vmatprep.subr.mxu0 0.0
  %3227 = vmatpush1.msra.mxu0 0.0
  %3228 = vmatprep.mubr.f32.mxu0 0.0
  %3229 = vmatmul.mubr.f32.gmra.mrb[0].mxu0 %v1836
  %v3230 = vpop.f32.mrb[0].mxu0
  %v3231 = vadd.f32 0.0, %v3230
  %v3232 = vpop.f32.mrb[0].mxu0
  %3233 = vmatprep.mubr.f32.mxu0 0.0
  %3234 = vmatmul.mubr.f32.gmra.mrb[0].mxu0 %v1839
  %v3235 = vpop.f32.mrb[0].mxu0
  %v3236 = vadd.f32 0.0, %v3235
  %v3237 = vpop.f32.mrb[0].mxu0
  %3238 = vdwg.mxu0
  %v3239 = vadd.f32 %v3162, %v3231
  %v3240 = vadd.f32 %v3163, %v3236
  %3242 = vrot.lane.b32.xlu0 %v1051, 64
  %v3243 = vpop.permute.xlu0 %3242
  %3245 = vmatprep.subr.mxu0 0.0
  %3246 = vmatpush1.msra.mxu0 %v3243
  %3247 = vmatprep.subr.mxu0 0.0
  %3248 = vmatpush1.msra.mxu0 0.0
  %3249 = vmatprep.subr.mxu0 0.0
  %3250 = vmatpush1.msra.mxu0 0.0
  %3251 = vmatprep.subr.mxu0 0.0
  %3252 = vmatpush1.msra.mxu0 0.0
  %3253 = vmatprep.subr.mxu0 0.0
  %3254 = vmatpush1.msra.mxu0 0.0
  %3255 = vmatprep.subr.mxu0 0.0
  %3256 = vmatpush1.msra.mxu0 0.0
  %3257 = vmatprep.subr.mxu0 0.0
  %3258 = vmatpush1.msra.mxu0 0.0
  %3259 = vmatprep.subr.mxu0 0.0
  %3260 = vmatpush1.msra.mxu0 0.0
  %3261 = vmatprep.subr.mxu0 0.0
  %3262 = vmatpush1.msra.mxu0 0.0
  %3263 = vmatprep.subr.mxu0 0.0
  %3264 = vmatpush1.msra.mxu0 0.0
  %3265 = vmatprep.subr.mxu0 0.0
  %3266 = vmatpush1.msra.mxu0 0.0
  %3267 = vmatprep.subr.mxu0 0.0
  %3268 = vmatpush1.msra.mxu0 0.0
  %3269 = vmatprep.subr.mxu0 0.0
  %3270 = vmatpush1.msra.mxu0 0.0
  %3271 = vmatprep.subr.mxu0 0.0
  %3272 = vmatpush1.msra.mxu0 0.0
  %3273 = vmatprep.subr.mxu0 0.0
  %3274 = vmatpush1.msra.mxu0 0.0
  %3275 = vmatprep.subr.mxu0 0.0
  %3276 = vmatpush1.msra.mxu0 0.0
  %3277 = vmatprep.subr.mxu0 0.0
  %3278 = vmatpush1.msra.mxu0 0.0
  %3279 = vmatprep.subr.mxu0 0.0
  %3280 = vmatpush1.msra.mxu0 0.0
  %3281 = vmatprep.subr.mxu0 0.0
  %3282 = vmatpush1.msra.mxu0 0.0
  %3283 = vmatprep.subr.mxu0 0.0
  %3284 = vmatpush1.msra.mxu0 0.0
  %3285 = vmatprep.subr.mxu0 0.0
  %3286 = vmatpush1.msra.mxu0 0.0
  %3287 = vmatprep.subr.mxu0 0.0
  %3288 = vmatpush1.msra.mxu0 0.0
  %3289 = vmatprep.subr.mxu0 0.0
  %3290 = vmatpush1.msra.mxu0 0.0
  %3291 = vmatprep.subr.mxu0 0.0
  %3292 = vmatpush1.msra.mxu0 0.0
  %3293 = vmatprep.subr.mxu0 0.0
  %3294 = vmatpush1.msra.mxu0 0.0
  %3295 = vmatprep.subr.mxu0 0.0
  %3296 = vmatpush1.msra.mxu0 0.0
  %3297 = vmatprep.subr.mxu0 0.0
  %3298 = vmatpush1.msra.mxu0 0.0
  %3299 = vmatprep.subr.mxu0 0.0
  %3300 = vmatpush1.msra.mxu0 0.0
  %3301 = vmatprep.subr.mxu0 0.0
  %3302 = vmatpush1.msra.mxu0 0.0
  %3303 = vmatprep.subr.mxu0 0.0
  %3304 = vmatpush1.msra.mxu0 0.0
  %3305 = vmatprep.subr.mxu0 0.0
  %3306 = vmatpush1.msra.mxu0 0.0
  %3307 = vmatprep.subr.mxu0 0.0
  %3308 = vmatpush1.msra.mxu0 0.0
  %3309 = vmatprep.mubr.f32.mxu0 0.0
  %3310 = vmatmul.mubr.f32.gmra.mrb[0].mxu0 %v1926
  %v3311 = vpop.f32.mrb[0].mxu0
  %v3312 = vadd.f32 0.0, %v3311
  %v3313 = vpop.f32.mrb[0].mxu0
  %3314 = vmatprep.mubr.f32.mxu0 0.0
  %3315 = vmatmul.mubr.f32.gmra.mrb[0].mxu0 %v1929
  %v3316 = vpop.f32.mrb[0].mxu0
  %v3317 = vadd.f32 0.0, %v3316
  %v3318 = vpop.f32.mrb[0].mxu0
  %3319 = vdwg.mxu0
  %v3320 = vadd.f32 %v3239, %v3312
  %v3321 = vadd.f32 %v3240, %v3317
  %3322 = vmatprep.subr.mxu0 0.0
  %3323 = vmatpush1.msra.mxu0 %v1053
  %3324 = vmatprep.subr.mxu0 0.0
  %3325 = vmatpush1.msra.mxu0 0.0
  %3326 = vmatprep.subr.mxu0 0.0
  %3327 = vmatpush1.msra.mxu0 0.0
  %3328 = vmatprep.subr.mxu0 0.0
  %3329 = vmatpush1.msra.mxu0 0.0
  %3330 = vmatprep.subr.mxu0 0.0
  %3331 = vmatpush1.msra.mxu0 0.0
  %3332 = vmatprep.subr.mxu0 0.0
  %3333 = vmatpush1.msra.mxu0 0.0
  %3334 = vmatprep.subr.mxu0 0.0
  %3335 = vmatpush1.msra.mxu0 0.0
  %3336 = vmatprep.subr.mxu0 0.0
  %3337 = vmatpush1.msra.mxu0 0.0
  %3338 = vmatprep.subr.mxu0 0.0
  %3339 = vmatpush1.msra.mxu0 0.0
  %3340 = vmatprep.subr.mxu0 0.0
  %3341 = vmatpush1.msra.mxu0 0.0
  %3342 = vmatprep.subr.mxu0 0.0
  %3343 = vmatpush1.msra.mxu0 0.0
  %3344 = vmatprep.subr.mxu0 0.0
  %3345 = vmatpush1.msra.mxu0 0.0
  %3346 = vmatprep.subr.mxu0 0.0
  %3347 = vmatpush1.msra.mxu0 0.0
  %3348 = vmatprep.subr.mxu0 0.0
  %3349 = vmatpush1.msra.mxu0 0.0
  %3350 = vmatprep.subr.mxu0 0.0
  %3351 = vmatpush1.msra.mxu0 0.0
  %3352 = vmatprep.subr.mxu0 0.0
  %3353 = vmatpush1.msra.mxu0 0.0
  %3354 = vmatprep.subr.mxu0 0.0
  %3355 = vmatpush1.msra.mxu0 0.0
  %3356 = vmatprep.subr.mxu0 0.0
  %3357 = vmatpush1.msra.mxu0 0.0
  %3358 = vmatprep.subr.mxu0 0.0
  %3359 = vmatpush1.msra.mxu0 0.0
  %3360 = vmatprep.subr.mxu0 0.0
  %3361 = vmatpush1.msra.mxu0 0.0
  %3362 = vmatprep.subr.mxu0 0.0
  %3363 = vmatpush1.msra.mxu0 0.0
  %3364 = vmatprep.subr.mxu0 0.0
  %3365 = vmatpush1.msra.mxu0 0.0
  %3366 = vmatprep.subr.mxu0 0.0
  %3367 = vmatpush1.msra.mxu0 0.0
  %3368 = vmatprep.subr.mxu0 0.0
  %3369 = vmatpush1.msra.mxu0 0.0
  %3370 = vmatprep.subr.mxu0 0.0
  %3371 = vmatpush1.msra.mxu0 0.0
  %3372 = vmatprep.subr.mxu0 0.0
  %3373 = vmatpush1.msra.mxu0 0.0
  %3374 = vmatprep.subr.mxu0 0.0
  %3375 = vmatpush1.msra.mxu0 0.0
  %3376 = vmatprep.subr.mxu0 0.0
  %3377 = vmatpush1.msra.mxu0 0.0
  %3378 = vmatprep.subr.mxu0 0.0
  %3379 = vmatpush1.msra.mxu0 0.0
  %3380 = vmatprep.subr.mxu0 0.0
  %3381 = vmatpush1.msra.mxu0 0.0
  %3382 = vmatprep.subr.mxu0 0.0
  %3383 = vmatpush1.msra.mxu0 0.0
  %3384 = vmatprep.subr.mxu0 0.0
  %3385 = vmatpush1.msra.mxu0 0.0
  %3386 = vmatprep.mubr.f32.mxu0 0.0
  %3387 = vmatmul.mubr.f32.gmra.mrb[0].mxu0 %v2012
  %v3388 = vpop.f32.mrb[0].mxu0
  %v3389 = vadd.f32 0.0, %v3388
  %v3390 = vpop.f32.mrb[0].mxu0
  %3391 = vmatprep.mubr.f32.mxu0 0.0
  %3392 = vmatmul.mubr.f32.gmra.mrb[0].mxu0 %v2015
  %v3393 = vpop.f32.mrb[0].mxu0
  %v3394 = vadd.f32 0.0, %v3393
  %v3395 = vpop.f32.mrb[0].mxu0
  %3396 = vdwg.mxu0
  %v3397 = vadd.f32 %v3320, %v3389
  %v3398 = vadd.f32 %v3321, %v3394
  %3400 = vrot.lane.b32.xlu0 %v1053, 64
  %v3401 = vpop.permute.xlu0 %3400
  %3403 = vmatprep.subr.mxu0 0.0
  %3404 = vmatpush1.msra.mxu0 %v3401
  %3405 = vmatprep.subr.mxu0 0.0
  %3406 = vmatpush1.msra.mxu0 0.0
  %3407 = vmatprep.subr.mxu0 0.0
  %3408 = vmatpush1.msra.mxu0 0.0
  %3409 = vmatprep.subr.mxu0 0.0
  %3410 = vmatpush1.msra.mxu0 0.0
  %3411 = vmatprep.subr.mxu0 0.0
  %3412 = vmatpush1.msra.mxu0 0.0
  %3413 = vmatprep.subr.mxu0 0.0
  %3414 = vmatpush1.msra.mxu0 0.0
  %3415 = vmatprep.subr.mxu0 0.0
  %3416 = vmatpush1.msra.mxu0 0.0
  %3417 = vmatprep.subr.mxu0 0.0
  %3418 = vmatpush1.msra.mxu0 0.0
  %3419 = vmatprep.subr.mxu0 0.0
  %3420 = vmatpush1.msra.mxu0 0.0
  %3421 = vmatprep.subr.mxu0 0.0
  %3422 = vmatpush1.msra.mxu0 0.0
  %3423 = vmatprep.subr.mxu0 0.0
  %3424 = vmatpush1.msra.mxu0 0.0
  %3425 = vmatprep.subr.mxu0 0.0
  %3426 = vmatpush1.msra.mxu0 0.0
  %3427 = vmatprep.subr.mxu0 0.0
  %3428 = vmatpush1.msra.mxu0 0.0
  %3429 = vmatprep.subr.mxu0 0.0
  %3430 = vmatpush1.msra.mxu0 0.0
  %3431 = vmatprep.subr.mxu0 0.0
  %3432 = vmatpush1.msra.mxu0 0.0
  %3433 = vmatprep.subr.mxu0 0.0
  %3434 = vmatpush1.msra.mxu0 0.0
  %3435 = vmatprep.subr.mxu0 0.0
  %3436 = vmatpush1.msra.mxu0 0.0
  %3437 = vmatprep.subr.mxu0 0.0
  %3438 = vmatpush1.msra.mxu0 0.0
  %3439 = vmatprep.subr.mxu0 0.0
  %3440 = vmatpush1.msra.mxu0 0.0
  %3441 = vmatprep.subr.mxu0 0.0
  %3442 = vmatpush1.msra.mxu0 0.0
  %3443 = vmatprep.subr.mxu0 0.0
  %3444 = vmatpush1.msra.mxu0 0.0
  %3445 = vmatprep.subr.mxu0 0.0
  %3446 = vmatpush1.msra.mxu0 0.0
  %3447 = vmatprep.subr.mxu0 0.0
  %3448 = vmatpush1.msra.mxu0 0.0
  %3449 = vmatprep.subr.mxu0 0.0
  %3450 = vmatpush1.msra.mxu0 0.0
  %3451 = vmatprep.subr.mxu0 0.0
  %3452 = vmatpush1.msra.mxu0 0.0
  %3453 = vmatprep.subr.mxu0 0.0
  %3454 = vmatpush1.msra.mxu0 0.0
  %3455 = vmatprep.subr.mxu0 0.0
  %3456 = vmatpush1.msra.mxu0 0.0
  %3457 = vmatprep.subr.mxu0 0.0
  %3458 = vmatpush1.msra.mxu0 0.0
  %3459 = vmatprep.subr.mxu0 0.0
  %3460 = vmatpush1.msra.mxu0 0.0
  %3461 = vmatprep.subr.mxu0 0.0
  %3462 = vmatpush1.msra.mxu0 0.0
  %3463 = vmatprep.subr.mxu0 0.0
  %3464 = vmatpush1.msra.mxu0 0.0
  %3465 = vmatprep.subr.mxu0 0.0
  %3466 = vmatpush1.msra.mxu0 0.0
  %3467 = vmatprep.mubr.f32.mxu0 0.0
  %3468 = vmatmul.mubr.f32.gmra.mrb[0].mxu0 %v2102
  %v3469 = vpop.f32.mrb[0].mxu0
  %v3470 = vadd.f32 0.0, %v3469
  %v3471 = vpop.f32.mrb[0].mxu0
  %3472 = vmatprep.mubr.f32.mxu0 0.0
  %3473 = vmatmul.mubr.f32.gmra.mrb[0].mxu0 %v2105
  %v3474 = vpop.f32.mrb[0].mxu0
  %v3475 = vadd.f32 0.0, %v3474
  %v3476 = vpop.f32.mrb[0].mxu0
  %3477 = vdwg.mxu0
  %v3478 = vadd.f32 %v3397, %v3470
  %v3479 = vadd.f32 %v3398, %v3475
  %3480 = vmatprep.subr.mxu0 0.0
  %3481 = vmatpush1.msra.mxu0 %v1128
  %3482 = vmatprep.subr.mxu0 0.0
  %3483 = vmatpush1.msra.mxu0 0.0
  %3484 = vmatprep.subr.mxu0 0.0
  %3485 = vmatpush1.msra.mxu0 0.0
  %3486 = vmatprep.subr.mxu0 0.0
  %3487 = vmatpush1.msra.mxu0 0.0
  %3488 = vmatprep.subr.mxu0 0.0
  %3489 = vmatpush1.msra.mxu0 0.0
  %3490 = vmatprep.subr.mxu0 0.0
  %3491 = vmatpush1.msra.mxu0 0.0
  %3492 = vmatprep.subr.mxu0 0.0
  %3493 = vmatpush1.msra.mxu0 0.0
  %3494 = vmatprep.subr.mxu0 0.0
  %3495 = vmatpush1.msra.mxu0 0.0
  %3496 = vmatprep.subr.mxu0 0.0
  %3497 = vmatpush1.msra.mxu0 0.0
  %3498 = vmatprep.subr.mxu0 0.0
  %3499 = vmatpush1.msra.mxu0 0.0
  %3500 = vmatprep.subr.mxu0 0.0
  %3501 = vmatpush1.msra.mxu0 0.0
  %3502 = vmatprep.subr.mxu0 0.0
  %3503 = vmatpush1.msra.mxu0 0.0
  %3504 = vmatprep.subr.mxu0 0.0
  %3505 = vmatpush1.msra.mxu0 0.0
  %3506 = vmatprep.subr.mxu0 0.0
  %3507 = vmatpush1.msra.mxu0 0.0
  %3508 = vmatprep.subr.mxu0 0.0
  %3509 = vmatpush1.msra.mxu0 0.0
  %3510 = vmatprep.subr.mxu0 0.0
  %3511 = vmatpush1.msra.mxu0 0.0
  %3512 = vmatprep.subr.mxu0 0.0
  %3513 = vmatpush1.msra.mxu0 0.0
  %3514 = vmatprep.subr.mxu0 0.0
  %3515 = vmatpush1.msra.mxu0 0.0
  %3516 = vmatprep.subr.mxu0 0.0
  %3517 = vmatpush1.msra.mxu0 0.0
  %3518 = vmatprep.subr.mxu0 0.0
  %3519 = vmatpush1.msra.mxu0 0.0
  %3520 = vmatprep.subr.mxu0 0.0
  %3521 = vmatpush1.msra.mxu0 0.0
  %3522 = vmatprep.subr.mxu0 0.0
  %3523 = vmatpush1.msra.mxu0 0.0
  %3524 = vmatprep.subr.mxu0 0.0
  %3525 = vmatpush1.msra.mxu0 0.0
  %3526 = vmatprep.subr.mxu0 0.0
  %3527 = vmatpush1.msra.mxu0 0.0
  %3528 = vmatprep.subr.mxu0 0.0
  %3529 = vmatpush1.msra.mxu0 0.0
  %3530 = vmatprep.subr.mxu0 0.0
  %3531 = vmatpush1.msra.mxu0 0.0
  %3532 = vmatprep.subr.mxu0 0.0
  %3533 = vmatpush1.msra.mxu0 0.0
  %3534 = vmatprep.subr.mxu0 0.0
  %3535 = vmatpush1.msra.mxu0 0.0
  %3536 = vmatprep.subr.mxu0 0.0
  %3537 = vmatpush1.msra.mxu0 0.0
  %3538 = vmatprep.subr.mxu0 0.0
  %3539 = vmatpush1.msra.mxu0 0.0
  %3540 = vmatprep.subr.mxu0 0.0
  %3541 = vmatpush1.msra.mxu0 0.0
  %3542 = vmatprep.subr.mxu0 0.0
  %3543 = vmatpush1.msra.mxu0 0.0
  %3544 = vmatprep.mubr.f32.mxu0 0.0
  %3545 = vmatmul.mubr.f32.gmra.mrb[0].mxu0 %v2188
  %v3546 = vpop.f32.mrb[0].mxu0
  %v3547 = vadd.f32 0.0, %v3546
  %v3548 = vpop.f32.mrb[0].mxu0
  %3549 = vmatprep.mubr.f32.mxu0 0.0
  %3550 = vmatmul.mubr.f32.gmra.mrb[0].mxu0 %v2191
  %v3551 = vpop.f32.mrb[0].mxu0
  %v3552 = vadd.f32 0.0, %v3551
  %v3553 = vpop.f32.mrb[0].mxu0
  %3554 = vdwg.mxu0
  %v3555 = vadd.f32 %v3478, %v3547
  %v3556 = vadd.f32 %v3479, %v3552
  %3558 = vrot.lane.b32.xlu0 %v1128, 64
  %v3559 = vpop.permute.xlu0 %3558
  %3561 = vmatprep.subr.mxu0 0.0
  %3562 = vmatpush1.msra.mxu0 %v3559
  %3563 = vmatprep.subr.mxu0 0.0
  %3564 = vmatpush1.msra.mxu0 0.0
  %3565 = vmatprep.subr.mxu0 0.0
  %3566 = vmatpush1.msra.mxu0 0.0
  %3567 = vmatprep.subr.mxu0 0.0
  %3568 = vmatpush1.msra.mxu0 0.0
  %3569 = vmatprep.subr.mxu0 0.0
  %3570 = vmatpush1.msra.mxu0 0.0
  %3571 = vmatprep.subr.mxu0 0.0
  %3572 = vmatpush1.msra.mxu0 0.0
  %3573 = vmatprep.subr.mxu0 0.0
  %3574 = vmatpush1.msra.mxu0 0.0
  %3575 = vmatprep.subr.mxu0 0.0
  %3576 = vmatpush1.msra.mxu0 0.0
  %3577 = vmatprep.subr.mxu0 0.0
  %3578 = vmatpush1.msra.mxu0 0.0
  %3579 = vmatprep.subr.mxu0 0.0
  %3580 = vmatpush1.msra.mxu0 0.0
  %3581 = vmatprep.subr.mxu0 0.0
  %3582 = vmatpush1.msra.mxu0 0.0
  %3583 = vmatprep.subr.mxu0 0.0
  %3584 = vmatpush1.msra.mxu0 0.0
  %3585 = vmatprep.subr.mxu0 0.0
  %3586 = vmatpush1.msra.mxu0 0.0
  %3587 = vmatprep.subr.mxu0 0.0
  %3588 = vmatpush1.msra.mxu0 0.0
  %3589 = vmatprep.subr.mxu0 0.0
  %3590 = vmatpush1.msra.mxu0 0.0
  %3591 = vmatprep.subr.mxu0 0.0
  %3592 = vmatpush1.msra.mxu0 0.0
  %3593 = vmatprep.subr.mxu0 0.0
  %3594 = vmatpush1.msra.mxu0 0.0
  %3595 = vmatprep.subr.mxu0 0.0
  %3596 = vmatpush1.msra.mxu0 0.0
  %3597 = vmatprep.subr.mxu0 0.0
  %3598 = vmatpush1.msra.mxu0 0.0
  %3599 = vmatprep.subr.mxu0 0.0
  %3600 = vmatpush1.msra.mxu0 0.0
  %3601 = vmatprep.subr.mxu0 0.0
  %3602 = vmatpush1.msra.mxu0 0.0
  %3603 = vmatprep.subr.mxu0 0.0
  %3604 = vmatpush1.msra.mxu0 0.0
  %3605 = vmatprep.subr.mxu0 0.0
  %3606 = vmatpush1.msra.mxu0 0.0
  %3607 = vmatprep.subr.mxu0 0.0
  %3608 = vmatpush1.msra.mxu0 0.0
  %3609 = vmatprep.subr.mxu0 0.0
  %3610 = vmatpush1.msra.mxu0 0.0
  %3611 = vmatprep.subr.mxu0 0.0
  %3612 = vmatpush1.msra.mxu0 0.0
  %3613 = vmatprep.subr.mxu0 0.0
  %3614 = vmatpush1.msra.mxu0 0.0
  %3615 = vmatprep.subr.mxu0 0.0
  %3616 = vmatpush1.msra.mxu0 0.0
  %3617 = vmatprep.subr.mxu0 0.0
  %3618 = vmatpush1.msra.mxu0 0.0
  %3619 = vmatprep.subr.mxu0 0.0
  %3620 = vmatpush1.msra.mxu0 0.0
  %3621 = vmatprep.subr.mxu0 0.0
  %3622 = vmatpush1.msra.mxu0 0.0
  %3623 = vmatprep.subr.mxu0 0.0
  %3624 = vmatpush1.msra.mxu0 0.0
  %3625 = vmatprep.mubr.f32.mxu0 0.0
  %3626 = vmatmul.mubr.f32.gmra.mrb[0].mxu0 %v2278
  %v3627 = vpop.f32.mrb[0].mxu0
  %v3628 = vadd.f32 0.0, %v3627
  %v3629 = vpop.f32.mrb[0].mxu0
  %3630 = vmatprep.mubr.f32.mxu0 0.0
  %3631 = vmatmul.mubr.f32.gmra.mrb[0].mxu0 %v2281
  %v3632 = vpop.f32.mrb[0].mxu0
  %v3633 = vadd.f32 0.0, %v3632
  %v3634 = vpop.f32.mrb[0].mxu0
  %3635 = vdwg.mxu0
  %v3636 = vadd.f32 %v3555, %v3628
  %v3637 = vadd.f32 %v3556, %v3633
  %3638 = vmatprep.subr.mxu0 0.0
  %3639 = vmatpush1.msra.mxu0 %v1130
  %3640 = vmatprep.subr.mxu0 0.0
  %3641 = vmatpush1.msra.mxu0 0.0
  %3642 = vmatprep.subr.mxu0 0.0
  %3643 = vmatpush1.msra.mxu0 0.0
  %3644 = vmatprep.subr.mxu0 0.0
  %3645 = vmatpush1.msra.mxu0 0.0
  %3646 = vmatprep.subr.mxu0 0.0
  %3647 = vmatpush1.msra.mxu0 0.0
  %3648 = vmatprep.subr.mxu0 0.0
  %3649 = vmatpush1.msra.mxu0 0.0
  %3650 = vmatprep.subr.mxu0 0.0
  %3651 = vmatpush1.msra.mxu0 0.0
  %3652 = vmatprep.subr.mxu0 0.0
  %3653 = vmatpush1.msra.mxu0 0.0
  %3654 = vmatprep.subr.mxu0 0.0
  %3655 = vmatpush1.msra.mxu0 0.0
  %3656 = vmatprep.subr.mxu0 0.0
  %3657 = vmatpush1.msra.mxu0 0.0
  %3658 = vmatprep.subr.mxu0 0.0
  %3659 = vmatpush1.msra.mxu0 0.0
  %3660 = vmatprep.subr.mxu0 0.0
  %3661 = vmatpush1.msra.mxu0 0.0
  %3662 = vmatprep.subr.mxu0 0.0
  %3663 = vmatpush1.msra.mxu0 0.0
  %3664 = vmatprep.subr.mxu0 0.0
  %3665 = vmatpush1.msra.mxu0 0.0
  %3666 = vmatprep.subr.mxu0 0.0
  %3667 = vmatpush1.msra.mxu0 0.0
  %3668 = vmatprep.subr.mxu0 0.0
  %3669 = vmatpush1.msra.mxu0 0.0
  %3670 = vmatprep.subr.mxu0 0.0
  %3671 = vmatpush1.msra.mxu0 0.0
  %3672 = vmatprep.subr.mxu0 0.0
  %3673 = vmatpush1.msra.mxu0 0.0
  %3674 = vmatprep.subr.mxu0 0.0
  %3675 = vmatpush1.msra.mxu0 0.0
  %3676 = vmatprep.subr.mxu0 0.0
  %3677 = vmatpush1.msra.mxu0 0.0
  %3678 = vmatprep.subr.mxu0 0.0
  %3679 = vmatpush1.msra.mxu0 0.0
  %3680 = vmatprep.subr.mxu0 0.0
  %3681 = vmatpush1.msra.mxu0 0.0
  %3682 = vmatprep.subr.mxu0 0.0
  %3683 = vmatpush1.msra.mxu0 0.0
  %3684 = vmatprep.subr.mxu0 0.0
  %3685 = vmatpush1.msra.mxu0 0.0
  %3686 = vmatprep.subr.mxu0 0.0
  %3687 = vmatpush1.msra.mxu0 0.0
  %3688 = vmatprep.subr.mxu0 0.0
  %3689 = vmatpush1.msra.mxu0 0.0
  %3690 = vmatprep.subr.mxu0 0.0
  %3691 = vmatpush1.msra.mxu0 0.0
  %3692 = vmatprep.subr.mxu0 0.0
  %3693 = vmatpush1.msra.mxu0 0.0
  %3694 = vmatprep.subr.mxu0 0.0
  %3695 = vmatpush1.msra.mxu0 0.0
  %3696 = vmatprep.subr.mxu0 0.0
  %3697 = vmatpush1.msra.mxu0 0.0
  %3698 = vmatprep.subr.mxu0 0.0
  %3699 = vmatpush1.msra.mxu0 0.0
  %3700 = vmatprep.subr.mxu0 0.0
  %3701 = vmatpush1.msra.mxu0 0.0
  %3702 = vmatprep.mubr.f32.mxu0 0.0
  %3703 = vmatmul.mubr.f32.gmra.mrb[0].mxu0 %v2364
  %v3704 = vpop.f32.mrb[0].mxu0
  %v3705 = vadd.f32 0.0, %v3704
  %v3706 = vpop.f32.mrb[0].mxu0
  %3707 = vmatprep.mubr.f32.mxu0 0.0
  %3708 = vmatmul.mubr.f32.gmra.mrb[0].mxu0 %v2367
  %v3709 = vpop.f32.mrb[0].mxu0
  %v3710 = vadd.f32 0.0, %v3709
  %v3711 = vpop.f32.mrb[0].mxu0
  %3712 = vdwg.mxu0
  %v3713 = vadd.f32 %v3636, %v3705
  %v3714 = vadd.f32 %v3637, %v3710
  %3716 = vrot.lane.b32.xlu0 %v1130, 64
  %v3717 = vpop.permute.xlu0 %3716
  %3719 = vmatprep.subr.mxu0 0.0
  %3720 = vmatpush1.msra.mxu0 %v3717
  %3721 = vmatprep.subr.mxu0 0.0
  %3722 = vmatpush1.msra.mxu0 0.0
  %3723 = vmatprep.subr.mxu0 0.0
  %3724 = vmatpush1.msra.mxu0 0.0
  %3725 = vmatprep.subr.mxu0 0.0
  %3726 = vmatpush1.msra.mxu0 0.0
  %3727 = vmatprep.subr.mxu0 0.0
  %3728 = vmatpush1.msra.mxu0 0.0
  %3729 = vmatprep.subr.mxu0 0.0
  %3730 = vmatpush1.msra.mxu0 0.0
  %3731 = vmatprep.subr.mxu0 0.0
  %3732 = vmatpush1.msra.mxu0 0.0
  %3733 = vmatprep.subr.mxu0 0.0
  %3734 = vmatpush1.msra.mxu0 0.0
  %3735 = vmatprep.subr.mxu0 0.0
  %3736 = vmatpush1.msra.mxu0 0.0
  %3737 = vmatprep.subr.mxu0 0.0
  %3738 = vmatpush1.msra.mxu0 0.0
  %3739 = vmatprep.subr.mxu0 0.0
  %3740 = vmatpush1.msra.mxu0 0.0
  %3741 = vmatprep.subr.mxu0 0.0
  %3742 = vmatpush1.msra.mxu0 0.0
  %3743 = vmatprep.subr.mxu0 0.0
  %3744 = vmatpush1.msra.mxu0 0.0
  %3745 = vmatprep.subr.mxu0 0.0
  %3746 = vmatpush1.msra.mxu0 0.0
  %3747 = vmatprep.subr.mxu0 0.0
  %3748 = vmatpush1.msra.mxu0 0.0
  %3749 = vmatprep.subr.mxu0 0.0
  %3750 = vmatpush1.msra.mxu0 0.0
  %3751 = vmatprep.subr.mxu0 0.0
  %3752 = vmatpush1.msra.mxu0 0.0
  %3753 = vmatprep.subr.mxu0 0.0
  %3754 = vmatpush1.msra.mxu0 0.0
  %3755 = vmatprep.subr.mxu0 0.0
  %3756 = vmatpush1.msra.mxu0 0.0
  %3757 = vmatprep.subr.mxu0 0.0
  %3758 = vmatpush1.msra.mxu0 0.0
  %3759 = vmatprep.subr.mxu0 0.0
  %3760 = vmatpush1.msra.mxu0 0.0
  %3761 = vmatprep.subr.mxu0 0.0
  %3762 = vmatpush1.msra.mxu0 0.0
  %3763 = vmatprep.subr.mxu0 0.0
  %3764 = vmatpush1.msra.mxu0 0.0
  %3765 = vmatprep.subr.mxu0 0.0
  %3766 = vmatpush1.msra.mxu0 0.0
  %3767 = vmatprep.subr.mxu0 0.0
  %3768 = vmatpush1.msra.mxu0 0.0
  %3769 = vmatprep.subr.mxu0 0.0
  %3770 = vmatpush1.msra.mxu0 0.0
  %3771 = vmatprep.subr.mxu0 0.0
  %3772 = vmatpush1.msra.mxu0 0.0
  %3773 = vmatprep.subr.mxu0 0.0
  %3774 = vmatpush1.msra.mxu0 0.0
  %3775 = vmatprep.subr.mxu0 0.0
  %3776 = vmatpush1.msra.mxu0 0.0
  %3777 = vmatprep.subr.mxu0 0.0
  %3778 = vmatpush1.msra.mxu0 0.0
  %3779 = vmatprep.subr.mxu0 0.0
  %3780 = vmatpush1.msra.mxu0 0.0
  %3781 = vmatprep.subr.mxu0 0.0
  %3782 = vmatpush1.msra.mxu0 0.0
  %3783 = vmatprep.mubr.f32.mxu0 0.0
  %3784 = vmatmul.mubr.f32.gmra.mrb[0].mxu0 %v2454
  %v3785 = vpop.f32.mrb[0].mxu0
  %v3786 = vadd.f32 0.0, %v3785
  %v3787 = vpop.f32.mrb[0].mxu0
  %3788 = vmatprep.mubr.f32.mxu0 0.0
  %3789 = vmatmul.mubr.f32.gmra.mrb[0].mxu0 %v2457
  %v3790 = vpop.f32.mrb[0].mxu0
  %v3791 = vadd.f32 0.0, %v3790
  %v3792 = vpop.f32.mrb[0].mxu0
  %3793 = vdwg.mxu0
  %v3794 = vadd.f32 %v3713, %v3786
  %v3795 = vadd.f32 %v3714, %v3791
  %vm3796 = vcmask 523264
  %v3797 = vsel %vm3796, %v2534, 0.0
  %3798 = vadd.xlane.f32.xlu0 %v3797
  %v3799 = vpop.xlane.xlu0 %3798
  %v3800 = vsel %vm3796, %v2535, 0.0
  %3801 = vadd.xlane.f32.xlu0 %v3800
  %v3802 = vpop.xlane.xlu0 %3801
  %v3803 = vsel %vm3796, %v3794, 0.0
  %3804 = vadd.xlane.f32.xlu0 %v3803
  %v3805 = vpop.xlane.xlu0 %3804
  %v3806 = vsel %vm3796, %v3795, 0.0
  %3807 = vadd.xlane.f32.xlu0 %v3806
  %v3808 = vpop.xlane.xlu0 %3807
  %v3809 = vmul.f32 %v2534, %v2534
  %v3810 = vmul.f32 %v2535, %v2535
  %v3811 = vmul.f32 %v3794, %v3794
  %v3812 = vmul.f32 %v3795, %v3795
  %v3813 = vsel %vm3796, %v3809, 0.0
  %3814 = vadd.xlane.f32.xlu0 %v3813
  %v3815 = vpop.xlane.xlu0 %3814
  %v3816 = vsel %vm3796, %v3810, 0.0
  %3817 = vadd.xlane.f32.xlu0 %v3816
  %v3818 = vpop.xlane.xlu0 %3817
  %v3819 = vsel %vm3796, %v3811, 0.0
  %3820 = vadd.xlane.f32.xlu0 %v3819
  %v3821 = vpop.xlane.xlu0 %3820
  %v3822 = vsel %vm3796, %v3812, 0.0
  %3823 = vadd.xlane.f32.xlu0 %v3822
  %v3824 = vpop.xlane.xlu0 %3823
  %v3825 = vadd.f32 %v3799, %v3805
  %v3826 = vadd.f32 %v3802, %v3808
  %v3827 = vadd.f32 %v3815, %v3821
  %v3828 = vadd.f32 %v3818, %v3824
  %v3829 = vmul.f32 %v3825, 0.0078125
  %v3830 = vmul.f32 %v3826, 0.0078125
  %v3831 = vmul.f32 %v3827, 0.0078125
  %v3832 = vmul.f32 %v3828, 0.0078125
  %v3833 = vmul.f32 %v3829, %v3829
  %v3834 = vmul.f32 %v3830, %v3830
  %v3835 = vsub.f32 %v3831, %v3833
  %v3836 = vsub.f32 %v3832, %v3834
  %v3837 = vmax.f32 %v3835, 0.0
  %v3838 = vmax.f32 %v3836, 0.0
  %v3839 = vadd.f32 %v3837, 1e-05
  %v3840 = vadd.f32 %v3838, 1e-05
  %v3841 = vrsqrt.pop %v3839
  %v3842 = vrsqrt.pop %v3840
  %3844 = vset.pattern.permute.xlu0 0
  %3845 = vperm.xlu0 %3844, %v3829
  %v3846 = vpop.permute.xlu0 %3845
  %3849 = vset.pattern.permute.xlu0 0
  %3850 = vperm.xlu0 %3849, %v3830
  %v3851 = vpop.permute.xlu0 %3850
  %v3853 = vsub.f32 %v2534, %v3846
  %v3854 = vsub.f32 %v2535, %v3851
  %v3855 = vsub.f32 %v3794, %v3846
  %v3856 = vsub.f32 %v3795, %v3851
  %3858 = vset.pattern.permute.xlu0 0
  %3859 = vperm.xlu0 %3858, %v3841
  %v3860 = vpop.permute.xlu0 %3859
  %3863 = vset.pattern.permute.xlu0 0
  %3864 = vperm.xlu0 %3863, %v3842
  %v3865 = vpop.permute.xlu0 %3864
  %v3867 = vmul.f32 %v3853, %v3860
  %v3868 = vmul.f32 %v3854, %v3865
  %v3869 = vmul.f32 %v3855, %v3860
  %v3870 = vmul.f32 %v3856, %v3865
  %v3871 = vld [vmem:[%s5] sm:$0xff]
  %v3872 = vld [vmem:[%s5 + $0x8] sm:$0xff]
  %v3873 = vld [vmem:[%s5 + $0x10] sm:$0xff]
  %v3874 = vld [vmem:[%s5 + $0x18] sm:$0xff]
  %3876 = vset.pattern.permute.xlu0 0
  %3877 = vperm.xlu0 %3876, %v3871
  %v3878 = vpop.permute.xlu0 %3877
  %3881 = vset.pattern.permute.xlu0 0
  %3882 = vperm.xlu0 %3881, %v3872
  %v3883 = vpop.permute.xlu0 %3882
  %3886 = vset.pattern.permute.xlu0 0
  %3887 = vperm.xlu0 %3886, %v3873
  %v3888 = vpop.permute.xlu0 %3887
  %3891 = vset.pattern.permute.xlu0 0
  %3892 = vperm.xlu0 %3891, %v3874
  %v3893 = vpop.permute.xlu0 %3892
  %v3895 = vmul.f32 %v3867, %v3878
  %v3896 = vmul.f32 %v3868, %v3883
  %v3897 = vmul.f32 %v3869, %v3888
  %v3898 = vmul.f32 %v3870, %v3893
  %v3899 = vld [vmem:[%s6] sm:$0xff]
  %v3900 = vld [vmem:[%s6 + $0x8] sm:$0xff]
  %v3901 = vld [vmem:[%s6 + $0x10] sm:$0xff]
  %v3902 = vld [vmem:[%s6 + $0x18] sm:$0xff]
  %3904 = vset.pattern.permute.xlu0 0
  %3905 = vperm.xlu0 %3904, %v3899
  %v3906 = vpop.permute.xlu0 %3905
  %3909 = vset.pattern.permute.xlu0 0
  %3910 = vperm.xlu0 %3909, %v3900
  %v3911 = vpop.permute.xlu0 %3910
  %3914 = vset.pattern.permute.xlu0 0
  %3915 = vperm.xlu0 %3914, %v3901
  %v3916 = vpop.permute.xlu0 %3915
  %3919 = vset.pattern.permute.xlu0 0
  %3920 = vperm.xlu0 %3919, %v3902
  %v3921 = vpop.permute.xlu0 %3920
  %v3923 = vadd.f32 %v3895, %v3906
  %v3924 = vadd.f32 %v3896, %v3911
  %v3925 = vadd.f32 %v3897, %v3916
  %v3926 = vadd.f32 %v3898, %v3921
  %vm3927 = vcmp.gt.f32.partialorder %v3923, 0.0
  %vm3928 = vcmp.gt.f32.partialorder %v3924, 0.0
  %vm3929 = vcmp.gt.f32.partialorder %v3925, 0.0
  %vm3930 = vcmp.gt.f32.partialorder %v3926, 0.0
  %v3931 = vmul.f32 %v3923, 0.2
  %v3932 = vmul.f32 %v3924, 0.2
  %v3933 = vmul.f32 %v3925, 0.2
  %v3934 = vmul.f32 %v3926, 0.2
  %v3935 = vsel %vm3927, %v3923, %v3931
  %v3936 = vsel %vm3928, %v3924, %v3932
  %v3937 = vsel %vm3929, %v3925, %v3933
  %v3938 = vsel %vm3930, %v3926, %v3934
  %v3939 = vld [vmem:[%s7] sm:$0xff]
  %v3940 = vld [vmem:[%s7 + $0x8] sm:$0xff]
  %v3941 = vld [vmem:[%s7 + $0x10] sm:$0xff]
  %v3942 = vld [vmem:[%s7 + $0x18] sm:$0xff]
  %v3943 = vunpack.c.0.s8 %v3939
  %v3944 = vunpack.c.0.s8 %v3940
  %v3945 = vunpack.c.1.s8 %v3939
  %v3946 = vunpack.c.1.s8 %v3940
  %v3947 = vunpack.c.2.s8 %v3939
  %v3948 = vunpack.c.2.s8 %v3940
  %v3949 = vunpack.c.3.s8 %v3939
  %v3950 = vunpack.c.3.s8 %v3940
  %v3951 = vunpack.c.0.s8 %v3941
  %v3952 = vunpack.c.0.s8 %v3942
  %v3953 = vunpack.c.1.s8 %v3941
  %v3954 = vunpack.c.1.s8 %v3942
  %v3955 = vunpack.c.2.s8 %v3941
  %v3956 = vunpack.c.2.s8 %v3942
  %v3957 = vunpack.c.3.s8 %v3941
  %v3958 = vunpack.c.3.s8 %v3942
  %v3959 = vcvt.s32.f32 %v3943
  %v3960 = vcvt.s32.f32 %v3944
  %v3961 = vcvt.s32.f32 %v3945
  %v3962 = vcvt.s32.f32 %v3946
  %v3963 = vcvt.s32.f32 %v3947
  %v3964 = vcvt.s32.f32 %v3948
  %v3965 = vcvt.s32.f32 %v3949
  %v3966 = vcvt.s32.f32 %v3950
  %v3967 = vcvt.s32.f32 %v3951
  %v3968 = vcvt.s32.f32 %v3952
  %v3969 = vcvt.s32.f32 %v3953
  %v3970 = vcvt.s32.f32 %v3954
  %v3971 = vcvt.s32.f32 %v3955
  %v3972 = vcvt.s32.f32 %v3956
  %v3973 = vcvt.s32.f32 %v3957
  %v3974 = vcvt.s32.f32 %v3958
  %v3976 = vsel %vm3796, %v3935, 0
  %v3979 = vsel %vm3796, %v3936, 0
  %v3982 = vsel %vm3796, %v3937, 0
  %v3985 = vsel %vm3796, %v3938, 0
  %3987 = vmatprep.subr.mxu0 %v3960
  %3988 = vmatpush1.msra.mxu0 %v3959
  %3989 = vmatprep.subr.mxu0 %v3962
  %3990 = vmatpush1.msra.mxu0 %v3961
  %3991 = vmatprep.subr.mxu0 %v3964
  %3992 = vmatpush1.msra.mxu0 %v3963
  %3993 = vmatprep.subr.mxu0 %v3966
  %3994 = vmatpush1.msra.mxu0 %v3965
  %3995 = vmatprep.subr.mxu0 %v3968
  %3996 = vmatpush1.msra.mxu0 %v3967
  %3997 = vmatprep.subr.mxu0 %v3970
  %3998 = vmatpush1.msra.mxu0 %v3969
  %3999 = vmatprep.subr.mxu0 %v3972
  %4000 = vmatpush1.msra.mxu0 %v3971
  %4001 = vmatprep.subr.mxu0 %v3974
  %4002 = vmatpush1.msra.mxu0 %v3973
  %4003 = vmatprep.subr.mxu0 0.0
  %4004 = vmatpush1.msra.mxu0 0.0
  %4005 = vmatprep.subr.mxu0 0.0
  %4006 = vmatpush1.msra.mxu0 0.0
  %4007 = vmatprep.subr.mxu0 0.0
  %4008 = vmatpush1.msra.mxu0 0.0
  %4009 = vmatprep.subr.mxu0 0.0
  %4010 = vmatpush1.msra.mxu0 0.0
  %4011 = vmatprep.subr.mxu0 0.0
  %4012 = vmatpush1.msra.mxu0 0.0
  %4013 = vmatprep.subr.mxu0 0.0
  %4014 = vmatpush1.msra.mxu0 0.0
  %4015 = vmatprep.subr.mxu0 0.0
  %4016 = vmatpush1.msra.mxu0 0.0
  %4017 = vmatprep.subr.mxu0 0.0
  %4018 = vmatpush1.msra.mxu0 0.0
  %4019 = vmatprep.subr.mxu0 0.0
  %4020 = vmatpush1.msra.mxu0 0.0
  %4021 = vmatprep.subr.mxu0 0.0
  %4022 = vmatpush1.msra.mxu0 0.0
  %4023 = vmatprep.subr.mxu0 0.0
  %4024 = vmatpush1.msra.mxu0 0.0
  %4025 = vmatprep.subr.mxu0 0.0
  %4026 = vmatpush1.msra.mxu0 0.0
  %4027 = vmatprep.subr.mxu0 0.0
  %4028 = vmatpush1.msra.mxu0 0.0
  %4029 = vmatprep.subr.mxu0 0.0
  %4030 = vmatpush1.msra.mxu0 0.0
  %4031 = vmatprep.subr.mxu0 0.0
  %4032 = vmatpush1.msra.mxu0 0.0
  %4033 = vmatprep.subr.mxu0 0.0
  %4034 = vmatpush1.msra.mxu0 0.0
  %4035 = vmatprep.subr.mxu0 0.0
  %4036 = vmatpush1.msra.mxu0 0.0
  %4037 = vmatprep.subr.mxu0 0.0
  %4038 = vmatpush1.msra.mxu0 0.0
  %4039 = vmatprep.subr.mxu0 0.0
  %4040 = vmatpush1.msra.mxu0 0.0
  %4041 = vmatprep.subr.mxu0 0.0
  %4042 = vmatpush1.msra.mxu0 0.0
  %4043 = vmatprep.subr.mxu0 0.0
  %4044 = vmatpush1.msra.mxu0 0.0
  %4045 = vmatprep.subr.mxu0 0.0
  %4046 = vmatpush1.msra.mxu0 0.0
  %4047 = vmatprep.subr.mxu0 0.0
  %4048 = vmatpush1.msra.mxu0 0.0
  %4049 = vmatprep.subr.mxu0 0.0
  %4050 = vmatpush1.msra.mxu0 0.0
  %4051 = vmatprep.mubr.f32.mxu0 0.0
  %4052 = vmatmul.mubr.f32.gmra.mrb[0].mxu0 %v3976
  %v4053 = vpop.f32.mrb[0].mxu0
  %v4054 = vadd.f32 0.0, %v4053
  %v4055 = vpop.f32.mrb[0].mxu0
  %v4056 = vadd.f32 0.0, %v4055
  %4057 = vmatprep.mubr.f32.mxu0 0.0
  %4058 = vmatmul.mubr.f32.gmra.mrb[0].mxu0 %v3979
  %v4059 = vpop.f32.mrb[0].mxu0
  %v4060 = vadd.f32 0.0, %v4059
  %v4061 = vpop.f32.mrb[0].mxu0
  %v4062 = vadd.f32 0.0, %v4061
  %4063 = vmatprep.mubr.f32.mxu0 0.0
  %4064 = vmatmul.mubr.f32.gmra.mrb[0].mxu0 %v3982
  %v4065 = vpop.f32.mrb[0].mxu0
  %v4066 = vadd.f32 0.0, %v4065
  %v4067 = vpop.f32.mrb[0].mxu0
  %v4068 = vadd.f32 0.0, %v4067
  %4069 = vmatprep.mubr.f32.mxu0 0.0
  %4070 = vmatmul.mubr.f32.gmra.mrb[0].mxu0 %v3985
  %v4071 = vpop.f32.mrb[0].mxu0
  %v4072 = vadd.f32 0.0, %v4071
  %v4073 = vpop.f32.mrb[0].mxu0
  %v4074 = vadd.f32 0.0, %v4073
  %4075 = vdwg.mxu0
  %v4076 = vld [vmem:[%s8] sm:$0xff]
  %v4077 = vld [vmem:[%s8 + $0x8] sm:$0xff]
  %v4078 = vld [vmem:[%s8 + $0x10] sm:$0xff]
  %v4079 = vld [vmem:[%s8 + $0x18] sm:$0xff]
  %s4080 = scalar_lea.vmem %s8, 32
  %v4081 = vld [vmem:[%s4080] sm:$0xff]
  %v4082 = vld [vmem:[%s4080 + $0x8] sm:$0xff]
  %v4083 = vld [vmem:[%s4080 + $0x10] sm:$0xff]
  %v4084 = vld [vmem:[%s4080 + $0x18] sm:$0xff]
  %4087 = vrot.lane.b32.xlu0 %v4054, 112
  %v4088 = vpop.permute.xlu0 %4087
  %4089 = vrot.lane.b32.xlu0 %v4060, 112
  %v4090 = vpop.permute.xlu0 %4089
  %vm4093 = vcmask 130048
  %v4095 = vsel %vm4093, %v4081, 0
  %v4098 = vsel %vm4093, %v4082, 0
  %v4101 = vsel %vm4093, %v4083, 0
  %v4104 = vsel %vm4093, %v4084, 0
  %4106 = vmatprep.subr.mxu0 0.0
  %4107 = vmatpush1.msra.mxu0 %v4088
  %4108 = vmatprep.subr.mxu0 0.0
  %4109 = vmatpush1.msra.mxu0 %v4090
  %4110 = vmatprep.subr.mxu0 0.0
  %4111 = vmatpush1.msra.mxu0 0.0
  %4112 = vmatprep.subr.mxu0 0.0
  %4113 = vmatpush1.msra.mxu0 0.0
  %4114 = vmatprep.subr.mxu0 0.0
  %4115 = vmatpush1.msra.mxu0 0.0
  %4116 = vmatprep.subr.mxu0 0.0
  %4117 = vmatpush1.msra.mxu0 0.0
  %4118 = vmatprep.subr.mxu0 0.0
  %4119 = vmatpush1.msra.mxu0 0.0
  %4120 = vmatprep.subr.mxu0 0.0
  %4121 = vmatpush1.msra.mxu0 0.0
  %4122 = vmatprep.subr.mxu0 0.0
  %4123 = vmatpush1.msra.mxu0 0.0
  %4124 = vmatprep.subr.mxu0 0.0
  %4125 = vmatpush1.msra.mxu0 0.0
  %4126 = vmatprep.subr.mxu0 0.0
  %4127 = vmatpush1.msra.mxu0 0.0
  %4128 = vmatprep.subr.mxu0 0.0
  %4129 = vmatpush1.msra.mxu0 0.0
  %4130 = vmatprep.subr.mxu0 0.0
  %4131 = vmatpush1.msra.mxu0 0.0
  %4132 = vmatprep.subr.mxu0 0.0
  %4133 = vmatpush1.msra.mxu0 0.0
  %4134 = vmatprep.subr.mxu0 0.0
  %4135 = vmatpush1.msra.mxu0 0.0
  %4136 = vmatprep.subr.mxu0 0.0
  %4137 = vmatpush1.msra.mxu0 0.0
  %4138 = vmatprep.subr.mxu0 0.0
  %4139 = vmatpush1.msra.mxu0 0.0
  %4140 = vmatprep.subr.mxu0 0.0
  %4141 = vmatpush1.msra.mxu0 0.0
  %4142 = vmatprep.subr.mxu0 0.0
  %4143 = vmatpush1.msra.mxu0 0.0
  %4144 = vmatprep.subr.mxu0 0.0
  %4145 = vmatpush1.msra.mxu0 0.0
  %4146 = vmatprep.subr.mxu0 0.0
  %4147 = vmatpush1.msra.mxu0 0.0
  %4148 = vmatprep.subr.mxu0 0.0
  %4149 = vmatpush1.msra.mxu0 0.0
  %4150 = vmatprep.subr.mxu0 0.0
  %4151 = vmatpush1.msra.mxu0 0.0
  %4152 = vmatprep.subr.mxu0 0.0
  %4153 = vmatpush1.msra.mxu0 0.0
  %4154 = vmatprep.subr.mxu0 0.0
  %4155 = vmatpush1.msra.mxu0 0.0
  %4156 = vmatprep.subr.mxu0 0.0
  %4157 = vmatpush1.msra.mxu0 0.0
  %4158 = vmatprep.subr.mxu0 0.0
  %4159 = vmatpush1.msra.mxu0 0.0
  %4160 = vmatprep.subr.mxu0 0.0
  %4161 = vmatpush1.msra.mxu0 0.0
  %4162 = vmatprep.subr.mxu0 0.0
  %4163 = vmatpush1.msra.mxu0 0.0
  %4164 = vmatprep.subr.mxu0 0.0
  %4165 = vmatpush1.msra.mxu0 0.0
  %4166 = vmatprep.subr.mxu0 0.0
  %4167 = vmatpush1.msra.mxu0 0.0
  %4168 = vmatprep.subr.mxu0 0.0
  %4169 = vmatpush1.msra.mxu0 0.0
  %4170 = vmatprep.mubr.f32.mxu0 0.0
  %4171 = vmatmul.mubr.f32.gmra.mrb[0].mxu0 %v4095
  %v4172 = vpop.f32.mrb[0].mxu0
  %v4173 = vadd.f32 0.0, %v4172
  %v4174 = vpop.f32.mrb[0].mxu0
  %4175 = vmatprep.mubr.f32.mxu0 0.0
  %4176 = vmatmul.mubr.f32.gmra.mrb[0].mxu0 %v4098
  %v4177 = vpop.f32.mrb[0].mxu0
  %v4178 = vadd.f32 0.0, %v4177
  %v4179 = vpop.f32.mrb[0].mxu0
  %4180 = vmatprep.mubr.f32.mxu0 0.0
  %4181 = vmatmul.mubr.f32.gmra.mrb[0].mxu0 %v4101
  %v4182 = vpop.f32.mrb[0].mxu0
  %v4183 = vadd.f32 0.0, %v4182
  %v4184 = vpop.f32.mrb[0].mxu0
  %4185 = vmatprep.mubr.f32.mxu0 0.0
  %4186 = vmatmul.mubr.f32.gmra.mrb[0].mxu0 %v4104
  %v4187 = vpop.f32.mrb[0].mxu0
  %v4188 = vadd.f32 0.0, %v4187
  %v4189 = vpop.f32.mrb[0].mxu0
  %4190 = vdwg.mxu0
  %v4192 = vsel %vm4093, %v4076, 0
  %v4195 = vsel %vm4093, %v4077, 0
  %v4198 = vsel %vm4093, %v4078, 0
  %v4201 = vsel %vm4093, %v4079, 0
  %4203 = vmatprep.subr.mxu0 0.0
  %4204 = vmatpush1.msra.mxu0 %v4054
  %4205 = vmatprep.subr.mxu0 0.0
  %4206 = vmatpush1.msra.mxu0 %v4060
  %4207 = vmatprep.subr.mxu0 0.0
  %4208 = vmatpush1.msra.mxu0 0.0
  %4209 = vmatprep.subr.mxu0 0.0
  %4210 = vmatpush1.msra.mxu0 0.0
  %4211 = vmatprep.subr.mxu0 0.0
  %4212 = vmatpush1.msra.mxu0 0.0
  %4213 = vmatprep.subr.mxu0 0.0
  %4214 = vmatpush1.msra.mxu0 0.0
  %4215 = vmatprep.subr.mxu0 0.0
  %4216 = vmatpush1.msra.mxu0 0.0
  %4217 = vmatprep.subr.mxu0 0.0
  %4218 = vmatpush1.msra.mxu0 0.0
  %4219 = vmatprep.subr.mxu0 0.0
  %4220 = vmatpush1.msra.mxu0 0.0
  %4221 = vmatprep.subr.mxu0 0.0
  %4222 = vmatpush1.msra.mxu0 0.0
  %4223 = vmatprep.subr.mxu0 0.0
  %4224 = vmatpush1.msra.mxu0 0.0
  %4225 = vmatprep.subr.mxu0 0.0
  %4226 = vmatpush1.msra.mxu0 0.0
  %4227 = vmatprep.subr.mxu0 0.0
  %4228 = vmatpush1.msra.mxu0 0.0
  %4229 = vmatprep.subr.mxu0 0.0
  %4230 = vmatpush1.msra.mxu0 0.0
  %4231 = vmatprep.subr.mxu0 0.0
  %4232 = vmatpush1.msra.mxu0 0.0
  %4233 = vmatprep.subr.mxu0 0.0
  %4234 = vmatpush1.msra.mxu0 0.0
  %4235 = vmatprep.subr.mxu0 0.0
  %4236 = vmatpush1.msra.mxu0 0.0
  %4237 = vmatprep.subr.mxu0 0.0
  %4238 = vmatpush1.msra.mxu0 0.0
  %4239 = vmatprep.subr.mxu0 0.0
  %4240 = vmatpush1.msra.mxu0 0.0
  %4241 = vmatprep.subr.mxu0 0.0
  %4242 = vmatpush1.msra.mxu0 0.0
  %4243 = vmatprep.subr.mxu0 0.0
  %4244 = vmatpush1.msra.mxu0 0.0
  %4245 = vmatprep.subr.mxu0 0.0
  %4246 = vmatpush1.msra.mxu0 0.0
  %4247 = vmatprep.subr.mxu0 0.0
  %4248 = vmatpush1.msra.mxu0 0.0
  %4249 = vmatprep.subr.mxu0 0.0
  %4250 = vmatpush1.msra.mxu0 0.0
  %4251 = vmatprep.subr.mxu0 0.0
  %4252 = vmatpush1.msra.mxu0 0.0
  %4253 = vmatprep.subr.mxu0 0.0
  %4254 = vmatpush1.msra.mxu0 0.0
  %4255 = vmatprep.subr.mxu0 0.0
  %4256 = vmatpush1.msra.mxu0 0.0
  %4257 = vmatprep.subr.mxu0 0.0
  %4258 = vmatpush1.msra.mxu0 0.0
  %4259 = vmatprep.subr.mxu0 0.0
  %4260 = vmatpush1.msra.mxu0 0.0
  %4261 = vmatprep.subr.mxu0 0.0
  %4262 = vmatpush1.msra.mxu0 0.0
  %4263 = vmatprep.subr.mxu0 0.0
  %4264 = vmatpush1.msra.mxu0 0.0
  %4265 = vmatprep.subr.mxu0 0.0
  %4266 = vmatpush1.msra.mxu0 0.0
  %4267 = vmatprep.mubr.f32.mxu0 0.0
  %4268 = vmatmul.mubr.f32.gmra.mrb[0].mxu0 %v4192
  %v4269 = vpop.f32.mrb[0].mxu0
  %v4270 = vadd.f32 %v4173, %v4269
  %v4271 = vpop.f32.mrb[0].mxu0
  %4272 = vmatprep.mubr.f32.mxu0 0.0
  %4273 = vmatmul.mubr.f32.gmra.mrb[0].mxu0 %v4195
  %v4274 = vpop.f32.mrb[0].mxu0
  %v4275 = vadd.f32 %v4178, %v4274
  %v4276 = vpop.f32.mrb[0].mxu0
  %4277 = vmatprep.mubr.f32.mxu0 0.0
  %4278 = vmatmul.mubr.f32.gmra.mrb[0].mxu0 %v4198
  %v4279 = vpop.f32.mrb[0].mxu0
  %v4280 = vadd.f32 %v4183, %v4279
  %v4281 = vpop.f32.mrb[0].mxu0
  %4282 = vmatprep.mubr.f32.mxu0 0.0
  %4283 = vmatmul.mubr.f32.gmra.mrb[0].mxu0 %v4201
  %v4284 = vpop.f32.mrb[0].mxu0
  %v4285 = vadd.f32 %v4188, %v4284
  %v4286 = vpop.f32.mrb[0].mxu0
  %4287 = vdwg.mxu0
  %s4288 = scalar_lea.vmem %s8, 64
  %v4289 = vld [vmem:[%s4288] sm:$0xff]
  %v4290 = vld [vmem:[%s4288 + $0x8] sm:$0xff]
  %v4291 = vld [vmem:[%s4288 + $0x10] sm:$0xff]
  %v4292 = vld [vmem:[%s4288 + $0x18] sm:$0xff]
  %4293 = vrot.lane.b32.xlu0 %v4054, 96
  %v4294 = vpop.permute.xlu0 %4293
  %4295 = vrot.lane.b32.xlu0 %v4060, 96
  %v4296 = vpop.permute.xlu0 %4295
  %v4300 = vsel %vm4093, %v4289, 0
  %v4303 = vsel %vm4093, %v4290, 0
  %v4306 = vsel %vm4093, %v4291, 0
  %v4309 = vsel %vm4093, %v4292, 0
  %4311 = vmatprep.subr.mxu0 0.0
  %4312 = vmatpush1.msra.mxu0 %v4294
  %4313 = vmatprep.subr.mxu0 0.0
  %4314 = vmatpush1.msra.mxu0 %v4296
  %4315 = vmatprep.subr.mxu0 0.0
  %4316 = vmatpush1.msra.mxu0 0.0
  %4317 = vmatprep.subr.mxu0 0.0
  %4318 = vmatpush1.msra.mxu0 0.0
  %4319 = vmatprep.subr.mxu0 0.0
  %4320 = vmatpush1.msra.mxu0 0.0
  %4321 = vmatprep.subr.mxu0 0.0
  %4322 = vmatpush1.msra.mxu0 0.0
  %4323 = vmatprep.subr.mxu0 0.0
  %4324 = vmatpush1.msra.mxu0 0.0
  %4325 = vmatprep.subr.mxu0 0.0
  %4326 = vmatpush1.msra.mxu0 0.0
  %4327 = vmatprep.subr.mxu0 0.0
  %4328 = vmatpush1.msra.mxu0 0.0
  %4329 = vmatprep.subr.mxu0 0.0
  %4330 = vmatpush1.msra.mxu0 0.0
  %4331 = vmatprep.subr.mxu0 0.0
  %4332 = vmatpush1.msra.mxu0 0.0
  %4333 = vmatprep.subr.mxu0 0.0
  %4334 = vmatpush1.msra.mxu0 0.0
  %4335 = vmatprep.subr.mxu0 0.0
  %4336 = vmatpush1.msra.mxu0 0.0
  %4337 = vmatprep.subr.mxu0 0.0
  %4338 = vmatpush1.msra.mxu0 0.0
  %4339 = vmatprep.subr.mxu0 0.0
  %4340 = vmatpush1.msra.mxu0 0.0
  %4341 = vmatprep.subr.mxu0 0.0
  %4342 = vmatpush1.msra.mxu0 0.0
  %4343 = vmatprep.subr.mxu0 0.0
  %4344 = vmatpush1.msra.mxu0 0.0
  %4345 = vmatprep.subr.mxu0 0.0
  %4346 = vmatpush1.msra.mxu0 0.0
  %4347 = vmatprep.subr.mxu0 0.0
  %4348 = vmatpush1.msra.mxu0 0.0
  %4349 = vmatprep.subr.mxu0 0.0
  %4350 = vmatpush1.msra.mxu0 0.0
  %4351 = vmatprep.subr.mxu0 0.0
  %4352 = vmatpush1.msra.mxu0 0.0
  %4353 = vmatprep.subr.mxu0 0.0
  %4354 = vmatpush1.msra.mxu0 0.0
  %4355 = vmatprep.subr.mxu0 0.0
  %4356 = vmatpush1.msra.mxu0 0.0
  %4357 = vmatprep.subr.mxu0 0.0
  %4358 = vmatpush1.msra.mxu0 0.0
  %4359 = vmatprep.subr.mxu0 0.0
  %4360 = vmatpush1.msra.mxu0 0.0
  %4361 = vmatprep.subr.mxu0 0.0
  %4362 = vmatpush1.msra.mxu0 0.0
  %4363 = vmatprep.subr.mxu0 0.0
  %4364 = vmatpush1.msra.mxu0 0.0
  %4365 = vmatprep.subr.mxu0 0.0
  %4366 = vmatpush1.msra.mxu0 0.0
  %4367 = vmatprep.subr.mxu0 0.0
  %4368 = vmatpush1.msra.mxu0 0.0
  %4369 = vmatprep.subr.mxu0 0.0
  %4370 = vmatpush1.msra.mxu0 0.0
  %4371 = vmatprep.subr.mxu0 0.0
  %4372 = vmatpush1.msra.mxu0 0.0
  %4373 = vmatprep.subr.mxu0 0.0
  %4374 = vmatpush1.msra.mxu0 0.0
  %4375 = vmatprep.mubr.f32.mxu0 0.0
  %4376 = vmatmul.mubr.f32.gmra.mrb[0].mxu0 %v4300
  %v4377 = vpop.f32.mrb[0].mxu0
  %v4378 = vadd.f32 0.0, %v4377
  %v4379 = vpop.f32.mrb[0].mxu0
  %4380 = vmatprep.mubr.f32.mxu0 0.0
  %4381 = vmatmul.mubr.f32.gmra.mrb[0].mxu0 %v4303
  %v4382 = vpop.f32.mrb[0].mxu0
  %v4383 = vadd.f32 0.0, %v4382
  %v4384 = vpop.f32.mrb[0].mxu0
  %4385 = vmatprep.mubr.f32.mxu0 0.0
  %4386 = vmatmul.mubr.f32.gmra.mrb[0].mxu0 %v4306
  %v4387 = vpop.f32.mrb[0].mxu0
  %v4388 = vadd.f32 0.0, %v4387
  %v4389 = vpop.f32.mrb[0].mxu0
  %4390 = vmatprep.mubr.f32.mxu0 0.0
  %4391 = vmatmul.mubr.f32.gmra.mrb[0].mxu0 %v4309
  %v4392 = vpop.f32.mrb[0].mxu0
  %v4393 = vadd.f32 0.0, %v4392
  %v4394 = vpop.f32.mrb[0].mxu0
  %4395 = vdwg.mxu0
  %v4396 = vadd.f32 %v4270, %v4378
  %v4397 = vadd.f32 %v4275, %v4383
  %v4398 = vadd.f32 %v4280, %v4388
  %v4399 = vadd.f32 %v4285, %v4393
  %s4400 = scalar_lea.vmem %s8, 96
  %v4401 = vld [vmem:[%s4400] sm:$0xff]
  %v4402 = vld [vmem:[%s4400 + $0x8] sm:$0xff]
  %v4403 = vld [vmem:[%s4400 + $0x10] sm:$0xff]
  %v4404 = vld [vmem:[%s4400 + $0x18] sm:$0xff]
  %4405 = vrot.lane.b32.xlu0 %v4054, 80
  %v4406 = vpop.permute.xlu0 %4405
  %4407 = vrot.lane.b32.xlu0 %v4060, 80
  %v4408 = vpop.permute.xlu0 %4407
  %v4412 = vsel %vm4093, %v4401, 0
  %v4415 = vsel %vm4093, %v4402, 0
  %v4418 = vsel %vm4093, %v4403, 0
  %v4421 = vsel %vm4093, %v4404, 0
  %4423 = vmatprep.subr.mxu0 0.0
  %4424 = vmatpush1.msra.mxu0 %v4406
  %4425 = vmatprep.subr.mxu0 0.0
  %4426 = vmatpush1.msra.mxu0 %v4408
  %4427 = vmatprep.subr.mxu0 0.0
  %4428 = vmatpush1.msra.mxu0 0.0
  %4429 = vmatprep.subr.mxu0 0.0
  %4430 = vmatpush1.msra.mxu0 0.0
  %4431 = vmatprep.subr.mxu0 0.0
  %4432 = vmatpush1.msra.mxu0 0.0
  %4433 = vmatprep.subr.mxu0 0.0
  %4434 = vmatpush1.msra.mxu0 0.0
  %4435 = vmatprep.subr.mxu0 0.0
  %4436 = vmatpush1.msra.mxu0 0.0
  %4437 = vmatprep.subr.mxu0 0.0
  %4438 = vmatpush1.msra.mxu0 0.0
  %4439 = vmatprep.subr.mxu0 0.0
  %4440 = vmatpush1.msra.mxu0 0.0
  %4441 = vmatprep.subr.mxu0 0.0
  %4442 = vmatpush1.msra.mxu0 0.0
  %4443 = vmatprep.subr.mxu0 0.0
  %4444 = vmatpush1.msra.mxu0 0.0
  %4445 = vmatprep.subr.mxu0 0.0
  %4446 = vmatpush1.msra.mxu0 0.0
  %4447 = vmatprep.subr.mxu0 0.0
  %4448 = vmatpush1.msra.mxu0 0.0
  %4449 = vmatprep.subr.mxu0 0.0
  %4450 = vmatpush1.msra.mxu0 0.0
  %4451 = vmatprep.subr.mxu0 0.0
  %4452 = vmatpush1.msra.mxu0 0.0
  %4453 = vmatprep.subr.mxu0 0.0
  %4454 = vmatpush1.msra.mxu0 0.0
  %4455 = vmatprep.subr.mxu0 0.0
  %4456 = vmatpush1.msra.mxu0 0.0
  %4457 = vmatprep.subr.mxu0 0.0
  %4458 = vmatpush1.msra.mxu0 0.0
  %4459 = vmatprep.subr.mxu0 0.0
  %4460 = vmatpush1.msra.mxu0 0.0
  %4461 = vmatprep.subr.mxu0 0.0
  %4462 = vmatpush1.msra.mxu0 0.0
  %4463 = vmatprep.subr.mxu0 0.0
  %4464 = vmatpush1.msra.mxu0 0.0
  %4465 = vmatprep.subr.mxu0 0.0
  %4466 = vmatpush1.msra.mxu0 0.0
  %4467 = vmatprep.subr.mxu0 0.0
  %4468 = vmatpush1.msra.mxu0 0.0
  %4469 = vmatprep.subr.mxu0 0.0
  %4470 = vmatpush1.msra.mxu0 0.0
  %4471 = vmatprep.subr.mxu0 0.0
  %4472 = vmatpush1.msra.mxu0 0.0
  %4473 = vmatprep.subr.mxu0 0.0
  %4474 = vmatpush1.msra.mxu0 0.0
  %4475 = vmatprep.subr.mxu0 0.0
  %4476 = vmatpush1.msra.mxu0 0.0
  %4477 = vmatprep.subr.mxu0 0.0
  %4478 = vmatpush1.msra.mxu0 0.0
  %4479 = vmatprep.subr.mxu0 0.0
  %4480 = vmatpush1.msra.mxu0 0.0
  %4481 = vmatprep.subr.mxu0 0.0
  %4482 = vmatpush1.msra.mxu0 0.0
  %4483 = vmatprep.subr.mxu0 0.0
  %4484 = vmatpush1.msra.mxu0 0.0
  %4485 = vmatprep.subr.mxu0 0.0
  %4486 = vmatpush1.msra.mxu0 0.0
  %4487 = vmatprep.mubr.f32.mxu0 0.0
  %4488 = vmatmul.mubr.f32.gmra.mrb[0].mxu0 %v4412
  %v4489 = vpop.f32.mrb[0].mxu0
  %v4490 = vadd.f32 0.0, %v4489
  %v4491 = vpop.f32.mrb[0].mxu0
  %4492 = vmatprep.mubr.f32.mxu0 0.0
  %4493 = vmatmul.mubr.f32.gmra.mrb[0].mxu0 %v4415
  %v4494 = vpop.f32.mrb[0].mxu0
  %v4495 = vadd.f32 0.0, %v4494
  %v4496 = vpop.f32.mrb[0].mxu0
  %4497 = vmatprep.mubr.f32.mxu0 0.0
  %4498 = vmatmul.mubr.f32.gmra.mrb[0].mxu0 %v4418
  %v4499 = vpop.f32.mrb[0].mxu0
  %v4500 = vadd.f32 0.0, %v4499
  %v4501 = vpop.f32.mrb[0].mxu0
  %4502 = vmatprep.mubr.f32.mxu0 0.0
  %4503 = vmatmul.mubr.f32.gmra.mrb[0].mxu0 %v4421
  %v4504 = vpop.f32.mrb[0].mxu0
  %v4505 = vadd.f32 0.0, %v4504
  %v4506 = vpop.f32.mrb[0].mxu0
  %4507 = vdwg.mxu0
  %v4508 = vadd.f32 %v4396, %v4490
  %v4509 = vadd.f32 %v4397, %v4495
  %v4510 = vadd.f32 %v4398, %v4500
  %v4511 = vadd.f32 %v4399, %v4505
  %s4512 = scalar_lea.vmem %s8, 128
  %v4513 = vld [vmem:[%s4512] sm:$0xff]
  %v4514 = vld [vmem:[%s4512 + $0x8] sm:$0xff]
  %v4515 = vld [vmem:[%s4512 + $0x10] sm:$0xff]
  %v4516 = vld [vmem:[%s4512 + $0x18] sm:$0xff]
  %4517 = vrot.lane.b32.xlu0 %v4054, 64
  %v4518 = vpop.permute.xlu0 %4517
  %4519 = vrot.lane.b32.xlu0 %v4060, 64
  %v4520 = vpop.permute.xlu0 %4519
  %v4524 = vsel %vm4093, %v4513, 0
  %v4527 = vsel %vm4093, %v4514, 0
  %v4530 = vsel %vm4093, %v4515, 0
  %v4533 = vsel %vm4093, %v4516, 0
  %4535 = vmatprep.subr.mxu0 0.0
  %4536 = vmatpush1.msra.mxu0 %v4518
  %4537 = vmatprep.subr.mxu0 0.0
  %4538 = vmatpush1.msra.mxu0 %v4520
  %4539 = vmatprep.subr.mxu0 0.0
  %4540 = vmatpush1.msra.mxu0 0.0
  %4541 = vmatprep.subr.mxu0 0.0
  %4542 = vmatpush1.msra.mxu0 0.0
  %4543 = vmatprep.subr.mxu0 0.0
  %4544 = vmatpush1.msra.mxu0 0.0
  %4545 = vmatprep.subr.mxu0 0.0
  %4546 = vmatpush1.msra.mxu0 0.0
  %4547 = vmatprep.subr.mxu0 0.0
  %4548 = vmatpush1.msra.mxu0 0.0
  %4549 = vmatprep.subr.mxu0 0.0
  %4550 = vmatpush1.msra.mxu0 0.0
  %4551 = vmatprep.subr.mxu0 0.0
  %4552 = vmatpush1.msra.mxu0 0.0
  %4553 = vmatprep.subr.mxu0 0.0
  %4554 = vmatpush1.msra.mxu0 0.0
  %4555 = vmatprep.subr.mxu0 0.0
  %4556 = vmatpush1.msra.mxu0 0.0
  %4557 = vmatprep.subr.mxu0 0.0
  %4558 = vmatpush1.msra.mxu0 0.0
  %4559 = vmatprep.subr.mxu0 0.0
  %4560 = vmatpush1.msra.mxu0 0.0
  %4561 = vmatprep.subr.mxu0 0.0
  %4562 = vmatpush1.msra.mxu0 0.0
  %4563 = vmatprep.subr.mxu0 0.0
  %4564 = vmatpush1.msra.mxu0 0.0
  %4565 = vmatprep.subr.mxu0 0.0
  %4566 = vmatpush1.msra.mxu0 0.0
  %4567 = vmatprep.subr.mxu0 0.0
  %4568 = vmatpush1.msra.mxu0 0.0
  %4569 = vmatprep.subr.mxu0 0.0
  %4570 = vmatpush1.msra.mxu0 0.0
  %4571 = vmatprep.subr.mxu0 0.0
  %4572 = vmatpush1.msra.mxu0 0.0
  %4573 = vmatprep.subr.mxu0 0.0
  %4574 = vmatpush1.msra.mxu0 0.0
  %4575 = vmatprep.subr.mxu0 0.0
  %4576 = vmatpush1.msra.mxu0 0.0
  %4577 = vmatprep.subr.mxu0 0.0
  %4578 = vmatpush1.msra.mxu0 0.0
  %4579 = vmatprep.subr.mxu0 0.0
  %4580 = vmatpush1.msra.mxu0 0.0
  %4581 = vmatprep.subr.mxu0 0.0
  %4582 = vmatpush1.msra.mxu0 0.0
  %4583 = vmatprep.subr.mxu0 0.0
  %4584 = vmatpush1.msra.mxu0 0.0
  %4585 = vmatprep.subr.mxu0 0.0
  %4586 = vmatpush1.msra.mxu0 0.0
  %4587 = vmatprep.subr.mxu0 0.0
  %4588 = vmatpush1.msra.mxu0 0.0
  %4589 = vmatprep.subr.mxu0 0.0
  %4590 = vmatpush1.msra.mxu0 0.0
  %4591 = vmatprep.subr.mxu0 0.0
  %4592 = vmatpush1.msra.mxu0 0.0
  %4593 = vmatprep.subr.mxu0 0.0
  %4594 = vmatpush1.msra.mxu0 0.0
  %4595 = vmatprep.subr.mxu0 0.0
  %4596 = vmatpush1.msra.mxu0 0.0
  %4597 = vmatprep.subr.mxu0 0.0
  %4598 = vmatpush1.msra.mxu0 0.0
  %4599 = vmatprep.mubr.f32.mxu0 0.0
  %4600 = vmatmul.mubr.f32.gmra.mrb[0].mxu0 %v4524
  %v4601 = vpop.f32.mrb[0].mxu0
  %v4602 = vadd.f32 0.0, %v4601
  %v4603 = vpop.f32.mrb[0].mxu0
  %4604 = vmatprep.mubr.f32.mxu0 0.0
  %4605 = vmatmul.mubr.f32.gmra.mrb[0].mxu0 %v4527
  %v4606 = vpop.f32.mrb[0].mxu0
  %v4607 = vadd.f32 0.0, %v4606
  %v4608 = vpop.f32.mrb[0].mxu0
  %4609 = vmatprep.mubr.f32.mxu0 0.0
  %4610 = vmatmul.mubr.f32.gmra.mrb[0].mxu0 %v4530
  %v4611 = vpop.f32.mrb[0].mxu0
  %v4612 = vadd.f32 0.0, %v4611
  %v4613 = vpop.f32.mrb[0].mxu0
  %4614 = vmatprep.mubr.f32.mxu0 0.0
  %4615 = vmatmul.mubr.f32.gmra.mrb[0].mxu0 %v4533
  %v4616 = vpop.f32.mrb[0].mxu0
  %v4617 = vadd.f32 0.0, %v4616
  %v4618 = vpop.f32.mrb[0].mxu0
  %4619 = vdwg.mxu0
  %v4620 = vadd.f32 %v4508, %v4602
  %v4621 = vadd.f32 %v4509, %v4607
  %v4622 = vadd.f32 %v4510, %v4612
  %v4623 = vadd.f32 %v4511, %v4617
  %s4624 = scalar_lea.vmem %s8, 160
  %v4625 = vld [vmem:[%s4624] sm:$0xff]
  %v4626 = vld [vmem:[%s4624 + $0x8] sm:$0xff]
  %v4627 = vld [vmem:[%s4624 + $0x10] sm:$0xff]
  %v4628 = vld [vmem:[%s4624 + $0x18] sm:$0xff]
  %4629 = vrot.lane.b32.xlu0 %v4054, 48
  %v4630 = vpop.permute.xlu0 %4629
  %4631 = vrot.lane.b32.xlu0 %v4060, 48
  %v4632 = vpop.permute.xlu0 %4631
  %v4636 = vsel %vm4093, %v4625, 0
  %v4639 = vsel %vm4093, %v4626, 0
  %v4642 = vsel %vm4093, %v4627, 0
  %v4645 = vsel %vm4093, %v4628, 0
  %4647 = vmatprep.subr.mxu0 0.0
  %4648 = vmatpush1.msra.mxu0 %v4630
  %4649 = vmatprep.subr.mxu0 0.0
  %4650 = vmatpush1.msra.mxu0 %v4632
  %4651 = vmatprep.subr.mxu0 0.0
  %4652 = vmatpush1.msra.mxu0 0.0
  %4653 = vmatprep.subr.mxu0 0.0
  %4654 = vmatpush1.msra.mxu0 0.0
  %4655 = vmatprep.subr.mxu0 0.0
  %4656 = vmatpush1.msra.mxu0 0.0
  %4657 = vmatprep.subr.mxu0 0.0
  %4658 = vmatpush1.msra.mxu0 0.0
  %4659 = vmatprep.subr.mxu0 0.0
  %4660 = vmatpush1.msra.mxu0 0.0
  %4661 = vmatprep.subr.mxu0 0.0
  %4662 = vmatpush1.msra.mxu0 0.0
  %4663 = vmatprep.subr.mxu0 0.0
  %4664 = vmatpush1.msra.mxu0 0.0
  %4665 = vmatprep.subr.mxu0 0.0
  %4666 = vmatpush1.msra.mxu0 0.0
  %4667 = vmatprep.subr.mxu0 0.0
  %4668 = vmatpush1.msra.mxu0 0.0
  %4669 = vmatprep.subr.mxu0 0.0
  %4670 = vmatpush1.msra.mxu0 0.0
  %4671 = vmatprep.subr.mxu0 0.0
  %4672 = vmatpush1.msra.mxu0 0.0
  %4673 = vmatprep.subr.mxu0 0.0
  %4674 = vmatpush1.msra.mxu0 0.0
  %4675 = vmatprep.subr.mxu0 0.0
  %4676 = vmatpush1.msra.mxu0 0.0
  %4677 = vmatprep.subr.mxu0 0.0
  %4678 = vmatpush1.msra.mxu0 0.0
  %4679 = vmatprep.subr.mxu0 0.0
  %4680 = vmatpush1.msra.mxu0 0.0
  %4681 = vmatprep.subr.mxu0 0.0
  %4682 = vmatpush1.msra.mxu0 0.0
  %4683 = vmatprep.subr.mxu0 0.0
  %4684 = vmatpush1.msra.mxu0 0.0
  %4685 = vmatprep.subr.mxu0 0.0
  %4686 = vmatpush1.msra.mxu0 0.0
  %4687 = vmatprep.subr.mxu0 0.0
  %4688 = vmatpush1.msra.mxu0 0.0
  %4689 = vmatprep.subr.mxu0 0.0
  %4690 = vmatpush1.msra.mxu0 0.0
  %4691 = vmatprep.subr.mxu0 0.0
  %4692 = vmatpush1.msra.mxu0 0.0
  %4693 = vmatprep.subr.mxu0 0.0
  %4694 = vmatpush1.msra.mxu0 0.0
  %4695 = vmatprep.subr.mxu0 0.0
  %4696 = vmatpush1.msra.mxu0 0.0
  %4697 = vmatprep.subr.mxu0 0.0
  %4698 = vmatpush1.msra.mxu0 0.0
  %4699 = vmatprep.subr.mxu0 0.0
  %4700 = vmatpush1.msra.mxu0 0.0
  %4701 = vmatprep.subr.mxu0 0.0
  %4702 = vmatpush1.msra.mxu0 0.0
  %4703 = vmatprep.subr.mxu0 0.0
  %4704 = vmatpush1.msra.mxu0 0.0
  %4705 = vmatprep.subr.mxu0 0.0
  %4706 = vmatpush1.msra.mxu0 0.0
  %4707 = vmatprep.subr.mxu0 0.0
  %4708 = vmatpush1.msra.mxu0 0.0
  %4709 = vmatprep.subr.mxu0 0.0
  %4710 = vmatpush1.msra.mxu0 0.0
  %4711 = vmatprep.mubr.f32.mxu0 0.0
  %4712 = vmatmul.mubr.f32.gmra.mrb[0].mxu0 %v4636
  %v4713 = vpop.f32.mrb[0].mxu0
  %v4714 = vadd.f32 0.0, %v4713
  %v4715 = vpop.f32.mrb[0].mxu0
  %4716 = vmatprep.mubr.f32.mxu0 0.0
  %4717 = vmatmul.mubr.f32.gmra.mrb[0].mxu0 %v4639
  %v4718 = vpop.f32.mrb[0].mxu0
  %v4719 = vadd.f32 0.0, %v4718
  %v4720 = vpop.f32.mrb[0].mxu0
  %4721 = vmatprep.mubr.f32.mxu0 0.0
  %4722 = vmatmul.mubr.f32.gmra.mrb[0].mxu0 %v4642
  %v4723 = vpop.f32.mrb[0].mxu0
  %v4724 = vadd.f32 0.0, %v4723
  %v4725 = vpop.f32.mrb[0].mxu0
  %4726 = vmatprep.mubr.f32.mxu0 0.0
  %4727 = vmatmul.mubr.f32.gmra.mrb[0].mxu0 %v4645
  %v4728 = vpop.f32.mrb[0].mxu0
  %v4729 = vadd.f32 0.0, %v4728
  %v4730 = vpop.f32.mrb[0].mxu0
  %4731 = vdwg.mxu0
  %v4732 = vadd.f32 %v4620, %v4714
  %v4733 = vadd.f32 %v4621, %v4719
  %v4734 = vadd.f32 %v4622, %v4724
  %v4735 = vadd.f32 %v4623, %v4729
  %s4736 = scalar_lea.vmem %s8, 192
  %v4737 = vld [vmem:[%s4736] sm:$0xff]
  %v4738 = vld [vmem:[%s4736 + $0x8] sm:$0xff]
  %v4739 = vld [vmem:[%s4736 + $0x10] sm:$0xff]
  %v4740 = vld [vmem:[%s4736 + $0x18] sm:$0xff]
  %4741 = vrot.lane.b32.xlu0 %v4054, 32
  %v4742 = vpop.permute.xlu0 %4741
  %4743 = vrot.lane.b32.xlu0 %v4060, 32
  %v4744 = vpop.permute.xlu0 %4743
  %v4748 = vsel %vm4093, %v4737, 0
  %v4751 = vsel %vm4093, %v4738, 0
  %v4754 = vsel %vm4093, %v4739, 0
  %v4757 = vsel %vm4093, %v4740, 0
  %4759 = vmatprep.subr.mxu0 0.0
  %4760 = vmatpush1.msra.mxu0 %v4742
  %4761 = vmatprep.subr.mxu0 0.0
  %4762 = vmatpush1.msra.mxu0 %v4744
  %4763 = vmatprep.subr.mxu0 0.0
  %4764 = vmatpush1.msra.mxu0 0.0
  %4765 = vmatprep.subr.mxu0 0.0
  %4766 = vmatpush1.msra.mxu0 0.0
  %4767 = vmatprep.subr.mxu0 0.0
  %4768 = vmatpush1.msra.mxu0 0.0
  %4769 = vmatprep.subr.mxu0 0.0
  %4770 = vmatpush1.msra.mxu0 0.0
  %4771 = vmatprep.subr.mxu0 0.0
  %4772 = vmatpush1.msra.mxu0 0.0
  %4773 = vmatprep.subr.mxu0 0.0
  %4774 = vmatpush1.msra.mxu0 0.0
  %4775 = vmatprep.subr.mxu0 0.0
  %4776 = vmatpush1.msra.mxu0 0.0
  %4777 = vmatprep.subr.mxu0 0.0
  %4778 = vmatpush1.msra.mxu0 0.0
  %4779 = vmatprep.subr.mxu0 0.0
  %4780 = vmatpush1.msra.mxu0 0.0
  %4781 = vmatprep.subr.mxu0 0.0
  %4782 = vmatpush1.msra.mxu0 0.0
  %4783 = vmatprep.subr.mxu0 0.0
  %4784 = vmatpush1.msra.mxu0 0.0
  %4785 = vmatprep.subr.mxu0 0.0
  %4786 = vmatpush1.msra.mxu0 0.0
  %4787 = vmatprep.subr.mxu0 0.0
  %4788 = vmatpush1.msra.mxu0 0.0
  %4789 = vmatprep.subr.mxu0 0.0
  %4790 = vmatpush1.msra.mxu0 0.0
  %4791 = vmatprep.subr.mxu0 0.0
  %4792 = vmatpush1.msra.mxu0 0.0
  %4793 = vmatprep.subr.mxu0 0.0
  %4794 = vmatpush1.msra.mxu0 0.0
  %4795 = vmatprep.subr.mxu0 0.0
  %4796 = vmatpush1.msra.mxu0 0.0
  %4797 = vmatprep.subr.mxu0 0.0
  %4798 = vmatpush1.msra.mxu0 0.0
  %4799 = vmatprep.subr.mxu0 0.0
  %4800 = vmatpush1.msra.mxu0 0.0
  %4801 = vmatprep.subr.mxu0 0.0
  %4802 = vmatpush1.msra.mxu0 0.0
  %4803 = vmatprep.subr.mxu0 0.0
  %4804 = vmatpush1.msra.mxu0 0.0
  %4805 = vmatprep.subr.mxu0 0.0
  %4806 = vmatpush1.msra.mxu0 0.0
  %4807 = vmatprep.subr.mxu0 0.0
  %4808 = vmatpush1.msra.mxu0 0.0
  %4809 = vmatprep.subr.mxu0 0.0
  %4810 = vmatpush1.msra.mxu0 0.0
  %4811 = vmatprep.subr.mxu0 0.0
  %4812 = vmatpush1.msra.mxu0 0.0
  %4813 = vmatprep.subr.mxu0 0.0
  %4814 = vmatpush1.msra.mxu0 0.0
  %4815 = vmatprep.subr.mxu0 0.0
  %4816 = vmatpush1.msra.mxu0 0.0
  %4817 = vmatprep.subr.mxu0 0.0
  %4818 = vmatpush1.msra.mxu0 0.0
  %4819 = vmatprep.subr.mxu0 0.0
  %4820 = vmatpush1.msra.mxu0 0.0
  %4821 = vmatprep.subr.mxu0 0.0
  %4822 = vmatpush1.msra.mxu0 0.0
  %4823 = vmatprep.mubr.f32.mxu0 0.0
  %4824 = vmatmul.mubr.f32.gmra.mrb[0].mxu0 %v4748
  %v4825 = vpop.f32.mrb[0].mxu0
  %v4826 = vadd.f32 0.0, %v4825
  %v4827 = vpop.f32.mrb[0].mxu0
  %4828 = vmatprep.mubr.f32.mxu0 0.0
  %4829 = vmatmul.mubr.f32.gmra.mrb[0].mxu0 %v4751
  %v4830 = vpop.f32.mrb[0].mxu0
  %v4831 = vadd.f32 0.0, %v4830
  %v4832 = vpop.f32.mrb[0].mxu0
  %4833 = vmatprep.mubr.f32.mxu0 0.0
  %4834 = vmatmul.mubr.f32.gmra.mrb[0].mxu0 %v4754
  %v4835 = vpop.f32.mrb[0].mxu0
  %v4836 = vadd.f32 0.0, %v4835
  %v4837 = vpop.f32.mrb[0].mxu0
  %4838 = vmatprep.mubr.f32.mxu0 0.0
  %4839 = vmatmul.mubr.f32.gmra.mrb[0].mxu0 %v4757
  %v4840 = vpop.f32.mrb[0].mxu0
  %v4841 = vadd.f32 0.0, %v4840
  %v4842 = vpop.f32.mrb[0].mxu0
  %4843 = vdwg.mxu0
  %v4844 = vadd.f32 %v4732, %v4826
  %v4845 = vadd.f32 %v4733, %v4831
  %v4846 = vadd.f32 %v4734, %v4836
  %v4847 = vadd.f32 %v4735, %v4841
  %s4848 = scalar_lea.vmem %s8, 224
  %v4849 = vld [vmem:[%s4848] sm:$0xff]
  %v4850 = vld [vmem:[%s4848 + $0x8] sm:$0xff]
  %v4851 = vld [vmem:[%s4848 + $0x10] sm:$0xff]
  %v4852 = vld [vmem:[%s4848 + $0x18] sm:$0xff]
  %4853 = vrot.lane.b32.xlu0 %v4054, 16
  %v4854 = vpop.permute.xlu0 %4853
  %4855 = vrot.lane.b32.xlu0 %v4060, 16
  %v4856 = vpop.permute.xlu0 %4855
  %v4860 = vsel %vm4093, %v4849, 0
  %v4863 = vsel %vm4093, %v4850, 0
  %v4866 = vsel %vm4093, %v4851, 0
  %v4869 = vsel %vm4093, %v4852, 0
  %4871 = vmatprep.subr.mxu0 0.0
  %4872 = vmatpush1.msra.mxu0 %v4854
  %4873 = vmatprep.subr.mxu0 0.0
  %4874 = vmatpush1.msra.mxu0 %v4856
  %4875 = vmatprep.subr.mxu0 0.0
  %4876 = vmatpush1.msra.mxu0 0.0
  %4877 = vmatprep.subr.mxu0 0.0
  %4878 = vmatpush1.msra.mxu0 0.0
  %4879 = vmatprep.subr.mxu0 0.0
  %4880 = vmatpush1.msra.mxu0 0.0
  %4881 = vmatprep.subr.mxu0 0.0
  %4882 = vmatpush1.msra.mxu0 0.0
  %4883 = vmatprep.subr.mxu0 0.0
  %4884 = vmatpush1.msra.mxu0 0.0
  %4885 = vmatprep.subr.mxu0 0.0
  %4886 = vmatpush1.msra.mxu0 0.0
  %4887 = vmatprep.subr.mxu0 0.0
  %4888 = vmatpush1.msra.mxu0 0.0
  %4889 = vmatprep.subr.mxu0 0.0
  %4890 = vmatpush1.msra.mxu0 0.0
  %4891 = vmatprep.subr.mxu0 0.0
  %4892 = vmatpush1.msra.mxu0 0.0
  %4893 = vmatprep.subr.mxu0 0.0
  %4894 = vmatpush1.msra.mxu0 0.0
  %4895 = vmatprep.subr.mxu0 0.0
  %4896 = vmatpush1.msra.mxu0 0.0
  %4897 = vmatprep.subr.mxu0 0.0
  %4898 = vmatpush1.msra.mxu0 0.0
  %4899 = vmatprep.subr.mxu0 0.0
  %4900 = vmatpush1.msra.mxu0 0.0
  %4901 = vmatprep.subr.mxu0 0.0
  %4902 = vmatpush1.msra.mxu0 0.0
  %4903 = vmatprep.subr.mxu0 0.0
  %4904 = vmatpush1.msra.mxu0 0.0
  %4905 = vmatprep.subr.mxu0 0.0
  %4906 = vmatpush1.msra.mxu0 0.0
  %4907 = vmatprep.subr.mxu0 0.0
  %4908 = vmatpush1.msra.mxu0 0.0
  %4909 = vmatprep.subr.mxu0 0.0
  %4910 = vmatpush1.msra.mxu0 0.0
  %4911 = vmatprep.subr.mxu0 0.0
  %4912 = vmatpush1.msra.mxu0 0.0
  %4913 = vmatprep.subr.mxu0 0.0
  %4914 = vmatpush1.msra.mxu0 0.0
  %4915 = vmatprep.subr.mxu0 0.0
  %4916 = vmatpush1.msra.mxu0 0.0
  %4917 = vmatprep.subr.mxu0 0.0
  %4918 = vmatpush1.msra.mxu0 0.0
  %4919 = vmatprep.subr.mxu0 0.0
  %4920 = vmatpush1.msra.mxu0 0.0
  %4921 = vmatprep.subr.mxu0 0.0
  %4922 = vmatpush1.msra.mxu0 0.0
  %4923 = vmatprep.subr.mxu0 0.0
  %4924 = vmatpush1.msra.mxu0 0.0
  %4925 = vmatprep.subr.mxu0 0.0
  %4926 = vmatpush1.msra.mxu0 0.0
  %4927 = vmatprep.subr.mxu0 0.0
  %4928 = vmatpush1.msra.mxu0 0.0
  %4929 = vmatprep.subr.mxu0 0.0
  %4930 = vmatpush1.msra.mxu0 0.0
  %4931 = vmatprep.subr.mxu0 0.0
  %4932 = vmatpush1.msra.mxu0 0.0
  %4933 = vmatprep.subr.mxu0 0.0
  %4934 = vmatpush1.msra.mxu0 0.0
  %4935 = vmatprep.mubr.f32.mxu0 0.0
  %4936 = vmatmul.mubr.f32.gmra.mrb[0].mxu0 %v4860
  %v4937 = vpop.f32.mrb[0].mxu0
  %v4938 = vadd.f32 0.0, %v4937
  %v4939 = vpop.f32.mrb[0].mxu0
  %4940 = vmatprep.mubr.f32.mxu0 0.0
  %4941 = vmatmul.mubr.f32.gmra.mrb[0].mxu0 %v4863
  %v4942 = vpop.f32.mrb[0].mxu0
  %v4943 = vadd.f32 0.0, %v4942
  %v4944 = vpop.f32.mrb[0].mxu0
  %4945 = vmatprep.mubr.f32.mxu0 0.0
  %4946 = vmatmul.mubr.f32.gmra.mrb[0].mxu0 %v4866
  %v4947 = vpop.f32.mrb[0].mxu0
  %v4948 = vadd.f32 0.0, %v4947
  %v4949 = vpop.f32.mrb[0].mxu0
  %4950 = vmatprep.mubr.f32.mxu0 0.0
  %4951 = vmatmul.mubr.f32.gmra.mrb[0].mxu0 %v4869
  %v4952 = vpop.f32.mrb[0].mxu0
  %v4953 = vadd.f32 0.0, %v4952
  %v4954 = vpop.f32.mrb[0].mxu0
  %4955 = vdwg.mxu0
  %v4956 = vadd.f32 %v4844, %v4938
  %v4957 = vadd.f32 %v4845, %v4943
  %v4958 = vadd.f32 %v4846, %v4948
  %v4959 = vadd.f32 %v4847, %v4953
  %s4960 = scalar_lea.vmem %s8, 256
  %v4961 = vld [vmem:[%s4960] sm:$0xff]
  %v4962 = vld [vmem:[%s4960 + $0x8] sm:$0xff]
  %v4963 = vld [vmem:[%s4960 + $0x10] sm:$0xff]
  %v4964 = vld [vmem:[%s4960 + $0x18] sm:$0xff]
  %v4966 = vsel %vm4093, %v4961, 0
  %v4969 = vsel %vm4093, %v4962, 0
  %v4972 = vsel %vm4093, %v4963, 0
  %v4975 = vsel %vm4093, %v4964, 0
  %4977 = vmatprep.subr.mxu0 0.0
  %4978 = vmatpush1.msra.mxu0 %v4056
  %4979 = vmatprep.subr.mxu0 0.0
  %4980 = vmatpush1.msra.mxu0 %v4062
  %4981 = vmatprep.subr.mxu0 0.0
  %4982 = vmatpush1.msra.mxu0 0.0
  %4983 = vmatprep.subr.mxu0 0.0
  %4984 = vmatpush1.msra.mxu0 0.0
  %4985 = vmatprep.subr.mxu0 0.0
  %4986 = vmatpush1.msra.mxu0 0.0
  %4987 = vmatprep.subr.mxu0 0.0
  %4988 = vmatpush1.msra.mxu0 0.0
  %4989 = vmatprep.subr.mxu0 0.0
  %4990 = vmatpush1.msra.mxu0 0.0
  %4991 = vmatprep.subr.mxu0 0.0
  %4992 = vmatpush1.msra.mxu0 0.0
  %4993 = vmatprep.subr.mxu0 0.0
  %4994 = vmatpush1.msra.mxu0 0.0
  %4995 = vmatprep.subr.mxu0 0.0
  %4996 = vmatpush1.msra.mxu0 0.0
  %4997 = vmatprep.subr.mxu0 0.0
  %4998 = vmatpush1.msra.mxu0 0.0
  %4999 = vmatprep.subr.mxu0 0.0
  %5000 = vmatpush1.msra.mxu0 0.0
  %5001 = vmatprep.subr.mxu0 0.0
  %5002 = vmatpush1.msra.mxu0 0.0
  %5003 = vmatprep.subr.mxu0 0.0
  %5004 = vmatpush1.msra.mxu0 0.0
  %5005 = vmatprep.subr.mxu0 0.0
  %5006 = vmatpush1.msra.mxu0 0.0
  %5007 = vmatprep.subr.mxu0 0.0
  %5008 = vmatpush1.msra.mxu0 0.0
  %5009 = vmatprep.subr.mxu0 0.0
  %5010 = vmatpush1.msra.mxu0 0.0
  %5011 = vmatprep.subr.mxu0 0.0
  %5012 = vmatpush1.msra.mxu0 0.0
  %5013 = vmatprep.subr.mxu0 0.0
  %5014 = vmatpush1.msra.mxu0 0.0
  %5015 = vmatprep.subr.mxu0 0.0
  %5016 = vmatpush1.msra.mxu0 0.0
  %5017 = vmatprep.subr.mxu0 0.0
  %5018 = vmatpush1.msra.mxu0 0.0
  %5019 = vmatprep.subr.mxu0 0.0
  %5020 = vmatpush1.msra.mxu0 0.0
  %5021 = vmatprep.subr.mxu0 0.0
  %5022 = vmatpush1.msra.mxu0 0.0
  %5023 = vmatprep.subr.mxu0 0.0
  %5024 = vmatpush1.msra.mxu0 0.0
  %5025 = vmatprep.subr.mxu0 0.0
  %5026 = vmatpush1.msra.mxu0 0.0
  %5027 = vmatprep.subr.mxu0 0.0
  %5028 = vmatpush1.msra.mxu0 0.0
  %5029 = vmatprep.subr.mxu0 0.0
  %5030 = vmatpush1.msra.mxu0 0.0
  %5031 = vmatprep.subr.mxu0 0.0
  %5032 = vmatpush1.msra.mxu0 0.0
  %5033 = vmatprep.subr.mxu0 0.0
  %5034 = vmatpush1.msra.mxu0 0.0
  %5035 = vmatprep.subr.mxu0 0.0
  %5036 = vmatpush1.msra.mxu0 0.0
  %5037 = vmatprep.subr.mxu0 0.0
  %5038 = vmatpush1.msra.mxu0 0.0
  %5039 = vmatprep.subr.mxu0 0.0
  %5040 = vmatpush1.msra.mxu0 0.0
  %5041 = vmatprep.mubr.f32.mxu0 0.0
  %5042 = vmatmul.mubr.f32.gmra.mrb[0].mxu0 %v4966
  %v5043 = vpop.f32.mrb[0].mxu0
  %v5044 = vadd.f32 0.0, %v5043
  %v5045 = vpop.f32.mrb[0].mxu0
  %5046 = vmatprep.mubr.f32.mxu0 0.0
  %5047 = vmatmul.mubr.f32.gmra.mrb[0].mxu0 %v4969
  %v5048 = vpop.f32.mrb[0].mxu0
  %v5049 = vadd.f32 0.0, %v5048
  %v5050 = vpop.f32.mrb[0].mxu0
  %5051 = vmatprep.mubr.f32.mxu0 0.0
  %5052 = vmatmul.mubr.f32.gmra.mrb[0].mxu0 %v4972
  %v5053 = vpop.f32.mrb[0].mxu0
  %v5054 = vadd.f32 0.0, %v5053
  %v5055 = vpop.f32.mrb[0].mxu0
  %5056 = vmatprep.mubr.f32.mxu0 0.0
  %5057 = vmatmul.mubr.f32.gmra.mrb[0].mxu0 %v4975
  %v5058 = vpop.f32.mrb[0].mxu0
  %v5059 = vadd.f32 0.0, %v5058
  %v5060 = vpop.f32.mrb[0].mxu0
  %5061 = vdwg.mxu0
  %v5062 = vadd.f32 %v4956, %v5044
  %v5063 = vadd.f32 %v4957, %v5049
  %v5064 = vadd.f32 %v4958, %v5054
  %v5065 = vadd.f32 %v4959, %v5059
  %s5066 = scalar_lea.vmem %s8, 288
  %v5067 = vld [vmem:[%s5066] sm:$0xff]
  %v5068 = vld [vmem:[%s5066 + $0x8] sm:$0xff]
  %v5069 = vld [vmem:[%s5066 + $0x10] sm:$0xff]
  %v5070 = vld [vmem:[%s5066 + $0x18] sm:$0xff]
  %5073 = vrot.lane.b32.xlu0 %v4056, 112
  %v5074 = vpop.permute.xlu0 %5073
  %5075 = vrot.lane.b32.xlu0 %v4062, 112
  %v5076 = vpop.permute.xlu0 %5075
  %v5080 = vsel %vm4093, %v5067, 0
  %v5083 = vsel %vm4093, %v5068, 0
  %v5086 = vsel %vm4093, %v5069, 0
  %v5089 = vsel %vm4093, %v5070, 0
  %5091 = vmatprep.subr.mxu0 0.0
  %5092 = vmatpush1.msra.mxu0 %v5074
  %5093 = vmatprep.subr.mxu0 0.0
  %5094 = vmatpush1.msra.mxu0 %v5076
  %5095 = vmatprep.subr.mxu0 0.0
  %5096 = vmatpush1.msra.mxu0 0.0
  %5097 = vmatprep.subr.mxu0 0.0
  %5098 = vmatpush1.msra.mxu0 0.0
  %5099 = vmatprep.subr.mxu0 0.0
  %5100 = vmatpush1.msra.mxu0 0.0
  %5101 = vmatprep.subr.mxu0 0.0
  %5102 = vmatpush1.msra.mxu0 0.0
  %5103 = vmatprep.subr.mxu0 0.0
  %5104 = vmatpush1.msra.mxu0 0.0
  %5105 = vmatprep.subr.mxu0 0.0
  %5106 = vmatpush1.msra.mxu0 0.0
  %5107 = vmatprep.subr.mxu0 0.0
  %5108 = vmatpush1.msra.mxu0 0.0
  %5109 = vmatprep.subr.mxu0 0.0
  %5110 = vmatpush1.msra.mxu0 0.0
  %5111 = vmatprep.subr.mxu0 0.0
  %5112 = vmatpush1.msra.mxu0 0.0
  %5113 = vmatprep.subr.mxu0 0.0
  %5114 = vmatpush1.msra.mxu0 0.0
  %5115 = vmatprep.subr.mxu0 0.0
  %5116 = vmatpush1.msra.mxu0 0.0
  %5117 = vmatprep.subr.mxu0 0.0
  %5118 = vmatpush1.msra.mxu0 0.0
  %5119 = vmatprep.subr.mxu0 0.0
  %5120 = vmatpush1.msra.mxu0 0.0
  %5121 = vmatprep.subr.mxu0 0.0
  %5122 = vmatpush1.msra.mxu0 0.0
  %5123 = vmatprep.subr.mxu0 0.0
  %5124 = vmatpush1.msra.mxu0 0.0
  %5125 = vmatprep.subr.mxu0 0.0
  %5126 = vmatpush1.msra.mxu0 0.0
  %5127 = vmatprep.subr.mxu0 0.0
  %5128 = vmatpush1.msra.mxu0 0.0
  %5129 = vmatprep.subr.mxu0 0.0
  %5130 = vmatpush1.msra.mxu0 0.0
  %5131 = vmatprep.subr.mxu0 0.0
  %5132 = vmatpush1.msra.mxu0 0.0
  %5133 = vmatprep.subr.mxu0 0.0
  %5134 = vmatpush1.msra.mxu0 0.0
  %5135 = vmatprep.subr.mxu0 0.0
  %5136 = vmatpush1.msra.mxu0 0.0
  %5137 = vmatprep.subr.mxu0 0.0
  %5138 = vmatpush1.msra.mxu0 0.0
  %5139 = vmatprep.subr.mxu0 0.0
  %5140 = vmatpush1.msra.mxu0 0.0
  %5141 = vmatprep.subr.mxu0 0.0
  %5142 = vmatpush1.msra.mxu0 0.0
  %5143 = vmatprep.subr.mxu0 0.0
  %5144 = vmatpush1.msra.mxu0 0.0
  %5145 = vmatprep.subr.mxu0 0.0
  %5146 = vmatpush1.msra.mxu0 0.0
  %5147 = vmatprep.subr.mxu0 0.0
  %5148 = vmatpush1.msra.mxu0 0.0
  %5149 = vmatprep.subr.mxu0 0.0
  %5150 = vmatpush1.msra.mxu0 0.0
  %5151 = vmatprep.subr.mxu0 0.0
  %5152 = vmatpush1.msra.mxu0 0.0
  %5153 = vmatprep.subr.mxu0 0.0
  %5154 = vmatpush1.msra.mxu0 0.0
  %5155 = vmatprep.mubr.f32.mxu0 0.0
  %5156 = vmatmul.mubr.f32.gmra.mrb[0].mxu0 %v5080
  %v5157 = vpop.f32.mrb[0].mxu0
  %v5158 = vadd.f32 0.0, %v5157
  %v5159 = vpop.f32.mrb[0].mxu0
  %5160 = vmatprep.mubr.f32.mxu0 0.0
  %5161 = vmatmul.mubr.f32.gmra.mrb[0].mxu0 %v5083
  %v5162 = vpop.f32.mrb[0].mxu0
  %v5163 = vadd.f32 0.0, %v5162
  %v5164 = vpop.f32.mrb[0].mxu0
  %5165 = vmatprep.mubr.f32.mxu0 0.0
  %5166 = vmatmul.mubr.f32.gmra.mrb[0].mxu0 %v5086
  %v5167 = vpop.f32.mrb[0].mxu0
  %v5168 = vadd.f32 0.0, %v5167
  %v5169 = vpop.f32.mrb[0].mxu0
  %5170 = vmatprep.mubr.f32.mxu0 0.0
  %5171 = vmatmul.mubr.f32.gmra.mrb[0].mxu0 %v5089
  %v5172 = vpop.f32.mrb[0].mxu0
  %v5173 = vadd.f32 0.0, %v5172
  %v5174 = vpop.f32.mrb[0].mxu0
  %5175 = vdwg.mxu0
  %v5176 = vadd.f32 %v5062, %v5158
  %v5177 = vadd.f32 %v5063, %v5163
  %v5178 = vadd.f32 %v5064, %v5168
  %v5179 = vadd.f32 %v5065, %v5173
  %s5180 = scalar_lea.vmem %s8, 320
  %v5181 = vld [vmem:[%s5180] sm:$0xff]
  %v5182 = vld [vmem:[%s5180 + $0x8] sm:$0xff]
  %v5183 = vld [vmem:[%s5180 + $0x10] sm:$0xff]
  %v5184 = vld [vmem:[%s5180 + $0x18] sm:$0xff]
  %5185 = vrot.lane.b32.xlu0 %v4056, 96
  %v5186 = vpop.permute.xlu0 %5185
  %5187 = vrot.lane.b32.xlu0 %v4062, 96
  %v5188 = vpop.permute.xlu0 %5187
  %v5192 = vsel %vm4093, %v5181, 0
  %v5195 = vsel %vm4093, %v5182, 0
  %v5198 = vsel %vm4093, %v5183, 0
  %v5201 = vsel %vm4093, %v5184, 0
  %5203 = vmatprep.subr.mxu0 0.0
  %5204 = vmatpush1.msra.mxu0 %v5186
  %5205 = vmatprep.subr.mxu0 0.0
  %5206 = vmatpush1.msra.mxu0 %v5188
  %5207 = vmatprep.subr.mxu0 0.0
  %5208 = vmatpush1.msra.mxu0 0.0
  %5209 = vmatprep.subr.mxu0 0.0
  %5210 = vmatpush1.msra.mxu0 0.0
  %5211 = vmatprep.subr.mxu0 0.0
  %5212 = vmatpush1.msra.mxu0 0.0
  %5213 = vmatprep.subr.mxu0 0.0
  %5214 = vmatpush1.msra.mxu0 0.0
  %5215 = vmatprep.subr.mxu0 0.0
  %5216 = vmatpush1.msra.mxu0 0.0
  %5217 = vmatprep.subr.mxu0 0.0
  %5218 = vmatpush1.msra.mxu0 0.0
  %5219 = vmatprep.subr.mxu0 0.0
  %5220 = vmatpush1.msra.mxu0 0.0
  %5221 = vmatprep.subr.mxu0 0.0
  %5222 = vmatpush1.msra.mxu0 0.0
  %5223 = vmatprep.subr.mxu0 0.0
  %5224 = vmatpush1.msra.mxu0 0.0
  %5225 = vmatprep.subr.mxu0 0.0
  %5226 = vmatpush1.msra.mxu0 0.0
  %5227 = vmatprep.subr.mxu0 0.0
  %5228 = vmatpush1.msra.mxu0 0.0
  %5229 = vmatprep.subr.mxu0 0.0
  %5230 = vmatpush1.msra.mxu0 0.0
  %5231 = vmatprep.subr.mxu0 0.0
  %5232 = vmatpush1.msra.mxu0 0.0
  %5233 = vmatprep.subr.mxu0 0.0
  %5234 = vmatpush1.msra.mxu0 0.0
  %5235 = vmatprep.subr.mxu0 0.0
  %5236 = vmatpush1.msra.mxu0 0.0
  %5237 = vmatprep.subr.mxu0 0.0
  %5238 = vmatpush1.msra.mxu0 0.0
  %5239 = vmatprep.subr.mxu0 0.0
  %5240 = vmatpush1.msra.mxu0 0.0
  %5241 = vmatprep.subr.mxu0 0.0
  %5242 = vmatpush1.msra.mxu0 0.0
  %5243 = vmatprep.subr.mxu0 0.0
  %5244 = vmatpush1.msra.mxu0 0.0
  %5245 = vmatprep.subr.mxu0 0.0
  %5246 = vmatpush1.msra.mxu0 0.0
  %5247 = vmatprep.subr.mxu0 0.0
  %5248 = vmatpush1.msra.mxu0 0.0
  %5249 = vmatprep.subr.mxu0 0.0
  %5250 = vmatpush1.msra.mxu0 0.0
  %5251 = vmatprep.subr.mxu0 0.0
  %5252 = vmatpush1.msra.mxu0 0.0
  %5253 = vmatprep.subr.mxu0 0.0
  %5254 = vmatpush1.msra.mxu0 0.0
  %5255 = vmatprep.subr.mxu0 0.0
  %5256 = vmatpush1.msra.mxu0 0.0
  %5257 = vmatprep.subr.mxu0 0.0
  %5258 = vmatpush1.msra.mxu0 0.0
  %5259 = vmatprep.subr.mxu0 0.0
  %5260 = vmatpush1.msra.mxu0 0.0
  %5261 = vmatprep.subr.mxu0 0.0
  %5262 = vmatpush1.msra.mxu0 0.0
  %5263 = vmatprep.subr.mxu0 0.0
  %5264 = vmatpush1.msra.mxu0 0.0
  %5265 = vmatprep.subr.mxu0 0.0
  %5266 = vmatpush1.msra.mxu0 0.0
  %5267 = vmatprep.mubr.f32.mxu0 0.0
  %5268 = vmatmul.mubr.f32.gmra.mrb[0].mxu0 %v5192
  %v5269 = vpop.f32.mrb[0].mxu0
  %v5270 = vadd.f32 0.0, %v5269
  %v5271 = vpop.f32.mrb[0].mxu0
  %5272 = vmatprep.mubr.f32.mxu0 0.0
  %5273 = vmatmul.mubr.f32.gmra.mrb[0].mxu0 %v5195
  %v5274 = vpop.f32.mrb[0].mxu0
  %v5275 = vadd.f32 0.0, %v5274
  %v5276 = vpop.f32.mrb[0].mxu0
  %5277 = vmatprep.mubr.f32.mxu0 0.0
  %5278 = vmatmul.mubr.f32.gmra.mrb[0].mxu0 %v5198
  %v5279 = vpop.f32.mrb[0].mxu0
  %v5280 = vadd.f32 0.0, %v5279
  %v5281 = vpop.f32.mrb[0].mxu0
  %5282 = vmatprep.mubr.f32.mxu0 0.0
  %5283 = vmatmul.mubr.f32.gmra.mrb[0].mxu0 %v5201
  %v5284 = vpop.f32.mrb[0].mxu0
  %v5285 = vadd.f32 0.0, %v5284
  %v5286 = vpop.f32.mrb[0].mxu0
  %5287 = vdwg.mxu0
  %v5288 = vadd.f32 %v5176, %v5270
  %v5289 = vadd.f32 %v5177, %v5275
  %v5290 = vadd.f32 %v5178, %v5280
  %v5291 = vadd.f32 %v5179, %v5285
  %s5292 = scalar_lea.vmem %s8, 352
  %v5293 = vld [vmem:[%s5292] sm:$0xff]
  %v5294 = vld [vmem:[%s5292 + $0x8] sm:$0xff]
  %v5295 = vld [vmem:[%s5292 + $0x10] sm:$0xff]
  %v5296 = vld [vmem:[%s5292 + $0x18] sm:$0xff]
  %5297 = vrot.lane.b32.xlu0 %v4056, 80
  %v5298 = vpop.permute.xlu0 %5297
  %5299 = vrot.lane.b32.xlu0 %v4062, 80
  %v5300 = vpop.permute.xlu0 %5299
  %v5304 = vsel %vm4093, %v5293, 0
  %v5307 = vsel %vm4093, %v5294, 0
  %v5310 = vsel %vm4093, %v5295, 0
  %v5313 = vsel %vm4093, %v5296, 0
  %5315 = vmatprep.subr.mxu0 0.0
  %5316 = vmatpush1.msra.mxu0 %v5298
  %5317 = vmatprep.subr.mxu0 0.0
  %5318 = vmatpush1.msra.mxu0 %v5300
  %5319 = vmatprep.subr.mxu0 0.0
  %5320 = vmatpush1.msra.mxu0 0.0
  %5321 = vmatprep.subr.mxu0 0.0
  %5322 = vmatpush1.msra.mxu0 0.0
  %5323 = vmatprep.subr.mxu0 0.0
  %5324 = vmatpush1.msra.mxu0 0.0
  %5325 = vmatprep.subr.mxu0 0.0
  %5326 = vmatpush1.msra.mxu0 0.0
  %5327 = vmatprep.subr.mxu0 0.0
  %5328 = vmatpush1.msra.mxu0 0.0
  %5329 = vmatprep.subr.mxu0 0.0
  %5330 = vmatpush1.msra.mxu0 0.0
  %5331 = vmatprep.subr.mxu0 0.0
  %5332 = vmatpush1.msra.mxu0 0.0
  %5333 = vmatprep.subr.mxu0 0.0
  %5334 = vmatpush1.msra.mxu0 0.0
  %5335 = vmatprep.subr.mxu0 0.0
  %5336 = vmatpush1.msra.mxu0 0.0
  %5337 = vmatprep.subr.mxu0 0.0
  %5338 = vmatpush1.msra.mxu0 0.0
  %5339 = vmatprep.subr.mxu0 0.0
  %5340 = vmatpush1.msra.mxu0 0.0
  %5341 = vmatprep.subr.mxu0 0.0
  %5342 = vmatpush1.msra.mxu0 0.0
  %5343 = vmatprep.subr.mxu0 0.0
  %5344 = vmatpush1.msra.mxu0 0.0
  %5345 = vmatprep.subr.mxu0 0.0
  %5346 = vmatpush1.msra.mxu0 0.0
  %5347 = vmatprep.subr.mxu0 0.0
  %5348 = vmatpush1.msra.mxu0 0.0
  %5349 = vmatprep.subr.mxu0 0.0
  %5350 = vmatpush1.msra.mxu0 0.0
  %5351 = vmatprep.subr.mxu0 0.0
  %5352 = vmatpush1.msra.mxu0 0.0
  %5353 = vmatprep.subr.mxu0 0.0
  %5354 = vmatpush1.msra.mxu0 0.0
  %5355 = vmatprep.subr.mxu0 0.0
  %5356 = vmatpush1.msra.mxu0 0.0
  %5357 = vmatprep.subr.mxu0 0.0
  %5358 = vmatpush1.msra.mxu0 0.0
  %5359 = vmatprep.subr.mxu0 0.0
  %5360 = vmatpush1.msra.mxu0 0.0
  %5361 = vmatprep.subr.mxu0 0.0
  %5362 = vmatpush1.msra.mxu0 0.0
  %5363 = vmatprep.subr.mxu0 0.0
  %5364 = vmatpush1.msra.mxu0 0.0
  %5365 = vmatprep.subr.mxu0 0.0
  %5366 = vmatpush1.msra.mxu0 0.0
  %5367 = vmatprep.subr.mxu0 0.0
  %5368 = vmatpush1.msra.mxu0 0.0
  %5369 = vmatprep.subr.mxu0 0.0
  %5370 = vmatpush1.msra.mxu0 0.0
  %5371 = vmatprep.subr.mxu0 0.0
  %5372 = vmatpush1.msra.mxu0 0.0
  %5373 = vmatprep.subr.mxu0 0.0
  %5374 = vmatpush1.msra.mxu0 0.0
  %5375 = vmatprep.subr.mxu0 0.0
  %5376 = vmatpush1.msra.mxu0 0.0
  %5377 = vmatprep.subr.mxu0 0.0
  %5378 = vmatpush1.msra.mxu0 0.0
  %5379 = vmatprep.mubr.f32.mxu0 0.0
  %5380 = vmatmul.mubr.f32.gmra.mrb[0].mxu0 %v5304
  %v5381 = vpop.f32.mrb[0].mxu0
  %v5382 = vadd.f32 0.0, %v5381
  %v5383 = vpop.f32.mrb[0].mxu0
  %5384 = vmatprep.mubr.f32.mxu0 0.0
  %5385 = vmatmul.mubr.f32.gmra.mrb[0].mxu0 %v5307
  %v5386 = vpop.f32.mrb[0].mxu0
  %v5387 = vadd.f32 0.0, %v5386
  %v5388 = vpop.f32.mrb[0].mxu0
  %5389 = vmatprep.mubr.f32.mxu0 0.0
  %5390 = vmatmul.mubr.f32.gmra.mrb[0].mxu0 %v5310
  %v5391 = vpop.f32.mrb[0].mxu0
  %v5392 = vadd.f32 0.0, %v5391
  %v5393 = vpop.f32.mrb[0].mxu0
  %5394 = vmatprep.mubr.f32.mxu0 0.0
  %5395 = vmatmul.mubr.f32.gmra.mrb[0].mxu0 %v5313
  %v5396 = vpop.f32.mrb[0].mxu0
  %v5397 = vadd.f32 0.0, %v5396
  %v5398 = vpop.f32.mrb[0].mxu0
  %5399 = vdwg.mxu0
  %v5400 = vadd.f32 %v5288, %v5382
  %v5401 = vadd.f32 %v5289, %v5387
  %v5402 = vadd.f32 %v5290, %v5392
  %v5403 = vadd.f32 %v5291, %v5397
  %s5404 = scalar_lea.vmem %s8, 384
  %v5405 = vld [vmem:[%s5404] sm:$0xff]
  %v5406 = vld [vmem:[%s5404 + $0x8] sm:$0xff]
  %v5407 = vld [vmem:[%s5404 + $0x10] sm:$0xff]
  %v5408 = vld [vmem:[%s5404 + $0x18] sm:$0xff]
  %5409 = vrot.lane.b32.xlu0 %v4056, 64
  %v5410 = vpop.permute.xlu0 %5409
  %5411 = vrot.lane.b32.xlu0 %v4062, 64
  %v5412 = vpop.permute.xlu0 %5411
  %v5416 = vsel %vm4093, %v5405, 0
  %v5419 = vsel %vm4093, %v5406, 0
  %v5422 = vsel %vm4093, %v5407, 0
  %v5425 = vsel %vm4093, %v5408, 0
  %5427 = vmatprep.subr.mxu0 0.0
  %5428 = vmatpush1.msra.mxu0 %v5410
  %5429 = vmatprep.subr.mxu0 0.0
  %5430 = vmatpush1.msra.mxu0 %v5412
  %5431 = vmatprep.subr.mxu0 0.0
  %5432 = vmatpush1.msra.mxu0 0.0
  %5433 = vmatprep.subr.mxu0 0.0
  %5434 = vmatpush1.msra.mxu0 0.0
  %5435 = vmatprep.subr.mxu0 0.0
  %5436 = vmatpush1.msra.mxu0 0.0
  %5437 = vmatprep.subr.mxu0 0.0
  %5438 = vmatpush1.msra.mxu0 0.0
  %5439 = vmatprep.subr.mxu0 0.0
  %5440 = vmatpush1.msra.mxu0 0.0
  %5441 = vmatprep.subr.mxu0 0.0
  %5442 = vmatpush1.msra.mxu0 0.0
  %5443 = vmatprep.subr.mxu0 0.0
  %5444 = vmatpush1.msra.mxu0 0.0
  %5445 = vmatprep.subr.mxu0 0.0
  %5446 = vmatpush1.msra.mxu0 0.0
  %5447 = vmatprep.subr.mxu0 0.0
  %5448 = vmatpush1.msra.mxu0 0.0
  %5449 = vmatprep.subr.mxu0 0.0
  %5450 = vmatpush1.msra.mxu0 0.0
  %5451 = vmatprep.subr.mxu0 0.0
  %5452 = vmatpush1.msra.mxu0 0.0
  %5453 = vmatprep.subr.mxu0 0.0
  %5454 = vmatpush1.msra.mxu0 0.0
  %5455 = vmatprep.subr.mxu0 0.0
  %5456 = vmatpush1.msra.mxu0 0.0
  %5457 = vmatprep.subr.mxu0 0.0
  %5458 = vmatpush1.msra.mxu0 0.0
  %5459 = vmatprep.subr.mxu0 0.0
  %5460 = vmatpush1.msra.mxu0 0.0
  %5461 = vmatprep.subr.mxu0 0.0
  %5462 = vmatpush1.msra.mxu0 0.0
  %5463 = vmatprep.subr.mxu0 0.0
  %5464 = vmatpush1.msra.mxu0 0.0
  %5465 = vmatprep.subr.mxu0 0.0
  %5466 = vmatpush1.msra.mxu0 0.0
  %5467 = vmatprep.subr.mxu0 0.0
  %5468 = vmatpush1.msra.mxu0 0.0
  %5469 = vmatprep.subr.mxu0 0.0
  %5470 = vmatpush1.msra.mxu0 0.0
  %5471 = vmatprep.subr.mxu0 0.0
  %5472 = vmatpush1.msra.mxu0 0.0
  %5473 = vmatprep.subr.mxu0 0.0
  %5474 = vmatpush1.msra.mxu0 0.0
  %5475 = vmatprep.subr.mxu0 0.0
  %5476 = vmatpush1.msra.mxu0 0.0
  %5477 = vmatprep.subr.mxu0 0.0
  %5478 = vmatpush1.msra.mxu0 0.0
  %5479 = vmatprep.subr.mxu0 0.0
  %5480 = vmatpush1.msra.mxu0 0.0
  %5481 = vmatprep.subr.mxu0 0.0
  %5482 = vmatpush1.msra.mxu0 0.0
  %5483 = vmatprep.subr.mxu0 0.0
  %5484 = vmatpush1.msra.mxu0 0.0
  %5485 = vmatprep.subr.mxu0 0.0
  %5486 = vmatpush1.msra.mxu0 0.0
  %5487 = vmatprep.subr.mxu0 0.0
  %5488 = vmatpush1.msra.mxu0 0.0
  %5489 = vmatprep.subr.mxu0 0.0
  %5490 = vmatpush1.msra.mxu0 0.0
  %5491 = vmatprep.mubr.f32.mxu0 0.0
  %5492 = vmatmul.mubr.f32.gmra.mrb[0].mxu0 %v5416
  %v5493 = vpop.f32.mrb[0].mxu0
  %v5494 = vadd.f32 0.0, %v5493
  %v5495 = vpop.f32.mrb[0].mxu0
  %5496 = vmatprep.mubr.f32.mxu0 0.0
  %5497 = vmatmul.mubr.f32.gmra.mrb[0].mxu0 %v5419
  %v5498 = vpop.f32.mrb[0].mxu0
  %v5499 = vadd.f32 0.0, %v5498
  %v5500 = vpop.f32.mrb[0].mxu0
  %5501 = vmatprep.mubr.f32.mxu0 0.0
  %5502 = vmatmul.mubr.f32.gmra.mrb[0].mxu0 %v5422
  %v5503 = vpop.f32.mrb[0].mxu0
  %v5504 = vadd.f32 0.0, %v5503
  %v5505 = vpop.f32.mrb[0].mxu0
  %5506 = vmatprep.mubr.f32.mxu0 0.0
  %5507 = vmatmul.mubr.f32.gmra.mrb[0].mxu0 %v5425
  %v5508 = vpop.f32.mrb[0].mxu0
  %v5509 = vadd.f32 0.0, %v5508
  %v5510 = vpop.f32.mrb[0].mxu0
  %5511 = vdwg.mxu0
  %v5512 = vadd.f32 %v5400, %v5494
  %v5513 = vadd.f32 %v5401, %v5499
  %v5514 = vadd.f32 %v5402, %v5504
  %v5515 = vadd.f32 %v5403, %v5509
  %s5516 = scalar_lea.vmem %s8, 416
  %v5517 = vld [vmem:[%s5516] sm:$0xff]
  %v5518 = vld [vmem:[%s5516 + $0x8] sm:$0xff]
  %v5519 = vld [vmem:[%s5516 + $0x10] sm:$0xff]
  %v5520 = vld [vmem:[%s5516 + $0x18] sm:$0xff]
  %5521 = vrot.lane.b32.xlu0 %v4056, 48
  %v5522 = vpop.permute.xlu0 %5521
  %5523 = vrot.lane.b32.xlu0 %v4062, 48
  %v5524 = vpop.permute.xlu0 %5523
  %v5528 = vsel %vm4093, %v5517, 0
  %v5531 = vsel %vm4093, %v5518, 0
  %v5534 = vsel %vm4093, %v5519, 0
  %v5537 = vsel %vm4093, %v5520, 0
  %5539 = vmatprep.subr.mxu0 0.0
  %5540 = vmatpush1.msra.mxu0 %v5522
  %5541 = vmatprep.subr.mxu0 0.0
  %5542 = vmatpush1.msra.mxu0 %v5524
  %5543 = vmatprep.subr.mxu0 0.0
  %5544 = vmatpush1.msra.mxu0 0.0
  %5545 = vmatprep.subr.mxu0 0.0
  %5546 = vmatpush1.msra.mxu0 0.0
  %5547 = vmatprep.subr.mxu0 0.0
  %5548 = vmatpush1.msra.mxu0 0.0
  %5549 = vmatprep.subr.mxu0 0.0
  %5550 = vmatpush1.msra.mxu0 0.0
  %5551 = vmatprep.subr.mxu0 0.0
  %5552 = vmatpush1.msra.mxu0 0.0
  %5553 = vmatprep.subr.mxu0 0.0
  %5554 = vmatpush1.msra.mxu0 0.0
  %5555 = vmatprep.subr.mxu0 0.0
  %5556 = vmatpush1.msra.mxu0 0.0
  %5557 = vmatprep.subr.mxu0 0.0
  %5558 = vmatpush1.msra.mxu0 0.0
  %5559 = vmatprep.subr.mxu0 0.0
  %5560 = vmatpush1.msra.mxu0 0.0
  %5561 = vmatprep.subr.mxu0 0.0
  %5562 = vmatpush1.msra.mxu0 0.0
  %5563 = vmatprep.subr.mxu0 0.0
  %5564 = vmatpush1.msra.mxu0 0.0
  %5565 = vmatprep.subr.mxu0 0.0
  %5566 = vmatpush1.msra.mxu0 0.0
  %5567 = vmatprep.subr.mxu0 0.0
  %5568 = vmatpush1.msra.mxu0 0.0
  %5569 = vmatprep.subr.mxu0 0.0
  %5570 = vmatpush1.msra.mxu0 0.0
  %5571 = vmatprep.subr.mxu0 0.0
  %5572 = vmatpush1.msra.mxu0 0.0
  %5573 = vmatprep.subr.mxu0 0.0
  %5574 = vmatpush1.msra.mxu0 0.0
  %5575 = vmatprep.subr.mxu0 0.0
  %5576 = vmatpush1.msra.mxu0 0.0
  %5577 = vmatprep.subr.mxu0 0.0
  %5578 = vmatpush1.msra.mxu0 0.0
  %5579 = vmatprep.subr.mxu0 0.0
  %5580 = vmatpush1.msra.mxu0 0.0
  %5581 = vmatprep.subr.mxu0 0.0
  %5582 = vmatpush1.msra.mxu0 0.0
  %5583 = vmatprep.subr.mxu0 0.0
  %5584 = vmatpush1.msra.mxu0 0.0
  %5585 = vmatprep.subr.mxu0 0.0
  %5586 = vmatpush1.msra.mxu0 0.0
  %5587 = vmatprep.subr.mxu0 0.0
  %5588 = vmatpush1.msra.mxu0 0.0
  %5589 = vmatprep.subr.mxu0 0.0
  %5590 = vmatpush1.msra.mxu0 0.0
  %5591 = vmatprep.subr.mxu0 0.0
  %5592 = vmatpush1.msra.mxu0 0.0
  %5593 = vmatprep.subr.mxu0 0.0
  %5594 = vmatpush1.msra.mxu0 0.0
  %5595 = vmatprep.subr.mxu0 0.0
  %5596 = vmatpush1.msra.mxu0 0.0
  %5597 = vmatprep.subr.mxu0 0.0
  %5598 = vmatpush1.msra.mxu0 0.0
  %5599 = vmatprep.subr.mxu0 0.0
  %5600 = vmatpush1.msra.mxu0 0.0
  %5601 = vmatprep.subr.mxu0 0.0
  %5602 = vmatpush1.msra.mxu0 0.0
  %5603 = vmatprep.mubr.f32.mxu0 0.0
  %5604 = vmatmul.mubr.f32.gmra.mrb[0].mxu0 %v5528
  %v5605 = vpop.f32.mrb[0].mxu0
  %v5606 = vadd.f32 0.0, %v5605
  %v5607 = vpop.f32.mrb[0].mxu0
  %5608 = vmatprep.mubr.f32.mxu0 0.0
  %5609 = vmatmul.mubr.f32.gmra.mrb[0].mxu0 %v5531
  %v5610 = vpop.f32.mrb[0].mxu0
  %v5611 = vadd.f32 0.0, %v5610
  %v5612 = vpop.f32.mrb[0].mxu0
  %5613 = vmatprep.mubr.f32.mxu0 0.0
  %5614 = vmatmul.mubr.f32.gmra.mrb[0].mxu0 %v5534
  %v5615 = vpop.f32.mrb[0].mxu0
  %v5616 = vadd.f32 0.0, %v5615
  %v5617 = vpop.f32.mrb[0].mxu0
  %5618 = vmatprep.mubr.f32.mxu0 0.0
  %5619 = vmatmul.mubr.f32.gmra.mrb[0].mxu0 %v5537
  %v5620 = vpop.f32.mrb[0].mxu0
  %v5621 = vadd.f32 0.0, %v5620
  %v5622 = vpop.f32.mrb[0].mxu0
  %5623 = vdwg.mxu0
  %v5624 = vadd.f32 %v5512, %v5606
  %v5625 = vadd.f32 %v5513, %v5611
  %v5626 = vadd.f32 %v5514, %v5616
  %v5627 = vadd.f32 %v5515, %v5621
  %s5628 = scalar_lea.vmem %s8, 448
  %v5629 = vld [vmem:[%s5628] sm:$0xff]
  %v5630 = vld [vmem:[%s5628 + $0x8] sm:$0xff]
  %v5631 = vld [vmem:[%s5628 + $0x10] sm:$0xff]
  %v5632 = vld [vmem:[%s5628 + $0x18] sm:$0xff]
  %5633 = vrot.lane.b32.xlu0 %v4056, 32
  %v5634 = vpop.permute.xlu0 %5633
  %5635 = vrot.lane.b32.xlu0 %v4062, 32
  %v5636 = vpop.permute.xlu0 %5635
  %v5640 = vsel %vm4093, %v5629, 0
  %v5643 = vsel %vm4093, %v5630, 0
  %v5646 = vsel %vm4093, %v5631, 0
  %v5649 = vsel %vm4093, %v5632, 0
  %5651 = vmatprep.subr.mxu0 0.0
  %5652 = vmatpush1.msra.mxu0 %v5634
  %5653 = vmatprep.subr.mxu0 0.0
  %5654 = vmatpush1.msra.mxu0 %v5636
  %5655 = vmatprep.subr.mxu0 0.0
  %5656 = vmatpush1.msra.mxu0 0.0
  %5657 = vmatprep.subr.mxu0 0.0
  %5658 = vmatpush1.msra.mxu0 0.0
  %5659 = vmatprep.subr.mxu0 0.0
  %5660 = vmatpush1.msra.mxu0 0.0
  %5661 = vmatprep.subr.mxu0 0.0
  %5662 = vmatpush1.msra.mxu0 0.0
  %5663 = vmatprep.subr.mxu0 0.0
  %5664 = vmatpush1.msra.mxu0 0.0
  %5665 = vmatprep.subr.mxu0 0.0
  %5666 = vmatpush1.msra.mxu0 0.0
  %5667 = vmatprep.subr.mxu0 0.0
  %5668 = vmatpush1.msra.mxu0 0.0
  %5669 = vmatprep.subr.mxu0 0.0
  %5670 = vmatpush1.msra.mxu0 0.0
  %5671 = vmatprep.subr.mxu0 0.0
  %5672 = vmatpush1.msra.mxu0 0.0
  %5673 = vmatprep.subr.mxu0 0.0
  %5674 = vmatpush1.msra.mxu0 0.0
  %5675 = vmatprep.subr.mxu0 0.0
  %5676 = vmatpush1.msra.mxu0 0.0
  %5677 = vmatprep.subr.mxu0 0.0
  %5678 = vmatpush1.msra.mxu0 0.0
  %5679 = vmatprep.subr.mxu0 0.0
  %5680 = vmatpush1.msra.mxu0 0.0
  %5681 = vmatprep.subr.mxu0 0.0
  %5682 = vmatpush1.msra.mxu0 0.0
  %5683 = vmatprep.subr.mxu0 0.0
  %5684 = vmatpush1.msra.mxu0 0.0
  %5685 = vmatprep.subr.mxu0 0.0
  %5686 = vmatpush1.msra.mxu0 0.0
  %5687 = vmatprep.subr.mxu0 0.0
  %5688 = vmatpush1.msra.mxu0 0.0
  %5689 = vmatprep.subr.mxu0 0.0
  %5690 = vmatpush1.msra.mxu0 0.0
  %5691 = vmatprep.subr.mxu0 0.0
  %5692 = vmatpush1.msra.mxu0 0.0
  %5693 = vmatprep.subr.mxu0 0.0
  %5694 = vmatpush1.msra.mxu0 0.0
  %5695 = vmatprep.subr.mxu0 0.0
  %5696 = vmatpush1.msra.mxu0 0.0
  %5697 = vmatprep.subr.mxu0 0.0
  %5698 = vmatpush1.msra.mxu0 0.0
  %5699 = vmatprep.subr.mxu0 0.0
  %5700 = vmatpush1.msra.mxu0 0.0
  %5701 = vmatprep.subr.mxu0 0.0
  %5702 = vmatpush1.msra.mxu0 0.0
  %5703 = vmatprep.subr.mxu0 0.0
  %5704 = vmatpush1.msra.mxu0 0.0
  %5705 = vmatprep.subr.mxu0 0.0
  %5706 = vmatpush1.msra.mxu0 0.0
  %5707 = vmatprep.subr.mxu0 0.0
  %5708 = vmatpush1.msra.mxu0 0.0
  %5709 = vmatprep.subr.mxu0 0.0
  %5710 = vmatpush1.msra.mxu0 0.0
  %5711 = vmatprep.subr.mxu0 0.0
  %5712 = vmatpush1.msra.mxu0 0.0
  %5713 = vmatprep.subr.mxu0 0.0
  %5714 = vmatpush1.msra.mxu0 0.0
  %5715 = vmatprep.mubr.f32.mxu0 0.0
  %5716 = vmatmul.mubr.f32.gmra.mrb[0].mxu0 %v5640
  %v5717 = vpop.f32.mrb[0].mxu0
  %v5718 = vadd.f32 0.0, %v5717
  %v5719 = vpop.f32.mrb[0].mxu0
  %5720 = vmatprep.mubr.f32.mxu0 0.0
  %5721 = vmatmul.mubr.f32.gmra.mrb[0].mxu0 %v5643
  %v5722 = vpop.f32.mrb[0].mxu0
  %v5723 = vadd.f32 0.0, %v5722
  %v5724 = vpop.f32.mrb[0].mxu0
  %5725 = vmatprep.mubr.f32.mxu0 0.0
  %5726 = vmatmul.mubr.f32.gmra.mrb[0].mxu0 %v5646
  %v5727 = vpop.f32.mrb[0].mxu0
  %v5728 = vadd.f32 0.0, %v5727
  %v5729 = vpop.f32.mrb[0].mxu0
  %5730 = vmatprep.mubr.f32.mxu0 0.0
  %5731 = vmatmul.mubr.f32.gmra.mrb[0].mxu0 %v5649
  %v5732 = vpop.f32.mrb[0].mxu0
  %v5733 = vadd.f32 0.0, %v5732
  %v5734 = vpop.f32.mrb[0].mxu0
  %5735 = vdwg.mxu0
  %v5736 = vadd.f32 %v5624, %v5718
  %v5737 = vadd.f32 %v5625, %v5723
  %v5738 = vadd.f32 %v5626, %v5728
  %v5739 = vadd.f32 %v5627, %v5733
  %s5740 = scalar_lea.vmem %s8, 480
  %v5741 = vld [vmem:[%s5740] sm:$0xff]
  %v5742 = vld [vmem:[%s5740 + $0x8] sm:$0xff]
  %v5743 = vld [vmem:[%s5740 + $0x10] sm:$0xff]
  %v5744 = vld [vmem:[%s5740 + $0x18] sm:$0xff]
  %5745 = vrot.lane.b32.xlu0 %v4056, 16
  %v5746 = vpop.permute.xlu0 %5745
  %5747 = vrot.lane.b32.xlu0 %v4062, 16
  %v5748 = vpop.permute.xlu0 %5747
  %v5752 = vsel %vm4093, %v5741, 0
  %v5755 = vsel %vm4093, %v5742, 0
  %v5758 = vsel %vm4093, %v5743, 0
  %v5761 = vsel %vm4093, %v5744, 0
  %5763 = vmatprep.subr.mxu0 0.0
  %5764 = vmatpush1.msra.mxu0 %v5746
  %5765 = vmatprep.subr.mxu0 0.0
  %5766 = vmatpush1.msra.mxu0 %v5748
  %5767 = vmatprep.subr.mxu0 0.0
  %5768 = vmatpush1.msra.mxu0 0.0
  %5769 = vmatprep.subr.mxu0 0.0
  %5770 = vmatpush1.msra.mxu0 0.0
  %5771 = vmatprep.subr.mxu0 0.0
  %5772 = vmatpush1.msra.mxu0 0.0
  %5773 = vmatprep.subr.mxu0 0.0
  %5774 = vmatpush1.msra.mxu0 0.0
  %5775 = vmatprep.subr.mxu0 0.0
  %5776 = vmatpush1.msra.mxu0 0.0
  %5777 = vmatprep.subr.mxu0 0.0
  %5778 = vmatpush1.msra.mxu0 0.0
  %5779 = vmatprep.subr.mxu0 0.0
  %5780 = vmatpush1.msra.mxu0 0.0
  %5781 = vmatprep.subr.mxu0 0.0
  %5782 = vmatpush1.msra.mxu0 0.0
  %5783 = vmatprep.subr.mxu0 0.0
  %5784 = vmatpush1.msra.mxu0 0.0
  %5785 = vmatprep.subr.mxu0 0.0
  %5786 = vmatpush1.msra.mxu0 0.0
  %5787 = vmatprep.subr.mxu0 0.0
  %5788 = vmatpush1.msra.mxu0 0.0
  %5789 = vmatprep.subr.mxu0 0.0
  %5790 = vmatpush1.msra.mxu0 0.0
  %5791 = vmatprep.subr.mxu0 0.0
  %5792 = vmatpush1.msra.mxu0 0.0
  %5793 = vmatprep.subr.mxu0 0.0
  %5794 = vmatpush1.msra.mxu0 0.0
  %5795 = vmatprep.subr.mxu0 0.0
  %5796 = vmatpush1.msra.mxu0 0.0
  %5797 = vmatprep.subr.mxu0 0.0
  %5798 = vmatpush1.msra.mxu0 0.0
  %5799 = vmatprep.subr.mxu0 0.0
  %5800 = vmatpush1.msra.mxu0 0.0
  %5801 = vmatprep.subr.mxu0 0.0
  %5802 = vmatpush1.msra.mxu0 0.0
  %5803 = vmatprep.subr.mxu0 0.0
  %5804 = vmatpush1.msra.mxu0 0.0
  %5805 = vmatprep.subr.mxu0 0.0
  %5806 = vmatpush1.msra.mxu0 0.0
  %5807 = vmatprep.subr.mxu0 0.0
  %5808 = vmatpush1.msra.mxu0 0.0
  %5809 = vmatprep.subr.mxu0 0.0
  %5810 = vmatpush1.msra.mxu0 0.0
  %5811 = vmatprep.subr.mxu0 0.0
  %5812 = vmatpush1.msra.mxu0 0.0
  %5813 = vmatprep.subr.mxu0 0.0
  %5814 = vmatpush1.msra.mxu0 0.0
  %5815 = vmatprep.subr.mxu0 0.0
  %5816 = vmatpush1.msra.mxu0 0.0
  %5817 = vmatprep.subr.mxu0 0.0
  %5818 = vmatpush1.msra.mxu0 0.0
  %5819 = vmatprep.subr.mxu0 0.0
  %5820 = vmatpush1.msra.mxu0 0.0
  %5821 = vmatprep.subr.mxu0 0.0
  %5822 = vmatpush1.msra.mxu0 0.0
  %5823 = vmatprep.subr.mxu0 0.0
  %5824 = vmatpush1.msra.mxu0 0.0
  %5825 = vmatprep.subr.mxu0 0.0
  %5826 = vmatpush1.msra.mxu0 0.0
  %5827 = vmatprep.mubr.f32.mxu0 0.0
  %5828 = vmatmul.mubr.f32.gmra.mrb[0].mxu0 %v5752
  %v5829 = vpop.f32.mrb[0].mxu0
  %v5830 = vadd.f32 0.0, %v5829
  %v5831 = vpop.f32.mrb[0].mxu0
  %5832 = vmatprep.mubr.f32.mxu0 0.0
  %5833 = vmatmul.mubr.f32.gmra.mrb[0].mxu0 %v5755
  %v5834 = vpop.f32.mrb[0].mxu0
  %v5835 = vadd.f32 0.0, %v5834
  %v5836 = vpop.f32.mrb[0].mxu0
  %5837 = vmatprep.mubr.f32.mxu0 0.0
  %5838 = vmatmul.mubr.f32.gmra.mrb[0].mxu0 %v5758
  %v5839 = vpop.f32.mrb[0].mxu0
  %v5840 = vadd.f32 0.0, %v5839
  %v5841 = vpop.f32.mrb[0].mxu0
  %5842 = vmatprep.mubr.f32.mxu0 0.0
  %5843 = vmatmul.mubr.f32.gmra.mrb[0].mxu0 %v5761
  %v5844 = vpop.f32.mrb[0].mxu0
  %v5845 = vadd.f32 0.0, %v5844
  %v5846 = vpop.f32.mrb[0].mxu0
  %5847 = vdwg.mxu0
  %v5848 = vadd.f32 %v5736, %v5830
  %v5849 = vadd.f32 %v5737, %v5835
  %v5850 = vadd.f32 %v5738, %v5840
  %v5851 = vadd.f32 %v5739, %v5845
  %5854 = vrot.lane.b32.xlu0 %v4066, 112
  %v5855 = vpop.permute.xlu0 %5854
  %5856 = vrot.lane.b32.xlu0 %v4072, 112
  %v5857 = vpop.permute.xlu0 %5856
  %5860 = vmatprep.subr.mxu0 0.0
  %5861 = vmatpush1.msra.mxu0 %v5855
  %5862 = vmatprep.subr.mxu0 0.0
  %5863 = vmatpush1.msra.mxu0 %v5857
  %5864 = vmatprep.subr.mxu0 0.0
  %5865 = vmatpush1.msra.mxu0 0.0
  %5866 = vmatprep.subr.mxu0 0.0
  %5867 = vmatpush1.msra.mxu0 0.0
  %5868 = vmatprep.subr.mxu0 0.0
  %5869 = vmatpush1.msra.mxu0 0.0
  %5870 = vmatprep.subr.mxu0 0.0
  %5871 = vmatpush1.msra.mxu0 0.0
  %5872 = vmatprep.subr.mxu0 0.0
  %5873 = vmatpush1.msra.mxu0 0.0
  %5874 = vmatprep.subr.mxu0 0.0
  %5875 = vmatpush1.msra.mxu0 0.0
  %5876 = vmatprep.subr.mxu0 0.0
  %5877 = vmatpush1.msra.mxu0 0.0
  %5878 = vmatprep.subr.mxu0 0.0
  %5879 = vmatpush1.msra.mxu0 0.0
  %5880 = vmatprep.subr.mxu0 0.0
  %5881 = vmatpush1.msra.mxu0 0.0
  %5882 = vmatprep.subr.mxu0 0.0
  %5883 = vmatpush1.msra.mxu0 0.0
  %5884 = vmatprep.subr.mxu0 0.0
  %5885 = vmatpush1.msra.mxu0 0.0
  %5886 = vmatprep.subr.mxu0 0.0
  %5887 = vmatpush1.msra.mxu0 0.0
  %5888 = vmatprep.subr.mxu0 0.0
  %5889 = vmatpush1.msra.mxu0 0.0
  %5890 = vmatprep.subr.mxu0 0.0
  %5891 = vmatpush1.msra.mxu0 0.0
  %5892 = vmatprep.subr.mxu0 0.0
  %5893 = vmatpush1.msra.mxu0 0.0
  %5894 = vmatprep.subr.mxu0 0.0
  %5895 = vmatpush1.msra.mxu0 0.0
  %5896 = vmatprep.subr.mxu0 0.0
  %5897 = vmatpush1.msra.mxu0 0.0
  %5898 = vmatprep.subr.mxu0 0.0
  %5899 = vmatpush1.msra.mxu0 0.0
  %5900 = vmatprep.subr.mxu0 0.0
  %5901 = vmatpush1.msra.mxu0 0.0
  %5902 = vmatprep.subr.mxu0 0.0
  %5903 = vmatpush1.msra.mxu0 0.0
  %5904 = vmatprep.subr.mxu0 0.0
  %5905 = vmatpush1.msra.mxu0 0.0
  %5906 = vmatprep.subr.mxu0 0.0
  %5907 = vmatpush1.msra.mxu0 0.0
  %5908 = vmatprep.subr.mxu0 0.0
  %5909 = vmatpush1.msra.mxu0 0.0
  %5910 = vmatprep.subr.mxu0 0.0
  %5911 = vmatpush1.msra.mxu0 0.0
  %5912 = vmatprep.subr.mxu0 0.0
  %5913 = vmatpush1.msra.mxu0 0.0
  %5914 = vmatprep.subr.mxu0 0.0
  %5915 = vmatpush1.msra.mxu0 0.0
  %5916 = vmatprep.subr.mxu0 0.0
  %5917 = vmatpush1.msra.mxu0 0.0
  %5918 = vmatprep.subr.mxu0 0.0
  %5919 = vmatpush1.msra.mxu0 0.0
  %5920 = vmatprep.subr.mxu0 0.0
  %5921 = vmatpush1.msra.mxu0 0.0
  %5922 = vmatprep.subr.mxu0 0.0
  %5923 = vmatpush1.msra.mxu0 0.0
  %5924 = vmatprep.mubr.f32.mxu0 0.0
  %5925 = vmatmul.mubr.f32.gmra.mrb[0].mxu0 %v4095
  %v5926 = vpop.f32.mrb[0].mxu0
  %v5927 = vadd.f32 0.0, %v5926
  %v5928 = vpop.f32.mrb[0].mxu0
  %5929 = vmatprep.mubr.f32.mxu0 0.0
  %5930 = vmatmul.mubr.f32.gmra.mrb[0].mxu0 %v4098
  %v5931 = vpop.f32.mrb[0].mxu0
  %v5932 = vadd.f32 0.0, %v5931
  %v5933 = vpop.f32.mrb[0].mxu0
  %5934 = vmatprep.mubr.f32.mxu0 0.0
  %5935 = vmatmul.mubr.f32.gmra.mrb[0].mxu0 %v4101
  %v5936 = vpop.f32.mrb[0].mxu0
  %v5937 = vadd.f32 0.0, %v5936
  %v5938 = vpop.f32.mrb[0].mxu0
  %5939 = vmatprep.mubr.f32.mxu0 0.0
  %5940 = vmatmul.mubr.f32.gmra.mrb[0].mxu0 %v4104
  %v5941 = vpop.f32.mrb[0].mxu0
  %v5942 = vadd.f32 0.0, %v5941
  %v5943 = vpop.f32.mrb[0].mxu0
  %5944 = vdwg.mxu0
  %5945 = vmatprep.subr.mxu0 0.0
  %5946 = vmatpush1.msra.mxu0 %v4066
  %5947 = vmatprep.subr.mxu0 0.0
  %5948 = vmatpush1.msra.mxu0 %v4072
  %5949 = vmatprep.subr.mxu0 0.0
  %5950 = vmatpush1.msra.mxu0 0.0
  %5951 = vmatprep.subr.mxu0 0.0
  %5952 = vmatpush1.msra.mxu0 0.0
  %5953 = vmatprep.subr.mxu0 0.0
  %5954 = vmatpush1.msra.mxu0 0.0
  %5955 = vmatprep.subr.mxu0 0.0
  %5956 = vmatpush1.msra.mxu0 0.0
  %5957 = vmatprep.subr.mxu0 0.0
  %5958 = vmatpush1.msra.mxu0 0.0
  %5959 = vmatprep.subr.mxu0 0.0
  %5960 = vmatpush1.msra.mxu0 0.0
  %5961 = vmatprep.subr.mxu0 0.0
  %5962 = vmatpush1.msra.mxu0 0.0
  %5963 = vmatprep.subr.mxu0 0.0
  %5964 = vmatpush1.msra.mxu0 0.0
  %5965 = vmatprep.subr.mxu0 0.0
  %5966 = vmatpush1.msra.mxu0 0.0
  %5967 = vmatprep.subr.mxu0 0.0
  %5968 = vmatpush1.msra.mxu0 0.0
  %5969 = vmatprep.subr.mxu0 0.0
  %5970 = vmatpush1.msra.mxu0 0.0
  %5971 = vmatprep.subr.mxu0 0.0
  %5972 = vmatpush1.msra.mxu0 0.0
  %5973 = vmatprep.subr.mxu0 0.0
  %5974 = vmatpush1.msra.mxu0 0.0
  %5975 = vmatprep.subr.mxu0 0.0
  %5976 = vmatpush1.msra.mxu0 0.0
  %5977 = vmatprep.subr.mxu0 0.0
  %5978 = vmatpush1.msra.mxu0 0.0
  %5979 = vmatprep.subr.mxu0 0.0
  %5980 = vmatpush1.msra.mxu0 0.0
  %5981 = vmatprep.subr.mxu0 0.0
  %5982 = vmatpush1.msra.mxu0 0.0
  %5983 = vmatprep.subr.mxu0 0.0
  %5984 = vmatpush1.msra.mxu0 0.0
  %5985 = vmatprep.subr.mxu0 0.0
  %5986 = vmatpush1.msra.mxu0 0.0
  %5987 = vmatprep.subr.mxu0 0.0
  %5988 = vmatpush1.msra.mxu0 0.0
  %5989 = vmatprep.subr.mxu0 0.0
  %5990 = vmatpush1.msra.mxu0 0.0
  %5991 = vmatprep.subr.mxu0 0.0
  %5992 = vmatpush1.msra.mxu0 0.0
  %5993 = vmatprep.subr.mxu0 0.0
  %5994 = vmatpush1.msra.mxu0 0.0
  %5995 = vmatprep.subr.mxu0 0.0
  %5996 = vmatpush1.msra.mxu0 0.0
  %5997 = vmatprep.subr.mxu0 0.0
  %5998 = vmatpush1.msra.mxu0 0.0
  %5999 = vmatprep.subr.mxu0 0.0
  %6000 = vmatpush1.msra.mxu0 0.0
  %6001 = vmatprep.subr.mxu0 0.0
  %6002 = vmatpush1.msra.mxu0 0.0
  %6003 = vmatprep.subr.mxu0 0.0
  %6004 = vmatpush1.msra.mxu0 0.0
  %6005 = vmatprep.subr.mxu0 0.0
  %6006 = vmatpush1.msra.mxu0 0.0
  %6007 = vmatprep.subr.mxu0 0.0
  %6008 = vmatpush1.msra.mxu0 0.0
  %6009 = vmatprep.mubr.f32.mxu0 0.0
  %6010 = vmatmul.mubr.f32.gmra.mrb[0].mxu0 %v4192
  %v6011 = vpop.f32.mrb[0].mxu0
  %v6012 = vadd.f32 %v5927, %v6011
  %v6013 = vpop.f32.mrb[0].mxu0
  %6014 = vmatprep.mubr.f32.mxu0 0.0
  %6015 = vmatmul.mubr.f32.gmra.mrb[0].mxu0 %v4195
  %v6016 = vpop.f32.mrb[0].mxu0
  %v6017 = vadd.f32 %v5932, %v6016
  %v6018 = vpop.f32.mrb[0].mxu0
  %6019 = vmatprep.mubr.f32.mxu0 0.0
  %6020 = vmatmul.mubr.f32.gmra.mrb[0].mxu0 %v4198
  %v6021 = vpop.f32.mrb[0].mxu0
  %v6022 = vadd.f32 %v5937, %v6021
  %v6023 = vpop.f32.mrb[0].mxu0
  %6024 = vmatprep.mubr.f32.mxu0 0.0
  %6025 = vmatmul.mubr.f32.gmra.mrb[0].mxu0 %v4201
  %v6026 = vpop.f32.mrb[0].mxu0
  %v6027 = vadd.f32 %v5942, %v6026
  %v6028 = vpop.f32.mrb[0].mxu0
  %6029 = vdwg.mxu0
  %6030 = vrot.lane.b32.xlu0 %v4066, 96
  %v6031 = vpop.permute.xlu0 %6030
  %6032 = vrot.lane.b32.xlu0 %v4072, 96
  %v6033 = vpop.permute.xlu0 %6032
  %6036 = vmatprep.subr.mxu0 0.0
  %6037 = vmatpush1.msra.mxu0 %v6031
  %6038 = vmatprep.subr.mxu0 0.0
  %6039 = vmatpush1.msra.mxu0 %v6033
  %6040 = vmatprep.subr.mxu0 0.0
  %6041 = vmatpush1.msra.mxu0 0.0
  %6042 = vmatprep.subr.mxu0 0.0
  %6043 = vmatpush1.msra.mxu0 0.0
  %6044 = vmatprep.subr.mxu0 0.0
  %6045 = vmatpush1.msra.mxu0 0.0
  %6046 = vmatprep.subr.mxu0 0.0
  %6047 = vmatpush1.msra.mxu0 0.0
  %6048 = vmatprep.subr.mxu0 0.0
  %6049 = vmatpush1.msra.mxu0 0.0
  %6050 = vmatprep.subr.mxu0 0.0
  %6051 = vmatpush1.msra.mxu0 0.0
  %6052 = vmatprep.subr.mxu0 0.0
  %6053 = vmatpush1.msra.mxu0 0.0
  %6054 = vmatprep.subr.mxu0 0.0
  %6055 = vmatpush1.msra.mxu0 0.0
  %6056 = vmatprep.subr.mxu0 0.0
  %6057 = vmatpush1.msra.mxu0 0.0
  %6058 = vmatprep.subr.mxu0 0.0
  %6059 = vmatpush1.msra.mxu0 0.0
  %6060 = vmatprep.subr.mxu0 0.0
  %6061 = vmatpush1.msra.mxu0 0.0
  %6062 = vmatprep.subr.mxu0 0.0
  %6063 = vmatpush1.msra.mxu0 0.0
  %6064 = vmatprep.subr.mxu0 0.0
  %6065 = vmatpush1.msra.mxu0 0.0
  %6066 = vmatprep.subr.mxu0 0.0
  %6067 = vmatpush1.msra.mxu0 0.0
  %6068 = vmatprep.subr.mxu0 0.0
  %6069 = vmatpush1.msra.mxu0 0.0
  %6070 = vmatprep.subr.mxu0 0.0
  %6071 = vmatpush1.msra.mxu0 0.0
  %6072 = vmatprep.subr.mxu0 0.0
  %6073 = vmatpush1.msra.mxu0 0.0
  %6074 = vmatprep.subr.mxu0 0.0
  %6075 = vmatpush1.msra.mxu0 0.0
  %6076 = vmatprep.subr.mxu0 0.0
  %6077 = vmatpush1.msra.mxu0 0.0
  %6078 = vmatprep.subr.mxu0 0.0
  %6079 = vmatpush1.msra.mxu0 0.0
  %6080 = vmatprep.subr.mxu0 0.0
  %6081 = vmatpush1.msra.mxu0 0.0
  %6082 = vmatprep.subr.mxu0 0.0
  %6083 = vmatpush1.msra.mxu0 0.0
  %6084 = vmatprep.subr.mxu0 0.0
  %6085 = vmatpush1.msra.mxu0 0.0
  %6086 = vmatprep.subr.mxu0 0.0
  %6087 = vmatpush1.msra.mxu0 0.0
  %6088 = vmatprep.subr.mxu0 0.0
  %6089 = vmatpush1.msra.mxu0 0.0
  %6090 = vmatprep.subr.mxu0 0.0
  %6091 = vmatpush1.msra.mxu0 0.0
  %6092 = vmatprep.subr.mxu0 0.0
  %6093 = vmatpush1.msra.mxu0 0.0
  %6094 = vmatprep.subr.mxu0 0.0
  %6095 = vmatpush1.msra.mxu0 0.0
  %6096 = vmatprep.subr.mxu0 0.0
  %6097 = vmatpush1.msra.mxu0 0.0
  %6098 = vmatprep.subr.mxu0 0.0
  %6099 = vmatpush1.msra.mxu0 0.0
  %6100 = vmatprep.mubr.f32.mxu0 0.0
  %6101 = vmatmul.mubr.f32.gmra.mrb[0].mxu0 %v4300
  %v6102 = vpop.f32.mrb[0].mxu0
  %v6103 = vadd.f32 0.0, %v6102
  %v6104 = vpop.f32.mrb[0].mxu0
  %6105 = vmatprep.mubr.f32.mxu0 0.0
  %6106 = vmatmul.mubr.f32.gmra.mrb[0].mxu0 %v4303
  %v6107 = vpop.f32.mrb[0].mxu0
  %v6108 = vadd.f32 0.0, %v6107
  %v6109 = vpop.f32.mrb[0].mxu0
  %6110 = vmatprep.mubr.f32.mxu0 0.0
  %6111 = vmatmul.mubr.f32.gmra.mrb[0].mxu0 %v4306
  %v6112 = vpop.f32.mrb[0].mxu0
  %v6113 = vadd.f32 0.0, %v6112
  %v6114 = vpop.f32.mrb[0].mxu0
  %6115 = vmatprep.mubr.f32.mxu0 0.0
  %6116 = vmatmul.mubr.f32.gmra.mrb[0].mxu0 %v4309
  %v6117 = vpop.f32.mrb[0].mxu0
  %v6118 = vadd.f32 0.0, %v6117
  %v6119 = vpop.f32.mrb[0].mxu0
  %6120 = vdwg.mxu0
  %v6121 = vadd.f32 %v6012, %v6103
  %v6122 = vadd.f32 %v6017, %v6108
  %v6123 = vadd.f32 %v6022, %v6113
  %v6124 = vadd.f32 %v6027, %v6118
  %6125 = vrot.lane.b32.xlu0 %v4066, 80
  %v6126 = vpop.permute.xlu0 %6125
  %6127 = vrot.lane.b32.xlu0 %v4072, 80
  %v6128 = vpop.permute.xlu0 %6127
  %6131 = vmatprep.subr.mxu0 0.0
  %6132 = vmatpush1.msra.mxu0 %v6126
  %6133 = vmatprep.subr.mxu0 0.0
  %6134 = vmatpush1.msra.mxu0 %v6128
  %6135 = vmatprep.subr.mxu0 0.0
  %6136 = vmatpush1.msra.mxu0 0.0
  %6137 = vmatprep.subr.mxu0 0.0
  %6138 = vmatpush1.msra.mxu0 0.0
  %6139 = vmatprep.subr.mxu0 0.0
  %6140 = vmatpush1.msra.mxu0 0.0
  %6141 = vmatprep.subr.mxu0 0.0
  %6142 = vmatpush1.msra.mxu0 0.0
  %6143 = vmatprep.subr.mxu0 0.0
  %6144 = vmatpush1.msra.mxu0 0.0
  %6145 = vmatprep.subr.mxu0 0.0
  %6146 = vmatpush1.msra.mxu0 0.0
  %6147 = vmatprep.subr.mxu0 0.0
  %6148 = vmatpush1.msra.mxu0 0.0
  %6149 = vmatprep.subr.mxu0 0.0
  %6150 = vmatpush1.msra.mxu0 0.0
  %6151 = vmatprep.subr.mxu0 0.0
  %6152 = vmatpush1.msra.mxu0 0.0
  %6153 = vmatprep.subr.mxu0 0.0
  %6154 = vmatpush1.msra.mxu0 0.0
  %6155 = vmatprep.subr.mxu0 0.0
  %6156 = vmatpush1.msra.mxu0 0.0
  %6157 = vmatprep.subr.mxu0 0.0
  %6158 = vmatpush1.msra.mxu0 0.0
  %6159 = vmatprep.subr.mxu0 0.0
  %6160 = vmatpush1.msra.mxu0 0.0
  %6161 = vmatprep.subr.mxu0 0.0
  %6162 = vmatpush1.msra.mxu0 0.0
  %6163 = vmatprep.subr.mxu0 0.0
  %6164 = vmatpush1.msra.mxu0 0.0
  %6165 = vmatprep.subr.mxu0 0.0
  %6166 = vmatpush1.msra.mxu0 0.0
  %6167 = vmatprep.subr.mxu0 0.0
  %6168 = vmatpush1.msra.mxu0 0.0
  %6169 = vmatprep.subr.mxu0 0.0
  %6170 = vmatpush1.msra.mxu0 0.0
  %6171 = vmatprep.subr.mxu0 0.0
  %6172 = vmatpush1.msra.mxu0 0.0
  %6173 = vmatprep.subr.mxu0 0.0
  %6174 = vmatpush1.msra.mxu0 0.0
  %6175 = vmatprep.subr.mxu0 0.0
  %6176 = vmatpush1.msra.mxu0 0.0
  %6177 = vmatprep.subr.mxu0 0.0
  %6178 = vmatpush1.msra.mxu0 0.0
  %6179 = vmatprep.subr.mxu0 0.0
  %6180 = vmatpush1.msra.mxu0 0.0
  %6181 = vmatprep.subr.mxu0 0.0
  %6182 = vmatpush1.msra.mxu0 0.0
  %6183 = vmatprep.subr.mxu0 0.0
  %6184 = vmatpush1.msra.mxu0 0.0
  %6185 = vmatprep.subr.mxu0 0.0
  %6186 = vmatpush1.msra.mxu0 0.0
  %6187 = vmatprep.subr.mxu0 0.0
  %6188 = vmatpush1.msra.mxu0 0.0
  %6189 = vmatprep.subr.mxu0 0.0
  %6190 = vmatpush1.msra.mxu0 0.0
  %6191 = vmatprep.subr.mxu0 0.0
  %6192 = vmatpush1.msra.mxu0 0.0
  %6193 = vmatprep.subr.mxu0 0.0
  %6194 = vmatpush1.msra.mxu0 0.0
  %6195 = vmatprep.mubr.f32.mxu0 0.0
  %6196 = vmatmul.mubr.f32.gmra.mrb[0].mxu0 %v4412
  %v6197 = vpop.f32.mrb[0].mxu0
  %v6198 = vadd.f32 0.0, %v6197
  %v6199 = vpop.f32.mrb[0].mxu0
  %6200 = vmatprep.mubr.f32.mxu0 0.0
  %6201 = vmatmul.mubr.f32.gmra.mrb[0].mxu0 %v4415
  %v6202 = vpop.f32.mrb[0].mxu0
  %v6203 = vadd.f32 0.0, %v6202
  %v6204 = vpop.f32.mrb[0].mxu0
  %6205 = vmatprep.mubr.f32.mxu0 0.0
  %6206 = vmatmul.mubr.f32.gmra.mrb[0].mxu0 %v4418
  %v6207 = vpop.f32.mrb[0].mxu0
  %v6208 = vadd.f32 0.0, %v6207
  %v6209 = vpop.f32.mrb[0].mxu0
  %6210 = vmatprep.mubr.f32.mxu0 0.0
  %6211 = vmatmul.mubr.f32.gmra.mrb[0].mxu0 %v4421
  %v6212 = vpop.f32.mrb[0].mxu0
  %v6213 = vadd.f32 0.0, %v6212
  %v6214 = vpop.f32.mrb[0].mxu0
  %6215 = vdwg.mxu0
  %v6216 = vadd.f32 %v6121, %v6198
  %v6217 = vadd.f32 %v6122, %v6203
  %v6218 = vadd.f32 %v6123, %v6208
  %v6219 = vadd.f32 %v6124, %v6213
  %6220 = vrot.lane.b32.xlu0 %v4066, 64
  %v6221 = vpop.permute.xlu0 %6220
  %6222 = vrot.lane.b32.xlu0 %v4072, 64
  %v6223 = vpop.permute.xlu0 %6222
  %6226 = vmatprep.subr.mxu0 0.0
  %6227 = vmatpush1.msra.mxu0 %v6221
  %6228 = vmatprep.subr.mxu0 0.0
  %6229 = vmatpush1.msra.mxu0 %v6223
  %6230 = vmatprep.subr.mxu0 0.0
  %6231 = vmatpush1.msra.mxu0 0.0
  %6232 = vmatprep.subr.mxu0 0.0
  %6233 = vmatpush1.msra.mxu0 0.0
  %6234 = vmatprep.subr.mxu0 0.0
  %6235 = vmatpush1.msra.mxu0 0.0
  %6236 = vmatprep.subr.mxu0 0.0
  %6237 = vmatpush1.msra.mxu0 0.0
  %6238 = vmatprep.subr.mxu0 0.0
  %6239 = vmatpush1.msra.mxu0 0.0
  %6240 = vmatprep.subr.mxu0 0.0
  %6241 = vmatpush1.msra.mxu0 0.0
  %6242 = vmatprep.subr.mxu0 0.0
  %6243 = vmatpush1.msra.mxu0 0.0
  %6244 = vmatprep.subr.mxu0 0.0
  %6245 = vmatpush1.msra.mxu0 0.0
  %6246 = vmatprep.subr.mxu0 0.0
  %6247 = vmatpush1.msra.mxu0 0.0
  %6248 = vmatprep.subr.mxu0 0.0
  %6249 = vmatpush1.msra.mxu0 0.0
  %6250 = vmatprep.subr.mxu0 0.0
  %6251 = vmatpush1.msra.mxu0 0.0
  %6252 = vmatprep.subr.mxu0 0.0
  %6253 = vmatpush1.msra.mxu0 0.0
  %6254 = vmatprep.subr.mxu0 0.0
  %6255 = vmatpush1.msra.mxu0 0.0
  %6256 = vmatprep.subr.mxu0 0.0
  %6257 = vmatpush1.msra.mxu0 0.0
  %6258 = vmatprep.subr.mxu0 0.0
  %6259 = vmatpush1.msra.mxu0 0.0
  %6260 = vmatprep.subr.mxu0 0.0
  %6261 = vmatpush1.msra.mxu0 0.0
  %6262 = vmatprep.subr.mxu0 0.0
  %6263 = vmatpush1.msra.mxu0 0.0
  %6264 = vmatprep.subr.mxu0 0.0
  %6265 = vmatpush1.msra.mxu0 0.0
  %6266 = vmatprep.subr.mxu0 0.0
  %6267 = vmatpush1.msra.mxu0 0.0
  %6268 = vmatprep.subr.mxu0 0.0
  %6269 = vmatpush1.msra.mxu0 0.0
  %6270 = vmatprep.subr.mxu0 0.0
  %6271 = vmatpush1.msra.mxu0 0.0
  %6272 = vmatprep.subr.mxu0 0.0
  %6273 = vmatpush1.msra.mxu0 0.0
  %6274 = vmatprep.subr.mxu0 0.0
  %6275 = vmatpush1.msra.mxu0 0.0
  %6276 = vmatprep.subr.mxu0 0.0
  %6277 = vmatpush1.msra.mxu0 0.0
  %6278 = vmatprep.subr.mxu0 0.0
  %6279 = vmatpush1.msra.mxu0 0.0
  %6280 = vmatprep.subr.mxu0 0.0
  %6281 = vmatpush1.msra.mxu0 0.0
  %6282 = vmatprep.subr.mxu0 0.0
  %6283 = vmatpush1.msra.mxu0 0.0
  %6284 = vmatprep.subr.mxu0 0.0
  %6285 = vmatpush1.msra.mxu0 0.0
  %6286 = vmatprep.subr.mxu0 0.0
  %6287 = vmatpush1.msra.mxu0 0.0
  %6288 = vmatprep.subr.mxu0 0.0
  %6289 = vmatpush1.msra.mxu0 0.0
  %6290 = vmatprep.mubr.f32.mxu0 0.0
  %6291 = vmatmul.mubr.f32.gmra.mrb[0].mxu0 %v4524
  %v6292 = vpop.f32.mrb[0].mxu0
  %v6293 = vadd.f32 0.0, %v6292
  %v6294 = vpop.f32.mrb[0].mxu0
  %6295 = vmatprep.mubr.f32.mxu0 0.0
  %6296 = vmatmul.mubr.f32.gmra.mrb[0].mxu0 %v4527
  %v6297 = vpop.f32.mrb[0].mxu0
  %v6298 = vadd.f32 0.0, %v6297
  %v6299 = vpop.f32.mrb[0].mxu0
  %6300 = vmatprep.mubr.f32.mxu0 0.0
  %6301 = vmatmul.mubr.f32.gmra.mrb[0].mxu0 %v4530
  %v6302 = vpop.f32.mrb[0].mxu0
  %v6303 = vadd.f32 0.0, %v6302
  %v6304 = vpop.f32.mrb[0].mxu0
  %6305 = vmatprep.mubr.f32.mxu0 0.0
  %6306 = vmatmul.mubr.f32.gmra.mrb[0].mxu0 %v4533
  %v6307 = vpop.f32.mrb[0].mxu0
  %v6308 = vadd.f32 0.0, %v6307
  %v6309 = vpop.f32.mrb[0].mxu0
  %6310 = vdwg.mxu0
  %v6311 = vadd.f32 %v6216, %v6293
  %v6312 = vadd.f32 %v6217, %v6298
  %v6313 = vadd.f32 %v6218, %v6303
  %v6314 = vadd.f32 %v6219, %v6308
  %6315 = vrot.lane.b32.xlu0 %v4066, 48
  %v6316 = vpop.permute.xlu0 %6315
  %6317 = vrot.lane.b32.xlu0 %v4072, 48
  %v6318 = vpop.permute.xlu0 %6317
  %6321 = vmatprep.subr.mxu0 0.0
  %6322 = vmatpush1.msra.mxu0 %v6316
  %6323 = vmatprep.subr.mxu0 0.0
  %6324 = vmatpush1.msra.mxu0 %v6318
  %6325 = vmatprep.subr.mxu0 0.0
  %6326 = vmatpush1.msra.mxu0 0.0
  %6327 = vmatprep.subr.mxu0 0.0
  %6328 = vmatpush1.msra.mxu0 0.0
  %6329 = vmatprep.subr.mxu0 0.0
  %6330 = vmatpush1.msra.mxu0 0.0
  %6331 = vmatprep.subr.mxu0 0.0
  %6332 = vmatpush1.msra.mxu0 0.0
  %6333 = vmatprep.subr.mxu0 0.0
  %6334 = vmatpush1.msra.mxu0 0.0
  %6335 = vmatprep.subr.mxu0 0.0
  %6336 = vmatpush1.msra.mxu0 0.0
  %6337 = vmatprep.subr.mxu0 0.0
  %6338 = vmatpush1.msra.mxu0 0.0
  %6339 = vmatprep.subr.mxu0 0.0
  %6340 = vmatpush1.msra.mxu0 0.0
  %6341 = vmatprep.subr.mxu0 0.0
  %6342 = vmatpush1.msra.mxu0 0.0
  %6343 = vmatprep.subr.mxu0 0.0
  %6344 = vmatpush1.msra.mxu0 0.0
  %6345 = vmatprep.subr.mxu0 0.0
  %6346 = vmatpush1.msra.mxu0 0.0
  %6347 = vmatprep.subr.mxu0 0.0
  %6348 = vmatpush1.msra.mxu0 0.0
  %6349 = vmatprep.subr.mxu0 0.0
  %6350 = vmatpush1.msra.mxu0 0.0
  %6351 = vmatprep.subr.mxu0 0.0
  %6352 = vmatpush1.msra.mxu0 0.0
  %6353 = vmatprep.subr.mxu0 0.0
  %6354 = vmatpush1.msra.mxu0 0.0
  %6355 = vmatprep.subr.mxu0 0.0
  %6356 = vmatpush1.msra.mxu0 0.0
  %6357 = vmatprep.subr.mxu0 0.0
  %6358 = vmatpush1.msra.mxu0 0.0
  %6359 = vmatprep.subr.mxu0 0.0
  %6360 = vmatpush1.msra.mxu0 0.0
  %6361 = vmatprep.subr.mxu0 0.0
  %6362 = vmatpush1.msra.mxu0 0.0
  %6363 = vmatprep.subr.mxu0 0.0
  %6364 = vmatpush1.msra.mxu0 0.0
  %6365 = vmatprep.subr.mxu0 0.0
  %6366 = vmatpush1.msra.mxu0 0.0
  %6367 = vmatprep.subr.mxu0 0.0
  %6368 = vmatpush1.msra.mxu0 0.0
  %6369 = vmatprep.subr.mxu0 0.0
  %6370 = vmatpush1.msra.mxu0 0.0
  %6371 = vmatprep.subr.mxu0 0.0
  %6372 = vmatpush1.msra.mxu0 0.0
  %6373 = vmatprep.subr.mxu0 0.0
  %6374 = vmatpush1.msra.mxu0 0.0
  %6375 = vmatprep.subr.mxu0 0.0
  %6376 = vmatpush1.msra.mxu0 0.0
  %6377 = vmatprep.subr.mxu0 0.0
  %6378 = vmatpush1.msra.mxu0 0.0
  %6379 = vmatprep.subr.mxu0 0.0
  %6380 = vmatpush1.msra.mxu0 0.0
  %6381 = vmatprep.subr.mxu0 0.0
  %6382 = vmatpush1.msra.mxu0 0.0
  %6383 = vmatprep.subr.mxu0 0.0
  %6384 = vmatpush1.msra.mxu0 0.0
  %6385 = vmatprep.mubr.f32.mxu0 0.0
  %6386 = vmatmul.mubr.f32.gmra.mrb[0].mxu0 %v4636
  %v6387 = vpop.f32.mrb[0].mxu0
  %v6388 = vadd.f32 0.0, %v6387
  %v6389 = vpop.f32.mrb[0].mxu0
  %6390 = vmatprep.mubr.f32.mxu0 0.0
  %6391 = vmatmul.mubr.f32.gmra.mrb[0].mxu0 %v4639
  %v6392 = vpop.f32.mrb[0].mxu0
  %v6393 = vadd.f32 0.0, %v6392
  %v6394 = vpop.f32.mrb[0].mxu0
  %6395 = vmatprep.mubr.f32.mxu0 0.0
  %6396 = vmatmul.mubr.f32.gmra.mrb[0].mxu0 %v4642
  %v6397 = vpop.f32.mrb[0].mxu0
  %v6398 = vadd.f32 0.0, %v6397
  %v6399 = vpop.f32.mrb[0].mxu0
  %6400 = vmatprep.mubr.f32.mxu0 0.0
  %6401 = vmatmul.mubr.f32.gmra.mrb[0].mxu0 %v4645
  %v6402 = vpop.f32.mrb[0].mxu0
  %v6403 = vadd.f32 0.0, %v6402
  %v6404 = vpop.f32.mrb[0].mxu0
  %6405 = vdwg.mxu0
  %v6406 = vadd.f32 %v6311, %v6388
  %v6407 = vadd.f32 %v6312, %v6393
  %v6408 = vadd.f32 %v6313, %v6398
  %v6409 = vadd.f32 %v6314, %v6403
  %6410 = vrot.lane.b32.xlu0 %v4066, 32
  %v6411 = vpop.permute.xlu0 %6410
  %6412 = vrot.lane.b32.xlu0 %v4072, 32
  %v6413 = vpop.permute.xlu0 %6412
  %6416 = vmatprep.subr.mxu0 0.0
  %6417 = vmatpush1.msra.mxu0 %v6411
  %6418 = vmatprep.subr.mxu0 0.0
  %6419 = vmatpush1.msra.mxu0 %v6413
  %6420 = vmatprep.subr.mxu0 0.0
  %6421 = vmatpush1.msra.mxu0 0.0
  %6422 = vmatprep.subr.mxu0 0.0
  %6423 = vmatpush1.msra.mxu0 0.0
  %6424 = vmatprep.subr.mxu0 0.0
  %6425 = vmatpush1.msra.mxu0 0.0
  %6426 = vmatprep.subr.mxu0 0.0
  %6427 = vmatpush1.msra.mxu0 0.0
  %6428 = vmatprep.subr.mxu0 0.0
  %6429 = vmatpush1.msra.mxu0 0.0
  %6430 = vmatprep.subr.mxu0 0.0
  %6431 = vmatpush1.msra.mxu0 0.0
  %6432 = vmatprep.subr.mxu0 0.0
  %6433 = vmatpush1.msra.mxu0 0.0
  %6434 = vmatprep.subr.mxu0 0.0
  %6435 = vmatpush1.msra.mxu0 0.0
  %6436 = vmatprep.subr.mxu0 0.0
  %6437 = vmatpush1.msra.mxu0 0.0
  %6438 = vmatprep.subr.mxu0 0.0
  %6439 = vmatpush1.msra.mxu0 0.0
  %6440 = vmatprep.subr.mxu0 0.0
  %6441 = vmatpush1.msra.mxu0 0.0
  %6442 = vmatprep.subr.mxu0 0.0
  %6443 = vmatpush1.msra.mxu0 0.0
  %6444 = vmatprep.subr.mxu0 0.0
  %6445 = vmatpush1.msra.mxu0 0.0
  %6446 = vmatprep.subr.mxu0 0.0
  %6447 = vmatpush1.msra.mxu0 0.0
  %6448 = vmatprep.subr.mxu0 0.0
  %6449 = vmatpush1.msra.mxu0 0.0
  %6450 = vmatprep.subr.mxu0 0.0
  %6451 = vmatpush1.msra.mxu0 0.0
  %6452 = vmatprep.subr.mxu0 0.0
  %6453 = vmatpush1.msra.mxu0 0.0
  %6454 = vmatprep.subr.mxu0 0.0
  %6455 = vmatpush1.msra.mxu0 0.0
  %6456 = vmatprep.subr.mxu0 0.0
  %6457 = vmatpush1.msra.mxu0 0.0
  %6458 = vmatprep.subr.mxu0 0.0
  %6459 = vmatpush1.msra.mxu0 0.0
  %6460 = vmatprep.subr.mxu0 0.0
  %6461 = vmatpush1.msra.mxu0 0.0
  %6462 = vmatprep.subr.mxu0 0.0
  %6463 = vmatpush1.msra.mxu0 0.0
  %6464 = vmatprep.subr.mxu0 0.0
  %6465 = vmatpush1.msra.mxu0 0.0
  %6466 = vmatprep.subr.mxu0 0.0
  %6467 = vmatpush1.msra.mxu0 0.0
  %6468 = vmatprep.subr.mxu0 0.0
  %6469 = vmatpush1.msra.mxu0 0.0
  %6470 = vmatprep.subr.mxu0 0.0
  %6471 = vmatpush1.msra.mxu0 0.0
  %6472 = vmatprep.subr.mxu0 0.0
  %6473 = vmatpush1.msra.mxu0 0.0
  %6474 = vmatprep.subr.mxu0 0.0
  %6475 = vmatpush1.msra.mxu0 0.0
  %6476 = vmatprep.subr.mxu0 0.0
  %6477 = vmatpush1.msra.mxu0 0.0
  %6478 = vmatprep.subr.mxu0 0.0
  %6479 = vmatpush1.msra.mxu0 0.0
  %6480 = vmatprep.mubr.f32.mxu0 0.0
  %6481 = vmatmul.mubr.f32.gmra.mrb[0].mxu0 %v4748
  %v6482 = vpop.f32.mrb[0].mxu0
  %v6483 = vadd.f32 0.0, %v6482
  %v6484 = vpop.f32.mrb[0].mxu0
  %6485 = vmatprep.mubr.f32.mxu0 0.0
  %6486 = vmatmul.mubr.f32.gmra.mrb[0].mxu0 %v4751
  %v6487 = vpop.f32.mrb[0].mxu0
  %v6488 = vadd.f32 0.0, %v6487
  %v6489 = vpop.f32.mrb[0].mxu0
  %6490 = vmatprep.mubr.f32.mxu0 0.0
  %6491 = vmatmul.mubr.f32.gmra.mrb[0].mxu0 %v4754
  %v6492 = vpop.f32.mrb[0].mxu0
  %v6493 = vadd.f32 0.0, %v6492
  %v6494 = vpop.f32.mrb[0].mxu0
  %6495 = vmatprep.mubr.f32.mxu0 0.0
  %6496 = vmatmul.mubr.f32.gmra.mrb[0].mxu0 %v4757
  %v6497 = vpop.f32.mrb[0].mxu0
  %v6498 = vadd.f32 0.0, %v6497
  %v6499 = vpop.f32.mrb[0].mxu0
  %6500 = vdwg.mxu0
  %v6501 = vadd.f32 %v6406, %v6483
  %v6502 = vadd.f32 %v6407, %v6488
  %v6503 = vadd.f32 %v6408, %v6493
  %v6504 = vadd.f32 %v6409, %v6498
  %6505 = vrot.lane.b32.xlu0 %v4066, 16
  %v6506 = vpop.permute.xlu0 %6505
  %6507 = vrot.lane.b32.xlu0 %v4072, 16
  %v6508 = vpop.permute.xlu0 %6507
  %6511 = vmatprep.subr.mxu0 0.0
  %6512 = vmatpush1.msra.mxu0 %v6506
  %6513 = vmatprep.subr.mxu0 0.0
  %6514 = vmatpush1.msra.mxu0 %v6508
  %6515 = vmatprep.subr.mxu0 0.0
  %6516 = vmatpush1.msra.mxu0 0.0
  %6517 = vmatprep.subr.mxu0 0.0
  %6518 = vmatpush1.msra.mxu0 0.0
  %6519 = vmatprep.subr.mxu0 0.0
  %6520 = vmatpush1.msra.mxu0 0.0
  %6521 = vmatprep.subr.mxu0 0.0
  %6522 = vmatpush1.msra.mxu0 0.0
  %6523 = vmatprep.subr.mxu0 0.0
  %6524 = vmatpush1.msra.mxu0 0.0
  %6525 = vmatprep.subr.mxu0 0.0
  %6526 = vmatpush1.msra.mxu0 0.0
  %6527 = vmatprep.subr.mxu0 0.0
  %6528 = vmatpush1.msra.mxu0 0.0
  %6529 = vmatprep.subr.mxu0 0.0
  %6530 = vmatpush1.msra.mxu0 0.0
  %6531 = vmatprep.subr.mxu0 0.0
  %6532 = vmatpush1.msra.mxu0 0.0
  %6533 = vmatprep.subr.mxu0 0.0
  %6534 = vmatpush1.msra.mxu0 0.0
  %6535 = vmatprep.subr.mxu0 0.0
  %6536 = vmatpush1.msra.mxu0 0.0
  %6537 = vmatprep.subr.mxu0 0.0
  %6538 = vmatpush1.msra.mxu0 0.0
  %6539 = vmatprep.subr.mxu0 0.0
  %6540 = vmatpush1.msra.mxu0 0.0
  %6541 = vmatprep.subr.mxu0 0.0
  %6542 = vmatpush1.msra.mxu0 0.0
  %6543 = vmatprep.subr.mxu0 0.0
  %6544 = vmatpush1.msra.mxu0 0.0
  %6545 = vmatprep.subr.mxu0 0.0
  %6546 = vmatpush1.msra.mxu0 0.0
  %6547 = vmatprep.subr.mxu0 0.0
  %6548 = vmatpush1.msra.mxu0 0.0
  %6549 = vmatprep.subr.mxu0 0.0
  %6550 = vmatpush1.msra.mxu0 0.0
  %6551 = vmatprep.subr.mxu0 0.0
  %6552 = vmatpush1.msra.mxu0 0.0
  %6553 = vmatprep.subr.mxu0 0.0
  %6554 = vmatpush1.msra.mxu0 0.0
  %6555 = vmatprep.subr.mxu0 0.0
  %6556 = vmatpush1.msra.mxu0 0.0
  %6557 = vmatprep.subr.mxu0 0.0
  %6558 = vmatpush1.msra.mxu0 0.0
  %6559 = vmatprep.subr.mxu0 0.0
  %6560 = vmatpush1.msra.mxu0 0.0
  %6561 = vmatprep.subr.mxu0 0.0
  %6562 = vmatpush1.msra.mxu0 0.0
  %6563 = vmatprep.subr.mxu0 0.0
  %6564 = vmatpush1.msra.mxu0 0.0
  %6565 = vmatprep.subr.mxu0 0.0
  %6566 = vmatpush1.msra.mxu0 0.0
  %6567 = vmatprep.subr.mxu0 0.0
  %6568 = vmatpush1.msra.mxu0 0.0
  %6569 = vmatprep.subr.mxu0 0.0
  %6570 = vmatpush1.msra.mxu0 0.0
  %6571 = vmatprep.subr.mxu0 0.0
  %6572 = vmatpush1.msra.mxu0 0.0
  %6573 = vmatprep.subr.mxu0 0.0
  %6574 = vmatpush1.msra.mxu0 0.0
  %6575 = vmatprep.mubr.f32.mxu0 0.0
  %6576 = vmatmul.mubr.f32.gmra.mrb[0].mxu0 %v4860
  %v6577 = vpop.f32.mrb[0].mxu0
  %v6578 = vadd.f32 0.0, %v6577
  %v6579 = vpop.f32.mrb[0].mxu0
  %6580 = vmatprep.mubr.f32.mxu0 0.0
  %6581 = vmatmul.mubr.f32.gmra.mrb[0].mxu0 %v4863
  %v6582 = vpop.f32.mrb[0].mxu0
  %v6583 = vadd.f32 0.0, %v6582
  %v6584 = vpop.f32.mrb[0].mxu0
  %6585 = vmatprep.mubr.f32.mxu0 0.0
  %6586 = vmatmul.mubr.f32.gmra.mrb[0].mxu0 %v4866
  %v6587 = vpop.f32.mrb[0].mxu0
  %v6588 = vadd.f32 0.0, %v6587
  %v6589 = vpop.f32.mrb[0].mxu0
  %6590 = vmatprep.mubr.f32.mxu0 0.0
  %6591 = vmatmul.mubr.f32.gmra.mrb[0].mxu0 %v4869
  %v6592 = vpop.f32.mrb[0].mxu0
  %v6593 = vadd.f32 0.0, %v6592
  %v6594 = vpop.f32.mrb[0].mxu0
  %6595 = vdwg.mxu0
  %v6596 = vadd.f32 %v6501, %v6578
  %v6597 = vadd.f32 %v6502, %v6583
  %v6598 = vadd.f32 %v6503, %v6588
  %v6599 = vadd.f32 %v6504, %v6593
  %6600 = vmatprep.subr.mxu0 0.0
  %6601 = vmatpush1.msra.mxu0 %v4068
  %6602 = vmatprep.subr.mxu0 0.0
  %6603 = vmatpush1.msra.mxu0 %v4074
  %6604 = vmatprep.subr.mxu0 0.0
  %6605 = vmatpush1.msra.mxu0 0.0
  %6606 = vmatprep.subr.mxu0 0.0
  %6607 = vmatpush1.msra.mxu0 0.0
  %6608 = vmatprep.subr.mxu0 0.0
  %6609 = vmatpush1.msra.mxu0 0.0
  %6610 = vmatprep.subr.mxu0 0.0
  %6611 = vmatpush1.msra.mxu0 0.0
  %6612 = vmatprep.subr.mxu0 0.0
  %6613 = vmatpush1.msra.mxu0 0.0
  %6614 = vmatprep.subr.mxu0 0.0
  %6615 = vmatpush1.msra.mxu0 0.0
  %6616 = vmatprep.subr.mxu0 0.0
  %6617 = vmatpush1.msra.mxu0 0.0
  %6618 = vmatprep.subr.mxu0 0.0
  %6619 = vmatpush1.msra.mxu0 0.0
  %6620 = vmatprep.subr.mxu0 0.0
  %6621 = vmatpush1.msra.mxu0 0.0
  %6622 = vmatprep.subr.mxu0 0.0
  %6623 = vmatpush1.msra.mxu0 0.0
  %6624 = vmatprep.subr.mxu0 0.0
  %6625 = vmatpush1.msra.mxu0 0.0
  %6626 = vmatprep.subr.mxu0 0.0
  %6627 = vmatpush1.msra.mxu0 0.0
  %6628 = vmatprep.subr.mxu0 0.0
  %6629 = vmatpush1.msra.mxu0 0.0
  %6630 = vmatprep.subr.mxu0 0.0
  %6631 = vmatpush1.msra.mxu0 0.0
  %6632 = vmatprep.subr.mxu0 0.0
  %6633 = vmatpush1.msra.mxu0 0.0
  %6634 = vmatprep.subr.mxu0 0.0
  %6635 = vmatpush1.msra.mxu0 0.0
  %6636 = vmatprep.subr.mxu0 0.0
  %6637 = vmatpush1.msra.mxu0 0.0
  %6638 = vmatprep.subr.mxu0 0.0
  %6639 = vmatpush1.msra.mxu0 0.0
  %6640 = vmatprep.subr.mxu0 0.0
  %6641 = vmatpush1.msra.mxu0 0.0
  %6642 = vmatprep.subr.mxu0 0.0
  %6643 = vmatpush1.msra.mxu0 0.0
  %6644 = vmatprep.subr.mxu0 0.0
  %6645 = vmatpush1.msra.mxu0 0.0
  %6646 = vmatprep.subr.mxu0 0.0
  %6647 = vmatpush1.msra.mxu0 0.0
  %6648 = vmatprep.subr.mxu0 0.0
  %6649 = vmatpush1.msra.mxu0 0.0
  %6650 = vmatprep.subr.mxu0 0.0
  %6651 = vmatpush1.msra.mxu0 0.0
  %6652 = vmatprep.subr.mxu0 0.0
  %6653 = vmatpush1.msra.mxu0 0.0
  %6654 = vmatprep.subr.mxu0 0.0
  %6655 = vmatpush1.msra.mxu0 0.0
  %6656 = vmatprep.subr.mxu0 0.0
  %6657 = vmatpush1.msra.mxu0 0.0
  %6658 = vmatprep.subr.mxu0 0.0
  %6659 = vmatpush1.msra.mxu0 0.0
  %6660 = vmatprep.subr.mxu0 0.0
  %6661 = vmatpush1.msra.mxu0 0.0
  %6662 = vmatprep.subr.mxu0 0.0
  %6663 = vmatpush1.msra.mxu0 0.0
  %6664 = vmatprep.mubr.f32.mxu0 0.0
  %6665 = vmatmul.mubr.f32.gmra.mrb[0].mxu0 %v4966
  %v6666 = vpop.f32.mrb[0].mxu0
  %v6667 = vadd.f32 0.0, %v6666
  %v6668 = vpop.f32.mrb[0].mxu0
  %6669 = vmatprep.mubr.f32.mxu0 0.0
  %6670 = vmatmul.mubr.f32.gmra.mrb[0].mxu0 %v4969
  %v6671 = vpop.f32.mrb[0].mxu0
  %v6672 = vadd.f32 0.0, %v6671
  %v6673 = vpop.f32.mrb[0].mxu0
  %6674 = vmatprep.mubr.f32.mxu0 0.0
  %6675 = vmatmul.mubr.f32.gmra.mrb[0].mxu0 %v4972
  %v6676 = vpop.f32.mrb[0].mxu0
  %v6677 = vadd.f32 0.0, %v6676
  %v6678 = vpop.f32.mrb[0].mxu0
  %6679 = vmatprep.mubr.f32.mxu0 0.0
  %6680 = vmatmul.mubr.f32.gmra.mrb[0].mxu0 %v4975
  %v6681 = vpop.f32.mrb[0].mxu0
  %v6682 = vadd.f32 0.0, %v6681
  %v6683 = vpop.f32.mrb[0].mxu0
  %6684 = vdwg.mxu0
  %v6685 = vadd.f32 %v6596, %v6667
  %v6686 = vadd.f32 %v6597, %v6672
  %v6687 = vadd.f32 %v6598, %v6677
  %v6688 = vadd.f32 %v6599, %v6682
  %6691 = vrot.lane.b32.xlu0 %v4068, 112
  %v6692 = vpop.permute.xlu0 %6691
  %6693 = vrot.lane.b32.xlu0 %v4074, 112
  %v6694 = vpop.permute.xlu0 %6693
  %6697 = vmatprep.subr.mxu0 0.0
  %6698 = vmatpush1.msra.mxu0 %v6692
  %6699 = vmatprep.subr.mxu0 0.0
  %6700 = vmatpush1.msra.mxu0 %v6694
  %6701 = vmatprep.subr.mxu0 0.0
  %6702 = vmatpush1.msra.mxu0 0.0
  %6703 = vmatprep.subr.mxu0 0.0
  %6704 = vmatpush1.msra.mxu0 0.0
  %6705 = vmatprep.subr.mxu0 0.0
  %6706 = vmatpush1.msra.mxu0 0.0
  %6707 = vmatprep.subr.mxu0 0.0
  %6708 = vmatpush1.msra.mxu0 0.0
  %6709 = vmatprep.subr.mxu0 0.0
  %6710 = vmatpush1.msra.mxu0 0.0
  %6711 = vmatprep.subr.mxu0 0.0
  %6712 = vmatpush1.msra.mxu0 0.0
  %6713 = vmatprep.subr.mxu0 0.0
  %6714 = vmatpush1.msra.mxu0 0.0
  %6715 = vmatprep.subr.mxu0 0.0
  %6716 = vmatpush1.msra.mxu0 0.0
  %6717 = vmatprep.subr.mxu0 0.0
  %6718 = vmatpush1.msra.mxu0 0.0
  %6719 = vmatprep.subr.mxu0 0.0
  %6720 = vmatpush1.msra.mxu0 0.0
  %6721 = vmatprep.subr.mxu0 0.0
  %6722 = vmatpush1.msra.mxu0 0.0
  %6723 = vmatprep.subr.mxu0 0.0
  %6724 = vmatpush1.msra.mxu0 0.0
  %6725 = vmatprep.subr.mxu0 0.0
  %6726 = vmatpush1.msra.mxu0 0.0
  %6727 = vmatprep.subr.mxu0 0.0
  %6728 = vmatpush1.msra.mxu0 0.0
  %6729 = vmatprep.subr.mxu0 0.0
  %6730 = vmatpush1.msra.mxu0 0.0
  %6731 = vmatprep.subr.mxu0 0.0
  %6732 = vmatpush1.msra.mxu0 0.0
  %6733 = vmatprep.subr.mxu0 0.0
  %6734 = vmatpush1.msra.mxu0 0.0
  %6735 = vmatprep.subr.mxu0 0.0
  %6736 = vmatpush1.msra.mxu0 0.0
  %6737 = vmatprep.subr.mxu0 0.0
  %6738 = vmatpush1.msra.mxu0 0.0
  %6739 = vmatprep.subr.mxu0 0.0
  %6740 = vmatpush1.msra.mxu0 0.0
  %6741 = vmatprep.subr.mxu0 0.0
  %6742 = vmatpush1.msra.mxu0 0.0
  %6743 = vmatprep.subr.mxu0 0.0
  %6744 = vmatpush1.msra.mxu0 0.0
  %6745 = vmatprep.subr.mxu0 0.0
  %6746 = vmatpush1.msra.mxu0 0.0
  %6747 = vmatprep.subr.mxu0 0.0
  %6748 = vmatpush1.msra.mxu0 0.0
  %6749 = vmatprep.subr.mxu0 0.0
  %6750 = vmatpush1.msra.mxu0 0.0
  %6751 = vmatprep.subr.mxu0 0.0
  %6752 = vmatpush1.msra.mxu0 0.0
  %6753 = vmatprep.subr.mxu0 0.0
  %6754 = vmatpush1.msra.mxu0 0.0
  %6755 = vmatprep.subr.mxu0 0.0
  %6756 = vmatpush1.msra.mxu0 0.0
  %6757 = vmatprep.subr.mxu0 0.0
  %6758 = vmatpush1.msra.mxu0 0.0
  %6759 = vmatprep.subr.mxu0 0.0
  %6760 = vmatpush1.msra.mxu0 0.0
  %6761 = vmatprep.mubr.f32.mxu0 0.0
  %6762 = vmatmul.mubr.f32.gmra.mrb[0].mxu0 %v5080
  %v6763 = vpop.f32.mrb[0].mxu0
  %v6764 = vadd.f32 0.0, %v6763
  %v6765 = vpop.f32.mrb[0].mxu0
  %6766 = vmatprep.mubr.f32.mxu0 0.0
  %6767 = vmatmul.mubr.f32.gmra.mrb[0].mxu0 %v5083
  %v6768 = vpop.f32.mrb[0].mxu0
  %v6769 = vadd.f32 0.0, %v6768
  %v6770 = vpop.f32.mrb[0].mxu0
  %6771 = vmatprep.mubr.f32.mxu0 0.0
  %6772 = vmatmul.mubr.f32.gmra.mrb[0].mxu0 %v5086
  %v6773 = vpop.f32.mrb[0].mxu0
  %v6774 = vadd.f32 0.0, %v6773
  %v6775 = vpop.f32.mrb[0].mxu0
  %6776 = vmatprep.mubr.f32.mxu0 0.0
  %6777 = vmatmul.mubr.f32.gmra.mrb[0].mxu0 %v5089
  %v6778 = vpop.f32.mrb[0].mxu0
  %v6779 = vadd.f32 0.0, %v6778
  %v6780 = vpop.f32.mrb[0].mxu0
  %6781 = vdwg.mxu0
  %v6782 = vadd.f32 %v6685, %v6764
  %v6783 = vadd.f32 %v6686, %v6769
  %v6784 = vadd.f32 %v6687, %v6774
  %v6785 = vadd.f32 %v6688, %v6779
  %6786 = vrot.lane.b32.xlu0 %v4068, 96
  %v6787 = vpop.permute.xlu0 %6786
  %6788 = vrot.lane.b32.xlu0 %v4074, 96
  %v6789 = vpop.permute.xlu0 %6788
  %6792 = vmatprep.subr.mxu0 0.0
  %6793 = vmatpush1.msra.mxu0 %v6787
  %6794 = vmatprep.subr.mxu0 0.0
  %6795 = vmatpush1.msra.mxu0 %v6789
  %6796 = vmatprep.subr.mxu0 0.0
  %6797 = vmatpush1.msra.mxu0 0.0
  %6798 = vmatprep.subr.mxu0 0.0
  %6799 = vmatpush1.msra.mxu0 0.0
  %6800 = vmatprep.subr.mxu0 0.0
  %6801 = vmatpush1.msra.mxu0 0.0
  %6802 = vmatprep.subr.mxu0 0.0
  %6803 = vmatpush1.msra.mxu0 0.0
  %6804 = vmatprep.subr.mxu0 0.0
  %6805 = vmatpush1.msra.mxu0 0.0
  %6806 = vmatprep.subr.mxu0 0.0
  %6807 = vmatpush1.msra.mxu0 0.0
  %6808 = vmatprep.subr.mxu0 0.0
  %6809 = vmatpush1.msra.mxu0 0.0
  %6810 = vmatprep.subr.mxu0 0.0
  %6811 = vmatpush1.msra.mxu0 0.0
  %6812 = vmatprep.subr.mxu0 0.0
  %6813 = vmatpush1.msra.mxu0 0.0
  %6814 = vmatprep.subr.mxu0 0.0
  %6815 = vmatpush1.msra.mxu0 0.0
  %6816 = vmatprep.subr.mxu0 0.0
  %6817 = vmatpush1.msra.mxu0 0.0
  %6818 = vmatprep.subr.mxu0 0.0
  %6819 = vmatpush1.msra.mxu0 0.0
  %6820 = vmatprep.subr.mxu0 0.0
  %6821 = vmatpush1.msra.mxu0 0.0
  %6822 = vmatprep.subr.mxu0 0.0
  %6823 = vmatpush1.msra.mxu0 0.0
  %6824 = vmatprep.subr.mxu0 0.0
  %6825 = vmatpush1.msra.mxu0 0.0
  %6826 = vmatprep.subr.mxu0 0.0
  %6827 = vmatpush1.msra.mxu0 0.0
  %6828 = vmatprep.subr.mxu0 0.0
  %6829 = vmatpush1.msra.mxu0 0.0
  %6830 = vmatprep.subr.mxu0 0.0
  %6831 = vmatpush1.msra.mxu0 0.0
  %6832 = vmatprep.subr.mxu0 0.0
  %6833 = vmatpush1.msra.mxu0 0.0
  %6834 = vmatprep.subr.mxu0 0.0
  %6835 = vmatpush1.msra.mxu0 0.0
  %6836 = vmatprep.subr.mxu0 0.0
  %6837 = vmatpush1.msra.mxu0 0.0
  %6838 = vmatprep.subr.mxu0 0.0
  %6839 = vmatpush1.msra.mxu0 0.0
  %6840 = vmatprep.subr.mxu0 0.0
  %6841 = vmatpush1.msra.mxu0 0.0
  %6842 = vmatprep.subr.mxu0 0.0
  %6843 = vmatpush1.msra.mxu0 0.0
  %6844 = vmatprep.subr.mxu0 0.0
  %6845 = vmatpush1.msra.mxu0 0.0
  %6846 = vmatprep.subr.mxu0 0.0
  %6847 = vmatpush1.msra.mxu0 0.0
  %6848 = vmatprep.subr.mxu0 0.0
  %6849 = vmatpush1.msra.mxu0 0.0
  %6850 = vmatprep.subr.mxu0 0.0
  %6851 = vmatpush1.msra.mxu0 0.0
  %6852 = vmatprep.subr.mxu0 0.0
  %6853 = vmatpush1.msra.mxu0 0.0
  %6854 = vmatprep.subr.mxu0 0.0
  %6855 = vmatpush1.msra.mxu0 0.0
  %6856 = vmatprep.mubr.f32.mxu0 0.0
  %6857 = vmatmul.mubr.f32.gmra.mrb[0].mxu0 %v5192
  %v6858 = vpop.f32.mrb[0].mxu0
  %v6859 = vadd.f32 0.0, %v6858
  %v6860 = vpop.f32.mrb[0].mxu0
  %6861 = vmatprep.mubr.f32.mxu0 0.0
  %6862 = vmatmul.mubr.f32.gmra.mrb[0].mxu0 %v5195
  %v6863 = vpop.f32.mrb[0].mxu0
  %v6864 = vadd.f32 0.0, %v6863
  %v6865 = vpop.f32.mrb[0].mxu0
  %6866 = vmatprep.mubr.f32.mxu0 0.0
  %6867 = vmatmul.mubr.f32.gmra.mrb[0].mxu0 %v5198
  %v6868 = vpop.f32.mrb[0].mxu0
  %v6869 = vadd.f32 0.0, %v6868
  %v6870 = vpop.f32.mrb[0].mxu0
  %6871 = vmatprep.mubr.f32.mxu0 0.0
  %6872 = vmatmul.mubr.f32.gmra.mrb[0].mxu0 %v5201
  %v6873 = vpop.f32.mrb[0].mxu0
  %v6874 = vadd.f32 0.0, %v6873
  %v6875 = vpop.f32.mrb[0].mxu0
  %6876 = vdwg.mxu0
  %v6877 = vadd.f32 %v6782, %v6859
  %v6878 = vadd.f32 %v6783, %v6864
  %v6879 = vadd.f32 %v6784, %v6869
  %v6880 = vadd.f32 %v6785, %v6874
  %6881 = vrot.lane.b32.xlu0 %v4068, 80
  %v6882 = vpop.permute.xlu0 %6881
  %6883 = vrot.lane.b32.xlu0 %v4074, 80
  %v6884 = vpop.permute.xlu0 %6883
  %6887 = vmatprep.subr.mxu0 0.0
  %6888 = vmatpush1.msra.mxu0 %v6882
  %6889 = vmatprep.subr.mxu0 0.0
  %6890 = vmatpush1.msra.mxu0 %v6884
  %6891 = vmatprep.subr.mxu0 0.0
  %6892 = vmatpush1.msra.mxu0 0.0
  %6893 = vmatprep.subr.mxu0 0.0
  %6894 = vmatpush1.msra.mxu0 0.0
  %6895 = vmatprep.subr.mxu0 0.0
  %6896 = vmatpush1.msra.mxu0 0.0
  %6897 = vmatprep.subr.mxu0 0.0
  %6898 = vmatpush1.msra.mxu0 0.0
  %6899 = vmatprep.subr.mxu0 0.0
  %6900 = vmatpush1.msra.mxu0 0.0
  %6901 = vmatprep.subr.mxu0 0.0
  %6902 = vmatpush1.msra.mxu0 0.0
  %6903 = vmatprep.subr.mxu0 0.0
  %6904 = vmatpush1.msra.mxu0 0.0
  %6905 = vmatprep.subr.mxu0 0.0
  %6906 = vmatpush1.msra.mxu0 0.0
  %6907 = vmatprep.subr.mxu0 0.0
  %6908 = vmatpush1.msra.mxu0 0.0
  %6909 = vmatprep.subr.mxu0 0.0
  %6910 = vmatpush1.msra.mxu0 0.0
  %6911 = vmatprep.subr.mxu0 0.0
  %6912 = vmatpush1.msra.mxu0 0.0
  %6913 = vmatprep.subr.mxu0 0.0
  %6914 = vmatpush1.msra.mxu0 0.0
  %6915 = vmatprep.subr.mxu0 0.0
  %6916 = vmatpush1.msra.mxu0 0.0
  %6917 = vmatprep.subr.mxu0 0.0
  %6918 = vmatpush1.msra.mxu0 0.0
  %6919 = vmatprep.subr.mxu0 0.0
  %6920 = vmatpush1.msra.mxu0 0.0
  %6921 = vmatprep.subr.mxu0 0.0
  %6922 = vmatpush1.msra.mxu0 0.0
  %6923 = vmatprep.subr.mxu0 0.0
  %6924 = vmatpush1.msra.mxu0 0.0
  %6925 = vmatprep.subr.mxu0 0.0
  %6926 = vmatpush1.msra.mxu0 0.0
  %6927 = vmatprep.subr.mxu0 0.0
  %6928 = vmatpush1.msra.mxu0 0.0
  %6929 = vmatprep.subr.mxu0 0.0
  %6930 = vmatpush1.msra.mxu0 0.0
  %6931 = vmatprep.subr.mxu0 0.0
  %6932 = vmatpush1.msra.mxu0 0.0
  %6933 = vmatprep.subr.mxu0 0.0
  %6934 = vmatpush1.msra.mxu0 0.0
  %6935 = vmatprep.subr.mxu0 0.0
  %6936 = vmatpush1.msra.mxu0 0.0
  %6937 = vmatprep.subr.mxu0 0.0
  %6938 = vmatpush1.msra.mxu0 0.0
  %6939 = vmatprep.subr.mxu0 0.0
  %6940 = vmatpush1.msra.mxu0 0.0
  %6941 = vmatprep.subr.mxu0 0.0
  %6942 = vmatpush1.msra.mxu0 0.0
  %6943 = vmatprep.subr.mxu0 0.0
  %6944 = vmatpush1.msra.mxu0 0.0
  %6945 = vmatprep.subr.mxu0 0.0
  %6946 = vmatpush1.msra.mxu0 0.0
  %6947 = vmatprep.subr.mxu0 0.0
  %6948 = vmatpush1.msra.mxu0 0.0
  %6949 = vmatprep.subr.mxu0 0.0
  %6950 = vmatpush1.msra.mxu0 0.0
  %6951 = vmatprep.mubr.f32.mxu0 0.0
  %6952 = vmatmul.mubr.f32.gmra.mrb[0].mxu0 %v5304
  %v6953 = vpop.f32.mrb[0].mxu0
  %v6954 = vadd.f32 0.0, %v6953
  %v6955 = vpop.f32.mrb[0].mxu0
  %6956 = vmatprep.mubr.f32.mxu0 0.0
  %6957 = vmatmul.mubr.f32.gmra.mrb[0].mxu0 %v5307
  %v6958 = vpop.f32.mrb[0].mxu0
  %v6959 = vadd.f32 0.0, %v6958
  %v6960 = vpop.f32.mrb[0].mxu0
  %6961 = vmatprep.mubr.f32.mxu0 0.0
  %6962 = vmatmul.mubr.f32.gmra.mrb[0].mxu0 %v5310
  %v6963 = vpop.f32.mrb[0].mxu0
  %v6964 = vadd.f32 0.0, %v6963
  %v6965 = vpop.f32.mrb[0].mxu0
  %6966 = vmatprep.mubr.f32.mxu0 0.0
  %6967 = vmatmul.mubr.f32.gmra.mrb[0].mxu0 %v5313
  %v6968 = vpop.f32.mrb[0].mxu0
  %v6969 = vadd.f32 0.0, %v6968
  %v6970 = vpop.f32.mrb[0].mxu0
  %6971 = vdwg.mxu0
  %v6972 = vadd.f32 %v6877, %v6954
  %v6973 = vadd.f32 %v6878, %v6959
  %v6974 = vadd.f32 %v6879, %v6964
  %v6975 = vadd.f32 %v6880, %v6969
  %6976 = vrot.lane.b32.xlu0 %v4068, 64
  %v6977 = vpop.permute.xlu0 %6976
  %6978 = vrot.lane.b32.xlu0 %v4074, 64
  %v6979 = vpop.permute.xlu0 %6978
  %6982 = vmatprep.subr.mxu0 0.0
  %6983 = vmatpush1.msra.mxu0 %v6977
  %6984 = vmatprep.subr.mxu0 0.0
  %6985 = vmatpush1.msra.mxu0 %v6979
  %6986 = vmatprep.subr.mxu0 0.0
  %6987 = vmatpush1.msra.mxu0 0.0
  %6988 = vmatprep.subr.mxu0 0.0
  %6989 = vmatpush1.msra.mxu0 0.0
  %6990 = vmatprep.subr.mxu0 0.0
  %6991 = vmatpush1.msra.mxu0 0.0
  %6992 = vmatprep.subr.mxu0 0.0
  %6993 = vmatpush1.msra.mxu0 0.0
  %6994 = vmatprep.subr.mxu0 0.0
  %6995 = vmatpush1.msra.mxu0 0.0
  %6996 = vmatprep.subr.mxu0 0.0
  %6997 = vmatpush1.msra.mxu0 0.0
  %6998 = vmatprep.subr.mxu0 0.0
  %6999 = vmatpush1.msra.mxu0 0.0
  %7000 = vmatprep.subr.mxu0 0.0
  %7001 = vmatpush1.msra.mxu0 0.0
  %7002 = vmatprep.subr.mxu0 0.0
  %7003 = vmatpush1.msra.mxu0 0.0
  %7004 = vmatprep.subr.mxu0 0.0
  %7005 = vmatpush1.msra.mxu0 0.0
  %7006 = vmatprep.subr.mxu0 0.0
  %7007 = vmatpush1.msra.mxu0 0.0
  %7008 = vmatprep.subr.mxu0 0.0
  %7009 = vmatpush1.msra.mxu0 0.0
  %7010 = vmatprep.subr.mxu0 0.0
  %7011 = vmatpush1.msra.mxu0 0.0
  %7012 = vmatprep.subr.mxu0 0.0
  %7013 = vmatpush1.msra.mxu0 0.0
  %7014 = vmatprep.subr.mxu0 0.0
  %7015 = vmatpush1.msra.mxu0 0.0
  %7016 = vmatprep.subr.mxu0 0.0
  %7017 = vmatpush1.msra.mxu0 0.0
  %7018 = vmatprep.subr.mxu0 0.0
  %7019 = vmatpush1.msra.mxu0 0.0
  %7020 = vmatprep.subr.mxu0 0.0
  %7021 = vmatpush1.msra.mxu0 0.0
  %7022 = vmatprep.subr.mxu0 0.0
  %7023 = vmatpush1.msra.mxu0 0.0
  %7024 = vmatprep.subr.mxu0 0.0
  %7025 = vmatpush1.msra.mxu0 0.0
  %7026 = vmatprep.subr.mxu0 0.0
  %7027 = vmatpush1.msra.mxu0 0.0
  %7028 = vmatprep.subr.mxu0 0.0
  %7029 = vmatpush1.msra.mxu0 0.0
  %7030 = vmatprep.subr.mxu0 0.0
  %7031 = vmatpush1.msra.mxu0 0.0
  %7032 = vmatprep.subr.mxu0 0.0
  %7033 = vmatpush1.msra.mxu0 0.0
  %7034 = vmatprep.subr.mxu0 0.0
  %7035 = vmatpush1.msra.mxu0 0.0
  %7036 = vmatprep.subr.mxu0 0.0
  %7037 = vmatpush1.msra.mxu0 0.0
  %7038 = vmatprep.subr.mxu0 0.0
  %7039 = vmatpush1.msra.mxu0 0.0
  %7040 = vmatprep.subr.mxu0 0.0
  %7041 = vmatpush1.msra.mxu0 0.0
  %7042 = vmatprep.subr.mxu0 0.0
  %7043 = vmatpush1.msra.mxu0 0.0
  %7044 = vmatprep.subr.mxu0 0.0
  %7045 = vmatpush1.msra.mxu0 0.0
  %7046 = vmatprep.mubr.f32.mxu0 0.0
  %7047 = vmatmul.mubr.f32.gmra.mrb[0].mxu0 %v5416
  %v7048 = vpop.f32.mrb[0].mxu0
  %v7049 = vadd.f32 0.0, %v7048
  %v7050 = vpop.f32.mrb[0].mxu0
  %7051 = vmatprep.mubr.f32.mxu0 0.0
  %7052 = vmatmul.mubr.f32.gmra.mrb[0].mxu0 %v5419
  %v7053 = vpop.f32.mrb[0].mxu0
  %v7054 = vadd.f32 0.0, %v7053
  %v7055 = vpop.f32.mrb[0].mxu0
  %7056 = vmatprep.mubr.f32.mxu0 0.0
  %7057 = vmatmul.mubr.f32.gmra.mrb[0].mxu0 %v5422
  %v7058 = vpop.f32.mrb[0].mxu0
  %v7059 = vadd.f32 0.0, %v7058
  %v7060 = vpop.f32.mrb[0].mxu0
  %7061 = vmatprep.mubr.f32.mxu0 0.0
  %7062 = vmatmul.mubr.f32.gmra.mrb[0].mxu0 %v5425
  %v7063 = vpop.f32.mrb[0].mxu0
  %v7064 = vadd.f32 0.0, %v7063
  %v7065 = vpop.f32.mrb[0].mxu0
  %7066 = vdwg.mxu0
  %v7067 = vadd.f32 %v6972, %v7049
  %v7068 = vadd.f32 %v6973, %v7054
  %v7069 = vadd.f32 %v6974, %v7059
  %v7070 = vadd.f32 %v6975, %v7064
  %7071 = vrot.lane.b32.xlu0 %v4068, 48
  %v7072 = vpop.permute.xlu0 %7071
  %7073 = vrot.lane.b32.xlu0 %v4074, 48
  %v7074 = vpop.permute.xlu0 %7073
  %7077 = vmatprep.subr.mxu0 0.0
  %7078 = vmatpush1.msra.mxu0 %v7072
  %7079 = vmatprep.subr.mxu0 0.0
  %7080 = vmatpush1.msra.mxu0 %v7074
  %7081 = vmatprep.subr.mxu0 0.0
  %7082 = vmatpush1.msra.mxu0 0.0
  %7083 = vmatprep.subr.mxu0 0.0
  %7084 = vmatpush1.msra.mxu0 0.0
  %7085 = vmatprep.subr.mxu0 0.0
  %7086 = vmatpush1.msra.mxu0 0.0
  %7087 = vmatprep.subr.mxu0 0.0
  %7088 = vmatpush1.msra.mxu0 0.0
  %7089 = vmatprep.subr.mxu0 0.0
  %7090 = vmatpush1.msra.mxu0 0.0
  %7091 = vmatprep.subr.mxu0 0.0
  %7092 = vmatpush1.msra.mxu0 0.0
  %7093 = vmatprep.subr.mxu0 0.0
  %7094 = vmatpush1.msra.mxu0 0.0
  %7095 = vmatprep.subr.mxu0 0.0
  %7096 = vmatpush1.msra.mxu0 0.0
  %7097 = vmatprep.subr.mxu0 0.0
  %7098 = vmatpush1.msra.mxu0 0.0
  %7099 = vmatprep.subr.mxu0 0.0
  %7100 = vmatpush1.msra.mxu0 0.0
  %7101 = vmatprep.subr.mxu0 0.0
  %7102 = vmatpush1.msra.mxu0 0.0
  %7103 = vmatprep.subr.mxu0 0.0
  %7104 = vmatpush1.msra.mxu0 0.0
  %7105 = vmatprep.subr.mxu0 0.0
  %7106 = vmatpush1.msra.mxu0 0.0
  %7107 = vmatprep.subr.mxu0 0.0
  %7108 = vmatpush1.msra.mxu0 0.0
  %7109 = vmatprep.subr.mxu0 0.0
  %7110 = vmatpush1.msra.mxu0 0.0
  %7111 = vmatprep.subr.mxu0 0.0
  %7112 = vmatpush1.msra.mxu0 0.0
  %7113 = vmatprep.subr.mxu0 0.0
  %7114 = vmatpush1.msra.mxu0 0.0
  %7115 = vmatprep.subr.mxu0 0.0
  %7116 = vmatpush1.msra.mxu0 0.0
  %7117 = vmatprep.subr.mxu0 0.0
  %7118 = vmatpush1.msra.mxu0 0.0
  %7119 = vmatprep.subr.mxu0 0.0
  %7120 = vmatpush1.msra.mxu0 0.0
  %7121 = vmatprep.subr.mxu0 0.0
  %7122 = vmatpush1.msra.mxu0 0.0
  %7123 = vmatprep.subr.mxu0 0.0
  %7124 = vmatpush1.msra.mxu0 0.0
  %7125 = vmatprep.subr.mxu0 0.0
  %7126 = vmatpush1.msra.mxu0 0.0
  %7127 = vmatprep.subr.mxu0 0.0
  %7128 = vmatpush1.msra.mxu0 0.0
  %7129 = vmatprep.subr.mxu0 0.0
  %7130 = vmatpush1.msra.mxu0 0.0
  %7131 = vmatprep.subr.mxu0 0.0
  %7132 = vmatpush1.msra.mxu0 0.0
  %7133 = vmatprep.subr.mxu0 0.0
  %7134 = vmatpush1.msra.mxu0 0.0
  %7135 = vmatprep.subr.mxu0 0.0
  %7136 = vmatpush1.msra.mxu0 0.0
  %7137 = vmatprep.subr.mxu0 0.0
  %7138 = vmatpush1.msra.mxu0 0.0
  %7139 = vmatprep.subr.mxu0 0.0
  %7140 = vmatpush1.msra.mxu0 0.0
  %7141 = vmatprep.mubr.f32.mxu0 0.0
  %7142 = vmatmul.mubr.f32.gmra.mrb[0].mxu0 %v5528
  %v7143 = vpop.f32.mrb[0].mxu0
  %v7144 = vadd.f32 0.0, %v7143
  %v7145 = vpop.f32.mrb[0].mxu0
  %7146 = vmatprep.mubr.f32.mxu0 0.0
  %7147 = vmatmul.mubr.f32.gmra.mrb[0].mxu0 %v5531
  %v7148 = vpop.f32.mrb[0].mxu0
  %v7149 = vadd.f32 0.0, %v7148
  %v7150 = vpop.f32.mrb[0].mxu0
  %7151 = vmatprep.mubr.f32.mxu0 0.0
  %7152 = vmatmul.mubr.f32.gmra.mrb[0].mxu0 %v5534
  %v7153 = vpop.f32.mrb[0].mxu0
  %v7154 = vadd.f32 0.0, %v7153
  %v7155 = vpop.f32.mrb[0].mxu0
  %7156 = vmatprep.mubr.f32.mxu0 0.0
  %7157 = vmatmul.mubr.f32.gmra.mrb[0].mxu0 %v5537
  %v7158 = vpop.f32.mrb[0].mxu0
  %v7159 = vadd.f32 0.0, %v7158
  %v7160 = vpop.f32.mrb[0].mxu0
  %7161 = vdwg.mxu0
  %v7162 = vadd.f32 %v7067, %v7144
  %v7163 = vadd.f32 %v7068, %v7149
  %v7164 = vadd.f32 %v7069, %v7154
  %v7165 = vadd.f32 %v7070, %v7159
  %7166 = vrot.lane.b32.xlu0 %v4068, 32
  %v7167 = vpop.permute.xlu0 %7166
  %7168 = vrot.lane.b32.xlu0 %v4074, 32
  %v7169 = vpop.permute.xlu0 %7168
  %7172 = vmatprep.subr.mxu0 0.0
  %7173 = vmatpush1.msra.mxu0 %v7167
  %7174 = vmatprep.subr.mxu0 0.0
  %7175 = vmatpush1.msra.mxu0 %v7169
  %7176 = vmatprep.subr.mxu0 0.0
  %7177 = vmatpush1.msra.mxu0 0.0
  %7178 = vmatprep.subr.mxu0 0.0
  %7179 = vmatpush1.msra.mxu0 0.0
  %7180 = vmatprep.subr.mxu0 0.0
  %7181 = vmatpush1.msra.mxu0 0.0
  %7182 = vmatprep.subr.mxu0 0.0
  %7183 = vmatpush1.msra.mxu0 0.0
  %7184 = vmatprep.subr.mxu0 0.0
  %7185 = vmatpush1.msra.mxu0 0.0
  %7186 = vmatprep.subr.mxu0 0.0
  %7187 = vmatpush1.msra.mxu0 0.0
  %7188 = vmatprep.subr.mxu0 0.0
  %7189 = vmatpush1.msra.mxu0 0.0
  %7190 = vmatprep.subr.mxu0 0.0
  %7191 = vmatpush1.msra.mxu0 0.0
  %7192 = vmatprep.subr.mxu0 0.0
  %7193 = vmatpush1.msra.mxu0 0.0
  %7194 = vmatprep.subr.mxu0 0.0
  %7195 = vmatpush1.msra.mxu0 0.0
  %7196 = vmatprep.subr.mxu0 0.0
  %7197 = vmatpush1.msra.mxu0 0.0
  %7198 = vmatprep.subr.mxu0 0.0
  %7199 = vmatpush1.msra.mxu0 0.0
  %7200 = vmatprep.subr.mxu0 0.0
  %7201 = vmatpush1.msra.mxu0 0.0
  %7202 = vmatprep.subr.mxu0 0.0
  %7203 = vmatpush1.msra.mxu0 0.0
  %7204 = vmatprep.subr.mxu0 0.0
  %7205 = vmatpush1.msra.mxu0 0.0
  %7206 = vmatprep.subr.mxu0 0.0
  %7207 = vmatpush1.msra.mxu0 0.0
  %7208 = vmatprep.subr.mxu0 0.0
  %7209 = vmatpush1.msra.mxu0 0.0
  %7210 = vmatprep.subr.mxu0 0.0
  %7211 = vmatpush1.msra.mxu0 0.0
  %7212 = vmatprep.subr.mxu0 0.0
  %7213 = vmatpush1.msra.mxu0 0.0
  %7214 = vmatprep.subr.mxu0 0.0
  %7215 = vmatpush1.msra.mxu0 0.0
  %7216 = vmatprep.subr.mxu0 0.0
  %7217 = vmatpush1.msra.mxu0 0.0
  %7218 = vmatprep.subr.mxu0 0.0
  %7219 = vmatpush1.msra.mxu0 0.0
  %7220 = vmatprep.subr.mxu0 0.0
  %7221 = vmatpush1.msra.mxu0 0.0
  %7222 = vmatprep.subr.mxu0 0.0
  %7223 = vmatpush1.msra.mxu0 0.0
  %7224 = vmatprep.subr.mxu0 0.0
  %7225 = vmatpush1.msra.mxu0 0.0
  %7226 = vmatprep.subr.mxu0 0.0
  %7227 = vmatpush1.msra.mxu0 0.0
  %7228 = vmatprep.subr.mxu0 0.0
  %7229 = vmatpush1.msra.mxu0 0.0
  %7230 = vmatprep.subr.mxu0 0.0
  %7231 = vmatpush1.msra.mxu0 0.0
  %7232 = vmatprep.subr.mxu0 0.0
  %7233 = vmatpush1.msra.mxu0 0.0
  %7234 = vmatprep.subr.mxu0 0.0
  %7235 = vmatpush1.msra.mxu0 0.0
  %7236 = vmatprep.mubr.f32.mxu0 0.0
  %7237 = vmatmul.mubr.f32.gmra.mrb[0].mxu0 %v5640
  %v7238 = vpop.f32.mrb[0].mxu0
  %v7239 = vadd.f32 0.0, %v7238
  %v7240 = vpop.f32.mrb[0].mxu0
  %7241 = vmatprep.mubr.f32.mxu0 0.0
  %7242 = vmatmul.mubr.f32.gmra.mrb[0].mxu0 %v5643
  %v7243 = vpop.f32.mrb[0].mxu0
  %v7244 = vadd.f32 0.0, %v7243
  %v7245 = vpop.f32.mrb[0].mxu0
  %7246 = vmatprep.mubr.f32.mxu0 0.0
  %7247 = vmatmul.mubr.f32.gmra.mrb[0].mxu0 %v5646
  %v7248 = vpop.f32.mrb[0].mxu0
  %v7249 = vadd.f32 0.0, %v7248
  %v7250 = vpop.f32.mrb[0].mxu0
  %7251 = vmatprep.mubr.f32.mxu0 0.0
  %7252 = vmatmul.mubr.f32.gmra.mrb[0].mxu0 %v5649
  %v7253 = vpop.f32.mrb[0].mxu0
  %v7254 = vadd.f32 0.0, %v7253
  %v7255 = vpop.f32.mrb[0].mxu0
  %7256 = vdwg.mxu0
  %v7257 = vadd.f32 %v7162, %v7239
  %v7258 = vadd.f32 %v7163, %v7244
  %v7259 = vadd.f32 %v7164, %v7249
  %v7260 = vadd.f32 %v7165, %v7254
  %7261 = vrot.lane.b32.xlu0 %v4068, 16
  %v7262 = vpop.permute.xlu0 %7261
  %7263 = vrot.lane.b32.xlu0 %v4074, 16
  %v7264 = vpop.permute.xlu0 %7263
  %7267 = vmatprep.subr.mxu0 0.0
  %7268 = vmatpush1.msra.mxu0 %v7262
  %7269 = vmatprep.subr.mxu0 0.0
  %7270 = vmatpush1.msra.mxu0 %v7264
  %7271 = vmatprep.subr.mxu0 0.0
  %7272 = vmatpush1.msra.mxu0 0.0
  %7273 = vmatprep.subr.mxu0 0.0
  %7274 = vmatpush1.msra.mxu0 0.0
  %7275 = vmatprep.subr.mxu0 0.0
  %7276 = vmatpush1.msra.mxu0 0.0
  %7277 = vmatprep.subr.mxu0 0.0
  %7278 = vmatpush1.msra.mxu0 0.0
  %7279 = vmatprep.subr.mxu0 0.0
  %7280 = vmatpush1.msra.mxu0 0.0
  %7281 = vmatprep.subr.mxu0 0.0
  %7282 = vmatpush1.msra.mxu0 0.0
  %7283 = vmatprep.subr.mxu0 0.0
  %7284 = vmatpush1.msra.mxu0 0.0
  %7285 = vmatprep.subr.mxu0 0.0
  %7286 = vmatpush1.msra.mxu0 0.0
  %7287 = vmatprep.subr.mxu0 0.0
  %7288 = vmatpush1.msra.mxu0 0.0
  %7289 = vmatprep.subr.mxu0 0.0
  %7290 = vmatpush1.msra.mxu0 0.0
  %7291 = vmatprep.subr.mxu0 0.0
  %7292 = vmatpush1.msra.mxu0 0.0
  %7293 = vmatprep.subr.mxu0 0.0
  %7294 = vmatpush1.msra.mxu0 0.0
  %7295 = vmatprep.subr.mxu0 0.0
  %7296 = vmatpush1.msra.mxu0 0.0
  %7297 = vmatprep.subr.mxu0 0.0
  %7298 = vmatpush1.msra.mxu0 0.0
  %7299 = vmatprep.subr.mxu0 0.0
  %7300 = vmatpush1.msra.mxu0 0.0
  %7301 = vmatprep.subr.mxu0 0.0
  %7302 = vmatpush1.msra.mxu0 0.0
  %7303 = vmatprep.subr.mxu0 0.0
  %7304 = vmatpush1.msra.mxu0 0.0
  %7305 = vmatprep.subr.mxu0 0.0
  %7306 = vmatpush1.msra.mxu0 0.0
  %7307 = vmatprep.subr.mxu0 0.0
  %7308 = vmatpush1.msra.mxu0 0.0
  %7309 = vmatprep.subr.mxu0 0.0
  %7310 = vmatpush1.msra.mxu0 0.0
  %7311 = vmatprep.subr.mxu0 0.0
  %7312 = vmatpush1.msra.mxu0 0.0
  %7313 = vmatprep.subr.mxu0 0.0
  %7314 = vmatpush1.msra.mxu0 0.0
  %7315 = vmatprep.subr.mxu0 0.0
  %7316 = vmatpush1.msra.mxu0 0.0
  %7317 = vmatprep.subr.mxu0 0.0
  %7318 = vmatpush1.msra.mxu0 0.0
  %7319 = vmatprep.subr.mxu0 0.0
  %7320 = vmatpush1.msra.mxu0 0.0
  %7321 = vmatprep.subr.mxu0 0.0
  %7322 = vmatpush1.msra.mxu0 0.0
  %7323 = vmatprep.subr.mxu0 0.0
  %7324 = vmatpush1.msra.mxu0 0.0
  %7325 = vmatprep.subr.mxu0 0.0
  %7326 = vmatpush1.msra.mxu0 0.0
  %7327 = vmatprep.subr.mxu0 0.0
  %7328 = vmatpush1.msra.mxu0 0.0
  %7329 = vmatprep.subr.mxu0 0.0
  %7330 = vmatpush1.msra.mxu0 0.0
  %7331 = vmatprep.mubr.f32.mxu0 0.0
  %7332 = vmatmul.mubr.f32.gmra.mrb[0].mxu0 %v5752
  %v7333 = vpop.f32.mrb[0].mxu0
  %v7334 = vadd.f32 0.0, %v7333
  %v7335 = vpop.f32.mrb[0].mxu0
  %7336 = vmatprep.mubr.f32.mxu0 0.0
  %7337 = vmatmul.mubr.f32.gmra.mrb[0].mxu0 %v5755
  %v7338 = vpop.f32.mrb[0].mxu0
  %v7339 = vadd.f32 0.0, %v7338
  %v7340 = vpop.f32.mrb[0].mxu0
  %7341 = vmatprep.mubr.f32.mxu0 0.0
  %7342 = vmatmul.mubr.f32.gmra.mrb[0].mxu0 %v5758
  %v7343 = vpop.f32.mrb[0].mxu0
  %v7344 = vadd.f32 0.0, %v7343
  %v7345 = vpop.f32.mrb[0].mxu0
  %7346 = vmatprep.mubr.f32.mxu0 0.0
  %7347 = vmatmul.mubr.f32.gmra.mrb[0].mxu0 %v5761
  %v7348 = vpop.f32.mrb[0].mxu0
  %v7349 = vadd.f32 0.0, %v7348
  %v7350 = vpop.f32.mrb[0].mxu0
  %7351 = vdwg.mxu0
  %v7352 = vadd.f32 %v7257, %v7334
  %v7353 = vadd.f32 %v7258, %v7339
  %v7354 = vadd.f32 %v7259, %v7344
  %v7355 = vadd.f32 %v7260, %v7349
  %v7356 = vsel %vm4093, %v5848, 0.0
  %7357 = vadd.xlane.f32.xlu0 %v7356
  %v7358 = vpop.xlane.xlu0 %7357
  %v7359 = vsel %vm4093, %v5849, 0.0
  %7360 = vadd.xlane.f32.xlu0 %v7359
  %v7361 = vpop.xlane.xlu0 %7360
  %v7362 = vsel %vm4093, %v5850, 0.0
  %7363 = vadd.xlane.f32.xlu0 %v7362
  %v7364 = vpop.xlane.xlu0 %7363
  %v7365 = vsel %vm4093, %v5851, 0.0
  %7366 = vadd.xlane.f32.xlu0 %v7365
  %v7367 = vpop.xlane.xlu0 %7366
  %v7368 = vsel %vm4093, %v7352, 0.0
  %7369 = vadd.xlane.f32.xlu0 %v7368
  %v7370 = vpop.xlane.xlu0 %7369
  %v7371 = vsel %vm4093, %v7353, 0.0
  %7372 = vadd.xlane.f32.xlu0 %v7371
  %v7373 = vpop.xlane.xlu0 %7372
  %v7374 = vsel %vm4093, %v7354, 0.0
  %7375 = vadd.xlane.f32.xlu0 %v7374
  %v7376 = vpop.xlane.xlu0 %7375
  %v7377 = vsel %vm4093, %v7355, 0.0
  %7378 = vadd.xlane.f32.xlu0 %v7377
  %v7379 = vpop.xlane.xlu0 %7378
  %v7380 = vmul.f32 %v5848, %v5848
  %v7381 = vmul.f32 %v5849, %v5849
  %v7382 = vmul.f32 %v5850, %v5850
  %v7383 = vmul.f32 %v5851, %v5851
  %v7384 = vmul.f32 %v7352, %v7352
  %v7385 = vmul.f32 %v7353, %v7353
  %v7386 = vmul.f32 %v7354, %v7354
  %v7387 = vmul.f32 %v7355, %v7355
  %v7388 = vsel %vm4093, %v7380, 0.0
  %7389 = vadd.xlane.f32.xlu0 %v7388
  %v7390 = vpop.xlane.xlu0 %7389
  %v7391 = vsel %vm4093, %v7381, 0.0
  %7392 = vadd.xlane.f32.xlu0 %v7391
  %v7393 = vpop.xlane.xlu0 %7392
  %v7394 = vsel %vm4093, %v7382, 0.0
  %7395 = vadd.xlane.f32.xlu0 %v7394
  %v7396 = vpop.xlane.xlu0 %7395
  %v7397 = vsel %vm4093, %v7383, 0.0
  %7398 = vadd.xlane.f32.xlu0 %v7397
  %v7399 = vpop.xlane.xlu0 %7398
  %v7400 = vsel %vm4093, %v7384, 0.0
  %7401 = vadd.xlane.f32.xlu0 %v7400
  %v7402 = vpop.xlane.xlu0 %7401
  %v7403 = vsel %vm4093, %v7385, 0.0
  %7404 = vadd.xlane.f32.xlu0 %v7403
  %v7405 = vpop.xlane.xlu0 %7404
  %v7406 = vsel %vm4093, %v7386, 0.0
  %7407 = vadd.xlane.f32.xlu0 %v7406
  %v7408 = vpop.xlane.xlu0 %7407
  %v7409 = vsel %vm4093, %v7387, 0.0
  %7410 = vadd.xlane.f32.xlu0 %v7409
  %v7411 = vpop.xlane.xlu0 %7410
  %v7412 = vadd.f32 %v7358, %v7370
  %v7413 = vadd.f32 %v7361, %v7373
  %v7414 = vadd.f32 %v7364, %v7376
  %v7415 = vadd.f32 %v7367, %v7379
  %v7416 = vadd.f32 %v7390, %v7402
  %v7417 = vadd.f32 %v7393, %v7405
  %v7418 = vadd.f32 %v7396, %v7408
  %v7419 = vadd.f32 %v7399, %v7411
  %v7420 = vmul.f32 %v7412, 0.03125
  %v7421 = vmul.f32 %v7413, 0.03125
  %v7422 = vmul.f32 %v7414, 0.03125
  %v7423 = vmul.f32 %v7415, 0.03125
  %v7424 = vmul.f32 %v7416, 0.03125
  %v7425 = vmul.f32 %v7417, 0.03125
  %v7426 = vmul.f32 %v7418, 0.03125
  %v7427 = vmul.f32 %v7419, 0.03125
  %v7428 = vmul.f32 %v7420, %v7420
  %v7429 = vmul.f32 %v7421, %v7421
  %v7430 = vmul.f32 %v7422, %v7422
  %v7431 = vmul.f32 %v7423, %v7423
  %v7432 = vsub.f32 %v7424, %v7428
  %v7433 = vsub.f32 %v7425, %v7429
  %v7434 = vsub.f32 %v7426, %v7430
  %v7435 = vsub.f32 %v7427, %v7431
  %v7436 = vmax.f32 %v7432, 0.0
  %v7437 = vmax.f32 %v7433, 0.0
  %v7438 = vmax.f32 %v7434, 0.0
  %v7439 = vmax.f32 %v7435, 0.0
  %v7440 = vadd.f32 %v7436, 1e-05
  %v7441 = vadd.f32 %v7437, 1e-05
  %v7442 = vadd.f32 %v7438, 1e-05
  %v7443 = vadd.f32 %v7439, 1e-05
  %v7444 = vrsqrt.pop %v7440
  %v7445 = vrsqrt.pop %v7441
  %v7446 = vrsqrt.pop %v7442
  %v7447 = vrsqrt.pop %v7443
  %7449 = vset.pattern.permute.xlu0 0
  %7450 = vperm.xlu0 %7449, %v7420
  %v7451 = vpop.permute.xlu0 %7450
  %7454 = vset.pattern.permute.xlu0 0
  %7455 = vperm.xlu0 %7454, %v7421
  %v7456 = vpop.permute.xlu0 %7455
  %7459 = vset.pattern.permute.xlu0 0
  %7460 = vperm.xlu0 %7459, %v7422
  %v7461 = vpop.permute.xlu0 %7460
  %7464 = vset.pattern.permute.xlu0 0
  %7465 = vperm.xlu0 %7464, %v7423
  %v7466 = vpop.permute.xlu0 %7465
  %v7468 = vsub.f32 %v5848, %v7451
  %v7469 = vsub.f32 %v5849, %v7456
  %v7470 = vsub.f32 %v5850, %v7461
  %v7471 = vsub.f32 %v5851, %v7466
  %v7472 = vsub.f32 %v7352, %v7451
  %v7473 = vsub.f32 %v7353, %v7456
  %v7474 = vsub.f32 %v7354, %v7461
  %v7475 = vsub.f32 %v7355, %v7466
  %7477 = vset.pattern.permute.xlu0 0
  %7478 = vperm.xlu0 %7477, %v7444
  %v7479 = vpop.permute.xlu0 %7478
  %7482 = vset.pattern.permute.xlu0 0
  %7483 = vperm.xlu0 %7482, %v7445
  %v7484 = vpop.permute.xlu0 %7483
  %7487 = vset.pattern.permute.xlu0 0
  %7488 = vperm.xlu0 %7487, %v7446
  %v7489 = vpop.permute.xlu0 %7488
  %7492 = vset.pattern.permute.xlu0 0
  %7493 = vperm.xlu0 %7492, %v7447
  %v7494 = vpop.permute.xlu0 %7493
  %v7496 = vmul.f32 %v7468, %v7479
  %v7497 = vmul.f32 %v7469, %v7484
  %v7498 = vmul.f32 %v7470, %v7489
  %v7499 = vmul.f32 %v7471, %v7494
  %v7500 = vmul.f32 %v7472, %v7479
  %v7501 = vmul.f32 %v7473, %v7484
  %v7502 = vmul.f32 %v7474, %v7489
  %v7503 = vmul.f32 %v7475, %v7494
  %v7504 = vld [vmem:[%s9] sm:$0xff]
  %v7505 = vld [vmem:[%s9 + $0x8] sm:$0xff]
  %v7506 = vld [vmem:[%s9 + $0x10] sm:$0xff]
  %v7507 = vld [vmem:[%s9 + $0x18] sm:$0xff]
  %v7508 = vld [vmem:[%s9 + $0x20] sm:$0xff]
  %v7509 = vld [vmem:[%s9 + $0x28] sm:$0xff]
  %v7510 = vld [vmem:[%s9 + $0x30] sm:$0xff]
  %v7511 = vld [vmem:[%s9 + $0x38] sm:$0xff]
  %7513 = vset.pattern.permute.xlu0 0
  %7514 = vperm.xlu0 %7513, %v7504
  %v7515 = vpop.permute.xlu0 %7514
  %7518 = vset.pattern.permute.xlu0 0
  %7519 = vperm.xlu0 %7518, %v7505
  %v7520 = vpop.permute.xlu0 %7519
  %7523 = vset.pattern.permute.xlu0 0
  %7524 = vperm.xlu0 %7523, %v7506
  %v7525 = vpop.permute.xlu0 %7524
  %7528 = vset.pattern.permute.xlu0 0
  %7529 = vperm.xlu0 %7528, %v7507
  %v7530 = vpop.permute.xlu0 %7529
  %7533 = vset.pattern.permute.xlu0 0
  %7534 = vperm.xlu0 %7533, %v7508
  %v7535 = vpop.permute.xlu0 %7534
  %7538 = vset.pattern.permute.xlu0 0
  %7539 = vperm.xlu0 %7538, %v7509
  %v7540 = vpop.permute.xlu0 %7539
  %7543 = vset.pattern.permute.xlu0 0
  %7544 = vperm.xlu0 %7543, %v7510
  %v7545 = vpop.permute.xlu0 %7544
  %7548 = vset.pattern.permute.xlu0 0
  %7549 = vperm.xlu0 %7548, %v7511
  %v7550 = vpop.permute.xlu0 %7549
  %v7552 = vmul.f32 %v7496, %v7515
  %v7553 = vmul.f32 %v7497, %v7520
  %v7554 = vmul.f32 %v7498, %v7525
  %v7555 = vmul.f32 %v7499, %v7530
  %v7556 = vmul.f32 %v7500, %v7535
  %v7557 = vmul.f32 %v7501, %v7540
  %v7558 = vmul.f32 %v7502, %v7545
  %v7559 = vmul.f32 %v7503, %v7550
  %v7560 = vld [vmem:[%s10] sm:$0xff]
  %v7561 = vld [vmem:[%s10 + $0x8] sm:$0xff]
  %v7562 = vld [vmem:[%s10 + $0x10] sm:$0xff]
  %v7563 = vld [vmem:[%s10 + $0x18] sm:$0xff]
  %v7564 = vld [vmem:[%s10 + $0x20] sm:$0xff]
  %v7565 = vld [vmem:[%s10 + $0x28] sm:$0xff]
  %v7566 = vld [vmem:[%s10 + $0x30] sm:$0xff]
  %v7567 = vld [vmem:[%s10 + $0x38] sm:$0xff]
  %7569 = vset.pattern.permute.xlu0 0
  %7570 = vperm.xlu0 %7569, %v7560
  %v7571 = vpop.permute.xlu0 %7570
  %7574 = vset.pattern.permute.xlu0 0
  %7575 = vperm.xlu0 %7574, %v7561
  %v7576 = vpop.permute.xlu0 %7575
  %7579 = vset.pattern.permute.xlu0 0
  %7580 = vperm.xlu0 %7579, %v7562
  %v7581 = vpop.permute.xlu0 %7580
  %7584 = vset.pattern.permute.xlu0 0
  %7585 = vperm.xlu0 %7584, %v7563
  %v7586 = vpop.permute.xlu0 %7585
  %7589 = vset.pattern.permute.xlu0 0
  %7590 = vperm.xlu0 %7589, %v7564
  %v7591 = vpop.permute.xlu0 %7590
  %7594 = vset.pattern.permute.xlu0 0
  %7595 = vperm.xlu0 %7594, %v7565
  %v7596 = vpop.permute.xlu0 %7595
  %7599 = vset.pattern.permute.xlu0 0
  %7600 = vperm.xlu0 %7599, %v7566
  %v7601 = vpop.permute.xlu0 %7600
  %7604 = vset.pattern.permute.xlu0 0
  %7605 = vperm.xlu0 %7604, %v7567
  %v7606 = vpop.permute.xlu0 %7605
  %v7608 = vadd.f32 %v7552, %v7571
  %v7609 = vadd.f32 %v7553, %v7576
  %v7610 = vadd.f32 %v7554, %v7581
  %v7611 = vadd.f32 %v7555, %v7586
  %v7612 = vadd.f32 %v7556, %v7591
  %v7613 = vadd.f32 %v7557, %v7596
  %v7614 = vadd.f32 %v7558, %v7601
  %v7615 = vadd.f32 %v7559, %v7606
  %vm7616 = vcmp.gt.f32.partialorder %v7608, 0.0
  %vm7617 = vcmp.gt.f32.partialorder %v7609, 0.0
  %vm7618 = vcmp.gt.f32.partialorder %v7610, 0.0
  %vm7619 = vcmp.gt.f32.partialorder %v7611, 0.0
  %vm7620 = vcmp.gt.f32.partialorder %v7612, 0.0
  %vm7621 = vcmp.gt.f32.partialorder %v7613, 0.0
  %vm7622 = vcmp.gt.f32.partialorder %v7614, 0.0
  %vm7623 = vcmp.gt.f32.partialorder %v7615, 0.0
  %v7624 = vmul.f32 %v7608, 0.2
  %v7625 = vmul.f32 %v7609, 0.2
  %v7626 = vmul.f32 %v7610, 0.2
  %v7627 = vmul.f32 %v7611, 0.2
  %v7628 = vmul.f32 %v7612, 0.2
  %v7629 = vmul.f32 %v7613, 0.2
  %v7630 = vmul.f32 %v7614, 0.2
  %v7631 = vmul.f32 %v7615, 0.2
  %v7632 = vsel %vm7616, %v7608, %v7624
  %v7633 = vsel %vm7617, %v7609, %v7625
  %v7634 = vsel %vm7618, %v7610, %v7626
  %v7635 = vsel %vm7619, %v7611, %v7627
  %v7636 = vsel %vm7620, %v7612, %v7628
  %v7637 = vsel %vm7621, %v7613, %v7629
  %v7638 = vsel %vm7622, %v7614, %v7630
  %v7639 = vsel %vm7623, %v7615, %v7631
  %v7640 = vld [vmem:[%s11] sm:$0xff]
  %v7641 = vld [vmem:[%s11 + $0x8] sm:$0xff]
  %v7642 = vld [vmem:[%s11 + $0x10] sm:$0xff]
  %v7643 = vld [vmem:[%s11 + $0x18] sm:$0xff]
  %v7644 = vld [vmem:[%s11 + $0x20] sm:$0xff]
  %v7645 = vld [vmem:[%s11 + $0x28] sm:$0xff]
  %v7646 = vld [vmem:[%s11 + $0x30] sm:$0xff]
  %v7647 = vld [vmem:[%s11 + $0x38] sm:$0xff]
  %v7648 = vmul.f32 %v7632, %v7640
  %v7649 = vmul.f32 %v7633, %v7641
  %v7650 = vmul.f32 %v7634, %v7642
  %v7651 = vmul.f32 %v7635, %v7643
  %v7652 = vmul.f32 %v7636, %v7644
  %v7653 = vmul.f32 %v7637, %v7645
  %v7654 = vmul.f32 %v7638, %v7646
  %v7655 = vmul.f32 %v7639, %v7647
  %v7656 = vld [vmem:[%s13] sm:$0x3]
  %v7658 = vsel %vm3796, %v7656, 0
  %7660 = vmatprep.subr.mxu0 0.0
  %7661 = vmatpush1.msra.mxu0 %v7648
  %7662 = vmatprep.subr.mxu0 0.0
  %7663 = vmatpush1.msra.mxu0 %v7649
  %7664 = vmatprep.subr.mxu0 0.0
  %7665 = vmatpush1.msra.mxu0 %v7650
  %7666 = vmatprep.subr.mxu0 0.0
  %7667 = vmatpush1.msra.mxu0 %v7651
  %7668 = vmatprep.subr.mxu0 0.0
  %7669 = vmatpush1.msra.mxu0 %v7652
  %7670 = vmatprep.subr.mxu0 0.0
  %7671 = vmatpush1.msra.mxu0 %v7653
  %7672 = vmatprep.subr.mxu0 0.0
  %7673 = vmatpush1.msra.mxu0 %v7654
  %7674 = vmatprep.subr.mxu0 0.0
  %7675 = vmatpush1.msra.mxu0 %v7655
  %7676 = vmatprep.subr.mxu0 0.0
  %7677 = vmatpush1.msra.mxu0 0.0
  %7678 = vmatprep.subr.mxu0 0.0
  %7679 = vmatpush1.msra.mxu0 0.0
  %7680 = vmatprep.subr.mxu0 0.0
  %7681 = vmatpush1.msra.mxu0 0.0
  %7682 = vmatprep.subr.mxu0 0.0
  %7683 = vmatpush1.msra.mxu0 0.0
  %7684 = vmatprep.subr.mxu0 0.0
  %7685 = vmatpush1.msra.mxu0 0.0
  %7686 = vmatprep.subr.mxu0 0.0
  %7687 = vmatpush1.msra.mxu0 0.0
  %7688 = vmatprep.subr.mxu0 0.0
  %7689 = vmatpush1.msra.mxu0 0.0
  %7690 = vmatprep.subr.mxu0 0.0
  %7691 = vmatpush1.msra.mxu0 0.0
  %7692 = vmatprep.subr.mxu0 0.0
  %7693 = vmatpush1.msra.mxu0 0.0
  %7694 = vmatprep.subr.mxu0 0.0
  %7695 = vmatpush1.msra.mxu0 0.0
  %7696 = vmatprep.subr.mxu0 0.0
  %7697 = vmatpush1.msra.mxu0 0.0
  %7698 = vmatprep.subr.mxu0 0.0
  %7699 = vmatpush1.msra.mxu0 0.0
  %7700 = vmatprep.subr.mxu0 0.0
  %7701 = vmatpush1.msra.mxu0 0.0
  %7702 = vmatprep.subr.mxu0 0.0
  %7703 = vmatpush1.msra.mxu0 0.0
  %7704 = vmatprep.subr.mxu0 0.0
  %7705 = vmatpush1.msra.mxu0 0.0
  %7706 = vmatprep.subr.mxu0 0.0
  %7707 = vmatpush1.msra.mxu0 0.0
  %7708 = vmatprep.subr.mxu0 0.0
  %7709 = vmatpush1.msra.mxu0 0.0
  %7710 = vmatprep.subr.mxu0 0.0
  %7711 = vmatpush1.msra.mxu0 0.0
  %7712 = vmatprep.subr.mxu0 0.0
  %7713 = vmatpush1.msra.mxu0 0.0
  %7714 = vmatprep.subr.mxu0 0.0
  %7715 = vmatpush1.msra.mxu0 0.0
  %7716 = vmatprep.subr.mxu0 0.0
  %7717 = vmatpush1.msra.mxu0 0.0
  %7718 = vmatprep.subr.mxu0 0.0
  %7719 = vmatpush1.msra.mxu0 0.0
  %7720 = vmatprep.subr.mxu0 0.0
  %7721 = vmatpush1.msra.mxu0 0.0
  %7722 = vmatprep.subr.mxu0 0.0
  %7723 = vmatpush1.msra.mxu0 0.0
  %7724 = vmatprep.mubr.f32.mxu0 0.0
  %7725 = vmatmul.mubr.f32.gmra.mrb[0].mxu0 %v7658
  %v7726 = vpop.f32.mrb[0].mxu0
  %v7727 = vadd.f32 0.0, %v7726
  %v7728 = vpop.f32.mrb[0].mxu0
  %7729 = vdwg.mxu0
  %vm7730 = vcmask 123904
  %v7731 = vsel %vm7730, %v7727, 0.0
  %7732 = vadd.xlane.f32.xlu0 %v7731
  %v7733 = vpop.xlane.xlu0 %7732
  %v7734 = vld [vmem:[#allocation2] sm:$0x1]
  %v7736 = vlaneseq
  %v7737 = vshrl.u32 %v7736, 7
  %v7738 = vsub.s32 0, %v7737
  %v7739 = vrot.slane %v7734, %v7738
  %v7741 = vadd.f32 %v7733, %v7739
  %v7742 = vxor.u32 %v7741, 2147483648
  %v7743 = vmul.f32 %v7742, 1.442695
  %v7744 = vpow.pop %v7743
  %v7745 = vadd.f32 %v7744, 1.0
  %v7746 = vrcp.pop %v7745
  %v7747 = vmul.f32 1.0, %v7746
  %vm7748 = vcmask 1024
  %7749 = vst.msk [vmem:[%s14] sm:$0x3] %vm7748, %v7747
  // Predicated region
  $region58: #{discriminator_forward.1} parent=0 // pred_check
    _
  $region59: #{discriminator_forward.1} parent=0 // pred_check_branch
    %7751 = sbr.rel (0) target = $region61
  $region60: #{discriminator_forward.1} parent=0 // pred_region
    _
  $region61: #{discriminator_forward.1} parent=0 // pred_fallthru
    _
  // Predicated region
  $region62: #{discriminator_forward.1} parent=0 // pred_check
    _
  $region63: #{discriminator_forward.1} parent=0 // pred_check_branch
    %7753 = sbr.rel (0) target = $region65
  $region64: #{discriminator_forward.1} parent=0 // pred_region
    _
  $region65: #{discriminator_forward.1} parent=0 // pred_fallthru
    _

</llo_original>
